<compile_context>
chip_gen: v6e
topology: v6e:2x2x1
jax: 0.10.0
libtpu: 0.0.40
codegen_flags: <defaults>
</compile_context>

<pallas_src>
import jax
import jax.numpy as jnp
from jax.experimental import pallas as pl
from jax.experimental.pallas import tpu as pltpu

# ---- model hyper-parameters (small, consistent with the module) -------------
D_MODEL = 32
NHEAD = 4
NLAYER = 2
MAX_TOKEN = 8
DFF = 2048            # PyTorch TransformerEncoderLayer default dim_feedforward
VOCAB = 16
EPS = 1e-5            # PyTorch LayerNorm default eps
HEAD_DIM = D_MODEL // NHEAD


def _layernorm(y, w, b):
    mean = jnp.mean(y, axis=-1, keepdims=True)
    var = jnp.mean((y - mean) ** 2, axis=-1, keepdims=True)
    return (y - mean) * jax.lax.rsqrt(var + EPS) * w + b


# -----------------------------------------------------------------------------
# Fused kernel: NLAYER encoder layers + final classifier head.
# x_ref: [TILE_B, L, D] f32, per-layer weights stacked along a leading axis.
# -----------------------------------------------------------------------------
def fused_forward_kernel(x_ref, mask_ref,
                         wqkv_ref, bqkv_ref, wo_ref, bo_ref,
                         ln1w_ref, ln1b_ref, ln2w_ref, ln2b_ref,
                         w1_ref, b1_ref, w2_ref, b2_ref,
                         wout_ref, bout_ref,
                         o_ref):
    TB, L, D = x_ref.shape
    rows = TB * L
    scale = HEAD_DIM ** -0.5

    x = x_ref[...].reshape(rows, D)          # [TB*L, D] f32 activations
    mask4 = mask_ref[...]                    # [H, 1, 1, D] f32 head-selection mask

    for l in range(NLAYER):                  # static unrolled loop over layers
        # --- fused QKV projection: one bf16 matmul against [D, 3D] ------------
        xb = x.astype(jnp.bfloat16)
        qkv = jnp.dot(xb, wqkv_ref[l],
                      preferred_element_type=jnp.float32) + bqkv_ref[l]
        q = qkv[:, 0:D]
        k = qkv[:, D:2 * D]
        v = qkv[:, 2 * D:3 * D]

        # --- multi-head attention via lane masks (bf16 MXU operands) ----------
        q3 = q.reshape(TB, L, D)[None]                       # [1, TB, L, D]
        v3 = v.reshape(TB, L, D)[None]
        qm = ((q3 * scale) * mask4).astype(jnp.bfloat16).reshape(NHEAD * TB, L, D)
        # K stays unmasked: the Q mask alone zeroes cross-head products in the
        # D contraction.  Broadcast K (in bf16) along the head axis.
        kb = jnp.broadcast_to(k.reshape(TB, L, D)[None].astype(jnp.bfloat16),
                              (NHEAD, TB, L, D)).reshape(NHEAD * TB, L, D)
        vm = (v3 * mask4).astype(jnp.bfloat16).reshape(NHEAD * TB, L, D)

        s = jnp.einsum('bid,bjd->bij', qm, kb,
                       preferred_element_type=jnp.float32)   # [H*TB, L, L] f32
        s = s - jnp.max(s, axis=-1, keepdims=True)
        p = jnp.exp(s)
        p = p * pl.reciprocal(jnp.sum(p, axis=-1, keepdims=True), approx=True)
        oh = jnp.einsum('bij,bjd->bid', p.astype(jnp.bfloat16), vm,
                        preferred_element_type=jnp.float32)  # [H*TB, L, D]
        # head h's output occupies only head-h lanes -> summing over heads
        # reproduces the concatenated multi-head layout.
        attn = jnp.sum(oh.reshape(NHEAD, TB, L, D), axis=0).reshape(rows, D)

        attn = jnp.dot(attn.astype(jnp.bfloat16), wo_ref[l],
                       preferred_element_type=jnp.float32) + bo_ref[l]

        # --- residual + LayerNorm 1 (f32) -------------------------------------
        y = _layernorm(x + attn, ln1w_ref[l], ln1b_ref[l])

        # --- feed-forward: bias+ReLU fused, h1 kept only as bf16 --------------
        h1 = jnp.maximum(
            jnp.dot(y.astype(jnp.bfloat16), w1_ref[l],
                    preferred_element_type=jnp.float32) + b1_ref[l],
            0.0).astype(jnp.bfloat16)
        f = jnp.dot(h1, w2_ref[l],
                    preferred_element_type=jnp.float32) + b2_ref[l]

        # --- residual + LayerNorm 2 (f32) -------------------------------------
        x = _layernorm(y + f, ln2w_ref[l], ln2b_ref[l])

    # --- final classifier: Linear(L*D -> 2) as one broadcasted VPU reduce ------
    x3 = x.reshape(TB, L, D)
    t = jnp.sum(x3[:, None, :, :] * wout_ref[...][None, :, :, :], axis=-1)  # [TB,2,L]
    o_ref[...] = jnp.sum(t, axis=-1) + bout_ref[...]                        # [TB,2]


def _pick_tile_b(B):
    # Whole batch if small; otherwise a multiple of 8 (output-block sublane
    # constraint on the [TILE_B, 2] block) that divides B.
    if B <= 8:
        return B
    for t in (64, 32, 16, 8):
        if B % t == 0:
            return t
    return B


def fused_forward(x, params):
    B, L, D = x.shape
    tile_b = _pick_tile_b(B)
    grid = (B // tile_b,)

    def _const_spec(a):
        n = a.ndim
        return pl.BlockSpec(a.shape, lambda i, n=n: (0,) * n)

    in_specs = ([pl.BlockSpec((tile_b, L, D), lambda i: (i, 0, 0))] +
                [_const_spec(a) for a in params])
    out_specs = pl.BlockSpec((tile_b, 2), lambda i: (i, 0))

    # Advisory cost estimate for XLA's scheduler.
    rows = B * L
    flops = NLAYER * (rows * (2 * D * 3 * D + 2 * D * D + 4 * D * DFF)
                      + 4 * NHEAD * B * L * L * D) + 2 * rows * D * 2
    transcendentals = NLAYER * NHEAD * B * L * L
    bytes_accessed = (sum(int(a.size) * a.dtype.itemsize for a in params)
                      + int(x.size) * 4 + B * 2 * 4)

    return pl.pallas_call(
        fused_forward_kernel,
        out_shape=jax.ShapeDtypeStruct((B, 2), jnp.float32),
        grid=grid,
        in_specs=in_specs,
        out_specs=out_specs,
        compiler_params=pltpu.CompilerParams(
            dimension_semantics=("parallel",),
            vmem_limit_bytes=32 * 1024 * 1024),
        cost_estimate=pl.CostEstimate(flops=flops,
                                      transcendentals=transcendentals,
                                      bytes_accessed=bytes_accessed),
    )(x, *params)


@jax.jit
def ad_transformer_forward(input_ids, embedding, params):
    B, seq = input_ids.shape
    # Embedding lookup glue (matches the PyTorch loop: positions >= seq keep
    # embedding[0], which equals looking up padded id 0).
    pad = jnp.zeros((B, MAX_TOKEN - seq), dtype=input_ids.dtype)
    ids = jnp.concatenate([input_ids, pad], axis=1)            # [B, L]
    x = embedding[ids].astype(jnp.float32)                     # [B, L, D]
    return fused_forward(x, params)


# -----------------------------------------------------------------------------
# Parameter construction (deterministic, PyTorch layouts, pre-transposed to
# [in, out], matmul weights pre-cast to bf16, layer params stacked on axis 0,
# QKV fused into a single [D, 3D] weight per layer).
# -----------------------------------------------------------------------------
def init_params(key):
    def nrm(k, shape, s=0.05):
        return s * jax.random.normal(k, shape, dtype=jnp.float32)

    D = D_MODEL
    keys = jax.random.split(key, 6 * NLAYER + 2)
    wqkv, bqkv = [], []
    wo, bo, w1, b1, w2, b2 = [], [], [], [], [], []
    ln1w, ln1b, ln2w, ln2b = [], [], [], []
    for l in range(NLAYER):
        k = keys[6 * l:6 * (l + 1)]
        w_in = nrm(k[0], (3 * D, D))               # in_proj_weight [3D, D]
        b_in = nrm(k[1], (3 * D,))
        wqkv.append(w_in.T)                        # [D, 3D] = [Wq.T | Wk.T | Wv.T]
        bqkv.append(b_in[None, :])                 # [1, 3D]
        wo.append(nrm(k[2], (D, D)).T)             # out_proj.weight.T
        bo.append(jnp.zeros((1, D), jnp.float32))
        w1.append(nrm(k[3], (DFF, D)).T)           # linear1.weight.T -> [D, DFF]
        b1.append(nrm(k[4], (DFF,))[None, :])
        w2.append(nrm(k[5], (D, DFF)).T)           # linear2.weight.T -> [DFF, D]
        b2.append(jnp.zeros((1, D), jnp.float32))
        ln1w.append(jnp.ones((1, D), jnp.float32))
        ln1b.append(jnp.zeros((1, D), jnp.float32))
        ln2w.append(jnp.ones((1, D), jnp.float32))
        ln2b.append(jnp.zeros((1, D), jnp.float32))

    bf = lambda xs: jnp.stack(xs).astype(jnp.bfloat16)
    f32 = lambda xs: jnp.stack(xs).astype(jnp.float32)

    # head-selection mask [H, 1, 1, D]: 1 where lane d belongs to head h.
    head_mask = (jnp.arange(D) // HEAD_DIM ==
                 jnp.arange(NHEAD)[:, None]).astype(jnp.float32)
    head_mask = head_mask.reshape(NHEAD, 1, 1, D)

    w_out = nrm(keys[-2], (2, D * MAX_TOKEN)).reshape(2, MAX_TOKEN, D)
    b_out = nrm(keys[-1], (2,))[None, :]

    return (head_mask,
            bf(wqkv), f32(bqkv), bf(wo), f32(bo),
            f32(ln1w), f32(ln1b), f32(ln2w), f32(ln2b),
            bf(w1), f32(b1), bf(w2), f32(b2),
            w_out, b_out)


# -----------------------------------------------------------------------------
# Pure-JAX reference with the same bf16-at-matmul-boundary policy but the
# conventional reshape/transpose multi-head formulation and exact f32
# softmax / attention einsums -> cross-validates the fused QKV matmul, the
# masked-head trick, bf16 attention, the fused layer loop and the classifier.
# -----------------------------------------------------------------------------
def reference_forward(input_ids, embedding, params):
    (head_mask, wqkv, bqkv, wo, bo,
     ln1w, ln1b, ln2w, ln2b, w1, b1, w2, b2, w_out, b_out) = params
    del head_mask
    B, seq = input_ids.shape
    L, D, H, hd = MAX_TOKEN, D_MODEL, NHEAD, HEAD_DIM
    pad = jnp.zeros((B, L - seq), dtype=input_ids.dtype)
    ids = jnp.concatenate([input_ids, pad], axis=1)
    x = embedding[ids].astype(jnp.float32)                    # [B, L, D]
    scale = hd ** -0.5
    for l in range(NLAYER):
        xb = x.astype(jnp.bfloat16)
        qkv = jnp.dot(xb, wqkv[l], preferred_element_type=jnp.float32) + bqkv[l]
        q, k, v = qkv[..., :D], qkv[..., D:2 * D], qkv[..., 2 * D:]
        qh = q.reshape(B, L, H, hd).transpose(0, 2, 1, 3)
        kh = k.reshape(B, L, H, hd).transpose(0, 2, 1, 3)
        vh = v.reshape(B, L, H, hd).transpose(0, 2, 1, 3)
        s = jnp.einsum('bhid,bhjd->bhij', qh * scale, kh)
        p = jax.nn.softmax(s, axis=-1)
        a = jnp.einsum('bhij,bhjd->bhid', p, vh)
        a = a.transpose(0, 2, 1, 3).reshape(B, L, D)
        a = jnp.dot(a.astype(jnp.bfloat16), wo[l],
                    preferred_element_type=jnp.float32) + bo[l]
        y = _layernorm(x + a, ln1w[l], ln1b[l])
        h1 = jnp.maximum(jnp.dot(y.astype(jnp.bfloat16), w1[l],
                                 preferred_element_type=jnp.float32) + b1[l], 0.0)
        f = jnp.dot(h1.astype(jnp.bfloat16), w2[l],
                    preferred_element_type=jnp.float32) + b2[l]
        x = _layernorm(y + f, ln2w[l], ln2b[l])
    return jnp.einsum('bld,cld->bc', x, w_out) + b_out


if __name__ == "__main__":
    key = jax.random.PRNGKey(0)
    k_emb, k_ids, k_par = jax.random.split(key, 3)

    embedding = 0.1 * jax.random.normal(k_emb, (VOCAB, D_MODEL), dtype=jnp.float32)
    B, seq_len = 2, 6
    input_ids = jax.random.randint(k_ids, (B, seq_len), 1, VOCAB, dtype=jnp.int32)

    params = init_params(k_par)

    out = ad_transformer_forward(input_ids, embedding, params)
    out = jax.block_until_ready(out)

    ref = reference_forward(input_ids, embedding, params)
    assert out.shape == (B, 2)
    # Tolerance covers MXU vs XLA accumulation-order / precision-mode
    # differences; both paths use the same bf16-at-matmul-boundary numerics
    # (the kernel additionally runs attention einsums in bf16 and an approx
    # reciprocal in softmax).
    assert jnp.allclose(out, ref, rtol=2e-2, atol=2e-2), (out, ref)

    print("KERNEL_OK")
</pallas_src>

<mosaic_0001>
module attributes {stable_mosaic.version = 11 : i64} {
  func.func @fused_forward_kernel(%arg0: i32, %arg1: memref<2x8x32xf32, #tpu.memory_space<vmem>>, %arg2: memref<4x1x1x32xf32, #tpu.memory_space<vmem>>, %arg3: memref<2x32x96xbf16, #tpu.memory_space<vmem>>, %arg4: memref<2x1x96xf32, #tpu.memory_space<vmem>>, %arg5: memref<2x32x32xbf16, #tpu.memory_space<vmem>>, %arg6: memref<2x1x32xf32, #tpu.memory_space<vmem>>, %arg7: memref<2x1x32xf32, #tpu.memory_space<vmem>>, %arg8: memref<2x1x32xf32, #tpu.memory_space<vmem>>, %arg9: memref<2x1x32xf32, #tpu.memory_space<vmem>>, %arg10: memref<2x1x32xf32, #tpu.memory_space<vmem>>, %arg11: memref<2x32x2048xbf16, #tpu.memory_space<vmem>>, %arg12: memref<2x1x2048xf32, #tpu.memory_space<vmem>>, %arg13: memref<2x2048x32xbf16, #tpu.memory_space<vmem>>, %arg14: memref<2x1x32xf32, #tpu.memory_space<vmem>>, %arg15: memref<2x8x32xf32, #tpu.memory_space<vmem>>, %arg16: memref<1x2xf32, #tpu.memory_space<vmem>>, %arg17: memref<2x2xf32, #tpu.memory_space<vmem>>) attributes {dimension_semantics = [#tpu.dimension_semantics<parallel>], iteration_bounds = array<i64: 1>, scalar_prefetch = 0 : i64, scratch_operands = 0 : i64, tpu.core_type = #tpu.core_type<tc>, window_params = [{transform_indices = @transform_0, window_bounds = array<i64: 2, 8, 32>}, {pipeline_mode = #tpu.pipeline_mode<synchronous>, transform_indices = @transform_1, window_bounds = array<i64: 4, 1, 1, 32>}, {pipeline_mode = #tpu.pipeline_mode<synchronous>, transform_indices = @transform_2, window_bounds = array<i64: 2, 32, 96>}, {pipeline_mode = #tpu.pipeline_mode<synchronous>, transform_indices = @transform_3, window_bounds = array<i64: 2, 1, 96>}, {pipeline_mode = #tpu.pipeline_mode<synchronous>, transform_indices = @transform_4, window_bounds = array<i64: 2, 32, 32>}, {pipeline_mode = #tpu.pipeline_mode<synchronous>, transform_indices = @transform_5, window_bounds = array<i64: 2, 1, 32>}, {pipeline_mode = #tpu.pipeline_mode<synchronous>, transform_indices = @transform_6, window_bounds = array<i64: 2, 1, 32>}, {pipeline_mode = #tpu.pipeline_mode<synchronous>, transform_indices = @transform_7, window_bounds = array<i64: 2, 1, 32>}, {pipeline_mode = #tpu.pipeline_mode<synchronous>, transform_indices = @transform_8, window_bounds = array<i64: 2, 1, 32>}, {pipeline_mode = #tpu.pipeline_mode<synchronous>, transform_indices = @transform_9, window_bounds = array<i64: 2, 1, 32>}, {pipeline_mode = #tpu.pipeline_mode<synchronous>, transform_indices = @transform_10, window_bounds = array<i64: 2, 32, 2048>}, {pipeline_mode = #tpu.pipeline_mode<synchronous>, transform_indices = @transform_11, window_bounds = array<i64: 2, 1, 2048>}, {pipeline_mode = #tpu.pipeline_mode<synchronous>, transform_indices = @transform_12, window_bounds = array<i64: 2, 2048, 32>}, {pipeline_mode = #tpu.pipeline_mode<synchronous>, transform_indices = @transform_13, window_bounds = array<i64: 2, 1, 32>}, {pipeline_mode = #tpu.pipeline_mode<synchronous>, transform_indices = @transform_14, window_bounds = array<i64: 2, 8, 32>}, {pipeline_mode = #tpu.pipeline_mode<synchronous>, transform_indices = @transform_15, window_bounds = array<i64: 1, 2>}, {transform_indices = @transform_16, window_bounds = array<i64: 2, 2>}]} {
    %c0 = arith.constant 0 : index
    %c0_0 = arith.constant 0 : index
    %c0_1 = arith.constant 0 : index
    %0 = vector.load %arg1[%c0, %c0_0, %c0_1] : memref<2x8x32xf32, #tpu.memory_space<vmem>>, vector<2x8x32xf32>
    %1 = vector.shape_cast %0 : vector<2x8x32xf32> to vector<16x32xf32>
    %c0_2 = arith.constant 0 : index
    %c0_3 = arith.constant 0 : index
    %c0_4 = arith.constant 0 : index
    %c0_5 = arith.constant 0 : index
    %2 = vector.load %arg2[%c0_2, %c0_3, %c0_4, %c0_5] : memref<4x1x1x32xf32, #tpu.memory_space<vmem>>, vector<4x1x1x32xf32>
    %3 = arith.truncf %1 : vector<16x32xf32> to vector<16x32xbf16>
    %c0_6 = arith.constant 0 : index
    %c0_7 = arith.constant 0 : index
    %c0_8 = arith.constant 0 : index
    %4 = vector.load %arg3[%c0_6, %c0_7, %c0_8] : memref<2x32x96xbf16, #tpu.memory_space<vmem>>, vector<1x32x96xbf16>
    %5 = vector.shape_cast %4 : vector<1x32x96xbf16> to vector<32x96xbf16>
    %cst = arith.constant dense<0.000000e+00> : vector<16x96xf32>
    %6 = tpu.matmul %3, %5, %cst {dimension_numbers = #tpu.dot_dimension_numbers<[1], [0], [0], [1], [0, 0, 1, 1], [], []>} : vector<16x32xbf16>, vector<32x96xbf16>, vector<16x96xf32> -> vector<16x96xf32>
    %c0_9 = arith.constant 0 : index
    %c0_10 = arith.constant 0 : index
    %c0_11 = arith.constant 0 : index
    %7 = vector.load %arg4[%c0_9, %c0_10, %c0_11] : memref<2x1x96xf32, #tpu.memory_space<vmem>>, vector<1x1x96xf32>
    %8 = vector.shape_cast %7 : vector<1x1x96xf32> to vector<1x96xf32>
    %9 = vector.broadcast %8 : vector<1x96xf32> to vector<16x96xf32>
    %10 = arith.addf %6, %9 : vector<16x96xf32>
    %11 = vector.extract_strided_slice %10 {offsets = [0, 0], sizes = [16, 32], strides = [1, 1]} : vector<16x96xf32> to vector<16x32xf32>
    %12 = vector.extract_strided_slice %10 {offsets = [0, 32], sizes = [16, 32], strides = [1, 1]} : vector<16x96xf32> to vector<16x32xf32>
    %13 = vector.extract_strided_slice %10 {offsets = [0, 64], sizes = [16, 32], strides = [1, 1]} : vector<16x96xf32> to vector<16x32xf32>
    %14 = vector.shape_cast %11 : vector<16x32xf32> to vector<2x8x32xf32>
    %15 = vector.shape_cast %14 : vector<2x8x32xf32> to vector<1x2x8x32xf32>
    %16 = vector.shape_cast %13 : vector<16x32xf32> to vector<2x8x32xf32>
    %17 = vector.shape_cast %16 : vector<2x8x32xf32> to vector<1x2x8x32xf32>
    %cst_12 = arith.constant 0.353553385 : f32
    %18 = vector.broadcast %cst_12 : f32 to vector<1x2x8x32xf32>
    %19 = arith.mulf %15, %18 : vector<1x2x8x32xf32>
    %20 = vector.broadcast %19 : vector<1x2x8x32xf32> to vector<4x2x8x32xf32>
    %21 = vector.broadcast %2 : vector<4x1x1x32xf32> to vector<4x2x8x32xf32>
    %22 = arith.mulf %20, %21 : vector<4x2x8x32xf32>
    %23 = arith.truncf %22 : vector<4x2x8x32xf32> to vector<4x2x8x32xbf16>
    %24 = vector.shape_cast %23 : vector<4x2x8x32xbf16> to vector<8x8x32xbf16>
    %25 = vector.shape_cast %12 : vector<16x32xf32> to vector<2x8x32xf32>
    %26 = vector.shape_cast %25 : vector<2x8x32xf32> to vector<1x2x8x32xf32>
    %27 = arith.truncf %26 : vector<1x2x8x32xf32> to vector<1x2x8x32xbf16>
    %28 = vector.shape_cast %27 : vector<1x2x8x32xbf16> to vector<1x2x8x32xbf16>
    %29 = vector.broadcast %28 : vector<1x2x8x32xbf16> to vector<4x2x8x32xbf16>
    %30 = vector.shape_cast %29 : vector<4x2x8x32xbf16> to vector<8x8x32xbf16>
    %31 = vector.broadcast %17 : vector<1x2x8x32xf32> to vector<4x2x8x32xf32>
    %32 = vector.broadcast %2 : vector<4x1x1x32xf32> to vector<4x2x8x32xf32>
    %33 = arith.mulf %31, %32 : vector<4x2x8x32xf32>
    %34 = arith.truncf %33 : vector<4x2x8x32xf32> to vector<4x2x8x32xbf16>
    %35 = vector.shape_cast %34 : vector<4x2x8x32xbf16> to vector<8x8x32xbf16>
    "tpu.trace_start"() <{level = 10 : i32, message = "bid,bjd->bij"}> : () -> ()
    %cst_13 = arith.constant dense<0.000000e+00> : vector<8x8x8xf32>
    %36 = tpu.matmul %24, %30, %cst_13 {dimension_numbers = #tpu.dot_dimension_numbers<[2], [2], [1], [1], [0, 0, 0, 1, 1, 1], [0], [0]>} : vector<8x8x32xbf16>, vector<8x8x32xbf16>, vector<8x8x8xf32> -> vector<8x8x8xf32>
    "tpu.trace_stop"() : () -> ()
    %cst_14 = arith.constant dense<0xFF800000> : vector<8x8xf32>
    %37 = vector.multi_reduction <maximumf>, %36, %cst_14 [2] : vector<8x8x8xf32> to vector<8x8xf32>
    %38 = vector.shape_cast %37 : vector<8x8xf32> to vector<8x8x1xf32>
    %39 = vector.broadcast %38 : vector<8x8x1xf32> to vector<8x8x8xf32>
    %40 = arith.subf %36, %39 : vector<8x8x8xf32>
    %41 = math.exp %40 : vector<8x8x8xf32>
    %cst_15 = arith.constant dense<0.000000e+00> : vector<8x8xf32>
    %42 = vector.multi_reduction <add>, %41, %cst_15 [2] : vector<8x8x8xf32> to vector<8x8xf32>
    %43 = vector.shape_cast %42 : vector<8x8xf32> to vector<8x8x1xf32>
    %44 = tpu.reciprocal %43 {approx = true} : vector<8x8x1xf32> -> vector<8x8x1xf32>
    %45 = vector.broadcast %44 : vector<8x8x1xf32> to vector<8x8x8xf32>
    %46 = arith.mulf %41, %45 : vector<8x8x8xf32>
    %47 = arith.truncf %46 : vector<8x8x8xf32> to vector<8x8x8xbf16>
    "tpu.trace_start"() <{level = 10 : i32, message = "bij,bjd->bid"}> : () -> ()
    %cst_16 = arith.constant dense<0.000000e+00> : vector<8x8x32xf32>
    %48 = tpu.matmul %47, %35, %cst_16 {dimension_numbers = #tpu.dot_dimension_numbers<[2], [1], [1], [2], [0, 0, 0, 1, 1, 2], [0], [0]>} : vector<8x8x8xbf16>, vector<8x8x32xbf16>, vector<8x8x32xf32> -> vector<8x8x32xf32>
    "tpu.trace_stop"() : () -> ()
    %49 = vector.shape_cast %48 : vector<8x8x32xf32> to vector<4x2x8x32xf32>
    %cst_17 = arith.constant dense<0.000000e+00> : vector<2x8x32xf32>
    %50 = vector.multi_reduction <add>, %49, %cst_17 [0] : vector<4x2x8x32xf32> to vector<2x8x32xf32>
    %51 = vector.shape_cast %50 : vector<2x8x32xf32> to vector<16x32xf32>
    %52 = arith.truncf %51 : vector<16x32xf32> to vector<16x32xbf16>
    %c0_18 = arith.constant 0 : index
    %c0_19 = arith.constant 0 : index
    %c0_20 = arith.constant 0 : index
    %53 = vector.load %arg5[%c0_18, %c0_19, %c0_20] : memref<2x32x32xbf16, #tpu.memory_space<vmem>>, vector<1x32x32xbf16>
    %54 = vector.shape_cast %53 : vector<1x32x32xbf16> to vector<32x32xbf16>
    %cst_21 = arith.constant dense<0.000000e+00> : vector<16x32xf32>
    %55 = tpu.matmul %52, %54, %cst_21 {dimension_numbers = #tpu.dot_dimension_numbers<[1], [0], [0], [1], [0, 0, 1, 1], [], []>} : vector<16x32xbf16>, vector<32x32xbf16>, vector<16x32xf32> -> vector<16x32xf32>
    %c0_22 = arith.constant 0 : index
    %c0_23 = arith.constant 0 : index
    %c0_24 = arith.constant 0 : index
    %56 = vector.load %arg6[%c0_22, %c0_23, %c0_24] : memref<2x1x32xf32, #tpu.memory_space<vmem>>, vector<1x1x32xf32>
    %57 = vector.shape_cast %56 : vector<1x1x32xf32> to vector<1x32xf32>
    %58 = vector.broadcast %57 : vector<1x32xf32> to vector<16x32xf32>
    %59 = arith.addf %55, %58 : vector<16x32xf32>
    %60 = arith.addf %1, %59 : vector<16x32xf32>
    %c0_25 = arith.constant 0 : index
    %c0_26 = arith.constant 0 : index
    %c0_27 = arith.constant 0 : index
    %61 = vector.load %arg7[%c0_25, %c0_26, %c0_27] : memref<2x1x32xf32, #tpu.memory_space<vmem>>, vector<1x1x32xf32>
    %62 = vector.shape_cast %61 : vector<1x1x32xf32> to vector<1x32xf32>
    %c0_28 = arith.constant 0 : index
    %c0_29 = arith.constant 0 : index
    %c0_30 = arith.constant 0 : index
    %63 = vector.load %arg8[%c0_28, %c0_29, %c0_30] : memref<2x1x32xf32, #tpu.memory_space<vmem>>, vector<1x1x32xf32>
    %64 = vector.shape_cast %63 : vector<1x1x32xf32> to vector<1x32xf32>
    %cst_31 = arith.constant dense<0.000000e+00> : vector<16xf32>
    %65 = vector.multi_reduction <add>, %60, %cst_31 [1] : vector<16x32xf32> to vector<16xf32>
    %66 = vector.shape_cast %65 : vector<16xf32> to vector<16x1xf32>
    %cst_32 = arith.constant 3.200000e+01 : f32
    %67 = vector.broadcast %cst_32 : f32 to vector<16x1xf32>
    %68 = arith.divf %66, %67 : vector<16x1xf32>
    %69 = vector.broadcast %68 : vector<16x1xf32> to vector<16x32xf32>
    %70 = arith.subf %60, %69 : vector<16x32xf32>
    %71 = arith.mulf %70, %70 : vector<16x32xf32>
    %cst_33 = arith.constant dense<0.000000e+00> : vector<16xf32>
    %72 = vector.multi_reduction <add>, %71, %cst_33 [1] : vector<16x32xf32> to vector<16xf32>
    %73 = vector.shape_cast %72 : vector<16xf32> to vector<16x1xf32>
    %cst_34 = arith.constant 3.200000e+01 : f32
    %74 = vector.broadcast %cst_34 : f32 to vector<16x1xf32>
    %75 = arith.divf %73, %74 : vector<16x1xf32>
    %76 = vector.broadcast %68 : vector<16x1xf32> to vector<16x32xf32>
    %77 = arith.subf %60, %76 : vector<16x32xf32>
    %cst_35 = arith.constant 9.99999974E-6 : f32
    %78 = vector.broadcast %cst_35 : f32 to vector<16x1xf32>
    %79 = arith.addf %75, %78 : vector<16x1xf32>
    %80 = math.rsqrt %79 : vector<16x1xf32>
    %81 = vector.broadcast %80 : vector<16x1xf32> to vector<16x32xf32>
    %82 = arith.mulf %77, %81 : vector<16x32xf32>
    %83 = vector.broadcast %62 : vector<1x32xf32> to vector<16x32xf32>
    %84 = arith.mulf %82, %83 : vector<16x32xf32>
    %85 = vector.broadcast %64 : vector<1x32xf32> to vector<16x32xf32>
    %86 = arith.addf %84, %85 : vector<16x32xf32>
    %87 = arith.truncf %86 : vector<16x32xf32> to vector<16x32xbf16>
    %c0_36 = arith.constant 0 : index
    %c0_37 = arith.constant 0 : index
    %c0_38 = arith.constant 0 : index
    %88 = vector.load %arg11[%c0_36, %c0_37, %c0_38] : memref<2x32x2048xbf16, #tpu.memory_space<vmem>>, vector<1x32x2048xbf16>
    %89 = vector.shape_cast %88 : vector<1x32x2048xbf16> to vector<32x2048xbf16>
    %cst_39 = arith.constant dense<0.000000e+00> : vector<16x2048xf32>
    %90 = tpu.matmul %87, %89, %cst_39 {dimension_numbers = #tpu.dot_dimension_numbers<[1], [0], [0], [1], [0, 0, 1, 1], [], []>} : vector<16x32xbf16>, vector<32x2048xbf16>, vector<16x2048xf32> -> vector<16x2048xf32>
    %c0_40 = arith.constant 0 : index
    %c0_41 = arith.constant 0 : index
    %c0_42 = arith.constant 0 : index
    %91 = vector.load %arg12[%c0_40, %c0_41, %c0_42] : memref<2x1x2048xf32, #tpu.memory_space<vmem>>, vector<1x1x2048xf32>
    %92 = vector.shape_cast %91 : vector<1x1x2048xf32> to vector<1x2048xf32>
    %93 = vector.broadcast %92 : vector<1x2048xf32> to vector<16x2048xf32>
    %94 = arith.addf %90, %93 : vector<16x2048xf32>
    %cst_43 = arith.constant 0.000000e+00 : f32
    %95 = vector.broadcast %cst_43 : f32 to vector<16x2048xf32>
    %96 = arith.maximumf %94, %95 : vector<16x2048xf32>
    %97 = arith.truncf %96 : vector<16x2048xf32> to vector<16x2048xbf16>
    %c0_44 = arith.constant 0 : index
    %c0_45 = arith.constant 0 : index
    %c0_46 = arith.constant 0 : index
    %98 = vector.load %arg13[%c0_44, %c0_45, %c0_46] : memref<2x2048x32xbf16, #tpu.memory_space<vmem>>, vector<1x2048x32xbf16>
    %99 = vector.shape_cast %98 : vector<1x2048x32xbf16> to vector<2048x32xbf16>
    %cst_47 = arith.constant dense<0.000000e+00> : vector<16x32xf32>
    %100 = tpu.matmul %97, %99, %cst_47 {dimension_numbers = #tpu.dot_dimension_numbers<[1], [0], [0], [1], [0, 0, 1, 1], [], []>} : vector<16x2048xbf16>, vector<2048x32xbf16>, vector<16x32xf32> -> vector<16x32xf32>
    %c0_48 = arith.constant 0 : index
    %c0_49 = arith.constant 0 : index
    %c0_50 = arith.constant 0 : index
    %101 = vector.load %arg14[%c0_48, %c0_49, %c0_50] : memref<2x1x32xf32, #tpu.memory_space<vmem>>, vector<1x1x32xf32>
    %102 = vector.shape_cast %101 : vector<1x1x32xf32> to vector<1x32xf32>
    %103 = vector.broadcast %102 : vector<1x32xf32> to vector<16x32xf32>
    %104 = arith.addf %100, %103 : vector<16x32xf32>
    %105 = arith.addf %86, %104 : vector<16x32xf32>
    %c0_51 = arith.constant 0 : index
    %c0_52 = arith.constant 0 : index
    %c0_53 = arith.constant 0 : index
    %106 = vector.load %arg9[%c0_51, %c0_52, %c0_53] : memref<2x1x32xf32, #tpu.memory_space<vmem>>, vector<1x1x32xf32>
    %107 = vector.shape_cast %106 : vector<1x1x32xf32> to vector<1x32xf32>
    %c0_54 = arith.constant 0 : index
    %c0_55 = arith.constant 0 : index
    %c0_56 = arith.constant 0 : index
    %108 = vector.load %arg10[%c0_54, %c0_55, %c0_56] : memref<2x1x32xf32, #tpu.memory_space<vmem>>, vector<1x1x32xf32>
    %109 = vector.shape_cast %108 : vector<1x1x32xf32> to vector<1x32xf32>
    %cst_57 = arith.constant dense<0.000000e+00> : vector<16xf32>
    %110 = vector.multi_reduction <add>, %105, %cst_57 [1] : vector<16x32xf32> to vector<16xf32>
    %111 = vector.shape_cast %110 : vector<16xf32> to vector<16x1xf32>
    %cst_58 = arith.constant 3.200000e+01 : f32
    %112 = vector.broadcast %cst_58 : f32 to vector<16x1xf32>
    %113 = arith.divf %111, %112 : vector<16x1xf32>
    %114 = vector.broadcast %113 : vector<16x1xf32> to vector<16x32xf32>
    %115 = arith.subf %105, %114 : vector<16x32xf32>
    %116 = arith.mulf %115, %115 : vector<16x32xf32>
    %cst_59 = arith.constant dense<0.000000e+00> : vector<16xf32>
    %117 = vector.multi_reduction <add>, %116, %cst_59 [1] : vector<16x32xf32> to vector<16xf32>
    %118 = vector.shape_cast %117 : vector<16xf32> to vector<16x1xf32>
    %cst_60 = arith.constant 3.200000e+01 : f32
    %119 = vector.broadcast %cst_60 : f32 to vector<16x1xf32>
    %120 = arith.divf %118, %119 : vector<16x1xf32>
    %121 = vector.broadcast %113 : vector<16x1xf32> to vector<16x32xf32>
    %122 = arith.subf %105, %121 : vector<16x32xf32>
    %cst_61 = arith.constant 9.99999974E-6 : f32
    %123 = vector.broadcast %cst_61 : f32 to vector<16x1xf32>
    %124 = arith.addf %120, %123 : vector<16x1xf32>
    %125 = math.rsqrt %124 : vector<16x1xf32>
    %126 = vector.broadcast %125 : vector<16x1xf32> to vector<16x32xf32>
    %127 = arith.mulf %122, %126 : vector<16x32xf32>
    %128 = vector.broadcast %107 : vector<1x32xf32> to vector<16x32xf32>
    %129 = arith.mulf %127, %128 : vector<16x32xf32>
    %130 = vector.broadcast %109 : vector<1x32xf32> to vector<16x32xf32>
    %131 = arith.addf %129, %130 : vector<16x32xf32>
    %132 = arith.truncf %131 : vector<16x32xf32> to vector<16x32xbf16>
    %c1 = arith.constant 1 : index
    %c0_62 = arith.constant 0 : index
    %c0_63 = arith.constant 0 : index
    %133 = vector.load %arg3[%c1, %c0_62, %c0_63] : memref<2x32x96xbf16, #tpu.memory_space<vmem>>, vector<1x32x96xbf16>
    %134 = vector.shape_cast %133 : vector<1x32x96xbf16> to vector<32x96xbf16>
    %cst_64 = arith.constant dense<0.000000e+00> : vector<16x96xf32>
    %135 = tpu.matmul %132, %134, %cst_64 {dimension_numbers = #tpu.dot_dimension_numbers<[1], [0], [0], [1], [0, 0, 1, 1], [], []>} : vector<16x32xbf16>, vector<32x96xbf16>, vector<16x96xf32> -> vector<16x96xf32>
    %c1_65 = arith.constant 1 : index
    %c0_66 = arith.constant 0 : index
    %c0_67 = arith.constant 0 : index
    %136 = vector.load %arg4[%c1_65, %c0_66, %c0_67] : memref<2x1x96xf32, #tpu.memory_space<vmem>>, vector<1x1x96xf32>
    %137 = vector.shape_cast %136 : vector<1x1x96xf32> to vector<1x96xf32>
    %138 = vector.broadcast %137 : vector<1x96xf32> to vector<16x96xf32>
    %139 = arith.addf %135, %138 : vector<16x96xf32>
    %140 = vector.extract_strided_slice %139 {offsets = [0, 0], sizes = [16, 32], strides = [1, 1]} : vector<16x96xf32> to vector<16x32xf32>
    %141 = vector.extract_strided_slice %139 {offsets = [0, 32], sizes = [16, 32], strides = [1, 1]} : vector<16x96xf32> to vector<16x32xf32>
    %142 = vector.extract_strided_slice %139 {offsets = [0, 64], sizes = [16, 32], strides = [1, 1]} : vector<16x96xf32> to vector<16x32xf32>
    %143 = vector.shape_cast %140 : vector<16x32xf32> to vector<2x8x32xf32>
    %144 = vector.shape_cast %143 : vector<2x8x32xf32> to vector<1x2x8x32xf32>
    %145 = vector.shape_cast %142 : vector<16x32xf32> to vector<2x8x32xf32>
    %146 = vector.shape_cast %145 : vector<2x8x32xf32> to vector<1x2x8x32xf32>
    %cst_68 = arith.constant 0.353553385 : f32
    %147 = vector.broadcast %cst_68 : f32 to vector<1x2x8x32xf32>
    %148 = arith.mulf %144, %147 : vector<1x2x8x32xf32>
    %149 = vector.broadcast %148 : vector<1x2x8x32xf32> to vector<4x2x8x32xf32>
    %150 = vector.broadcast %2 : vector<4x1x1x32xf32> to vector<4x2x8x32xf32>
    %151 = arith.mulf %149, %150 : vector<4x2x8x32xf32>
    %152 = arith.truncf %151 : vector<4x2x8x32xf32> to vector<4x2x8x32xbf16>
    %153 = vector.shape_cast %152 : vector<4x2x8x32xbf16> to vector<8x8x32xbf16>
    %154 = vector.shape_cast %141 : vector<16x32xf32> to vector<2x8x32xf32>
    %155 = vector.shape_cast %154 : vector<2x8x32xf32> to vector<1x2x8x32xf32>
    %156 = arith.truncf %155 : vector<1x2x8x32xf32> to vector<1x2x8x32xbf16>
    %157 = vector.shape_cast %156 : vector<1x2x8x32xbf16> to vector<1x2x8x32xbf16>
    %158 = vector.broadcast %157 : vector<1x2x8x32xbf16> to vector<4x2x8x32xbf16>
    %159 = vector.shape_cast %158 : vector<4x2x8x32xbf16> to vector<8x8x32xbf16>
    %160 = vector.broadcast %146 : vector<1x2x8x32xf32> to vector<4x2x8x32xf32>
    %161 = vector.broadcast %2 : vector<4x1x1x32xf32> to vector<4x2x8x32xf32>
    %162 = arith.mulf %160, %161 : vector<4x2x8x32xf32>
    %163 = arith.truncf %162 : vector<4x2x8x32xf32> to vector<4x2x8x32xbf16>
    %164 = vector.shape_cast %163 : vector<4x2x8x32xbf16> to vector<8x8x32xbf16>
    "tpu.trace_start"() <{level = 10 : i32, message = "bid,bjd->bij"}> : () -> ()
    %cst_69 = arith.constant dense<0.000000e+00> : vector<8x8x8xf32>
    %165 = tpu.matmul %153, %159, %cst_69 {dimension_numbers = #tpu.dot_dimension_numbers<[2], [2], [1], [1], [0, 0, 0, 1, 1, 1], [0], [0]>} : vector<8x8x32xbf16>, vector<8x8x32xbf16>, vector<8x8x8xf32> -> vector<8x8x8xf32>
    "tpu.trace_stop"() : () -> ()
    %cst_70 = arith.constant dense<0xFF800000> : vector<8x8xf32>
    %166 = vector.multi_reduction <maximumf>, %165, %cst_70 [2] : vector<8x8x8xf32> to vector<8x8xf32>
    %167 = vector.shape_cast %166 : vector<8x8xf32> to vector<8x8x1xf32>
    %168 = vector.broadcast %167 : vector<8x8x1xf32> to vector<8x8x8xf32>
    %169 = arith.subf %165, %168 : vector<8x8x8xf32>
    %170 = math.exp %169 : vector<8x8x8xf32>
    %cst_71 = arith.constant dense<0.000000e+00> : vector<8x8xf32>
    %171 = vector.multi_reduction <add>, %170, %cst_71 [2] : vector<8x8x8xf32> to vector<8x8xf32>
    %172 = vector.shape_cast %171 : vector<8x8xf32> to vector<8x8x1xf32>
    %173 = tpu.reciprocal %172 {approx = true} : vector<8x8x1xf32> -> vector<8x8x1xf32>
    %174 = vector.broadcast %173 : vector<8x8x1xf32> to vector<8x8x8xf32>
    %175 = arith.mulf %170, %174 : vector<8x8x8xf32>
    %176 = arith.truncf %175 : vector<8x8x8xf32> to vector<8x8x8xbf16>
    "tpu.trace_start"() <{level = 10 : i32, message = "bij,bjd->bid"}> : () -> ()
    %cst_72 = arith.constant dense<0.000000e+00> : vector<8x8x32xf32>
    %177 = tpu.matmul %176, %164, %cst_72 {dimension_numbers = #tpu.dot_dimension_numbers<[2], [1], [1], [2], [0, 0, 0, 1, 1, 2], [0], [0]>} : vector<8x8x8xbf16>, vector<8x8x32xbf16>, vector<8x8x32xf32> -> vector<8x8x32xf32>
    "tpu.trace_stop"() : () -> ()
    %178 = vector.shape_cast %177 : vector<8x8x32xf32> to vector<4x2x8x32xf32>
    %cst_73 = arith.constant dense<0.000000e+00> : vector<2x8x32xf32>
    %179 = vector.multi_reduction <add>, %178, %cst_73 [0] : vector<4x2x8x32xf32> to vector<2x8x32xf32>
    %180 = vector.shape_cast %179 : vector<2x8x32xf32> to vector<16x32xf32>
    %181 = arith.truncf %180 : vector<16x32xf32> to vector<16x32xbf16>
    %c1_74 = arith.constant 1 : index
    %c0_75 = arith.constant 0 : index
    %c0_76 = arith.constant 0 : index
    %182 = vector.load %arg5[%c1_74, %c0_75, %c0_76] : memref<2x32x32xbf16, #tpu.memory_space<vmem>>, vector<1x32x32xbf16>
    %183 = vector.shape_cast %182 : vector<1x32x32xbf16> to vector<32x32xbf16>
    %cst_77 = arith.constant dense<0.000000e+00> : vector<16x32xf32>
    %184 = tpu.matmul %181, %183, %cst_77 {dimension_numbers = #tpu.dot_dimension_numbers<[1], [0], [0], [1], [0, 0, 1, 1], [], []>} : vector<16x32xbf16>, vector<32x32xbf16>, vector<16x32xf32> -> vector<16x32xf32>
    %c1_78 = arith.constant 1 : index
    %c0_79 = arith.constant 0 : index
    %c0_80 = arith.constant 0 : index
    %185 = vector.load %arg6[%c1_78, %c0_79, %c0_80] : memref<2x1x32xf32, #tpu.memory_space<vmem>>, vector<1x1x32xf32>
    %186 = vector.shape_cast %185 : vector<1x1x32xf32> to vector<1x32xf32>
    %187 = vector.broadcast %186 : vector<1x32xf32> to vector<16x32xf32>
    %188 = arith.addf %184, %187 : vector<16x32xf32>
    %189 = arith.addf %131, %188 : vector<16x32xf32>
    %c1_81 = arith.constant 1 : index
    %c0_82 = arith.constant 0 : index
    %c0_83 = arith.constant 0 : index
    %190 = vector.load %arg7[%c1_81, %c0_82, %c0_83] : memref<2x1x32xf32, #tpu.memory_space<vmem>>, vector<1x1x32xf32>
    %191 = vector.shape_cast %190 : vector<1x1x32xf32> to vector<1x32xf32>
    %c1_84 = arith.constant 1 : index
    %c0_85 = arith.constant 0 : index
    %c0_86 = arith.constant 0 : index
    %192 = vector.load %arg8[%c1_84, %c0_85, %c0_86] : memref<2x1x32xf32, #tpu.memory_space<vmem>>, vector<1x1x32xf32>
    %193 = vector.shape_cast %192 : vector<1x1x32xf32> to vector<1x32xf32>
    %cst_87 = arith.constant dense<0.000000e+00> : vector<16xf32>
    %194 = vector.multi_reduction <add>, %189, %cst_87 [1] : vector<16x32xf32> to vector<16xf32>
    %195 = vector.shape_cast %194 : vector<16xf32> to vector<16x1xf32>
    %cst_88 = arith.constant 3.200000e+01 : f32
    %196 = vector.broadcast %cst_88 : f32 to vector<16x1xf32>
    %197 = arith.divf %195, %196 : vector<16x1xf32>
    %198 = vector.broadcast %197 : vector<16x1xf32> to vector<16x32xf32>
    %199 = arith.subf %189, %198 : vector<16x32xf32>
    %200 = arith.mulf %199, %199 : vector<16x32xf32>
    %cst_89 = arith.constant dense<0.000000e+00> : vector<16xf32>
    %201 = vector.multi_reduction <add>, %200, %cst_89 [1] : vector<16x32xf32> to vector<16xf32>
    %202 = vector.shape_cast %201 : vector<16xf32> to vector<16x1xf32>
    %cst_90 = arith.constant 3.200000e+01 : f32
    %203 = vector.broadcast %cst_90 : f32 to vector<16x1xf32>
    %204 = arith.divf %202, %203 : vector<16x1xf32>
    %205 = vector.broadcast %197 : vector<16x1xf32> to vector<16x32xf32>
    %206 = arith.subf %189, %205 : vector<16x32xf32>
    %cst_91 = arith.constant 9.99999974E-6 : f32
    %207 = vector.broadcast %cst_91 : f32 to vector<16x1xf32>
    %208 = arith.addf %204, %207 : vector<16x1xf32>
    %209 = math.rsqrt %208 : vector<16x1xf32>
    %210 = vector.broadcast %209 : vector<16x1xf32> to vector<16x32xf32>
    %211 = arith.mulf %206, %210 : vector<16x32xf32>
    %212 = vector.broadcast %191 : vector<1x32xf32> to vector<16x32xf32>
    %213 = arith.mulf %211, %212 : vector<16x32xf32>
    %214 = vector.broadcast %193 : vector<1x32xf32> to vector<16x32xf32>
    %215 = arith.addf %213, %214 : vector<16x32xf32>
    %216 = arith.truncf %215 : vector<16x32xf32> to vector<16x32xbf16>
    %c1_92 = arith.constant 1 : index
    %c0_93 = arith.constant 0 : index
    %c0_94 = arith.constant 0 : index
    %217 = vector.load %arg11[%c1_92, %c0_93, %c0_94] : memref<2x32x2048xbf16, #tpu.memory_space<vmem>>, vector<1x32x2048xbf16>
    %218 = vector.shape_cast %217 : vector<1x32x2048xbf16> to vector<32x2048xbf16>
    %cst_95 = arith.constant dense<0.000000e+00> : vector<16x2048xf32>
    %219 = tpu.matmul %216, %218, %cst_95 {dimension_numbers = #tpu.dot_dimension_numbers<[1], [0], [0], [1], [0, 0, 1, 1], [], []>} : vector<16x32xbf16>, vector<32x2048xbf16>, vector<16x2048xf32> -> vector<16x2048xf32>
    %c1_96 = arith.constant 1 : index
    %c0_97 = arith.constant 0 : index
    %c0_98 = arith.constant 0 : index
    %220 = vector.load %arg12[%c1_96, %c0_97, %c0_98] : memref<2x1x2048xf32, #tpu.memory_space<vmem>>, vector<1x1x2048xf32>
    %221 = vector.shape_cast %220 : vector<1x1x2048xf32> to vector<1x2048xf32>
    %222 = vector.broadcast %221 : vector<1x2048xf32> to vector<16x2048xf32>
    %223 = arith.addf %219, %222 : vector<16x2048xf32>
    %cst_99 = arith.constant 0.000000e+00 : f32
    %224 = vector.broadcast %cst_99 : f32 to vector<16x2048xf32>
    %225 = arith.maximumf %223, %224 : vector<16x2048xf32>
    %226 = arith.truncf %225 : vector<16x2048xf32> to vector<16x2048xbf16>
    %c1_100 = arith.constant 1 : index
    %c0_101 = arith.constant 0 : index
    %c0_102 = arith.constant 0 : index
    %227 = vector.load %arg13[%c1_100, %c0_101, %c0_102] : memref<2x2048x32xbf16, #tpu.memory_space<vmem>>, vector<1x2048x32xbf16>
    %228 = vector.shape_cast %227 : vector<1x2048x32xbf16> to vector<2048x32xbf16>
    %cst_103 = arith.constant dense<0.000000e+00> : vector<16x32xf32>
    %229 = tpu.matmul %226, %228, %cst_103 {dimension_numbers = #tpu.dot_dimension_numbers<[1], [0], [0], [1], [0, 0, 1, 1], [], []>} : vector<16x2048xbf16>, vector<2048x32xbf16>, vector<16x32xf32> -> vector<16x32xf32>
    %c1_104 = arith.constant 1 : index
    %c0_105 = arith.constant 0 : index
    %c0_106 = arith.constant 0 : index
    %230 = vector.load %arg14[%c1_104, %c0_105, %c0_106] : memref<2x1x32xf32, #tpu.memory_space<vmem>>, vector<1x1x32xf32>
    %231 = vector.shape_cast %230 : vector<1x1x32xf32> to vector<1x32xf32>
    %232 = vector.broadcast %231 : vector<1x32xf32> to vector<16x32xf32>
    %233 = arith.addf %229, %232 : vector<16x32xf32>
    %234 = arith.addf %215, %233 : vector<16x32xf32>
    %c1_107 = arith.constant 1 : index
    %c0_108 = arith.constant 0 : index
    %c0_109 = arith.constant 0 : index
    %235 = vector.load %arg9[%c1_107, %c0_108, %c0_109] : memref<2x1x32xf32, #tpu.memory_space<vmem>>, vector<1x1x32xf32>
    %236 = vector.shape_cast %235 : vector<1x1x32xf32> to vector<1x32xf32>
    %c1_110 = arith.constant 1 : index
    %c0_111 = arith.constant 0 : index
    %c0_112 = arith.constant 0 : index
    %237 = vector.load %arg10[%c1_110, %c0_111, %c0_112] : memref<2x1x32xf32, #tpu.memory_space<vmem>>, vector<1x1x32xf32>
    %238 = vector.shape_cast %237 : vector<1x1x32xf32> to vector<1x32xf32>
    %cst_113 = arith.constant dense<0.000000e+00> : vector<16xf32>
    %239 = vector.multi_reduction <add>, %234, %cst_113 [1] : vector<16x32xf32> to vector<16xf32>
    %240 = vector.shape_cast %239 : vector<16xf32> to vector<16x1xf32>
    %cst_114 = arith.constant 3.200000e+01 : f32
    %241 = vector.broadcast %cst_114 : f32 to vector<16x1xf32>
    %242 = arith.divf %240, %241 : vector<16x1xf32>
    %243 = vector.broadcast %242 : vector<16x1xf32> to vector<16x32xf32>
    %244 = arith.subf %234, %243 : vector<16x32xf32>
    %245 = arith.mulf %244, %244 : vector<16x32xf32>
    %cst_115 = arith.constant dense<0.000000e+00> : vector<16xf32>
    %246 = vector.multi_reduction <add>, %245, %cst_115 [1] : vector<16x32xf32> to vector<16xf32>
    %247 = vector.shape_cast %246 : vector<16xf32> to vector<16x1xf32>
    %cst_116 = arith.constant 3.200000e+01 : f32
    %248 = vector.broadcast %cst_116 : f32 to vector<16x1xf32>
    %249 = arith.divf %247, %248 : vector<16x1xf32>
    %250 = vector.broadcast %242 : vector<16x1xf32> to vector<16x32xf32>
    %251 = arith.subf %234, %250 : vector<16x32xf32>
    %cst_117 = arith.constant 9.99999974E-6 : f32
    %252 = vector.broadcast %cst_117 : f32 to vector<16x1xf32>
    %253 = arith.addf %249, %252 : vector<16x1xf32>
    %254 = math.rsqrt %253 : vector<16x1xf32>
    %255 = vector.broadcast %254 : vector<16x1xf32> to vector<16x32xf32>
    %256 = arith.mulf %251, %255 : vector<16x32xf32>
    %257 = vector.broadcast %236 : vector<1x32xf32> to vector<16x32xf32>
    %258 = arith.mulf %256, %257 : vector<16x32xf32>
    %259 = vector.broadcast %238 : vector<1x32xf32> to vector<16x32xf32>
    %260 = arith.addf %258, %259 : vector<16x32xf32>
    %261 = vector.shape_cast %260 : vector<16x32xf32> to vector<2x8x32xf32>
    %262 = vector.shape_cast %261 : vector<2x8x32xf32> to vector<2x1x8x32xf32>
    %c0_118 = arith.constant 0 : index
    %c0_119 = arith.constant 0 : index
    %c0_120 = arith.constant 0 : index
    %263 = vector.load %arg15[%c0_118, %c0_119, %c0_120] : memref<2x8x32xf32, #tpu.memory_space<vmem>>, vector<2x8x32xf32>
    %264 = vector.shape_cast %263 : vector<2x8x32xf32> to vector<1x2x8x32xf32>
    %265 = vector.broadcast %262 : vector<2x1x8x32xf32> to vector<2x2x8x32xf32>
    %266 = vector.broadcast %264 : vector<1x2x8x32xf32> to vector<2x2x8x32xf32>
    %267 = arith.mulf %265, %266 : vector<2x2x8x32xf32>
    %cst_121 = arith.constant dense<0.000000e+00> : vector<2x2x8xf32>
    %268 = vector.multi_reduction <add>, %267, %cst_121 [3] : vector<2x2x8x32xf32> to vector<2x2x8xf32>
    %cst_122 = arith.constant dense<0.000000e+00> : vector<2x2xf32>
    %269 = vector.multi_reduction <add>, %268, %cst_122 [2] : vector<2x2x8xf32> to vector<2x2xf32>
    %c0_123 = arith.constant 0 : index
    %c0_124 = arith.constant 0 : index
    %270 = vector.load %arg16[%c0_123, %c0_124] : memref<1x2xf32, #tpu.memory_space<vmem>>, vector<1x2xf32>
    %271 = vector.broadcast %270 : vector<1x2xf32> to vector<2x2xf32>
    %272 = arith.addf %269, %271 : vector<2x2xf32>
    %c0_125 = arith.constant 0 : index
    %c0_126 = arith.constant 0 : index
    %273 = vector.load %arg17[%c0_125, %c0_126] : memref<2x2xf32, #tpu.memory_space<vmem>>, vector<2x2xf32>
    tpu.vector_store %arg17[%c0_125, %c0_126], %272 {strides = array<i32>} : memref<2x2xf32, #tpu.memory_space<vmem>>, vector<2x2xf32>,
    return
  }
  func.func @transform_0(%arg0: i32) -> (i32, i32, i32) {
    %c0_i32 = arith.constant 0 : i32
    %c0_i32_0 = arith.constant 0 : i32
    %c0_i32_1 = arith.constant 0 : i32
    return %arg0, %c0_i32, %c0_i32_0 : i32, i32, i32
  }
  func.func @transform_1(%arg0: i32) -> (i32, i32, i32, i32) {
    %c0_i32 = arith.constant 0 : i32
    %c0_i32_0 = arith.constant 0 : i32
    %c0_i32_1 = arith.constant 0 : i32
    %c0_i32_2 = arith.constant 0 : i32
    %c0_i32_3 = arith.constant 0 : i32
    return %c0_i32, %c0_i32_0, %c0_i32_1, %c0_i32_2 : i32, i32, i32, i32
  }
  func.func @transform_2(%arg0: i32) -> (i32, i32, i32) {
    %c0_i32 = arith.constant 0 : i32
    %c0_i32_0 = arith.constant 0 : i32
    %c0_i32_1 = arith.constant 0 : i32
    %c0_i32_2 = arith.constant 0 : i32
    return %c0_i32, %c0_i32_0, %c0_i32_1 : i32, i32, i32
  }
  func.func @transform_3(%arg0: i32) -> (i32, i32, i32) {
    %c0_i32 = arith.constant 0 : i32
    %c0_i32_0 = arith.constant 0 : i32
    %c0_i32_1 = arith.constant 0 : i32
    %c0_i32_2 = arith.constant 0 : i32
    return %c0_i32, %c0_i32_0, %c0_i32_1 : i32, i32, i32
  }
  func.func @transform_4(%arg0: i32) -> (i32, i32, i32) {
    %c0_i32 = arith.constant 0 : i32
    %c0_i32_0 = arith.constant 0 : i32
    %c0_i32_1 = arith.constant 0 : i32
    %c0_i32_2 = arith.constant 0 : i32
    return %c0_i32, %c0_i32_0, %c0_i32_1 : i32, i32, i32
  }
  func.func @transform_5(%arg0: i32) -> (i32, i32, i32) {
    %c0_i32 = arith.constant 0 : i32
    %c0_i32_0 = arith.constant 0 : i32
    %c0_i32_1 = arith.constant 0 : i32
    %c0_i32_2 = arith.constant 0 : i32
    return %c0_i32, %c0_i32_0, %c0_i32_1 : i32, i32, i32
  }
  func.func @transform_6(%arg0: i32) -> (i32, i32, i32) {
    %c0_i32 = arith.constant 0 : i32
    %c0_i32_0 = arith.constant 0 : i32
    %c0_i32_1 = arith.constant 0 : i32
    %c0_i32_2 = arith.constant 0 : i32
    return %c0_i32, %c0_i32_0, %c0_i32_1 : i32, i32, i32
  }
  func.func @transform_7(%arg0: i32) -> (i32, i32, i32) {
    %c0_i32 = arith.constant 0 : i32
    %c0_i32_0 = arith.constant 0 : i32
    %c0_i32_1 = arith.constant 0 : i32
    %c0_i32_2 = arith.constant 0 : i32
    return %c0_i32, %c0_i32_0, %c0_i32_1 : i32, i32, i32
  }
  func.func @transform_8(%arg0: i32) -> (i32, i32, i32) {
    %c0_i32 = arith.constant 0 : i32
    %c0_i32_0 = arith.constant 0 : i32
    %c0_i32_1 = arith.constant 0 : i32
    %c0_i32_2 = arith.constant 0 : i32
    return %c0_i32, %c0_i32_0, %c0_i32_1 : i32, i32, i32
  }
  func.func @transform_9(%arg0: i32) -> (i32, i32, i32) {
    %c0_i32 = arith.constant 0 : i32
    %c0_i32_0 = arith.constant 0 : i32
    %c0_i32_1 = arith.constant 0 : i32
    %c0_i32_2 = arith.constant 0 : i32
    return %c0_i32, %c0_i32_0, %c0_i32_1 : i32, i32, i32
  }
  func.func @transform_10(%arg0: i32) -> (i32, i32, i32) {
    %c0_i32 = arith.constant 0 : i32
    %c0_i32_0 = arith.constant 0 : i32
    %c0_i32_1 = arith.constant 0 : i32
    %c0_i32_2 = arith.constant 0 : i32
    return %c0_i32, %c0_i32_0, %c0_i32_1 : i32, i32, i32
  }
  func.func @transform_11(%arg0: i32) -> (i32, i32, i32) {
    %c0_i32 = arith.constant 0 : i32
    %c0_i32_0 = arith.constant 0 : i32
    %c0_i32_1 = arith.constant 0 : i32
    %c0_i32_2 = arith.constant 0 : i32
    return %c0_i32, %c0_i32_0, %c0_i32_1 : i32, i32, i32
  }
  func.func @transform_12(%arg0: i32) -> (i32, i32, i32) {
    %c0_i32 = arith.constant 0 : i32
    %c0_i32_0 = arith.constant 0 : i32
    %c0_i32_1 = arith.constant 0 : i32
    %c0_i32_2 = arith.constant 0 : i32
    return %c0_i32, %c0_i32_0, %c0_i32_1 : i32, i32, i32
  }
  func.func @transform_13(%arg0: i32) -> (i32, i32, i32) {
    %c0_i32 = arith.constant 0 : i32
    %c0_i32_0 = arith.constant 0 : i32
    %c0_i32_1 = arith.constant 0 : i32
    %c0_i32_2 = arith.constant 0 : i32
    return %c0_i32, %c0_i32_0, %c0_i32_1 : i32, i32, i32
  }
  func.func @transform_14(%arg0: i32) -> (i32, i32, i32) {
    %c0_i32 = arith.constant 0 : i32
    %c0_i32_0 = arith.constant 0 : i32
    %c0_i32_1 = arith.constant 0 : i32
    %c0_i32_2 = arith.constant 0 : i32
    return %c0_i32, %c0_i32_0, %c0_i32_1 : i32, i32, i32
  }
  func.func @transform_15(%arg0: i32) -> (i32, i32) {
    %c0_i32 = arith.constant 0 : i32
    %c0_i32_0 = arith.constant 0 : i32
    %c0_i32_1 = arith.constant 0 : i32
    return %c0_i32, %c0_i32_0 : i32, i32
  }
  func.func @transform_16(%arg0: i32) -> (i32, i32) {
    %c0_i32 = arith.constant 0 : i32
    %c0_i32_0 = arith.constant 0 : i32
    return %arg0, %c0_i32 : i32, i32
  }
}

</mosaic_0001>

<llo_original>
// kernel: ad_transformer_forward.1
$region0: #{ad_transformer_forward.1}
  #allocation0 [shape = 'u32[]', space=smem, size = 0x4, offset = 0x4, fixed_abs, tag = 'smem constant byte address 0x4 - core index']
  #allocation1 [shape = 'u32[144,128]{1,0:T(1,128)}', space=vmem, size = 0x12000, scoped, tag = 'internal scratch']
  %s0 = inlined_call_operand.vmem [shape: f32[2,8,32], index: 0, kind: input, shape index: {}]
  %s1 = inlined_call_operand.vmem [shape: f32[4,1,1,32], index: 1, kind: input, shape index: {}]
  %s2 = inlined_call_operand.vmem [shape: bf16[2,32,96], index: 2, kind: input, shape index: {}]
  %s3 = inlined_call_operand.vmem [shape: f32[2,1,96], index: 3, kind: input, shape index: {}]
  %s4 = inlined_call_operand.vmem [shape: bf16[2,32,32], index: 4, kind: input, shape index: {}]
  %s5 = inlined_call_operand.vmem [shape: f32[2,1,32], index: 5, kind: input, shape index: {}]
  %s6 = inlined_call_operand.vmem [shape: f32[2,1,32], index: 6, kind: input, shape index: {}]
  %s7 = inlined_call_operand.vmem [shape: f32[2,1,32], index: 7, kind: input, shape index: {}]
  %s8 = inlined_call_operand.vmem [shape: f32[2,1,32], index: 8, kind: input, shape index: {}]
  %s9 = inlined_call_operand.vmem [shape: f32[2,1,32], index: 9, kind: input, shape index: {}]
  %s10 = inlined_call_operand.vmem [shape: bf16[2,32,2048], index: 10, kind: input, shape index: {}]
  %s11 = inlined_call_operand.vmem [shape: f32[2,1,2048], index: 11, kind: input, shape index: {}]
  %s12 = inlined_call_operand.vmem [shape: bf16[2,2048,32], index: 12, kind: input, shape index: {}]
  %s13 = inlined_call_operand.vmem [shape: f32[2,1,32], index: 13, kind: input, shape index: {}]
  %s14 = inlined_call_operand.vmem [shape: f32[2,8,32], index: 14, kind: input, shape index: {}]
  %s15 = inlined_call_operand.vmem [shape: f32[1,2], index: 15, kind: input, shape index: {}]
  %s16 = inlined_call_operand.hbm [shape: f32[2,2], index: 16, kind: output, shape index: {}]
  %s17 = sld [smem:[#allocation0]]
  $region74: #{ad_transformer_forward.1} parent=0
    _
  %s19 = ssub.s32 1, %s17
  %s20 = scalar_select 0, %s19, %s17
  $region1: #{ad_transformer_forward.1} parent=0
    #allocation2 [shape = 'u8[1024]{0}', space=vmem, size = 0x400, scoped, tag = 'output window, operand 0, single buffered']
    #allocation3 [shape = 's32[1]{0}', space=sflag, size = 0x4, scoped, tag = 'scoped memory for ad_transformer_forward.1']
    %21 = vsyncpa [#allocation3], 0
    // Predicated region
    $region2: #{ad_transformer_forward.1} parent=1 // pred_check
      _
    $region3: #{ad_transformer_forward.1} parent=1 // pred_check_branch
      %23 = sbr.rel (0) target = $region5
    $region4: #{ad_transformer_forward.1} parent=1 // pred_region
      _
    $region5: #{ad_transformer_forward.1} parent=1 // pred_fallthru
      _
    // Predicated region
    $region6: #{ad_transformer_forward.1} parent=1 // pred_check
      _
    $region7: #{ad_transformer_forward.1} parent=1 // pred_check_branch
      %25 = sbr.rel (0) target = $region9
    $region8: #{ad_transformer_forward.1} parent=1 // pred_region
      _
    $region9: #{ad_transformer_forward.1} parent=1 // pred_fallthru
      _
    // Predicated region
    $region10: #{ad_transformer_forward.1} parent=1 // pred_check
      _
    $region11: #{ad_transformer_forward.1} parent=1 // pred_check_branch
      %27 = sbr.rel (0) target = $region13
    $region12: #{ad_transformer_forward.1} parent=1 // pred_region
      _
    $region13: #{ad_transformer_forward.1} parent=1 // pred_fallthru
      _
    // Predicated region
    $region14: #{ad_transformer_forward.1} parent=1 // pred_check
      _
    $region15: #{ad_transformer_forward.1} parent=1 // pred_check_branch
      %29 = sbr.rel (0) target = $region17
    $region16: #{ad_transformer_forward.1} parent=1 // pred_region
      _
    $region17: #{ad_transformer_forward.1} parent=1 // pred_fallthru
      _
    // Predicated region
    $region18: #{ad_transformer_forward.1} parent=1 // pred_check
      _
    $region19: #{ad_transformer_forward.1} parent=1 // pred_check_branch
      %31 = sbr.rel (0) target = $region21
    $region20: #{ad_transformer_forward.1} parent=1 // pred_region
      _
    $region21: #{ad_transformer_forward.1} parent=1 // pred_fallthru
      _
    // Predicated region
    $region22: #{ad_transformer_forward.1} parent=1 // pred_check
      _
    $region23: #{ad_transformer_forward.1} parent=1 // pred_check_branch
      %33 = sbr.rel (0) target = $region25
    $region24: #{ad_transformer_forward.1} parent=1 // pred_region
      _
    $region25: #{ad_transformer_forward.1} parent=1 // pred_fallthru
      _
    // Predicated region
    $region26: #{ad_transformer_forward.1} parent=1 // pred_check
      _
    $region27: #{ad_transformer_forward.1} parent=1 // pred_check_branch
      %35 = sbr.rel (0) target = $region29
    $region28: #{ad_transformer_forward.1} parent=1 // pred_region
      _
    $region29: #{ad_transformer_forward.1} parent=1 // pred_fallthru
      _
    // Predicated region
    $region30: #{ad_transformer_forward.1} parent=1 // pred_check
      _
    $region31: #{ad_transformer_forward.1} parent=1 // pred_check_branch
      %37 = sbr.rel (0) target = $region33
    $region32: #{ad_transformer_forward.1} parent=1 // pred_region
      _
    $region33: #{ad_transformer_forward.1} parent=1 // pred_fallthru
      _
    // Predicated region
    $region34: #{ad_transformer_forward.1} parent=1 // pred_check
      _
    $region35: #{ad_transformer_forward.1} parent=1 // pred_check_branch
      %39 = sbr.rel (0) target = $region37
    $region36: #{ad_transformer_forward.1} parent=1 // pred_region
      _
    $region37: #{ad_transformer_forward.1} parent=1 // pred_fallthru
      _
    // Predicated region
    $region38: #{ad_transformer_forward.1} parent=1 // pred_check
      _
    $region39: #{ad_transformer_forward.1} parent=1 // pred_check_branch
      %41 = sbr.rel (0) target = $region41
    $region40: #{ad_transformer_forward.1} parent=1 // pred_region
      _
    $region41: #{ad_transformer_forward.1} parent=1 // pred_fallthru
      _
    // Predicated region
    $region42: #{ad_transformer_forward.1} parent=1 // pred_check
      _
    $region43: #{ad_transformer_forward.1} parent=1 // pred_check_branch
      %43 = sbr.rel (0) target = $region45
    $region44: #{ad_transformer_forward.1} parent=1 // pred_region
      _
    $region45: #{ad_transformer_forward.1} parent=1 // pred_fallthru
      _
    // Predicated region
    $region46: #{ad_transformer_forward.1} parent=1 // pred_check
      _
    $region47: #{ad_transformer_forward.1} parent=1 // pred_check_branch
      %45 = sbr.rel (0) target = $region49
    $region48: #{ad_transformer_forward.1} parent=1 // pred_region
      _
    $region49: #{ad_transformer_forward.1} parent=1 // pred_fallthru
      _
    // Predicated region
    $region50: #{ad_transformer_forward.1} parent=1 // pred_check
      _
    $region51: #{ad_transformer_forward.1} parent=1 // pred_check_branch
      %47 = sbr.rel (0) target = $region53
    $region52: #{ad_transformer_forward.1} parent=1 // pred_region
      _
    $region53: #{ad_transformer_forward.1} parent=1 // pred_fallthru
      _
    // Predicated region
    $region54: #{ad_transformer_forward.1} parent=1 // pred_check
      _
    $region55: #{ad_transformer_forward.1} parent=1 // pred_check_branch
      %49 = sbr.rel (0) target = $region57
    $region56: #{ad_transformer_forward.1} parent=1 // pred_region
      _
    $region57: #{ad_transformer_forward.1} parent=1 // pred_fallthru
      _
    // Predicated region
    $region58: #{ad_transformer_forward.1} parent=1 // pred_check
      _
    $region59: #{ad_transformer_forward.1} parent=1 // pred_check_branch
      %51 = sbr.rel (0) target = $region61
    $region60: #{ad_transformer_forward.1} parent=1 // pred_region
      _
    $region61: #{ad_transformer_forward.1} parent=1 // pred_fallthru
      _
    // Predicated region
    $region62: #{ad_transformer_forward.1} parent=1 // pred_check
      _
    $region63: #{ad_transformer_forward.1} parent=1 // pred_check_branch
      %53 = sbr.rel (0) target = $region65
    $region64: #{ad_transformer_forward.1} parent=1 // pred_region
      _
    $region65: #{ad_transformer_forward.1} parent=1 // pred_fallthru
      _
    %v55 = vld [vmem:[%s0] sm:$0xff]
    %v56 = vld [vmem:[%s0 + $0x8] sm:$0xff]
    %v57 = vld [vmem:[%s1] sm:$0x1]
    %v58 = vld [vmem:[%s1 + $0x1] sm:$0x1]
    %v59 = vld [vmem:[%s1 + $0x2] sm:$0x1]
    %v60 = vld [vmem:[%s1 + $0x3] sm:$0x1]
    %v61 = vpack.c.bf16 %v56, %v55
    %v62 = vld [vmem:[%s2] sm:$0xf]
    %v63 = vld [vmem:[%s2 + $0x4] sm:$0xf]
    %v64 = vld [vmem:[%s2 + $0x8] sm:$0xf]
    %v65 = vld [vmem:[%s2 + $0xc] sm:$0xf]
    %v66 = vld [vmem:[%s3] sm:$0x1]
    %v68 = vlaneseq
    %v69 = vshrl.u32 %v68, 7
    %v70 = vsub.s32 0, %v69
    %v71 = vrot.slane %v66, %v70
    %v77 = vunpack.c.l.b16 %v62
    %v78 = vunpack.c.l.b16 %v63
    %v79 = vunpack.c.l.b16 %v64
    %v80 = vunpack.c.l.b16 %v65
    %v81 = vpack.c.b16 %v78, %v77
    %v82 = vpack.c.b16 %v80, %v79
    %vm85 = vcmask 261120
    %v87 = vsel %vm85, %v61, 0
    %89 = vmatprep.subr.bf16.mxu0 0
    %90 = vmatpush1.bf16.msra.mxu0 0
    %91 = vmatprep.subr.bf16.mxu0 0
    %92 = vmatpush1.bf16.msra.mxu0 0
    %93 = vmatprep.subr.bf16.mxu0 0
    %94 = vmatpush1.bf16.msra.mxu0 0
    %95 = vmatprep.subr.bf16.mxu0 0
    %96 = vmatpush1.bf16.msra.mxu0 0
    %97 = vmatprep.subr.bf16.mxu0 0
    %98 = vmatpush1.bf16.msra.mxu0 0
    %99 = vmatprep.subr.bf16.mxu0 0
    %100 = vmatpush1.bf16.msra.mxu0 0
    %101 = vmatprep.subr.bf16.mxu0 0
    %102 = vmatpush1.bf16.msra.mxu0 %v82
    %103 = vmatprep.subr.bf16.mxu0 0
    %104 = vmatpush1.bf16.msra.mxu0 %v81
    %105 = vmatprep.subr.bf16.mxu0 0
    %106 = vmatpush2.bf16.msra.mxu0 0
    %107 = vmatprep.subr.bf16.mxu0 0
    %108 = vmatpush2.bf16.msra.mxu0 0
    %109 = vmatprep.subr.bf16.mxu0 0
    %110 = vmatpush2.bf16.msra.mxu0 0
    %111 = vmatprep.subr.bf16.mxu0 0
    %112 = vmatpush2.bf16.msra.mxu0 0
    %113 = vmatprep.subr.bf16.mxu0 0
    %114 = vmatpush2.bf16.msra.mxu0 0
    %115 = vmatprep.subr.bf16.mxu0 0
    %116 = vmatpush2.bf16.msra.mxu0 0
    %117 = vmatprep.subr.bf16.mxu0 0
    %118 = vmatpush2.bf16.msra.mxu0 0
    %119 = vmatprep.subr.bf16.mxu0 0
    %120 = vmatpush2.bf16.msra.mxu0 0
    %121 = vmatprep.mubr.bf16.mxu0 0
    %122 = vmatmul.mubr.bf16.gmra.mxu0 %v87
    %v123 = vpop.f32.mrf.mxu0
    %v124 = vadd.f32 %v71, %v123
    %v125 = vpop.f32.mrf.mxu0
    %v126 = vpop.f32.mrf.mxu0
    %v127 = vadd.f32 %v71, %v126
    %v128 = vpop.f32.mrf.mxu0
    %129 = vdwg.mxu0
    %v130 = vmul.f32 %v124, 0.35355338
    %v131 = vmul.f32 %v127, 0.35355338
    %v136 = vlaneseq
    %v137 = vshrl.u32 %v136, 7
    %v138 = vsub.s32 0, %v137
    %v139 = vrot.slane %v57, %v138
    %v140 = vlaneseq
    %v141 = vshrl.u32 %v140, 7
    %v142 = vsub.s32 0, %v141
    %v143 = vrot.slane %v58, %v142
    %v144 = vlaneseq
    %v145 = vshrl.u32 %v144, 7
    %v146 = vsub.s32 0, %v145
    %v147 = vrot.slane %v59, %v146
    %v148 = vlaneseq
    %v149 = vshrl.u32 %v148, 7
    %v150 = vsub.s32 0, %v149
    %v151 = vrot.slane %v60, %v150
    %v156 = vmul.f32 %v130, %v139
    %v157 = vmul.f32 %v131, %v139
    %v158 = vmul.f32 %v130, %v143
    %v159 = vmul.f32 %v131, %v143
    %v160 = vmul.f32 %v130, %v147
    %v161 = vmul.f32 %v131, %v147
    %v162 = vmul.f32 %v130, %v151
    %v163 = vmul.f32 %v131, %v151
    %v164 = vpack.c.bf16 %v156, %v156
    %v165 = vpack.c.bf16 %v157, %v157
    %v166 = vpack.c.bf16 %v158, %v158
    %v167 = vpack.c.bf16 %v159, %v159
    %v168 = vpack.c.bf16 %v160, %v160
    %v169 = vpack.c.bf16 %v161, %v161
    %v170 = vpack.c.bf16 %v162, %v162
    %v171 = vpack.c.bf16 %v163, %v163
    %v172 = vpack.c.bf16 %v124, %v124
    %v173 = vpack.c.bf16 %v127, %v127
    %174 = vrot.lane.b32.xlu0 %v139, 64
    %v175 = vpop.permute.xlu0 %174
    %176 = vrot.lane.b32.xlu0 %v143, 64
    %v177 = vpop.permute.xlu0 %176
    %178 = vrot.lane.b32.xlu0 %v147, 64
    %v179 = vpop.permute.xlu0 %178
    %180 = vrot.lane.b32.xlu0 %v151, 64
    %v181 = vpop.permute.xlu0 %180
    %v186 = vmul.f32 %v124, %v175
    %v187 = vmul.f32 %v127, %v175
    %v188 = vmul.f32 %v124, %v177
    %v189 = vmul.f32 %v127, %v177
    %v190 = vmul.f32 %v124, %v179
    %v191 = vmul.f32 %v127, %v179
    %v192 = vmul.f32 %v124, %v181
    %v193 = vmul.f32 %v127, %v181
    %v194 = vpack.c.bf16 %v186, %v186
    %v195 = vpack.c.bf16 %v187, %v187
    %v196 = vpack.c.bf16 %v188, %v188
    %v197 = vpack.c.bf16 %v189, %v189
    %v198 = vpack.c.bf16 %v190, %v190
    %v199 = vpack.c.bf16 %v191, %v191
    %v200 = vpack.c.bf16 %v192, %v192
    %v201 = vpack.c.bf16 %v193, %v193
    %203 = vrot.lane.b32.xlu0 %v172, 96
    %v204 = vpop.permute.xlu0 %203
    %v206 = vsel %vm85, %v164, 0
    %v209 = vsel %vm85, %v204, 0
    %211 = vmatprep.subr.bf16.mxu0 0
    %212 = vmatpush1.bf16.xpose.msra.mxu0 0
    %213 = vmatprep.subr.bf16.mxu0 0
    %214 = vmatpush1.bf16.xpose.msra.mxu0 0
    %215 = vmatprep.subr.bf16.mxu0 0
    %216 = vmatpush1.bf16.xpose.msra.mxu0 0
    %217 = vmatprep.subr.bf16.mxu0 0
    %218 = vmatpush1.bf16.xpose.msra.mxu0 0
    %219 = vmatprep.subr.bf16.mxu0 0
    %220 = vmatpush1.bf16.xpose.msra.mxu0 0
    %221 = vmatprep.subr.bf16.mxu0 0
    %222 = vmatpush1.bf16.xpose.msra.mxu0 0
    %223 = vmatprep.subr.bf16.mxu0 0
    %224 = vmatpush1.bf16.xpose.msra.mxu0 0
    %225 = vmatprep.subr.bf16.mxu0 0
    %226 = vmatpush1.bf16.xpose.msra.mxu0 %v209
    %227 = vmatprep.subr.bf16.mxu0 0
    %228 = vmatpush2.bf16.xpose.msra.mxu0 0
    %229 = vmatprep.subr.bf16.mxu0 0
    %230 = vmatpush2.bf16.xpose.msra.mxu0 0
    %231 = vmatprep.subr.bf16.mxu0 0
    %232 = vmatpush2.bf16.xpose.msra.mxu0 0
    %233 = vmatprep.subr.bf16.mxu0 0
    %234 = vmatpush2.bf16.xpose.msra.mxu0 0
    %235 = vmatprep.subr.bf16.mxu0 0
    %236 = vmatpush2.bf16.xpose.msra.mxu0 0
    %237 = vmatprep.subr.bf16.mxu0 0
    %238 = vmatpush2.bf16.xpose.msra.mxu0 0
    %239 = vmatprep.subr.bf16.mxu0 0
    %240 = vmatpush2.bf16.xpose.msra.mxu0 0
    %241 = vmatprep.subr.bf16.mxu0 0
    %242 = vmatpush2.bf16.xpose.msra.mxu0 0
    %243 = vmatprep.mubr.bf16.mxu0 0
    %244 = vmatmul.mubr.bf16.gmra.mxu0 %v206
    %v245 = vpop.f32.mrf.mxu0
    %v246 = vadd.f32 0.0, %v245
    %v247 = vpop.f32.mrf.mxu0
    %v248 = vpop.f32.mrf.mxu0
    %v249 = vpop.f32.mrf.mxu0
    %250 = vdwg.mxu0
    %252 = vrot.lane.b32.xlu0 %v173, 96
    %v253 = vpop.permute.xlu0 %252
    %v255 = vsel %vm85, %v165, 0
    %v258 = vsel %vm85, %v253, 0
    %260 = vmatprep.subr.bf16.mxu0 0
    %261 = vmatpush1.bf16.xpose.msra.mxu0 0
    %262 = vmatprep.subr.bf16.mxu0 0
    %263 = vmatpush1.bf16.xpose.msra.mxu0 0
    %264 = vmatprep.subr.bf16.mxu0 0
    %265 = vmatpush1.bf16.xpose.msra.mxu0 0
    %266 = vmatprep.subr.bf16.mxu0 0
    %267 = vmatpush1.bf16.xpose.msra.mxu0 0
    %268 = vmatprep.subr.bf16.mxu0 0
    %269 = vmatpush1.bf16.xpose.msra.mxu0 0
    %270 = vmatprep.subr.bf16.mxu0 0
    %271 = vmatpush1.bf16.xpose.msra.mxu0 0
    %272 = vmatprep.subr.bf16.mxu0 0
    %273 = vmatpush1.bf16.xpose.msra.mxu0 0
    %274 = vmatprep.subr.bf16.mxu0 0
    %275 = vmatpush1.bf16.xpose.msra.mxu0 %v258
    %276 = vmatprep.subr.bf16.mxu0 0
    %277 = vmatpush2.bf16.xpose.msra.mxu0 0
    %278 = vmatprep.subr.bf16.mxu0 0
    %279 = vmatpush2.bf16.xpose.msra.mxu0 0
    %280 = vmatprep.subr.bf16.mxu0 0
    %281 = vmatpush2.bf16.xpose.msra.mxu0 0
    %282 = vmatprep.subr.bf16.mxu0 0
    %283 = vmatpush2.bf16.xpose.msra.mxu0 0
    %284 = vmatprep.subr.bf16.mxu0 0
    %285 = vmatpush2.bf16.xpose.msra.mxu0 0
    %286 = vmatprep.subr.bf16.mxu0 0
    %287 = vmatpush2.bf16.xpose.msra.mxu0 0
    %288 = vmatprep.subr.bf16.mxu0 0
    %289 = vmatpush2.bf16.xpose.msra.mxu0 0
    %290 = vmatprep.subr.bf16.mxu0 0
    %291 = vmatpush2.bf16.xpose.msra.mxu0 0
    %292 = vmatprep.mubr.bf16.mxu0 0
    %293 = vmatmul.mubr.bf16.gmra.mxu0 %v255
    %v294 = vpop.f32.mrf.mxu0
    %v295 = vadd.f32 0.0, %v294
    %v296 = vpop.f32.mrf.mxu0
    %v297 = vpop.f32.mrf.mxu0
    %v298 = vpop.f32.mrf.mxu0
    %299 = vdwg.mxu0
    %v301 = vsel %vm85, %v166, 0
    %303 = vmatprep.subr.bf16.mxu0 0
    %304 = vmatpush1.bf16.xpose.msra.mxu0 0
    %305 = vmatprep.subr.bf16.mxu0 0
    %306 = vmatpush1.bf16.xpose.msra.mxu0 0
    %307 = vmatprep.subr.bf16.mxu0 0
    %308 = vmatpush1.bf16.xpose.msra.mxu0 0
    %309 = vmatprep.subr.bf16.mxu0 0
    %310 = vmatpush1.bf16.xpose.msra.mxu0 0
    %311 = vmatprep.subr.bf16.mxu0 0
    %312 = vmatpush1.bf16.xpose.msra.mxu0 0
    %313 = vmatprep.subr.bf16.mxu0 0
    %314 = vmatpush1.bf16.xpose.msra.mxu0 0
    %315 = vmatprep.subr.bf16.mxu0 0
    %316 = vmatpush1.bf16.xpose.msra.mxu0 0
    %317 = vmatprep.subr.bf16.mxu0 0
    %318 = vmatpush1.bf16.xpose.msra.mxu0 %v209
    %319 = vmatprep.subr.bf16.mxu0 0
    %320 = vmatpush2.bf16.xpose.msra.mxu0 0
    %321 = vmatprep.subr.bf16.mxu0 0
    %322 = vmatpush2.bf16.xpose.msra.mxu0 0
    %323 = vmatprep.subr.bf16.mxu0 0
    %324 = vmatpush2.bf16.xpose.msra.mxu0 0
    %325 = vmatprep.subr.bf16.mxu0 0
    %326 = vmatpush2.bf16.xpose.msra.mxu0 0
    %327 = vmatprep.subr.bf16.mxu0 0
    %328 = vmatpush2.bf16.xpose.msra.mxu0 0
    %329 = vmatprep.subr.bf16.mxu0 0
    %330 = vmatpush2.bf16.xpose.msra.mxu0 0
    %331 = vmatprep.subr.bf16.mxu0 0
    %332 = vmatpush2.bf16.xpose.msra.mxu0 0
    %333 = vmatprep.subr.bf16.mxu0 0
    %334 = vmatpush2.bf16.xpose.msra.mxu0 0
    %335 = vmatprep.mubr.bf16.mxu0 0
    %336 = vmatmul.mubr.bf16.gmra.mxu0 %v301
    %v337 = vpop.f32.mrf.mxu0
    %v338 = vadd.f32 0.0, %v337
    %v339 = vpop.f32.mrf.mxu0
    %v340 = vpop.f32.mrf.mxu0
    %v341 = vpop.f32.mrf.mxu0
    %342 = vdwg.mxu0
    %v344 = vsel %vm85, %v167, 0
    %346 = vmatprep.subr.bf16.mxu0 0
    %347 = vmatpush1.bf16.xpose.msra.mxu0 0
    %348 = vmatprep.subr.bf16.mxu0 0
    %349 = vmatpush1.bf16.xpose.msra.mxu0 0
    %350 = vmatprep.subr.bf16.mxu0 0
    %351 = vmatpush1.bf16.xpose.msra.mxu0 0
    %352 = vmatprep.subr.bf16.mxu0 0
    %353 = vmatpush1.bf16.xpose.msra.mxu0 0
    %354 = vmatprep.subr.bf16.mxu0 0
    %355 = vmatpush1.bf16.xpose.msra.mxu0 0
    %356 = vmatprep.subr.bf16.mxu0 0
    %357 = vmatpush1.bf16.xpose.msra.mxu0 0
    %358 = vmatprep.subr.bf16.mxu0 0
    %359 = vmatpush1.bf16.xpose.msra.mxu0 0
    %360 = vmatprep.subr.bf16.mxu0 0
    %361 = vmatpush1.bf16.xpose.msra.mxu0 %v258
    %362 = vmatprep.subr.bf16.mxu0 0
    %363 = vmatpush2.bf16.xpose.msra.mxu0 0
    %364 = vmatprep.subr.bf16.mxu0 0
    %365 = vmatpush2.bf16.xpose.msra.mxu0 0
    %366 = vmatprep.subr.bf16.mxu0 0
    %367 = vmatpush2.bf16.xpose.msra.mxu0 0
    %368 = vmatprep.subr.bf16.mxu0 0
    %369 = vmatpush2.bf16.xpose.msra.mxu0 0
    %370 = vmatprep.subr.bf16.mxu0 0
    %371 = vmatpush2.bf16.xpose.msra.mxu0 0
    %372 = vmatprep.subr.bf16.mxu0 0
    %373 = vmatpush2.bf16.xpose.msra.mxu0 0
    %374 = vmatprep.subr.bf16.mxu0 0
    %375 = vmatpush2.bf16.xpose.msra.mxu0 0
    %376 = vmatprep.subr.bf16.mxu0 0
    %377 = vmatpush2.bf16.xpose.msra.mxu0 0
    %378 = vmatprep.mubr.bf16.mxu0 0
    %379 = vmatmul.mubr.bf16.gmra.mxu0 %v344
    %v380 = vpop.f32.mrf.mxu0
    %v381 = vadd.f32 0.0, %v380
    %v382 = vpop.f32.mrf.mxu0
    %v383 = vpop.f32.mrf.mxu0
    %v384 = vpop.f32.mrf.mxu0
    %385 = vdwg.mxu0
    %v387 = vsel %vm85, %v168, 0
    %389 = vmatprep.subr.bf16.mxu0 0
    %390 = vmatpush1.bf16.xpose.msra.mxu0 0
    %391 = vmatprep.subr.bf16.mxu0 0
    %392 = vmatpush1.bf16.xpose.msra.mxu0 0
    %393 = vmatprep.subr.bf16.mxu0 0
    %394 = vmatpush1.bf16.xpose.msra.mxu0 0
    %395 = vmatprep.subr.bf16.mxu0 0
    %396 = vmatpush1.bf16.xpose.msra.mxu0 0
    %397 = vmatprep.subr.bf16.mxu0 0
    %398 = vmatpush1.bf16.xpose.msra.mxu0 0
    %399 = vmatprep.subr.bf16.mxu0 0
    %400 = vmatpush1.bf16.xpose.msra.mxu0 0
    %401 = vmatprep.subr.bf16.mxu0 0
    %402 = vmatpush1.bf16.xpose.msra.mxu0 0
    %403 = vmatprep.subr.bf16.mxu0 0
    %404 = vmatpush1.bf16.xpose.msra.mxu0 %v209
    %405 = vmatprep.subr.bf16.mxu0 0
    %406 = vmatpush2.bf16.xpose.msra.mxu0 0
    %407 = vmatprep.subr.bf16.mxu0 0
    %408 = vmatpush2.bf16.xpose.msra.mxu0 0
    %409 = vmatprep.subr.bf16.mxu0 0
    %410 = vmatpush2.bf16.xpose.msra.mxu0 0
    %411 = vmatprep.subr.bf16.mxu0 0
    %412 = vmatpush2.bf16.xpose.msra.mxu0 0
    %413 = vmatprep.subr.bf16.mxu0 0
    %414 = vmatpush2.bf16.xpose.msra.mxu0 0
    %415 = vmatprep.subr.bf16.mxu0 0
    %416 = vmatpush2.bf16.xpose.msra.mxu0 0
    %417 = vmatprep.subr.bf16.mxu0 0
    %418 = vmatpush2.bf16.xpose.msra.mxu0 0
    %419 = vmatprep.subr.bf16.mxu0 0
    %420 = vmatpush2.bf16.xpose.msra.mxu0 0
    %421 = vmatprep.mubr.bf16.mxu0 0
    %422 = vmatmul.mubr.bf16.gmra.mxu0 %v387
    %v423 = vpop.f32.mrf.mxu0
    %v424 = vadd.f32 0.0, %v423
    %v425 = vpop.f32.mrf.mxu0
    %v426 = vpop.f32.mrf.mxu0
    %v427 = vpop.f32.mrf.mxu0
    %428 = vdwg.mxu0
    %v430 = vsel %vm85, %v169, 0
    %432 = vmatprep.subr.bf16.mxu0 0
    %433 = vmatpush1.bf16.xpose.msra.mxu0 0
    %434 = vmatprep.subr.bf16.mxu0 0
    %435 = vmatpush1.bf16.xpose.msra.mxu0 0
    %436 = vmatprep.subr.bf16.mxu0 0
    %437 = vmatpush1.bf16.xpose.msra.mxu0 0
    %438 = vmatprep.subr.bf16.mxu0 0
    %439 = vmatpush1.bf16.xpose.msra.mxu0 0
    %440 = vmatprep.subr.bf16.mxu0 0
    %441 = vmatpush1.bf16.xpose.msra.mxu0 0
    %442 = vmatprep.subr.bf16.mxu0 0
    %443 = vmatpush1.bf16.xpose.msra.mxu0 0
    %444 = vmatprep.subr.bf16.mxu0 0
    %445 = vmatpush1.bf16.xpose.msra.mxu0 0
    %446 = vmatprep.subr.bf16.mxu0 0
    %447 = vmatpush1.bf16.xpose.msra.mxu0 %v258
    %448 = vmatprep.subr.bf16.mxu0 0
    %449 = vmatpush2.bf16.xpose.msra.mxu0 0
    %450 = vmatprep.subr.bf16.mxu0 0
    %451 = vmatpush2.bf16.xpose.msra.mxu0 0
    %452 = vmatprep.subr.bf16.mxu0 0
    %453 = vmatpush2.bf16.xpose.msra.mxu0 0
    %454 = vmatprep.subr.bf16.mxu0 0
    %455 = vmatpush2.bf16.xpose.msra.mxu0 0
    %456 = vmatprep.subr.bf16.mxu0 0
    %457 = vmatpush2.bf16.xpose.msra.mxu0 0
    %458 = vmatprep.subr.bf16.mxu0 0
    %459 = vmatpush2.bf16.xpose.msra.mxu0 0
    %460 = vmatprep.subr.bf16.mxu0 0
    %461 = vmatpush2.bf16.xpose.msra.mxu0 0
    %462 = vmatprep.subr.bf16.mxu0 0
    %463 = vmatpush2.bf16.xpose.msra.mxu0 0
    %464 = vmatprep.mubr.bf16.mxu0 0
    %465 = vmatmul.mubr.bf16.gmra.mxu0 %v430
    %v466 = vpop.f32.mrf.mxu0
    %v467 = vadd.f32 0.0, %v466
    %v468 = vpop.f32.mrf.mxu0
    %v469 = vpop.f32.mrf.mxu0
    %v470 = vpop.f32.mrf.mxu0
    %471 = vdwg.mxu0
    %v473 = vsel %vm85, %v170, 0
    %475 = vmatprep.subr.bf16.mxu0 0
    %476 = vmatpush1.bf16.xpose.msra.mxu0 0
    %477 = vmatprep.subr.bf16.mxu0 0
    %478 = vmatpush1.bf16.xpose.msra.mxu0 0
    %479 = vmatprep.subr.bf16.mxu0 0
    %480 = vmatpush1.bf16.xpose.msra.mxu0 0
    %481 = vmatprep.subr.bf16.mxu0 0
    %482 = vmatpush1.bf16.xpose.msra.mxu0 0
    %483 = vmatprep.subr.bf16.mxu0 0
    %484 = vmatpush1.bf16.xpose.msra.mxu0 0
    %485 = vmatprep.subr.bf16.mxu0 0
    %486 = vmatpush1.bf16.xpose.msra.mxu0 0
    %487 = vmatprep.subr.bf16.mxu0 0
    %488 = vmatpush1.bf16.xpose.msra.mxu0 0
    %489 = vmatprep.subr.bf16.mxu0 0
    %490 = vmatpush1.bf16.xpose.msra.mxu0 %v209
    %491 = vmatprep.subr.bf16.mxu0 0
    %492 = vmatpush2.bf16.xpose.msra.mxu0 0
    %493 = vmatprep.subr.bf16.mxu0 0
    %494 = vmatpush2.bf16.xpose.msra.mxu0 0
    %495 = vmatprep.subr.bf16.mxu0 0
    %496 = vmatpush2.bf16.xpose.msra.mxu0 0
    %497 = vmatprep.subr.bf16.mxu0 0
    %498 = vmatpush2.bf16.xpose.msra.mxu0 0
    %499 = vmatprep.subr.bf16.mxu0 0
    %500 = vmatpush2.bf16.xpose.msra.mxu0 0
    %501 = vmatprep.subr.bf16.mxu0 0
    %502 = vmatpush2.bf16.xpose.msra.mxu0 0
    %503 = vmatprep.subr.bf16.mxu0 0
    %504 = vmatpush2.bf16.xpose.msra.mxu0 0
    %505 = vmatprep.subr.bf16.mxu0 0
    %506 = vmatpush2.bf16.xpose.msra.mxu0 0
    %507 = vmatprep.mubr.bf16.mxu0 0
    %508 = vmatmul.mubr.bf16.gmra.mxu0 %v473
    %v509 = vpop.f32.mrf.mxu0
    %v510 = vadd.f32 0.0, %v509
    %v511 = vpop.f32.mrf.mxu0
    %v512 = vpop.f32.mrf.mxu0
    %v513 = vpop.f32.mrf.mxu0
    %514 = vdwg.mxu0
    %v516 = vsel %vm85, %v171, 0
    %518 = vmatprep.subr.bf16.mxu0 0
    %519 = vmatpush1.bf16.xpose.msra.mxu0 0
    %520 = vmatprep.subr.bf16.mxu0 0
    %521 = vmatpush1.bf16.xpose.msra.mxu0 0
    %522 = vmatprep.subr.bf16.mxu0 0
    %523 = vmatpush1.bf16.xpose.msra.mxu0 0
    %524 = vmatprep.subr.bf16.mxu0 0
    %525 = vmatpush1.bf16.xpose.msra.mxu0 0
    %526 = vmatprep.subr.bf16.mxu0 0
    %527 = vmatpush1.bf16.xpose.msra.mxu0 0
    %528 = vmatprep.subr.bf16.mxu0 0
    %529 = vmatpush1.bf16.xpose.msra.mxu0 0
    %530 = vmatprep.subr.bf16.mxu0 0
    %531 = vmatpush1.bf16.xpose.msra.mxu0 0
    %532 = vmatprep.subr.bf16.mxu0 0
    %533 = vmatpush1.bf16.xpose.msra.mxu0 %v258
    %534 = vmatprep.subr.bf16.mxu0 0
    %535 = vmatpush2.bf16.xpose.msra.mxu0 0
    %536 = vmatprep.subr.bf16.mxu0 0
    %537 = vmatpush2.bf16.xpose.msra.mxu0 0
    %538 = vmatprep.subr.bf16.mxu0 0
    %539 = vmatpush2.bf16.xpose.msra.mxu0 0
    %540 = vmatprep.subr.bf16.mxu0 0
    %541 = vmatpush2.bf16.xpose.msra.mxu0 0
    %542 = vmatprep.subr.bf16.mxu0 0
    %543 = vmatpush2.bf16.xpose.msra.mxu0 0
    %544 = vmatprep.subr.bf16.mxu0 0
    %545 = vmatpush2.bf16.xpose.msra.mxu0 0
    %546 = vmatprep.subr.bf16.mxu0 0
    %547 = vmatpush2.bf16.xpose.msra.mxu0 0
    %548 = vmatprep.subr.bf16.mxu0 0
    %549 = vmatpush2.bf16.xpose.msra.mxu0 0
    %550 = vmatprep.mubr.bf16.mxu0 0
    %551 = vmatmul.mubr.bf16.gmra.mxu0 %v516
    %v552 = vpop.f32.mrf.mxu0
    %v553 = vadd.f32 0.0, %v552
    %v554 = vpop.f32.mrf.mxu0
    %v555 = vpop.f32.mrf.mxu0
    %v556 = vpop.f32.mrf.mxu0
    %557 = vdwg.mxu0
    %vm558 = vcmask 64512
    %v559 = vsel %vm558, %v246, -inf
    %560 = vmax.xlane.f32.xlu0 %v559
    %v561 = vpop.xlane.xlu0 %560
    %v562 = vsel %vm558, %v295, -inf
    %563 = vmax.xlane.f32.xlu0 %v562
    %v564 = vpop.xlane.xlu0 %563
    %v565 = vsel %vm558, %v338, -inf
    %566 = vmax.xlane.f32.xlu0 %v565
    %v567 = vpop.xlane.xlu0 %566
    %v568 = vsel %vm558, %v381, -inf
    %569 = vmax.xlane.f32.xlu0 %v568
    %v570 = vpop.xlane.xlu0 %569
    %v571 = vsel %vm558, %v424, -inf
    %572 = vmax.xlane.f32.xlu0 %v571
    %v573 = vpop.xlane.xlu0 %572
    %v574 = vsel %vm558, %v467, -inf
    %575 = vmax.xlane.f32.xlu0 %v574
    %v576 = vpop.xlane.xlu0 %575
    %v577 = vsel %vm558, %v510, -inf
    %578 = vmax.xlane.f32.xlu0 %v577
    %v579 = vpop.xlane.xlu0 %578
    %v580 = vsel %vm558, %v553, -inf
    %581 = vmax.xlane.f32.xlu0 %v580
    %v582 = vpop.xlane.xlu0 %581
    %v583 = vsub.f32 %v246, %v561
    %v584 = vsub.f32 %v295, %v564
    %v585 = vsub.f32 %v338, %v567
    %v586 = vsub.f32 %v381, %v570
    %v587 = vsub.f32 %v424, %v573
    %v588 = vsub.f32 %v467, %v576
    %v589 = vsub.f32 %v510, %v579
    %v590 = vsub.f32 %v553, %v582
    %v591 = vmul.f32 %v583, 1.442695
    %v592 = vpow.pop %v591
    %v593 = vmul.f32 %v584, 1.442695
    %v594 = vpow.pop %v593
    %v595 = vmul.f32 %v585, 1.442695
    %v596 = vpow.pop %v595
    %v597 = vmul.f32 %v586, 1.442695
    %v598 = vpow.pop %v597
    %v599 = vmul.f32 %v587, 1.442695
    %v600 = vpow.pop %v599
    %v601 = vmul.f32 %v588, 1.442695
    %v602 = vpow.pop %v601
    %v603 = vmul.f32 %v589, 1.442695
    %v604 = vpow.pop %v603
    %v605 = vmul.f32 %v590, 1.442695
    %v606 = vpow.pop %v605
    %v607 = vsel %vm558, %v592, 0.0
    %608 = vadd.xlane.f32.xlu0 %v607
    %v609 = vpop.xlane.xlu0 %608
    %v610 = vsel %vm558, %v594, 0.0
    %611 = vadd.xlane.f32.xlu0 %v610
    %v612 = vpop.xlane.xlu0 %611
    %v613 = vsel %vm558, %v596, 0.0
    %614 = vadd.xlane.f32.xlu0 %v613
    %v615 = vpop.xlane.xlu0 %614
    %v616 = vsel %vm558, %v598, 0.0
    %617 = vadd.xlane.f32.xlu0 %v616
    %v618 = vpop.xlane.xlu0 %617
    %v619 = vsel %vm558, %v600, 0.0
    %620 = vadd.xlane.f32.xlu0 %v619
    %v621 = vpop.xlane.xlu0 %620
    %v622 = vsel %vm558, %v602, 0.0
    %623 = vadd.xlane.f32.xlu0 %v622
    %v624 = vpop.xlane.xlu0 %623
    %v625 = vsel %vm558, %v604, 0.0
    %626 = vadd.xlane.f32.xlu0 %v625
    %v627 = vpop.xlane.xlu0 %626
    %v628 = vsel %vm558, %v606, 0.0
    %629 = vadd.xlane.f32.xlu0 %v628
    %v630 = vpop.xlane.xlu0 %629
    %v631 = vrcp.pop %v609
    %v632 = vrcp.pop %v612
    %v633 = vrcp.pop %v615
    %v634 = vrcp.pop %v618
    %v635 = vrcp.pop %v621
    %v636 = vrcp.pop %v624
    %v637 = vrcp.pop %v627
    %v638 = vrcp.pop %v630
    %v639 = vmul.f32 %v592, %v631
    %v640 = vmul.f32 %v594, %v632
    %v641 = vmul.f32 %v596, %v633
    %v642 = vmul.f32 %v598, %v634
    %v643 = vmul.f32 %v600, %v635
    %v644 = vmul.f32 %v602, %v636
    %v645 = vmul.f32 %v604, %v637
    %v646 = vmul.f32 %v606, %v638
    %v647 = vpack.c.bf16 %v639, %v639
    %v648 = vpack.c.bf16 %v640, %v640
    %v649 = vpack.c.bf16 %v641, %v641
    %v650 = vpack.c.bf16 %v642, %v642
    %v651 = vpack.c.bf16 %v643, %v643
    %v652 = vpack.c.bf16 %v644, %v644
    %v653 = vpack.c.bf16 %v645, %v645
    %v654 = vpack.c.bf16 %v646, %v646
    %656 = vrot.lane.b32.xlu0 %v194, 64
    %v657 = vpop.permute.xlu0 %656
    %v659 = vsel %vm558, %v647, 0
    %vm661 = vcmask 1043456
    %v663 = vsel %vm661, %v657, 0
    %665 = vmatprep.subr.bf16.mxu0 0
    %666 = vmatpush1.bf16.msra.mxu0 0
    %667 = vmatprep.subr.bf16.mxu0 0
    %668 = vmatpush1.bf16.msra.mxu0 0
    %669 = vmatprep.subr.bf16.mxu0 0
    %670 = vmatpush1.bf16.msra.mxu0 0
    %671 = vmatprep.subr.bf16.mxu0 0
    %672 = vmatpush1.bf16.msra.mxu0 0
    %673 = vmatprep.subr.bf16.mxu0 0
    %674 = vmatpush1.bf16.msra.mxu0 0
    %675 = vmatprep.subr.bf16.mxu0 0
    %676 = vmatpush1.bf16.msra.mxu0 0
    %677 = vmatprep.subr.bf16.mxu0 0
    %678 = vmatpush1.bf16.msra.mxu0 0
    %679 = vmatprep.subr.bf16.mxu0 0
    %680 = vmatpush1.bf16.msra.mxu0 %v663
    %681 = vmatprep.subr.bf16.mxu0 0
    %682 = vmatpush2.bf16.msra.mxu0 0
    %683 = vmatprep.subr.bf16.mxu0 0
    %684 = vmatpush2.bf16.msra.mxu0 0
    %685 = vmatprep.subr.bf16.mxu0 0
    %686 = vmatpush2.bf16.msra.mxu0 0
    %687 = vmatprep.subr.bf16.mxu0 0
    %688 = vmatpush2.bf16.msra.mxu0 0
    %689 = vmatprep.subr.bf16.mxu0 0
    %690 = vmatpush2.bf16.msra.mxu0 0
    %691 = vmatprep.subr.bf16.mxu0 0
    %692 = vmatpush2.bf16.msra.mxu0 0
    %693 = vmatprep.subr.bf16.mxu0 0
    %694 = vmatpush2.bf16.msra.mxu0 0
    %695 = vmatprep.subr.bf16.mxu0 0
    %696 = vmatpush2.bf16.msra.mxu0 0
    %697 = vmatprep.mubr.bf16.mxu0 0
    %698 = vmatmul.mubr.bf16.gmra.mxu0 %v659
    %v699 = vpop.f32.mrf.mxu0
    %v700 = vadd.f32 0.0, %v699
    %v701 = vpop.f32.mrf.mxu0
    %v702 = vpop.f32.mrf.mxu0
    %v703 = vpop.f32.mrf.mxu0
    %704 = vdwg.mxu0
    %706 = vrot.lane.b32.xlu0 %v195, 64
    %v707 = vpop.permute.xlu0 %706
    %v709 = vsel %vm558, %v648, 0
    %v712 = vsel %vm661, %v707, 0
    %714 = vmatprep.subr.bf16.mxu0 0
    %715 = vmatpush1.bf16.msra.mxu0 0
    %716 = vmatprep.subr.bf16.mxu0 0
    %717 = vmatpush1.bf16.msra.mxu0 0
    %718 = vmatprep.subr.bf16.mxu0 0
    %719 = vmatpush1.bf16.msra.mxu0 0
    %720 = vmatprep.subr.bf16.mxu0 0
    %721 = vmatpush1.bf16.msra.mxu0 0
    %722 = vmatprep.subr.bf16.mxu0 0
    %723 = vmatpush1.bf16.msra.mxu0 0
    %724 = vmatprep.subr.bf16.mxu0 0
    %725 = vmatpush1.bf16.msra.mxu0 0
    %726 = vmatprep.subr.bf16.mxu0 0
    %727 = vmatpush1.bf16.msra.mxu0 0
    %728 = vmatprep.subr.bf16.mxu0 0
    %729 = vmatpush1.bf16.msra.mxu0 %v712
    %730 = vmatprep.subr.bf16.mxu0 0
    %731 = vmatpush2.bf16.msra.mxu0 0
    %732 = vmatprep.subr.bf16.mxu0 0
    %733 = vmatpush2.bf16.msra.mxu0 0
    %734 = vmatprep.subr.bf16.mxu0 0
    %735 = vmatpush2.bf16.msra.mxu0 0
    %736 = vmatprep.subr.bf16.mxu0 0
    %737 = vmatpush2.bf16.msra.mxu0 0
    %738 = vmatprep.subr.bf16.mxu0 0
    %739 = vmatpush2.bf16.msra.mxu0 0
    %740 = vmatprep.subr.bf16.mxu0 0
    %741 = vmatpush2.bf16.msra.mxu0 0
    %742 = vmatprep.subr.bf16.mxu0 0
    %743 = vmatpush2.bf16.msra.mxu0 0
    %744 = vmatprep.subr.bf16.mxu0 0
    %745 = vmatpush2.bf16.msra.mxu0 0
    %746 = vmatprep.mubr.bf16.mxu0 0
    %747 = vmatmul.mubr.bf16.gmra.mxu0 %v709
    %v748 = vpop.f32.mrf.mxu0
    %v749 = vadd.f32 0.0, %v748
    %v750 = vpop.f32.mrf.mxu0
    %v751 = vpop.f32.mrf.mxu0
    %v752 = vpop.f32.mrf.mxu0
    %753 = vdwg.mxu0
    %755 = vrot.lane.b32.xlu0 %v196, 64
    %v756 = vpop.permute.xlu0 %755
    %v758 = vsel %vm558, %v649, 0
    %v761 = vsel %vm661, %v756, 0
    %763 = vmatprep.subr.bf16.mxu0 0
    %764 = vmatpush1.bf16.msra.mxu0 0
    %765 = vmatprep.subr.bf16.mxu0 0
    %766 = vmatpush1.bf16.msra.mxu0 0
    %767 = vmatprep.subr.bf16.mxu0 0
    %768 = vmatpush1.bf16.msra.mxu0 0
    %769 = vmatprep.subr.bf16.mxu0 0
    %770 = vmatpush1.bf16.msra.mxu0 0
    %771 = vmatprep.subr.bf16.mxu0 0
    %772 = vmatpush1.bf16.msra.mxu0 0
    %773 = vmatprep.subr.bf16.mxu0 0
    %774 = vmatpush1.bf16.msra.mxu0 0
    %775 = vmatprep.subr.bf16.mxu0 0
    %776 = vmatpush1.bf16.msra.mxu0 0
    %777 = vmatprep.subr.bf16.mxu0 0
    %778 = vmatpush1.bf16.msra.mxu0 %v761
    %779 = vmatprep.subr.bf16.mxu0 0
    %780 = vmatpush2.bf16.msra.mxu0 0
    %781 = vmatprep.subr.bf16.mxu0 0
    %782 = vmatpush2.bf16.msra.mxu0 0
    %783 = vmatprep.subr.bf16.mxu0 0
    %784 = vmatpush2.bf16.msra.mxu0 0
    %785 = vmatprep.subr.bf16.mxu0 0
    %786 = vmatpush2.bf16.msra.mxu0 0
    %787 = vmatprep.subr.bf16.mxu0 0
    %788 = vmatpush2.bf16.msra.mxu0 0
    %789 = vmatprep.subr.bf16.mxu0 0
    %790 = vmatpush2.bf16.msra.mxu0 0
    %791 = vmatprep.subr.bf16.mxu0 0
    %792 = vmatpush2.bf16.msra.mxu0 0
    %793 = vmatprep.subr.bf16.mxu0 0
    %794 = vmatpush2.bf16.msra.mxu0 0
    %795 = vmatprep.mubr.bf16.mxu0 0
    %796 = vmatmul.mubr.bf16.gmra.mxu0 %v758
    %v797 = vpop.f32.mrf.mxu0
    %v798 = vadd.f32 0.0, %v797
    %v799 = vpop.f32.mrf.mxu0
    %v800 = vpop.f32.mrf.mxu0
    %v801 = vpop.f32.mrf.mxu0
    %802 = vdwg.mxu0
    %804 = vrot.lane.b32.xlu0 %v197, 64
    %v805 = vpop.permute.xlu0 %804
    %v807 = vsel %vm558, %v650, 0
    %v810 = vsel %vm661, %v805, 0
    %812 = vmatprep.subr.bf16.mxu0 0
    %813 = vmatpush1.bf16.msra.mxu0 0
    %814 = vmatprep.subr.bf16.mxu0 0
    %815 = vmatpush1.bf16.msra.mxu0 0
    %816 = vmatprep.subr.bf16.mxu0 0
    %817 = vmatpush1.bf16.msra.mxu0 0
    %818 = vmatprep.subr.bf16.mxu0 0
    %819 = vmatpush1.bf16.msra.mxu0 0
    %820 = vmatprep.subr.bf16.mxu0 0
    %821 = vmatpush1.bf16.msra.mxu0 0
    %822 = vmatprep.subr.bf16.mxu0 0
    %823 = vmatpush1.bf16.msra.mxu0 0
    %824 = vmatprep.subr.bf16.mxu0 0
    %825 = vmatpush1.bf16.msra.mxu0 0
    %826 = vmatprep.subr.bf16.mxu0 0
    %827 = vmatpush1.bf16.msra.mxu0 %v810
    %828 = vmatprep.subr.bf16.mxu0 0
    %829 = vmatpush2.bf16.msra.mxu0 0
    %830 = vmatprep.subr.bf16.mxu0 0
    %831 = vmatpush2.bf16.msra.mxu0 0
    %832 = vmatprep.subr.bf16.mxu0 0
    %833 = vmatpush2.bf16.msra.mxu0 0
    %834 = vmatprep.subr.bf16.mxu0 0
    %835 = vmatpush2.bf16.msra.mxu0 0
    %836 = vmatprep.subr.bf16.mxu0 0
    %837 = vmatpush2.bf16.msra.mxu0 0
    %838 = vmatprep.subr.bf16.mxu0 0
    %839 = vmatpush2.bf16.msra.mxu0 0
    %840 = vmatprep.subr.bf16.mxu0 0
    %841 = vmatpush2.bf16.msra.mxu0 0
    %842 = vmatprep.subr.bf16.mxu0 0
    %843 = vmatpush2.bf16.msra.mxu0 0
    %844 = vmatprep.mubr.bf16.mxu0 0
    %845 = vmatmul.mubr.bf16.gmra.mxu0 %v807
    %v846 = vpop.f32.mrf.mxu0
    %v847 = vadd.f32 0.0, %v846
    %v848 = vpop.f32.mrf.mxu0
    %v849 = vpop.f32.mrf.mxu0
    %v850 = vpop.f32.mrf.mxu0
    %851 = vdwg.mxu0
    %853 = vrot.lane.b32.xlu0 %v198, 64
    %v854 = vpop.permute.xlu0 %853
    %v856 = vsel %vm558, %v651, 0
    %v859 = vsel %vm661, %v854, 0
    %861 = vmatprep.subr.bf16.mxu0 0
    %862 = vmatpush1.bf16.msra.mxu0 0
    %863 = vmatprep.subr.bf16.mxu0 0
    %864 = vmatpush1.bf16.msra.mxu0 0
    %865 = vmatprep.subr.bf16.mxu0 0
    %866 = vmatpush1.bf16.msra.mxu0 0
    %867 = vmatprep.subr.bf16.mxu0 0
    %868 = vmatpush1.bf16.msra.mxu0 0
    %869 = vmatprep.subr.bf16.mxu0 0
    %870 = vmatpush1.bf16.msra.mxu0 0
    %871 = vmatprep.subr.bf16.mxu0 0
    %872 = vmatpush1.bf16.msra.mxu0 0
    %873 = vmatprep.subr.bf16.mxu0 0
    %874 = vmatpush1.bf16.msra.mxu0 0
    %875 = vmatprep.subr.bf16.mxu0 0
    %876 = vmatpush1.bf16.msra.mxu0 %v859
    %877 = vmatprep.subr.bf16.mxu0 0
    %878 = vmatpush2.bf16.msra.mxu0 0
    %879 = vmatprep.subr.bf16.mxu0 0
    %880 = vmatpush2.bf16.msra.mxu0 0
    %881 = vmatprep.subr.bf16.mxu0 0
    %882 = vmatpush2.bf16.msra.mxu0 0
    %883 = vmatprep.subr.bf16.mxu0 0
    %884 = vmatpush2.bf16.msra.mxu0 0
    %885 = vmatprep.subr.bf16.mxu0 0
    %886 = vmatpush2.bf16.msra.mxu0 0
    %887 = vmatprep.subr.bf16.mxu0 0
    %888 = vmatpush2.bf16.msra.mxu0 0
    %889 = vmatprep.subr.bf16.mxu0 0
    %890 = vmatpush2.bf16.msra.mxu0 0
    %891 = vmatprep.subr.bf16.mxu0 0
    %892 = vmatpush2.bf16.msra.mxu0 0
    %893 = vmatprep.mubr.bf16.mxu0 0
    %894 = vmatmul.mubr.bf16.gmra.mxu0 %v856
    %v895 = vpop.f32.mrf.mxu0
    %v896 = vadd.f32 0.0, %v895
    %v897 = vpop.f32.mrf.mxu0
    %v898 = vpop.f32.mrf.mxu0
    %v899 = vpop.f32.mrf.mxu0
    %900 = vdwg.mxu0
    %902 = vrot.lane.b32.xlu0 %v199, 64
    %v903 = vpop.permute.xlu0 %902
    %v905 = vsel %vm558, %v652, 0
    %v908 = vsel %vm661, %v903, 0
    %910 = vmatprep.subr.bf16.mxu0 0
    %911 = vmatpush1.bf16.msra.mxu0 0
    %912 = vmatprep.subr.bf16.mxu0 0
    %913 = vmatpush1.bf16.msra.mxu0 0
    %914 = vmatprep.subr.bf16.mxu0 0
    %915 = vmatpush1.bf16.msra.mxu0 0
    %916 = vmatprep.subr.bf16.mxu0 0
    %917 = vmatpush1.bf16.msra.mxu0 0
    %918 = vmatprep.subr.bf16.mxu0 0
    %919 = vmatpush1.bf16.msra.mxu0 0
    %920 = vmatprep.subr.bf16.mxu0 0
    %921 = vmatpush1.bf16.msra.mxu0 0
    %922 = vmatprep.subr.bf16.mxu0 0
    %923 = vmatpush1.bf16.msra.mxu0 0
    %924 = vmatprep.subr.bf16.mxu0 0
    %925 = vmatpush1.bf16.msra.mxu0 %v908
    %926 = vmatprep.subr.bf16.mxu0 0
    %927 = vmatpush2.bf16.msra.mxu0 0
    %928 = vmatprep.subr.bf16.mxu0 0
    %929 = vmatpush2.bf16.msra.mxu0 0
    %930 = vmatprep.subr.bf16.mxu0 0
    %931 = vmatpush2.bf16.msra.mxu0 0
    %932 = vmatprep.subr.bf16.mxu0 0
    %933 = vmatpush2.bf16.msra.mxu0 0
    %934 = vmatprep.subr.bf16.mxu0 0
    %935 = vmatpush2.bf16.msra.mxu0 0
    %936 = vmatprep.subr.bf16.mxu0 0
    %937 = vmatpush2.bf16.msra.mxu0 0
    %938 = vmatprep.subr.bf16.mxu0 0
    %939 = vmatpush2.bf16.msra.mxu0 0
    %940 = vmatprep.subr.bf16.mxu0 0
    %941 = vmatpush2.bf16.msra.mxu0 0
    %942 = vmatprep.mubr.bf16.mxu0 0
    %943 = vmatmul.mubr.bf16.gmra.mxu0 %v905
    %v944 = vpop.f32.mrf.mxu0
    %v945 = vadd.f32 0.0, %v944
    %v946 = vpop.f32.mrf.mxu0
    %v947 = vpop.f32.mrf.mxu0
    %v948 = vpop.f32.mrf.mxu0
    %949 = vdwg.mxu0
    %951 = vrot.lane.b32.xlu0 %v200, 64
    %v952 = vpop.permute.xlu0 %951
    %v954 = vsel %vm558, %v653, 0
    %v957 = vsel %vm661, %v952, 0
    %959 = vmatprep.subr.bf16.mxu0 0
    %960 = vmatpush1.bf16.msra.mxu0 0
    %961 = vmatprep.subr.bf16.mxu0 0
    %962 = vmatpush1.bf16.msra.mxu0 0
    %963 = vmatprep.subr.bf16.mxu0 0
    %964 = vmatpush1.bf16.msra.mxu0 0
    %965 = vmatprep.subr.bf16.mxu0 0
    %966 = vmatpush1.bf16.msra.mxu0 0
    %967 = vmatprep.subr.bf16.mxu0 0
    %968 = vmatpush1.bf16.msra.mxu0 0
    %969 = vmatprep.subr.bf16.mxu0 0
    %970 = vmatpush1.bf16.msra.mxu0 0
    %971 = vmatprep.subr.bf16.mxu0 0
    %972 = vmatpush1.bf16.msra.mxu0 0
    %973 = vmatprep.subr.bf16.mxu0 0
    %974 = vmatpush1.bf16.msra.mxu0 %v957
    %975 = vmatprep.subr.bf16.mxu0 0
    %976 = vmatpush2.bf16.msra.mxu0 0
    %977 = vmatprep.subr.bf16.mxu0 0
    %978 = vmatpush2.bf16.msra.mxu0 0
    %979 = vmatprep.subr.bf16.mxu0 0
    %980 = vmatpush2.bf16.msra.mxu0 0
    %981 = vmatprep.subr.bf16.mxu0 0
    %982 = vmatpush2.bf16.msra.mxu0 0
    %983 = vmatprep.subr.bf16.mxu0 0
    %984 = vmatpush2.bf16.msra.mxu0 0
    %985 = vmatprep.subr.bf16.mxu0 0
    %986 = vmatpush2.bf16.msra.mxu0 0
    %987 = vmatprep.subr.bf16.mxu0 0
    %988 = vmatpush2.bf16.msra.mxu0 0
    %989 = vmatprep.subr.bf16.mxu0 0
    %990 = vmatpush2.bf16.msra.mxu0 0
    %991 = vmatprep.mubr.bf16.mxu0 0
    %992 = vmatmul.mubr.bf16.gmra.mxu0 %v954
    %v993 = vpop.f32.mrf.mxu0
    %v994 = vadd.f32 0.0, %v993
    %v995 = vpop.f32.mrf.mxu0
    %v996 = vpop.f32.mrf.mxu0
    %v997 = vpop.f32.mrf.mxu0
    %998 = vdwg.mxu0
    %1000 = vrot.lane.b32.xlu0 %v201, 64
    %v1001 = vpop.permute.xlu0 %1000
    %v1003 = vsel %vm558, %v654, 0
    %v1006 = vsel %vm661, %v1001, 0
    %1008 = vmatprep.subr.bf16.mxu0 0
    %1009 = vmatpush1.bf16.msra.mxu0 0
    %1010 = vmatprep.subr.bf16.mxu0 0
    %1011 = vmatpush1.bf16.msra.mxu0 0
    %1012 = vmatprep.subr.bf16.mxu0 0
    %1013 = vmatpush1.bf16.msra.mxu0 0
    %1014 = vmatprep.subr.bf16.mxu0 0
    %1015 = vmatpush1.bf16.msra.mxu0 0
    %1016 = vmatprep.subr.bf16.mxu0 0
    %1017 = vmatpush1.bf16.msra.mxu0 0
    %1018 = vmatprep.subr.bf16.mxu0 0
    %1019 = vmatpush1.bf16.msra.mxu0 0
    %1020 = vmatprep.subr.bf16.mxu0 0
    %1021 = vmatpush1.bf16.msra.mxu0 0
    %1022 = vmatprep.subr.bf16.mxu0 0
    %1023 = vmatpush1.bf16.msra.mxu0 %v1006
    %1024 = vmatprep.subr.bf16.mxu0 0
    %1025 = vmatpush2.bf16.msra.mxu0 0
    %1026 = vmatprep.subr.bf16.mxu0 0
    %1027 = vmatpush2.bf16.msra.mxu0 0
    %1028 = vmatprep.subr.bf16.mxu0 0
    %1029 = vmatpush2.bf16.msra.mxu0 0
    %1030 = vmatprep.subr.bf16.mxu0 0
    %1031 = vmatpush2.bf16.msra.mxu0 0
    %1032 = vmatprep.subr.bf16.mxu0 0
    %1033 = vmatpush2.bf16.msra.mxu0 0
    %1034 = vmatprep.subr.bf16.mxu0 0
    %1035 = vmatpush2.bf16.msra.mxu0 0
    %1036 = vmatprep.subr.bf16.mxu0 0
    %1037 = vmatpush2.bf16.msra.mxu0 0
    %1038 = vmatprep.subr.bf16.mxu0 0
    %1039 = vmatpush2.bf16.msra.mxu0 0
    %1040 = vmatprep.mubr.bf16.mxu0 0
    %1041 = vmatmul.mubr.bf16.gmra.mxu0 %v1003
    %v1042 = vpop.f32.mrf.mxu0
    %v1043 = vadd.f32 0.0, %v1042
    %v1044 = vpop.f32.mrf.mxu0
    %v1045 = vpop.f32.mrf.mxu0
    %v1046 = vpop.f32.mrf.mxu0
    %1047 = vdwg.mxu0
    %v1048 = vsel %vm85, %v700, 0.0
    %v1049 = vsel %vm85, %v798, 0.0
    %v1050 = vadd.f32 %v1048, %v1049
    %v1051 = vsel %vm85, %v896, 0.0
    %v1052 = vadd.f32 %v1050, %v1051
    %v1053 = vsel %vm85, %v994, 0.0
    %v1054 = vadd.f32 %v1052, %v1053
    %v1055 = vsel %vm85, %v749, 0.0
    %v1056 = vsel %vm85, %v847, 0.0
    %v1057 = vadd.f32 %v1055, %v1056
    %v1058 = vsel %vm85, %v945, 0.0
    %v1059 = vadd.f32 %v1057, %v1058
    %v1060 = vsel %vm85, %v1043, 0.0
    %v1061 = vadd.f32 %v1059, %v1060
    %v1062 = vpack.c.bf16 %v1061, %v1054
    %v1063 = vld [vmem:[%s4] sm:$0xf]
    %v1064 = vld [vmem:[%s4 + $0x4] sm:$0xf]
    %v1065 = vld [vmem:[%s4 + $0x8] sm:$0xf]
    %v1066 = vld [vmem:[%s4 + $0xc] sm:$0xf]
    %v1067 = vld [vmem:[%s5] sm:$0x1]
    %v1069 = vlaneseq
    %v1070 = vshrl.u32 %v1069, 7
    %v1071 = vsub.s32 0, %v1070
    %v1072 = vrot.slane %v1067, %v1071
    %v1078 = vunpack.c.l.b16 %v1063
    %v1079 = vunpack.c.l.b16 %v1064
    %v1080 = vunpack.c.l.b16 %v1065
    %v1081 = vunpack.c.l.b16 %v1066
    %v1082 = vpack.c.b16 %v1079, %v1078
    %v1083 = vpack.c.b16 %v1081, %v1080
    %v1087 = vsel %vm85, %v1062, 0
    %1089 = vmatprep.subr.bf16.mxu0 0
    %1090 = vmatpush1.bf16.msra.mxu0 0
    %1091 = vmatprep.subr.bf16.mxu0 0
    %1092 = vmatpush1.bf16.msra.mxu0 0
    %1093 = vmatprep.subr.bf16.mxu0 0
    %1094 = vmatpush1.bf16.msra.mxu0 0
    %1095 = vmatprep.subr.bf16.mxu0 0
    %1096 = vmatpush1.bf16.msra.mxu0 0
    %1097 = vmatprep.subr.bf16.mxu0 0
    %1098 = vmatpush1.bf16.msra.mxu0 0
    %1099 = vmatprep.subr.bf16.mxu0 0
    %1100 = vmatpush1.bf16.msra.mxu0 0
    %1101 = vmatprep.subr.bf16.mxu0 0
    %1102 = vmatpush1.bf16.msra.mxu0 %v1083
    %1103 = vmatprep.subr.bf16.mxu0 0
    %1104 = vmatpush1.bf16.msra.mxu0 %v1082
    %1105 = vmatprep.subr.bf16.mxu0 0
    %1106 = vmatpush2.bf16.msra.mxu0 0
    %1107 = vmatprep.subr.bf16.mxu0 0
    %1108 = vmatpush2.bf16.msra.mxu0 0
    %1109 = vmatprep.subr.bf16.mxu0 0
    %1110 = vmatpush2.bf16.msra.mxu0 0
    %1111 = vmatprep.subr.bf16.mxu0 0
    %1112 = vmatpush2.bf16.msra.mxu0 0
    %1113 = vmatprep.subr.bf16.mxu0 0
    %1114 = vmatpush2.bf16.msra.mxu0 0
    %1115 = vmatprep.subr.bf16.mxu0 0
    %1116 = vmatpush2.bf16.msra.mxu0 0
    %1117 = vmatprep.subr.bf16.mxu0 0
    %1118 = vmatpush2.bf16.msra.mxu0 0
    %1119 = vmatprep.subr.bf16.mxu0 0
    %1120 = vmatpush2.bf16.msra.mxu0 0
    %1121 = vmatprep.mubr.bf16.mxu0 0
    %1122 = vmatmul.mubr.bf16.gmra.mxu0 %v1087
    %v1123 = vpop.f32.mrf.mxu0
    %v1124 = vadd.f32 %v1072, %v1123
    %v1125 = vpop.f32.mrf.mxu0
    %v1126 = vpop.f32.mrf.mxu0
    %v1127 = vadd.f32 %v1072, %v1126
    %v1128 = vpop.f32.mrf.mxu0
    %1129 = vdwg.mxu0
    %v1130 = vadd.f32 %v55, %v1124
    %v1131 = vadd.f32 %v56, %v1127
    %v1132 = vld [vmem:[%s6] sm:$0x1]
    %v1133 = vld [vmem:[%s7] sm:$0x1]
    %v1134 = vsel %vm85, %v1130, 0.0
    %1135 = vadd.xlane.f32.xlu0 %v1134
    %v1136 = vpop.xlane.xlu0 %1135
    %v1137 = vsel %vm85, %v1131, 0.0
    %1138 = vadd.xlane.f32.xlu0 %v1137
    %v1139 = vpop.xlane.xlu0 %1138
    %v1140 = vrcp.pop 32.0
    %v1141 = vmul.f32 %v1136, %v1140
    %v1142 = vmul.f32 %v1139, %v1140
    %v1143 = vsub.f32 %v1130, %v1141
    %v1144 = vsub.f32 %v1131, %v1142
    %v1145 = vmul.f32 %v1143, %v1143
    %v1146 = vmul.f32 %v1144, %v1144
    %v1147 = vsel %vm85, %v1145, 0.0
    %1148 = vadd.xlane.f32.xlu0 %v1147
    %v1149 = vpop.xlane.xlu0 %1148
    %v1150 = vsel %vm85, %v1146, 0.0
    %1151 = vadd.xlane.f32.xlu0 %v1150
    %v1152 = vpop.xlane.xlu0 %1151
    %v1153 = vmul.f32 %v1149, %v1140
    %v1154 = vmul.f32 %v1152, %v1140
    %v1155 = vadd.f32 %v1153, 1e-05
    %v1156 = vadd.f32 %v1154, 1e-05
    %v1157 = vrsqrt.pop %v1155
    %v1158 = vrsqrt.pop %v1156
    %v1159 = vmul.f32 %v1143, %v1157
    %v1160 = vmul.f32 %v1144, %v1158
    %v1162 = vlaneseq
    %v1163 = vshrl.u32 %v1162, 7
    %v1164 = vsub.s32 0, %v1163
    %v1165 = vrot.slane %v1132, %v1164
    %v1167 = vmul.f32 %v1159, %v1165
    %v1168 = vmul.f32 %v1160, %v1165
    %v1170 = vlaneseq
    %v1171 = vshrl.u32 %v1170, 7
    %v1172 = vsub.s32 0, %v1171
    %v1173 = vrot.slane %v1133, %v1172
    %v1175 = vadd.f32 %v1167, %v1173
    %v1176 = vadd.f32 %v1168, %v1173
    %v1177 = vpack.c.bf16 %v1176, %v1175
    %v1178 = vld [vmem:[%s10] sm:$0xff]
    %v1179 = vld [vmem:[%s10 + $0x8] sm:$0xff]
    %v1180 = vld [vmem:[%s10 + $0x10] sm:$0xff]
    %v1181 = vld [vmem:[%s10 + $0x18] sm:$0xff]
    %v1182 = vld [vmem:[%s10 + $0x20] sm:$0xff]
    %v1183 = vld [vmem:[%s10 + $0x28] sm:$0xff]
    %v1184 = vld [vmem:[%s10 + $0x30] sm:$0xff]
    %v1185 = vld [vmem:[%s10 + $0x38] sm:$0xff]
    %v1186 = vld [vmem:[%s10 + $0x40] sm:$0xff]
    %v1187 = vld [vmem:[%s10 + $0x48] sm:$0xff]
    %v1188 = vld [vmem:[%s10 + $0x50] sm:$0xff]
    %v1189 = vld [vmem:[%s10 + $0x58] sm:$0xff]
    %v1190 = vld [vmem:[%s10 + $0x60] sm:$0xff]
    %v1191 = vld [vmem:[%s10 + $0x68] sm:$0xff]
    %v1192 = vld [vmem:[%s10 + $0x70] sm:$0xff]
    %v1193 = vld [vmem:[%s10 + $0x78] sm:$0xff]
    %v1194 = vld [vmem:[%s10 + $0x80] sm:$0xff]
    %v1195 = vld [vmem:[%s10 + $0x88] sm:$0xff]
    %v1196 = vld [vmem:[%s10 + $0x90] sm:$0xff]
    %v1197 = vld [vmem:[%s10 + $0x98] sm:$0xff]
    %v1198 = vld [vmem:[%s10 + $0xa0] sm:$0xff]
    %v1199 = vld [vmem:[%s10 + $0xa8] sm:$0xff]
    %v1200 = vld [vmem:[%s10 + $0xb0] sm:$0xff]
    %v1201 = vld [vmem:[%s10 + $0xb8] sm:$0xff]
    %v1202 = vld [vmem:[%s10 + $0xc0] sm:$0xff]
    %v1203 = vld [vmem:[%s10 + $0xc8] sm:$0xff]
    %v1204 = vld [vmem:[%s10 + $0xd0] sm:$0xff]
    %v1205 = vld [vmem:[%s10 + $0xd8] sm:$0xff]
    %v1206 = vld [vmem:[%s10 + $0xe0] sm:$0xff]
    %v1207 = vld [vmem:[%s10 + $0xe8] sm:$0xff]
    %v1208 = vld [vmem:[%s10 + $0xf0] sm:$0xff]
    %v1209 = vld [vmem:[%s10 + $0xf8] sm:$0xff]
    %v1210 = vld [vmem:[%s11] sm:$0xff]
    %v1211 = vld [vmem:[%s11 + $0x8] sm:$0xff]
    %v1214 = vlaneseq
    %v1215 = vshrl.u32 %v1214, 7
    %v1216 = vsub.s32 0, %v1215
    %v1217 = vrot.slane %v1210, %v1216
    %v1218 = vlaneseq
    %v1219 = vshrl.u32 %v1218, 7
    %v1220 = vsub.s32 1, %v1219
    %v1221 = vrot.slane %v1210, %v1220
    %v1222 = vlaneseq
    %v1223 = vshrl.u32 %v1222, 7
    %v1224 = vsub.s32 2, %v1223
    %v1225 = vrot.slane %v1210, %v1224
    %v1226 = vlaneseq
    %v1227 = vshrl.u32 %v1226, 7
    %v1228 = vsub.s32 3, %v1227
    %v1229 = vrot.slane %v1210, %v1228
    %v1230 = vlaneseq
    %v1231 = vshrl.u32 %v1230, 7
    %v1232 = vsub.s32 4, %v1231
    %v1233 = vrot.slane %v1210, %v1232
    %v1234 = vlaneseq
    %v1235 = vshrl.u32 %v1234, 7
    %v1236 = vsub.s32 5, %v1235
    %v1237 = vrot.slane %v1210, %v1236
    %v1238 = vlaneseq
    %v1239 = vshrl.u32 %v1238, 7
    %v1240 = vsub.s32 6, %v1239
    %v1241 = vrot.slane %v1210, %v1240
    %v1242 = vlaneseq
    %v1243 = vshrl.u32 %v1242, 7
    %v1244 = vsub.s32 7, %v1243
    %v1245 = vrot.slane %v1210, %v1244
    %v1246 = vlaneseq
    %v1247 = vshrl.u32 %v1246, 7
    %v1248 = vsub.s32 0, %v1247
    %v1249 = vrot.slane %v1211, %v1248
    %v1250 = vlaneseq
    %v1251 = vshrl.u32 %v1250, 7
    %v1252 = vsub.s32 1, %v1251
    %v1253 = vrot.slane %v1211, %v1252
    %v1254 = vlaneseq
    %v1255 = vshrl.u32 %v1254, 7
    %v1256 = vsub.s32 2, %v1255
    %v1257 = vrot.slane %v1211, %v1256
    %v1258 = vlaneseq
    %v1259 = vshrl.u32 %v1258, 7
    %v1260 = vsub.s32 3, %v1259
    %v1261 = vrot.slane %v1211, %v1260
    %v1262 = vlaneseq
    %v1263 = vshrl.u32 %v1262, 7
    %v1264 = vsub.s32 4, %v1263
    %v1265 = vrot.slane %v1211, %v1264
    %v1266 = vlaneseq
    %v1267 = vshrl.u32 %v1266, 7
    %v1268 = vsub.s32 5, %v1267
    %v1269 = vrot.slane %v1211, %v1268
    %v1270 = vlaneseq
    %v1271 = vshrl.u32 %v1270, 7
    %v1272 = vsub.s32 6, %v1271
    %v1273 = vrot.slane %v1211, %v1272
    %v1274 = vlaneseq
    %v1275 = vshrl.u32 %v1274, 7
    %v1276 = vsub.s32 7, %v1275
    %v1277 = vrot.slane %v1211, %v1276
    %v1326 = vunpack.c.l.b16 %v1178
    %v1327 = vunpack.c.h.b16 %v1178
    %v1328 = vunpack.c.l.b16 %v1179
    %v1329 = vunpack.c.h.b16 %v1179
    %v1330 = vunpack.c.l.b16 %v1180
    %v1331 = vunpack.c.h.b16 %v1180
    %v1332 = vunpack.c.l.b16 %v1181
    %v1333 = vunpack.c.h.b16 %v1181
    %v1334 = vunpack.c.l.b16 %v1182
    %v1335 = vunpack.c.h.b16 %v1182
    %v1336 = vunpack.c.l.b16 %v1183
    %v1337 = vunpack.c.h.b16 %v1183
    %v1338 = vunpack.c.l.b16 %v1184
    %v1339 = vunpack.c.h.b16 %v1184
    %v1340 = vunpack.c.l.b16 %v1185
    %v1341 = vunpack.c.h.b16 %v1185
    %v1342 = vunpack.c.l.b16 %v1186
    %v1343 = vunpack.c.h.b16 %v1186
    %v1344 = vunpack.c.l.b16 %v1187
    %v1345 = vunpack.c.h.b16 %v1187
    %v1346 = vunpack.c.l.b16 %v1188
    %v1347 = vunpack.c.h.b16 %v1188
    %v1348 = vunpack.c.l.b16 %v1189
    %v1349 = vunpack.c.h.b16 %v1189
    %v1350 = vunpack.c.l.b16 %v1190
    %v1351 = vunpack.c.h.b16 %v1190
    %v1352 = vunpack.c.l.b16 %v1191
    %v1353 = vunpack.c.h.b16 %v1191
    %v1354 = vunpack.c.l.b16 %v1192
    %v1355 = vunpack.c.h.b16 %v1192
    %v1356 = vunpack.c.l.b16 %v1193
    %v1357 = vunpack.c.h.b16 %v1193
    %v1358 = vunpack.c.l.b16 %v1194
    %v1359 = vunpack.c.h.b16 %v1194
    %v1360 = vunpack.c.l.b16 %v1195
    %v1361 = vunpack.c.h.b16 %v1195
    %v1362 = vunpack.c.l.b16 %v1196
    %v1363 = vunpack.c.h.b16 %v1196
    %v1364 = vunpack.c.l.b16 %v1197
    %v1365 = vunpack.c.h.b16 %v1197
    %v1366 = vunpack.c.l.b16 %v1198
    %v1367 = vunpack.c.h.b16 %v1198
    %v1368 = vunpack.c.l.b16 %v1199
    %v1369 = vunpack.c.h.b16 %v1199
    %v1370 = vunpack.c.l.b16 %v1200
    %v1371 = vunpack.c.h.b16 %v1200
    %v1372 = vunpack.c.l.b16 %v1201
    %v1373 = vunpack.c.h.b16 %v1201
    %v1374 = vunpack.c.l.b16 %v1202
    %v1375 = vunpack.c.h.b16 %v1202
    %v1376 = vunpack.c.l.b16 %v1203
    %v1377 = vunpack.c.h.b16 %v1203
    %v1378 = vunpack.c.l.b16 %v1204
    %v1379 = vunpack.c.h.b16 %v1204
    %v1380 = vunpack.c.l.b16 %v1205
    %v1381 = vunpack.c.h.b16 %v1205
    %v1382 = vunpack.c.l.b16 %v1206
    %v1383 = vunpack.c.h.b16 %v1206
    %v1384 = vunpack.c.l.b16 %v1207
    %v1385 = vunpack.c.h.b16 %v1207
    %v1386 = vunpack.c.l.b16 %v1208
    %v1387 = vunpack.c.h.b16 %v1208
    %v1388 = vunpack.c.l.b16 %v1209
    %v1389 = vunpack.c.h.b16 %v1209
    %v1390 = vpack.c.b16 %v1342, %v1326
    %v1391 = vpack.c.b16 %v1343, %v1327
    %v1392 = vpack.c.b16 %v1344, %v1328
    %v1393 = vpack.c.b16 %v1345, %v1329
    %v1394 = vpack.c.b16 %v1346, %v1330
    %v1395 = vpack.c.b16 %v1347, %v1331
    %v1396 = vpack.c.b16 %v1348, %v1332
    %v1397 = vpack.c.b16 %v1349, %v1333
    %v1398 = vpack.c.b16 %v1350, %v1334
    %v1399 = vpack.c.b16 %v1351, %v1335
    %v1400 = vpack.c.b16 %v1352, %v1336
    %v1401 = vpack.c.b16 %v1353, %v1337
    %v1402 = vpack.c.b16 %v1354, %v1338
    %v1403 = vpack.c.b16 %v1355, %v1339
    %v1404 = vpack.c.b16 %v1356, %v1340
    %v1405 = vpack.c.b16 %v1357, %v1341
    %v1406 = vpack.c.b16 %v1374, %v1358
    %v1407 = vpack.c.b16 %v1375, %v1359
    %v1408 = vpack.c.b16 %v1376, %v1360
    %v1409 = vpack.c.b16 %v1377, %v1361
    %v1410 = vpack.c.b16 %v1378, %v1362
    %v1411 = vpack.c.b16 %v1379, %v1363
    %v1412 = vpack.c.b16 %v1380, %v1364
    %v1413 = vpack.c.b16 %v1381, %v1365
    %v1414 = vpack.c.b16 %v1382, %v1366
    %v1415 = vpack.c.b16 %v1383, %v1367
    %v1416 = vpack.c.b16 %v1384, %v1368
    %v1417 = vpack.c.b16 %v1385, %v1369
    %v1418 = vpack.c.b16 %v1386, %v1370
    %v1419 = vpack.c.b16 %v1387, %v1371
    %v1420 = vpack.c.b16 %v1388, %v1372
    %v1421 = vpack.c.b16 %v1389, %v1373
    %v1455 = vsel %vm85, %v1177, 0
    %1457 = vmatprep.subr.bf16.mxu0 0
    %1458 = vmatpush1.bf16.msra.mxu0 0
    %1459 = vmatprep.subr.bf16.mxu0 0
    %1460 = vmatpush1.bf16.msra.mxu0 0
    %1461 = vmatprep.subr.bf16.mxu0 0
    %1462 = vmatpush1.bf16.msra.mxu0 0
    %1463 = vmatprep.subr.bf16.mxu0 0
    %1464 = vmatpush1.bf16.msra.mxu0 0
    %1465 = vmatprep.subr.bf16.mxu0 0
    %1466 = vmatpush1.bf16.msra.mxu0 0
    %1467 = vmatprep.subr.bf16.mxu0 0
    %1468 = vmatpush1.bf16.msra.mxu0 0
    %1469 = vmatprep.subr.bf16.mxu0 %v1407
    %1470 = vmatpush1.bf16.msra.mxu0 %v1406
    %1471 = vmatprep.subr.bf16.mxu0 %v1391
    %1472 = vmatpush1.bf16.msra.mxu0 %v1390
    %1473 = vmatprep.subr.bf16.mxu0 0
    %1474 = vmatpush2.bf16.msra.mxu0 0
    %1475 = vmatprep.subr.bf16.mxu0 0
    %1476 = vmatpush2.bf16.msra.mxu0 0
    %1477 = vmatprep.subr.bf16.mxu0 0
    %1478 = vmatpush2.bf16.msra.mxu0 0
    %1479 = vmatprep.subr.bf16.mxu0 0
    %1480 = vmatpush2.bf16.msra.mxu0 0
    %1481 = vmatprep.subr.bf16.mxu0 0
    %1482 = vmatpush2.bf16.msra.mxu0 0
    %1483 = vmatprep.subr.bf16.mxu0 0
    %1484 = vmatpush2.bf16.msra.mxu0 0
    %1485 = vmatprep.subr.bf16.mxu0 0
    %1486 = vmatpush2.bf16.msra.mxu0 0
    %1487 = vmatprep.subr.bf16.mxu0 0
    %1488 = vmatpush2.bf16.msra.mxu0 0
    %1489 = vmatprep.mubr.bf16.mxu0 0
    %1490 = vmatmul.mubr.bf16.gmra.mxu0 %v1455
    %v1491 = vpop.f32.mrf.mxu0
    %v1492 = vadd.f32 %v1217, %v1491
    %v1493 = vpop.f32.mrf.mxu0
    %v1494 = vadd.f32 %v1221, %v1493
    %v1495 = vpop.f32.mrf.mxu0
    %v1496 = vadd.f32 %v1217, %v1495
    %v1497 = vpop.f32.mrf.mxu0
    %v1498 = vadd.f32 %v1221, %v1497
    %1499 = vdwg.mxu0
    %1500 = vmatprep.subr.bf16.mxu0 0
    %1501 = vmatpush1.bf16.msra.mxu0 0
    %1502 = vmatprep.subr.bf16.mxu0 0
    %1503 = vmatpush1.bf16.msra.mxu0 0
    %1504 = vmatprep.subr.bf16.mxu0 0
    %1505 = vmatpush1.bf16.msra.mxu0 0
    %1506 = vmatprep.subr.bf16.mxu0 0
    %1507 = vmatpush1.bf16.msra.mxu0 0
    %1508 = vmatprep.subr.bf16.mxu0 0
    %1509 = vmatpush1.bf16.msra.mxu0 0
    %1510 = vmatprep.subr.bf16.mxu0 0
    %1511 = vmatpush1.bf16.msra.mxu0 0
    %1512 = vmatprep.subr.bf16.mxu0 %v1409
    %1513 = vmatpush1.bf16.msra.mxu0 %v1408
    %1514 = vmatprep.subr.bf16.mxu0 %v1393
    %1515 = vmatpush1.bf16.msra.mxu0 %v1392
    %1516 = vmatprep.subr.bf16.mxu0 0
    %1517 = vmatpush2.bf16.msra.mxu0 0
    %1518 = vmatprep.subr.bf16.mxu0 0
    %1519 = vmatpush2.bf16.msra.mxu0 0
    %1520 = vmatprep.subr.bf16.mxu0 0
    %1521 = vmatpush2.bf16.msra.mxu0 0
    %1522 = vmatprep.subr.bf16.mxu0 0
    %1523 = vmatpush2.bf16.msra.mxu0 0
    %1524 = vmatprep.subr.bf16.mxu0 0
    %1525 = vmatpush2.bf16.msra.mxu0 0
    %1526 = vmatprep.subr.bf16.mxu0 0
    %1527 = vmatpush2.bf16.msra.mxu0 0
    %1528 = vmatprep.subr.bf16.mxu0 0
    %1529 = vmatpush2.bf16.msra.mxu0 0
    %1530 = vmatprep.subr.bf16.mxu0 0
    %1531 = vmatpush2.bf16.msra.mxu0 0
    %1532 = vmatprep.mubr.bf16.mxu0 0
    %1533 = vmatmul.mubr.bf16.gmra.mxu0 %v1455
    %v1534 = vpop.f32.mrf.mxu0
    %v1535 = vadd.f32 %v1225, %v1534
    %v1536 = vpop.f32.mrf.mxu0
    %v1537 = vadd.f32 %v1229, %v1536
    %v1538 = vpop.f32.mrf.mxu0
    %v1539 = vadd.f32 %v1225, %v1538
    %v1540 = vpop.f32.mrf.mxu0
    %v1541 = vadd.f32 %v1229, %v1540
    %1542 = vdwg.mxu0
    %1543 = vmatprep.subr.bf16.mxu0 0
    %1544 = vmatpush1.bf16.msra.mxu0 0
    %1545 = vmatprep.subr.bf16.mxu0 0
    %1546 = vmatpush1.bf16.msra.mxu0 0
    %1547 = vmatprep.subr.bf16.mxu0 0
    %1548 = vmatpush1.bf16.msra.mxu0 0
    %1549 = vmatprep.subr.bf16.mxu0 0
    %1550 = vmatpush1.bf16.msra.mxu0 0
    %1551 = vmatprep.subr.bf16.mxu0 0
    %1552 = vmatpush1.bf16.msra.mxu0 0
    %1553 = vmatprep.subr.bf16.mxu0 0
    %1554 = vmatpush1.bf16.msra.mxu0 0
    %1555 = vmatprep.subr.bf16.mxu0 %v1411
    %1556 = vmatpush1.bf16.msra.mxu0 %v1410
    %1557 = vmatprep.subr.bf16.mxu0 %v1395
    %1558 = vmatpush1.bf16.msra.mxu0 %v1394
    %1559 = vmatprep.subr.bf16.mxu0 0
    %1560 = vmatpush2.bf16.msra.mxu0 0
    %1561 = vmatprep.subr.bf16.mxu0 0
    %1562 = vmatpush2.bf16.msra.mxu0 0
    %1563 = vmatprep.subr.bf16.mxu0 0
    %1564 = vmatpush2.bf16.msra.mxu0 0
    %1565 = vmatprep.subr.bf16.mxu0 0
    %1566 = vmatpush2.bf16.msra.mxu0 0
    %1567 = vmatprep.subr.bf16.mxu0 0
    %1568 = vmatpush2.bf16.msra.mxu0 0
    %1569 = vmatprep.subr.bf16.mxu0 0
    %1570 = vmatpush2.bf16.msra.mxu0 0
    %1571 = vmatprep.subr.bf16.mxu0 0
    %1572 = vmatpush2.bf16.msra.mxu0 0
    %1573 = vmatprep.subr.bf16.mxu0 0
    %1574 = vmatpush2.bf16.msra.mxu0 0
    %1575 = vmatprep.mubr.bf16.mxu0 0
    %1576 = vmatmul.mubr.bf16.gmra.mxu0 %v1455
    %v1577 = vpop.f32.mrf.mxu0
    %v1578 = vadd.f32 %v1233, %v1577
    %v1579 = vpop.f32.mrf.mxu0
    %v1580 = vadd.f32 %v1237, %v1579
    %v1581 = vpop.f32.mrf.mxu0
    %v1582 = vadd.f32 %v1233, %v1581
    %v1583 = vpop.f32.mrf.mxu0
    %v1584 = vadd.f32 %v1237, %v1583
    %1585 = vdwg.mxu0
    %1586 = vmatprep.subr.bf16.mxu0 0
    %1587 = vmatpush1.bf16.msra.mxu0 0
    %1588 = vmatprep.subr.bf16.mxu0 0
    %1589 = vmatpush1.bf16.msra.mxu0 0
    %1590 = vmatprep.subr.bf16.mxu0 0
    %1591 = vmatpush1.bf16.msra.mxu0 0
    %1592 = vmatprep.subr.bf16.mxu0 0
    %1593 = vmatpush1.bf16.msra.mxu0 0
    %1594 = vmatprep.subr.bf16.mxu0 0
    %1595 = vmatpush1.bf16.msra.mxu0 0
    %1596 = vmatprep.subr.bf16.mxu0 0
    %1597 = vmatpush1.bf16.msra.mxu0 0
    %1598 = vmatprep.subr.bf16.mxu0 %v1413
    %1599 = vmatpush1.bf16.msra.mxu0 %v1412
    %1600 = vmatprep.subr.bf16.mxu0 %v1397
    %1601 = vmatpush1.bf16.msra.mxu0 %v1396
    %1602 = vmatprep.subr.bf16.mxu0 0
    %1603 = vmatpush2.bf16.msra.mxu0 0
    %1604 = vmatprep.subr.bf16.mxu0 0
    %1605 = vmatpush2.bf16.msra.mxu0 0
    %1606 = vmatprep.subr.bf16.mxu0 0
    %1607 = vmatpush2.bf16.msra.mxu0 0
    %1608 = vmatprep.subr.bf16.mxu0 0
    %1609 = vmatpush2.bf16.msra.mxu0 0
    %1610 = vmatprep.subr.bf16.mxu0 0
    %1611 = vmatpush2.bf16.msra.mxu0 0
    %1612 = vmatprep.subr.bf16.mxu0 0
    %1613 = vmatpush2.bf16.msra.mxu0 0
    %1614 = vmatprep.subr.bf16.mxu0 0
    %1615 = vmatpush2.bf16.msra.mxu0 0
    %1616 = vmatprep.subr.bf16.mxu0 0
    %1617 = vmatpush2.bf16.msra.mxu0 0
    %1618 = vmatprep.mubr.bf16.mxu0 0
    %1619 = vmatmul.mubr.bf16.gmra.mxu0 %v1455
    %v1620 = vpop.f32.mrf.mxu0
    %v1621 = vadd.f32 %v1241, %v1620
    %v1622 = vpop.f32.mrf.mxu0
    %v1623 = vadd.f32 %v1245, %v1622
    %v1624 = vpop.f32.mrf.mxu0
    %v1625 = vadd.f32 %v1241, %v1624
    %v1626 = vpop.f32.mrf.mxu0
    %v1627 = vadd.f32 %v1245, %v1626
    %1628 = vdwg.mxu0
    %1629 = vmatprep.subr.bf16.mxu0 0
    %1630 = vmatpush1.bf16.msra.mxu0 0
    %1631 = vmatprep.subr.bf16.mxu0 0
    %1632 = vmatpush1.bf16.msra.mxu0 0
    %1633 = vmatprep.subr.bf16.mxu0 0
    %1634 = vmatpush1.bf16.msra.mxu0 0
    %1635 = vmatprep.subr.bf16.mxu0 0
    %1636 = vmatpush1.bf16.msra.mxu0 0
    %1637 = vmatprep.subr.bf16.mxu0 0
    %1638 = vmatpush1.bf16.msra.mxu0 0
    %1639 = vmatprep.subr.bf16.mxu0 0
    %1640 = vmatpush1.bf16.msra.mxu0 0
    %1641 = vmatprep.subr.bf16.mxu0 %v1415
    %1642 = vmatpush1.bf16.msra.mxu0 %v1414
    %1643 = vmatprep.subr.bf16.mxu0 %v1399
    %1644 = vmatpush1.bf16.msra.mxu0 %v1398
    %1645 = vmatprep.subr.bf16.mxu0 0
    %1646 = vmatpush2.bf16.msra.mxu0 0
    %1647 = vmatprep.subr.bf16.mxu0 0
    %1648 = vmatpush2.bf16.msra.mxu0 0
    %1649 = vmatprep.subr.bf16.mxu0 0
    %1650 = vmatpush2.bf16.msra.mxu0 0
    %1651 = vmatprep.subr.bf16.mxu0 0
    %1652 = vmatpush2.bf16.msra.mxu0 0
    %1653 = vmatprep.subr.bf16.mxu0 0
    %1654 = vmatpush2.bf16.msra.mxu0 0
    %1655 = vmatprep.subr.bf16.mxu0 0
    %1656 = vmatpush2.bf16.msra.mxu0 0
    %1657 = vmatprep.subr.bf16.mxu0 0
    %1658 = vmatpush2.bf16.msra.mxu0 0
    %1659 = vmatprep.subr.bf16.mxu0 0
    %1660 = vmatpush2.bf16.msra.mxu0 0
    %1661 = vmatprep.mubr.bf16.mxu0 0
    %1662 = vmatmul.mubr.bf16.gmra.mxu0 %v1455
    %v1663 = vpop.f32.mrf.mxu0
    %v1664 = vadd.f32 %v1249, %v1663
    %v1665 = vpop.f32.mrf.mxu0
    %v1666 = vadd.f32 %v1253, %v1665
    %v1667 = vpop.f32.mrf.mxu0
    %v1668 = vadd.f32 %v1249, %v1667
    %v1669 = vpop.f32.mrf.mxu0
    %v1670 = vadd.f32 %v1253, %v1669
    %1671 = vdwg.mxu0
    %1672 = vmatprep.subr.bf16.mxu0 0
    %1673 = vmatpush1.bf16.msra.mxu0 0
    %1674 = vmatprep.subr.bf16.mxu0 0
    %1675 = vmatpush1.bf16.msra.mxu0 0
    %1676 = vmatprep.subr.bf16.mxu0 0
    %1677 = vmatpush1.bf16.msra.mxu0 0
    %1678 = vmatprep.subr.bf16.mxu0 0
    %1679 = vmatpush1.bf16.msra.mxu0 0
    %1680 = vmatprep.subr.bf16.mxu0 0
    %1681 = vmatpush1.bf16.msra.mxu0 0
    %1682 = vmatprep.subr.bf16.mxu0 0
    %1683 = vmatpush1.bf16.msra.mxu0 0
    %1684 = vmatprep.subr.bf16.mxu0 %v1417
    %1685 = vmatpush1.bf16.msra.mxu0 %v1416
    %1686 = vmatprep.subr.bf16.mxu0 %v1401
    %1687 = vmatpush1.bf16.msra.mxu0 %v1400
    %1688 = vmatprep.subr.bf16.mxu0 0
    %1689 = vmatpush2.bf16.msra.mxu0 0
    %1690 = vmatprep.subr.bf16.mxu0 0
    %1691 = vmatpush2.bf16.msra.mxu0 0
    %1692 = vmatprep.subr.bf16.mxu0 0
    %1693 = vmatpush2.bf16.msra.mxu0 0
    %1694 = vmatprep.subr.bf16.mxu0 0
    %1695 = vmatpush2.bf16.msra.mxu0 0
    %1696 = vmatprep.subr.bf16.mxu0 0
    %1697 = vmatpush2.bf16.msra.mxu0 0
    %1698 = vmatprep.subr.bf16.mxu0 0
    %1699 = vmatpush2.bf16.msra.mxu0 0
    %1700 = vmatprep.subr.bf16.mxu0 0
    %1701 = vmatpush2.bf16.msra.mxu0 0
    %1702 = vmatprep.subr.bf16.mxu0 0
    %1703 = vmatpush2.bf16.msra.mxu0 0
    %1704 = vmatprep.mubr.bf16.mxu0 0
    %1705 = vmatmul.mubr.bf16.gmra.mxu0 %v1455
    %v1706 = vpop.f32.mrf.mxu0
    %v1707 = vadd.f32 %v1257, %v1706
    %v1708 = vpop.f32.mrf.mxu0
    %v1709 = vadd.f32 %v1261, %v1708
    %v1710 = vpop.f32.mrf.mxu0
    %v1711 = vadd.f32 %v1257, %v1710
    %v1712 = vpop.f32.mrf.mxu0
    %v1713 = vadd.f32 %v1261, %v1712
    %1714 = vdwg.mxu0
    %1715 = vmatprep.subr.bf16.mxu0 0
    %1716 = vmatpush1.bf16.msra.mxu0 0
    %1717 = vmatprep.subr.bf16.mxu0 0
    %1718 = vmatpush1.bf16.msra.mxu0 0
    %1719 = vmatprep.subr.bf16.mxu0 0
    %1720 = vmatpush1.bf16.msra.mxu0 0
    %1721 = vmatprep.subr.bf16.mxu0 0
    %1722 = vmatpush1.bf16.msra.mxu0 0
    %1723 = vmatprep.subr.bf16.mxu0 0
    %1724 = vmatpush1.bf16.msra.mxu0 0
    %1725 = vmatprep.subr.bf16.mxu0 0
    %1726 = vmatpush1.bf16.msra.mxu0 0
    %1727 = vmatprep.subr.bf16.mxu0 %v1419
    %1728 = vmatpush1.bf16.msra.mxu0 %v1418
    %1729 = vmatprep.subr.bf16.mxu0 %v1403
    %1730 = vmatpush1.bf16.msra.mxu0 %v1402
    %1731 = vmatprep.subr.bf16.mxu0 0
    %1732 = vmatpush2.bf16.msra.mxu0 0
    %1733 = vmatprep.subr.bf16.mxu0 0
    %1734 = vmatpush2.bf16.msra.mxu0 0
    %1735 = vmatprep.subr.bf16.mxu0 0
    %1736 = vmatpush2.bf16.msra.mxu0 0
    %1737 = vmatprep.subr.bf16.mxu0 0
    %1738 = vmatpush2.bf16.msra.mxu0 0
    %1739 = vmatprep.subr.bf16.mxu0 0
    %1740 = vmatpush2.bf16.msra.mxu0 0
    %1741 = vmatprep.subr.bf16.mxu0 0
    %1742 = vmatpush2.bf16.msra.mxu0 0
    %1743 = vmatprep.subr.bf16.mxu0 0
    %1744 = vmatpush2.bf16.msra.mxu0 0
    %1745 = vmatprep.subr.bf16.mxu0 0
    %1746 = vmatpush2.bf16.msra.mxu0 0
    %1747 = vmatprep.mubr.bf16.mxu0 0
    %1748 = vmatmul.mubr.bf16.gmra.mxu0 %v1455
    %v1749 = vpop.f32.mrf.mxu0
    %v1750 = vadd.f32 %v1265, %v1749
    %v1751 = vpop.f32.mrf.mxu0
    %v1752 = vadd.f32 %v1269, %v1751
    %v1753 = vpop.f32.mrf.mxu0
    %v1754 = vadd.f32 %v1265, %v1753
    %v1755 = vpop.f32.mrf.mxu0
    %v1756 = vadd.f32 %v1269, %v1755
    %1757 = vdwg.mxu0
    %1758 = vmatprep.subr.bf16.mxu0 0
    %1759 = vmatpush1.bf16.msra.mxu0 0
    %1760 = vmatprep.subr.bf16.mxu0 0
    %1761 = vmatpush1.bf16.msra.mxu0 0
    %1762 = vmatprep.subr.bf16.mxu0 0
    %1763 = vmatpush1.bf16.msra.mxu0 0
    %1764 = vmatprep.subr.bf16.mxu0 0
    %1765 = vmatpush1.bf16.msra.mxu0 0
    %1766 = vmatprep.subr.bf16.mxu0 0
    %1767 = vmatpush1.bf16.msra.mxu0 0
    %1768 = vmatprep.subr.bf16.mxu0 0
    %1769 = vmatpush1.bf16.msra.mxu0 0
    %1770 = vmatprep.subr.bf16.mxu0 %v1421
    %1771 = vmatpush1.bf16.msra.mxu0 %v1420
    %1772 = vmatprep.subr.bf16.mxu0 %v1405
    %1773 = vmatpush1.bf16.msra.mxu0 %v1404
    %1774 = vmatprep.subr.bf16.mxu0 0
    %1775 = vmatpush2.bf16.msra.mxu0 0
    %1776 = vmatprep.subr.bf16.mxu0 0
    %1777 = vmatpush2.bf16.msra.mxu0 0
    %1778 = vmatprep.subr.bf16.mxu0 0
    %1779 = vmatpush2.bf16.msra.mxu0 0
    %1780 = vmatprep.subr.bf16.mxu0 0
    %1781 = vmatpush2.bf16.msra.mxu0 0
    %1782 = vmatprep.subr.bf16.mxu0 0
    %1783 = vmatpush2.bf16.msra.mxu0 0
    %1784 = vmatprep.subr.bf16.mxu0 0
    %1785 = vmatpush2.bf16.msra.mxu0 0
    %1786 = vmatprep.subr.bf16.mxu0 0
    %1787 = vmatpush2.bf16.msra.mxu0 0
    %1788 = vmatprep.subr.bf16.mxu0 0
    %1789 = vmatpush2.bf16.msra.mxu0 0
    %1790 = vmatprep.mubr.bf16.mxu0 0
    %1791 = vmatmul.mubr.bf16.gmra.mxu0 %v1455
    %v1792 = vpop.f32.mrf.mxu0
    %v1793 = vadd.f32 %v1273, %v1792
    %v1794 = vpop.f32.mrf.mxu0
    %v1795 = vadd.f32 %v1277, %v1794
    %v1796 = vpop.f32.mrf.mxu0
    %v1797 = vadd.f32 %v1273, %v1796
    %v1798 = vpop.f32.mrf.mxu0
    %v1799 = vadd.f32 %v1277, %v1798
    %1800 = vdwg.mxu0
    %v1801 = vmax.f32 %v1492, 0.0
    %v1802 = vmax.f32 %v1494, 0.0
    %v1803 = vmax.f32 %v1535, 0.0
    %v1804 = vmax.f32 %v1537, 0.0
    %v1805 = vmax.f32 %v1578, 0.0
    %v1806 = vmax.f32 %v1580, 0.0
    %v1807 = vmax.f32 %v1621, 0.0
    %v1808 = vmax.f32 %v1623, 0.0
    %v1809 = vmax.f32 %v1664, 0.0
    %v1810 = vmax.f32 %v1666, 0.0
    %v1811 = vmax.f32 %v1707, 0.0
    %v1812 = vmax.f32 %v1709, 0.0
    %v1813 = vmax.f32 %v1750, 0.0
    %v1814 = vmax.f32 %v1752, 0.0
    %v1815 = vmax.f32 %v1793, 0.0
    %v1816 = vmax.f32 %v1795, 0.0
    %v1817 = vmax.f32 %v1496, 0.0
    %v1818 = vmax.f32 %v1498, 0.0
    %v1819 = vmax.f32 %v1539, 0.0
    %v1820 = vmax.f32 %v1541, 0.0
    %v1821 = vmax.f32 %v1582, 0.0
    %v1822 = vmax.f32 %v1584, 0.0
    %v1823 = vmax.f32 %v1625, 0.0
    %v1824 = vmax.f32 %v1627, 0.0
    %v1825 = vmax.f32 %v1668, 0.0
    %v1826 = vmax.f32 %v1670, 0.0
    %v1827 = vmax.f32 %v1711, 0.0
    %v1828 = vmax.f32 %v1713, 0.0
    %v1829 = vmax.f32 %v1754, 0.0
    %v1830 = vmax.f32 %v1756, 0.0
    %v1831 = vmax.f32 %v1797, 0.0
    %v1832 = vmax.f32 %v1799, 0.0
    %v1833 = vpack.c.bf16 %v1817, %v1801
    %v1834 = vpack.c.bf16 %v1818, %v1802
    %v1835 = vpack.c.bf16 %v1819, %v1803
    %v1836 = vpack.c.bf16 %v1820, %v1804
    %v1837 = vpack.c.bf16 %v1821, %v1805
    %v1838 = vpack.c.bf16 %v1822, %v1806
    %v1839 = vpack.c.bf16 %v1823, %v1807
    %v1840 = vpack.c.bf16 %v1824, %v1808
    %v1841 = vpack.c.bf16 %v1825, %v1809
    %v1842 = vpack.c.bf16 %v1826, %v1810
    %v1843 = vpack.c.bf16 %v1827, %v1811
    %v1844 = vpack.c.bf16 %v1828, %v1812
    %v1845 = vpack.c.bf16 %v1829, %v1813
    %v1846 = vpack.c.bf16 %v1830, %v1814
    %v1847 = vpack.c.bf16 %v1831, %v1815
    %v1848 = vpack.c.bf16 %v1832, %v1816
    %v1849 = vld [vmem:[%s12] sm:$0xf]
    %v1850 = vld [vmem:[%s12 + $0x4] sm:$0xf]
    %v1851 = vld [vmem:[%s12 + $0x8] sm:$0xf]
    %v1852 = vld [vmem:[%s12 + $0xc] sm:$0xf]
    %v1853 = vld [vmem:[%s12 + $0x10] sm:$0xf]
    %v1854 = vld [vmem:[%s12 + $0x14] sm:$0xf]
    %v1855 = vld [vmem:[%s12 + $0x18] sm:$0xf]
    %v1856 = vld [vmem:[%s12 + $0x1c] sm:$0xf]
    %v1857 = vld [vmem:[%s12 + $0x20] sm:$0xf]
    %v1858 = vld [vmem:[%s12 + $0x24] sm:$0xf]
    %v1859 = vld [vmem:[%s12 + $0x28] sm:$0xf]
    %v1860 = vld [vmem:[%s12 + $0x2c] sm:$0xf]
    %v1861 = vld [vmem:[%s12 + $0x30] sm:$0xf]
    %v1862 = vld [vmem:[%s12 + $0x34] sm:$0xf]
    %v1863 = vld [vmem:[%s12 + $0x38] sm:$0xf]
    %v1864 = vld [vmem:[%s12 + $0x3c] sm:$0xf]
    %v1865 = vld [vmem:[%s12 + $0x40] sm:$0xf]
    %v1866 = vld [vmem:[%s12 + $0x44] sm:$0xf]
    %v1867 = vld [vmem:[%s12 + $0x48] sm:$0xf]
    %v1868 = vld [vmem:[%s12 + $0x4c] sm:$0xf]
    %v1869 = vld [vmem:[%s12 + $0x50] sm:$0xf]
    %v1870 = vld [vmem:[%s12 + $0x54] sm:$0xf]
    %v1871 = vld [vmem:[%s12 + $0x58] sm:$0xf]
    %v1872 = vld [vmem:[%s12 + $0x5c] sm:$0xf]
    %v1873 = vld [vmem:[%s12 + $0x60] sm:$0xf]
    %v1874 = vld [vmem:[%s12 + $0x64] sm:$0xf]
    %v1875 = vld [vmem:[%s12 + $0x68] sm:$0xf]
    %v1876 = vld [vmem:[%s12 + $0x6c] sm:$0xf]
    %v1877 = vld [vmem:[%s12 + $0x70] sm:$0xf]
    %v1878 = vld [vmem:[%s12 + $0x74] sm:$0xf]
    %v1879 = vld [vmem:[%s12 + $0x78] sm:$0xf]
    %v1880 = vld [vmem:[%s12 + $0x7c] sm:$0xf]
    %v1881 = vld [vmem:[%s12 + $0x80] sm:$0xf]
    %v1882 = vld [vmem:[%s12 + $0x84] sm:$0xf]
    %v1883 = vld [vmem:[%s12 + $0x88] sm:$0xf]
    %v1884 = vld [vmem:[%s12 + $0x8c] sm:$0xf]
    %v1885 = vld [vmem:[%s12 + $0x90] sm:$0xf]
    %v1886 = vld [vmem:[%s12 + $0x94] sm:$0xf]
    %v1887 = vld [vmem:[%s12 + $0x98] sm:$0xf]
    %v1888 = vld [vmem:[%s12 + $0x9c] sm:$0xf]
    %v1889 = vld [vmem:[%s12 + $0xa0] sm:$0xf]
    %v1890 = vld [vmem:[%s12 + $0xa4] sm:$0xf]
    %v1891 = vld [vmem:[%s12 + $0xa8] sm:$0xf]
    %v1892 = vld [vmem:[%s12 + $0xac] sm:$0xf]
    %v1893 = vld [vmem:[%s12 + $0xb0] sm:$0xf]
    %v1894 = vld [vmem:[%s12 + $0xb4] sm:$0xf]
    %v1895 = vld [vmem:[%s12 + $0xb8] sm:$0xf]
    %v1896 = vld [vmem:[%s12 + $0xbc] sm:$0xf]
    %v1897 = vld [vmem:[%s12 + $0xc0] sm:$0xf]
    %v1898 = vld [vmem:[%s12 + $0xc4] sm:$0xf]
    %v1899 = vld [vmem:[%s12 + $0xc8] sm:$0xf]
    %v1900 = vld [vmem:[%s12 + $0xcc] sm:$0xf]
    %v1901 = vld [vmem:[%s12 + $0xd0] sm:$0xf]
    %v1902 = vld [vmem:[%s12 + $0xd4] sm:$0xf]
    %v1903 = vld [vmem:[%s12 + $0xd8] sm:$0xf]
    %v1904 = vld [vmem:[%s12 + $0xdc] sm:$0xf]
    %v1905 = vld [vmem:[%s12 + $0xe0] sm:$0xf]
    %v1906 = vld [vmem:[%s12 + $0xe4] sm:$0xf]
    %v1907 = vld [vmem:[%s12 + $0xe8] sm:$0xf]
    %v1908 = vld [vmem:[%s12 + $0xec] sm:$0xf]
    %v1909 = vld [vmem:[%s12 + $0xf0] sm:$0xf]
    %v1910 = vld [vmem:[%s12 + $0xf4] sm:$0xf]
    %v1911 = vld [vmem:[%s12 + $0xf8] sm:$0xf]
    %v1912 = vld [vmem:[%s12 + $0xfc] sm:$0xf]
    %v1913 = vld [vmem:[%s12 + $0x100] sm:$0xf]
    %v1914 = vld [vmem:[%s12 + $0x104] sm:$0xf]
    %v1915 = vld [vmem:[%s12 + $0x108] sm:$0xf]
    %v1916 = vld [vmem:[%s12 + $0x10c] sm:$0xf]
    %v1917 = vld [vmem:[%s12 + $0x110] sm:$0xf]
    %v1918 = vld [vmem:[%s12 + $0x114] sm:$0xf]
    %v1919 = vld [vmem:[%s12 + $0x118] sm:$0xf]
    %v1920 = vld [vmem:[%s12 + $0x11c] sm:$0xf]
    %v1921 = vld [vmem:[%s12 + $0x120] sm:$0xf]
    %v1922 = vld [vmem:[%s12 + $0x124] sm:$0xf]
    %v1923 = vld [vmem:[%s12 + $0x128] sm:$0xf]
    %v1924 = vld [vmem:[%s12 + $0x12c] sm:$0xf]
    %v1925 = vld [vmem:[%s12 + $0x130] sm:$0xf]
    %v1926 = vld [vmem:[%s12 + $0x134] sm:$0xf]
    %v1927 = vld [vmem:[%s12 + $0x138] sm:$0xf]
    %v1928 = vld [vmem:[%s12 + $0x13c] sm:$0xf]
    %v1929 = vld [vmem:[%s12 + $0x140] sm:$0xf]
    %v1930 = vld [vmem:[%s12 + $0x144] sm:$0xf]
    %v1931 = vld [vmem:[%s12 + $0x148] sm:$0xf]
    %v1932 = vld [vmem:[%s12 + $0x14c] sm:$0xf]
    %v1933 = vld [vmem:[%s12 + $0x150] sm:$0xf]
    %v1934 = vld [vmem:[%s12 + $0x154] sm:$0xf]
    %v1935 = vld [vmem:[%s12 + $0x158] sm:$0xf]
    %v1936 = vld [vmem:[%s12 + $0x15c] sm:$0xf]
    %v1937 = vld [vmem:[%s12 + $0x160] sm:$0xf]
    %v1938 = vld [vmem:[%s12 + $0x164] sm:$0xf]
    %v1939 = vld [vmem:[%s12 + $0x168] sm:$0xf]
    %v1940 = vld [vmem:[%s12 + $0x16c] sm:$0xf]
    %v1941 = vld [vmem:[%s12 + $0x170] sm:$0xf]
    %v1942 = vld [vmem:[%s12 + $0x174] sm:$0xf]
    %v1943 = vld [vmem:[%s12 + $0x178] sm:$0xf]
    %v1944 = vld [vmem:[%s12 + $0x17c] sm:$0xf]
    %v1945 = vld [vmem:[%s12 + $0x180] sm:$0xf]
    %v1946 = vld [vmem:[%s12 + $0x184] sm:$0xf]
    %v1947 = vld [vmem:[%s12 + $0x188] sm:$0xf]
    %v1948 = vld [vmem:[%s12 + $0x18c] sm:$0xf]
    %v1949 = vld [vmem:[%s12 + $0x190] sm:$0xf]
    %v1950 = vld [vmem:[%s12 + $0x194] sm:$0xf]
    %v1951 = vld [vmem:[%s12 + $0x198] sm:$0xf]
    %v1952 = vld [vmem:[%s12 + $0x19c] sm:$0xf]
    %v1953 = vld [vmem:[%s12 + $0x1a0] sm:$0xf]
    %v1954 = vld [vmem:[%s12 + $0x1a4] sm:$0xf]
    %v1955 = vld [vmem:[%s12 + $0x1a8] sm:$0xf]
    %v1956 = vld [vmem:[%s12 + $0x1ac] sm:$0xf]
    %v1957 = vld [vmem:[%s12 + $0x1b0] sm:$0xf]
    %v1958 = vld [vmem:[%s12 + $0x1b4] sm:$0xf]
    %v1959 = vld [vmem:[%s12 + $0x1b8] sm:$0xf]
    %v1960 = vld [vmem:[%s12 + $0x1bc] sm:$0xf]
    %v1961 = vld [vmem:[%s12 + $0x1c0] sm:$0xf]
    %v1962 = vld [vmem:[%s12 + $0x1c4] sm:$0xf]
    %v1963 = vld [vmem:[%s12 + $0x1c8] sm:$0xf]
    %v1964 = vld [vmem:[%s12 + $0x1cc] sm:$0xf]
    %v1965 = vld [vmem:[%s12 + $0x1d0] sm:$0xf]
    %v1966 = vld [vmem:[%s12 + $0x1d4] sm:$0xf]
    %v1967 = vld [vmem:[%s12 + $0x1d8] sm:$0xf]
    %v1968 = vld [vmem:[%s12 + $0x1dc] sm:$0xf]
    %v1969 = vld [vmem:[%s12 + $0x1e0] sm:$0xf]
    %v1970 = vld [vmem:[%s12 + $0x1e4] sm:$0xf]
    %v1971 = vld [vmem:[%s12 + $0x1e8] sm:$0xf]
    %v1972 = vld [vmem:[%s12 + $0x1ec] sm:$0xf]
    %v1973 = vld [vmem:[%s12 + $0x1f0] sm:$0xf]
    %v1974 = vld [vmem:[%s12 + $0x1f4] sm:$0xf]
    %v1975 = vld [vmem:[%s12 + $0x1f8] sm:$0xf]
    %v1976 = vld [vmem:[%s12 + $0x1fc] sm:$0xf]
    %v1977 = vld [vmem:[%s12 + $0x200] sm:$0xf]
    %v1978 = vld [vmem:[%s12 + $0x204] sm:$0xf]
    %v1979 = vld [vmem:[%s12 + $0x208] sm:$0xf]
    %v1980 = vld [vmem:[%s12 + $0x20c] sm:$0xf]
    %v1981 = vld [vmem:[%s12 + $0x210] sm:$0xf]
    %v1982 = vld [vmem:[%s12 + $0x214] sm:$0xf]
    %v1983 = vld [vmem:[%s12 + $0x218] sm:$0xf]
    %v1984 = vld [vmem:[%s12 + $0x21c] sm:$0xf]
    %v1985 = vld [vmem:[%s12 + $0x220] sm:$0xf]
    %v1986 = vld [vmem:[%s12 + $0x224] sm:$0xf]
    %v1987 = vld [vmem:[%s12 + $0x228] sm:$0xf]
    %v1988 = vld [vmem:[%s12 + $0x22c] sm:$0xf]
    %v1989 = vld [vmem:[%s12 + $0x230] sm:$0xf]
    %v1990 = vld [vmem:[%s12 + $0x234] sm:$0xf]
    %v1991 = vld [vmem:[%s12 + $0x238] sm:$0xf]
    %v1992 = vld [vmem:[%s12 + $0x23c] sm:$0xf]
    %v1993 = vld [vmem:[%s12 + $0x240] sm:$0xf]
    %v1994 = vld [vmem:[%s12 + $0x244] sm:$0xf]
    %v1995 = vld [vmem:[%s12 + $0x248] sm:$0xf]
    %v1996 = vld [vmem:[%s12 + $0x24c] sm:$0xf]
    %v1997 = vld [vmem:[%s12 + $0x250] sm:$0xf]
    %v1998 = vld [vmem:[%s12 + $0x254] sm:$0xf]
    %v1999 = vld [vmem:[%s12 + $0x258] sm:$0xf]
    %v2000 = vld [vmem:[%s12 + $0x25c] sm:$0xf]
    %v2001 = vld [vmem:[%s12 + $0x260] sm:$0xf]
    %v2002 = vld [vmem:[%s12 + $0x264] sm:$0xf]
    %v2003 = vld [vmem:[%s12 + $0x268] sm:$0xf]
    %v2004 = vld [vmem:[%s12 + $0x26c] sm:$0xf]
    %v2005 = vld [vmem:[%s12 + $0x270] sm:$0xf]
    %v2006 = vld [vmem:[%s12 + $0x274] sm:$0xf]
    %v2007 = vld [vmem:[%s12 + $0x278] sm:$0xf]
    %v2008 = vld [vmem:[%s12 + $0x27c] sm:$0xf]
    %v2009 = vld [vmem:[%s12 + $0x280] sm:$0xf]
    %v2010 = vld [vmem:[%s12 + $0x284] sm:$0xf]
    %v2011 = vld [vmem:[%s12 + $0x288] sm:$0xf]
    %v2012 = vld [vmem:[%s12 + $0x28c] sm:$0xf]
    %v2013 = vld [vmem:[%s12 + $0x290] sm:$0xf]
    %v2014 = vld [vmem:[%s12 + $0x294] sm:$0xf]
    %v2015 = vld [vmem:[%s12 + $0x298] sm:$0xf]
    %v2016 = vld [vmem:[%s12 + $0x29c] sm:$0xf]
    %v2017 = vld [vmem:[%s12 + $0x2a0] sm:$0xf]
    %v2018 = vld [vmem:[%s12 + $0x2a4] sm:$0xf]
    %v2019 = vld [vmem:[%s12 + $0x2a8] sm:$0xf]
    %v2020 = vld [vmem:[%s12 + $0x2ac] sm:$0xf]
    %v2021 = vld [vmem:[%s12 + $0x2b0] sm:$0xf]
    %v2022 = vld [vmem:[%s12 + $0x2b4] sm:$0xf]
    %v2023 = vld [vmem:[%s12 + $0x2b8] sm:$0xf]
    %v2024 = vld [vmem:[%s12 + $0x2bc] sm:$0xf]
    %v2025 = vld [vmem:[%s12 + $0x2c0] sm:$0xf]
    %v2026 = vld [vmem:[%s12 + $0x2c4] sm:$0xf]
    %v2027 = vld [vmem:[%s12 + $0x2c8] sm:$0xf]
    %v2028 = vld [vmem:[%s12 + $0x2cc] sm:$0xf]
    %v2029 = vld [vmem:[%s12 + $0x2d0] sm:$0xf]
    %v2030 = vld [vmem:[%s12 + $0x2d4] sm:$0xf]
    %v2031 = vld [vmem:[%s12 + $0x2d8] sm:$0xf]
    %v2032 = vld [vmem:[%s12 + $0x2dc] sm:$0xf]
    %v2033 = vld [vmem:[%s12 + $0x2e0] sm:$0xf]
    %v2034 = vld [vmem:[%s12 + $0x2e4] sm:$0xf]
    %v2035 = vld [vmem:[%s12 + $0x2e8] sm:$0xf]
    %v2036 = vld [vmem:[%s12 + $0x2ec] sm:$0xf]
    %v2037 = vld [vmem:[%s12 + $0x2f0] sm:$0xf]
    %v2038 = vld [vmem:[%s12 + $0x2f4] sm:$0xf]
    %v2039 = vld [vmem:[%s12 + $0x2f8] sm:$0xf]
    %v2040 = vld [vmem:[%s12 + $0x2fc] sm:$0xf]
    %v2041 = vld [vmem:[%s12 + $0x300] sm:$0xf]
    %v2042 = vld [vmem:[%s12 + $0x304] sm:$0xf]
    %v2043 = vld [vmem:[%s12 + $0x308] sm:$0xf]
    %v2044 = vld [vmem:[%s12 + $0x30c] sm:$0xf]
    %v2045 = vld [vmem:[%s12 + $0x310] sm:$0xf]
    %v2046 = vld [vmem:[%s12 + $0x314] sm:$0xf]
    %v2047 = vld [vmem:[%s12 + $0x318] sm:$0xf]
    %v2048 = vld [vmem:[%s12 + $0x31c] sm:$0xf]
    %v2049 = vld [vmem:[%s12 + $0x320] sm:$0xf]
    %v2050 = vld [vmem:[%s12 + $0x324] sm:$0xf]
    %v2051 = vld [vmem:[%s12 + $0x328] sm:$0xf]
    %v2052 = vld [vmem:[%s12 + $0x32c] sm:$0xf]
    %v2053 = vld [vmem:[%s12 + $0x330] sm:$0xf]
    %v2054 = vld [vmem:[%s12 + $0x334] sm:$0xf]
    %v2055 = vld [vmem:[%s12 + $0x338] sm:$0xf]
    %v2056 = vld [vmem:[%s12 + $0x33c] sm:$0xf]
    %v2057 = vld [vmem:[%s12 + $0x340] sm:$0xf]
    %v2058 = vld [vmem:[%s12 + $0x344] sm:$0xf]
    %v2059 = vld [vmem:[%s12 + $0x348] sm:$0xf]
    %v2060 = vld [vmem:[%s12 + $0x34c] sm:$0xf]
    %v2061 = vld [vmem:[%s12 + $0x350] sm:$0xf]
    %v2062 = vld [vmem:[%s12 + $0x354] sm:$0xf]
    %v2063 = vld [vmem:[%s12 + $0x358] sm:$0xf]
    %v2064 = vld [vmem:[%s12 + $0x35c] sm:$0xf]
    %v2065 = vld [vmem:[%s12 + $0x360] sm:$0xf]
    %v2066 = vld [vmem:[%s12 + $0x364] sm:$0xf]
    %v2067 = vld [vmem:[%s12 + $0x368] sm:$0xf]
    %v2068 = vld [vmem:[%s12 + $0x36c] sm:$0xf]
    %v2069 = vld [vmem:[%s12 + $0x370] sm:$0xf]
    %v2070 = vld [vmem:[%s12 + $0x374] sm:$0xf]
    %v2071 = vld [vmem:[%s12 + $0x378] sm:$0xf]
    %v2072 = vld [vmem:[%s12 + $0x37c] sm:$0xf]
    %v2073 = vld [vmem:[%s12 + $0x380] sm:$0xf]
    %v2074 = vld [vmem:[%s12 + $0x384] sm:$0xf]
    %v2075 = vld [vmem:[%s12 + $0x388] sm:$0xf]
    %v2076 = vld [vmem:[%s12 + $0x38c] sm:$0xf]
    %v2077 = vld [vmem:[%s12 + $0x390] sm:$0xf]
    %v2078 = vld [vmem:[%s12 + $0x394] sm:$0xf]
    %v2079 = vld [vmem:[%s12 + $0x398] sm:$0xf]
    %v2080 = vld [vmem:[%s12 + $0x39c] sm:$0xf]
    %v2081 = vld [vmem:[%s12 + $0x3a0] sm:$0xf]
    %v2082 = vld [vmem:[%s12 + $0x3a4] sm:$0xf]
    %v2083 = vld [vmem:[%s12 + $0x3a8] sm:$0xf]
    %v2084 = vld [vmem:[%s12 + $0x3ac] sm:$0xf]
    %v2085 = vld [vmem:[%s12 + $0x3b0] sm:$0xf]
    %v2086 = vld [vmem:[%s12 + $0x3b4] sm:$0xf]
    %v2087 = vld [vmem:[%s12 + $0x3b8] sm:$0xf]
    %v2088 = vld [vmem:[%s12 + $0x3bc] sm:$0xf]
    %v2089 = vld [vmem:[%s12 + $0x3c0] sm:$0xf]
    %v2090 = vld [vmem:[%s12 + $0x3c4] sm:$0xf]
    %v2091 = vld [vmem:[%s12 + $0x3c8] sm:$0xf]
    %v2092 = vld [vmem:[%s12 + $0x3cc] sm:$0xf]
    %v2093 = vld [vmem:[%s12 + $0x3d0] sm:$0xf]
    %v2094 = vld [vmem:[%s12 + $0x3d4] sm:$0xf]
    %v2095 = vld [vmem:[%s12 + $0x3d8] sm:$0xf]
    %v2096 = vld [vmem:[%s12 + $0x3dc] sm:$0xf]
    %v2097 = vld [vmem:[%s12 + $0x3e0] sm:$0xf]
    %v2098 = vld [vmem:[%s12 + $0x3e4] sm:$0xf]
    %v2099 = vld [vmem:[%s12 + $0x3e8] sm:$0xf]
    %v2100 = vld [vmem:[%s12 + $0x3ec] sm:$0xf]
    %v2101 = vld [vmem:[%s12 + $0x3f0] sm:$0xf]
    %v2102 = vld [vmem:[%s12 + $0x3f4] sm:$0xf]
    %v2103 = vld [vmem:[%s12 + $0x3f8] sm:$0xf]
    %v2104 = vld [vmem:[%s12 + $0x3fc] sm:$0xf]
    %v2105 = vld [vmem:[%s13] sm:$0x1]
    %v2107 = vlaneseq
    %v2108 = vshrl.u32 %v2107, 7
    %v2109 = vsub.s32 0, %v2108
    %v2110 = vrot.slane %v2105, %v2109
    %v2368 = vunpack.c.l.b16 %v1849
    %v2369 = vunpack.c.l.b16 %v1850
    %v2370 = vunpack.c.l.b16 %v1851
    %v2371 = vunpack.c.l.b16 %v1852
    %v2372 = vunpack.c.l.b16 %v1853
    %v2373 = vunpack.c.l.b16 %v1854
    %v2374 = vunpack.c.l.b16 %v1855
    %v2375 = vunpack.c.l.b16 %v1856
    %v2376 = vunpack.c.l.b16 %v1857
    %v2377 = vunpack.c.l.b16 %v1858
    %v2378 = vunpack.c.l.b16 %v1859
    %v2379 = vunpack.c.l.b16 %v1860
    %v2380 = vunpack.c.l.b16 %v1861
    %v2381 = vunpack.c.l.b16 %v1862
    %v2382 = vunpack.c.l.b16 %v1863
    %v2383 = vunpack.c.l.b16 %v1864
    %v2384 = vunpack.c.l.b16 %v1865
    %v2385 = vunpack.c.l.b16 %v1866
    %v2386 = vunpack.c.l.b16 %v1867
    %v2387 = vunpack.c.l.b16 %v1868
    %v2388 = vunpack.c.l.b16 %v1869
    %v2389 = vunpack.c.l.b16 %v1870
    %v2390 = vunpack.c.l.b16 %v1871
    %v2391 = vunpack.c.l.b16 %v1872
    %v2392 = vunpack.c.l.b16 %v1873
    %v2393 = vunpack.c.l.b16 %v1874
    %v2394 = vunpack.c.l.b16 %v1875
    %v2395 = vunpack.c.l.b16 %v1876
    %v2396 = vunpack.c.l.b16 %v1877
    %v2397 = vunpack.c.l.b16 %v1878
    %v2398 = vunpack.c.l.b16 %v1879
    %v2399 = vunpack.c.l.b16 %v1880
    %v2400 = vunpack.c.l.b16 %v1881
    %v2401 = vunpack.c.l.b16 %v1882
    %v2402 = vunpack.c.l.b16 %v1883
    %v2403 = vunpack.c.l.b16 %v1884
    %v2404 = vunpack.c.l.b16 %v1885
    %v2405 = vunpack.c.l.b16 %v1886
    %v2406 = vunpack.c.l.b16 %v1887
    %v2407 = vunpack.c.l.b16 %v1888
    %v2408 = vunpack.c.l.b16 %v1889
    %v2409 = vunpack.c.l.b16 %v1890
    %v2410 = vunpack.c.l.b16 %v1891
    %v2411 = vunpack.c.l.b16 %v1892
    %v2412 = vunpack.c.l.b16 %v1893
    %v2413 = vunpack.c.l.b16 %v1894
    %v2414 = vunpack.c.l.b16 %v1895
    %v2415 = vunpack.c.l.b16 %v1896
    %v2416 = vunpack.c.l.b16 %v1897
    %v2417 = vunpack.c.l.b16 %v1898
    %v2418 = vunpack.c.l.b16 %v1899
    %v2419 = vunpack.c.l.b16 %v1900
    %v2420 = vunpack.c.l.b16 %v1901
    %v2421 = vunpack.c.l.b16 %v1902
    %v2422 = vunpack.c.l.b16 %v1903
    %v2423 = vunpack.c.l.b16 %v1904
    %v2424 = vunpack.c.l.b16 %v1905
    %v2425 = vunpack.c.l.b16 %v1906
    %v2426 = vunpack.c.l.b16 %v1907
    %v2427 = vunpack.c.l.b16 %v1908
    %v2428 = vunpack.c.l.b16 %v1909
    %v2429 = vunpack.c.l.b16 %v1910
    %v2430 = vunpack.c.l.b16 %v1911
    %v2431 = vunpack.c.l.b16 %v1912
    %v2432 = vunpack.c.l.b16 %v1913
    %v2433 = vunpack.c.l.b16 %v1914
    %v2434 = vunpack.c.l.b16 %v1915
    %v2435 = vunpack.c.l.b16 %v1916
    %v2436 = vunpack.c.l.b16 %v1917
    %v2437 = vunpack.c.l.b16 %v1918
    %v2438 = vunpack.c.l.b16 %v1919
    %v2439 = vunpack.c.l.b16 %v1920
    %v2440 = vunpack.c.l.b16 %v1921
    %v2441 = vunpack.c.l.b16 %v1922
    %v2442 = vunpack.c.l.b16 %v1923
    %v2443 = vunpack.c.l.b16 %v1924
    %v2444 = vunpack.c.l.b16 %v1925
    %v2445 = vunpack.c.l.b16 %v1926
    %v2446 = vunpack.c.l.b16 %v1927
    %v2447 = vunpack.c.l.b16 %v1928
    %v2448 = vunpack.c.l.b16 %v1929
    %v2449 = vunpack.c.l.b16 %v1930
    %v2450 = vunpack.c.l.b16 %v1931
    %v2451 = vunpack.c.l.b16 %v1932
    %v2452 = vunpack.c.l.b16 %v1933
    %v2453 = vunpack.c.l.b16 %v1934
    %v2454 = vunpack.c.l.b16 %v1935
    %v2455 = vunpack.c.l.b16 %v1936
    %v2456 = vunpack.c.l.b16 %v1937
    %v2457 = vunpack.c.l.b16 %v1938
    %v2458 = vunpack.c.l.b16 %v1939
    %v2459 = vunpack.c.l.b16 %v1940
    %v2460 = vunpack.c.l.b16 %v1941
    %v2461 = vunpack.c.l.b16 %v1942
    %v2462 = vunpack.c.l.b16 %v1943
    %v2463 = vunpack.c.l.b16 %v1944
    %v2464 = vunpack.c.l.b16 %v1945
    %v2465 = vunpack.c.l.b16 %v1946
    %v2466 = vunpack.c.l.b16 %v1947
    %v2467 = vunpack.c.l.b16 %v1948
    %v2468 = vunpack.c.l.b16 %v1949
    %v2469 = vunpack.c.l.b16 %v1950
    %v2470 = vunpack.c.l.b16 %v1951
    %v2471 = vunpack.c.l.b16 %v1952
    %v2472 = vunpack.c.l.b16 %v1953
    %v2473 = vunpack.c.l.b16 %v1954
    %v2474 = vunpack.c.l.b16 %v1955
    %v2475 = vunpack.c.l.b16 %v1956
    %v2476 = vunpack.c.l.b16 %v1957
    %v2477 = vunpack.c.l.b16 %v1958
    %v2478 = vunpack.c.l.b16 %v1959
    %v2479 = vunpack.c.l.b16 %v1960
    %v2480 = vunpack.c.l.b16 %v1961
    %v2481 = vunpack.c.l.b16 %v1962
    %v2482 = vunpack.c.l.b16 %v1963
    %v2483 = vunpack.c.l.b16 %v1964
    %v2484 = vunpack.c.l.b16 %v1965
    %v2485 = vunpack.c.l.b16 %v1966
    %v2486 = vunpack.c.l.b16 %v1967
    %v2487 = vunpack.c.l.b16 %v1968
    %v2488 = vunpack.c.l.b16 %v1969
    %v2489 = vunpack.c.l.b16 %v1970
    %v2490 = vunpack.c.l.b16 %v1971
    %v2491 = vunpack.c.l.b16 %v1972
    %v2492 = vunpack.c.l.b16 %v1973
    %v2493 = vunpack.c.l.b16 %v1974
    %v2494 = vunpack.c.l.b16 %v1975
    %v2495 = vunpack.c.l.b16 %v1976
    %v2496 = vunpack.c.l.b16 %v1977
    %v2497 = vunpack.c.l.b16 %v1978
    %v2498 = vunpack.c.l.b16 %v1979
    %v2499 = vunpack.c.l.b16 %v1980
    %v2500 = vunpack.c.l.b16 %v1981
    %v2501 = vunpack.c.l.b16 %v1982
    %v2502 = vunpack.c.l.b16 %v1983
    %v2503 = vunpack.c.l.b16 %v1984
    %v2504 = vunpack.c.l.b16 %v1985
    %v2505 = vunpack.c.l.b16 %v1986
    %v2506 = vunpack.c.l.b16 %v1987
    %v2507 = vunpack.c.l.b16 %v1988
    %v2508 = vunpack.c.l.b16 %v1989
    %v2509 = vunpack.c.l.b16 %v1990
    %v2510 = vunpack.c.l.b16 %v1991
    %v2511 = vunpack.c.l.b16 %v1992
    %v2512 = vunpack.c.l.b16 %v1993
    %v2513 = vunpack.c.l.b16 %v1994
    %v2514 = vunpack.c.l.b16 %v1995
    %v2515 = vunpack.c.l.b16 %v1996
    %v2516 = vunpack.c.l.b16 %v1997
    %v2517 = vunpack.c.l.b16 %v1998
    %v2518 = vunpack.c.l.b16 %v1999
    %v2519 = vunpack.c.l.b16 %v2000
    %v2520 = vunpack.c.l.b16 %v2001
    %v2521 = vunpack.c.l.b16 %v2002
    %v2522 = vunpack.c.l.b16 %v2003
    %v2523 = vunpack.c.l.b16 %v2004
    %v2524 = vunpack.c.l.b16 %v2005
    %v2525 = vunpack.c.l.b16 %v2006
    %v2526 = vunpack.c.l.b16 %v2007
    %v2527 = vunpack.c.l.b16 %v2008
    %v2528 = vunpack.c.l.b16 %v2009
    %v2529 = vunpack.c.l.b16 %v2010
    %v2530 = vunpack.c.l.b16 %v2011
    %v2531 = vunpack.c.l.b16 %v2012
    %v2532 = vunpack.c.l.b16 %v2013
    %v2533 = vunpack.c.l.b16 %v2014
    %v2534 = vunpack.c.l.b16 %v2015
    %v2535 = vunpack.c.l.b16 %v2016
    %v2536 = vunpack.c.l.b16 %v2017
    %v2537 = vunpack.c.l.b16 %v2018
    %v2538 = vunpack.c.l.b16 %v2019
    %v2539 = vunpack.c.l.b16 %v2020
    %v2540 = vunpack.c.l.b16 %v2021
    %v2541 = vunpack.c.l.b16 %v2022
    %v2542 = vunpack.c.l.b16 %v2023
    %v2543 = vunpack.c.l.b16 %v2024
    %v2544 = vunpack.c.l.b16 %v2025
    %v2545 = vunpack.c.l.b16 %v2026
    %v2546 = vunpack.c.l.b16 %v2027
    %v2547 = vunpack.c.l.b16 %v2028
    %v2548 = vunpack.c.l.b16 %v2029
    %v2549 = vunpack.c.l.b16 %v2030
    %v2550 = vunpack.c.l.b16 %v2031
    %v2551 = vunpack.c.l.b16 %v2032
    %v2552 = vunpack.c.l.b16 %v2033
    %v2553 = vunpack.c.l.b16 %v2034
    %v2554 = vunpack.c.l.b16 %v2035
    %v2555 = vunpack.c.l.b16 %v2036
    %v2556 = vunpack.c.l.b16 %v2037
    %v2557 = vunpack.c.l.b16 %v2038
    %v2558 = vunpack.c.l.b16 %v2039
    %v2559 = vunpack.c.l.b16 %v2040
    %v2560 = vunpack.c.l.b16 %v2041
    %v2561 = vunpack.c.l.b16 %v2042
    %v2562 = vunpack.c.l.b16 %v2043
    %v2563 = vunpack.c.l.b16 %v2044
    %v2564 = vunpack.c.l.b16 %v2045
    %v2565 = vunpack.c.l.b16 %v2046
    %v2566 = vunpack.c.l.b16 %v2047
    %v2567 = vunpack.c.l.b16 %v2048
    %v2568 = vunpack.c.l.b16 %v2049
    %v2569 = vunpack.c.l.b16 %v2050
    %v2570 = vunpack.c.l.b16 %v2051
    %v2571 = vunpack.c.l.b16 %v2052
    %v2572 = vunpack.c.l.b16 %v2053
    %v2573 = vunpack.c.l.b16 %v2054
    %v2574 = vunpack.c.l.b16 %v2055
    %v2575 = vunpack.c.l.b16 %v2056
    %v2576 = vunpack.c.l.b16 %v2057
    %v2577 = vunpack.c.l.b16 %v2058
    %v2578 = vunpack.c.l.b16 %v2059
    %v2579 = vunpack.c.l.b16 %v2060
    %v2580 = vunpack.c.l.b16 %v2061
    %v2581 = vunpack.c.l.b16 %v2062
    %v2582 = vunpack.c.l.b16 %v2063
    %v2583 = vunpack.c.l.b16 %v2064
    %v2584 = vunpack.c.l.b16 %v2065
    %v2585 = vunpack.c.l.b16 %v2066
    %v2586 = vunpack.c.l.b16 %v2067
    %v2587 = vunpack.c.l.b16 %v2068
    %v2588 = vunpack.c.l.b16 %v2069
    %v2589 = vunpack.c.l.b16 %v2070
    %v2590 = vunpack.c.l.b16 %v2071
    %v2591 = vunpack.c.l.b16 %v2072
    %v2592 = vunpack.c.l.b16 %v2073
    %v2593 = vunpack.c.l.b16 %v2074
    %v2594 = vunpack.c.l.b16 %v2075
    %v2595 = vunpack.c.l.b16 %v2076
    %v2596 = vunpack.c.l.b16 %v2077
    %v2597 = vunpack.c.l.b16 %v2078
    %v2598 = vunpack.c.l.b16 %v2079
    %v2599 = vunpack.c.l.b16 %v2080
    %v2600 = vunpack.c.l.b16 %v2081
    %v2601 = vunpack.c.l.b16 %v2082
    %v2602 = vunpack.c.l.b16 %v2083
    %v2603 = vunpack.c.l.b16 %v2084
    %v2604 = vunpack.c.l.b16 %v2085
    %v2605 = vunpack.c.l.b16 %v2086
    %v2606 = vunpack.c.l.b16 %v2087
    %v2607 = vunpack.c.l.b16 %v2088
    %v2608 = vunpack.c.l.b16 %v2089
    %v2609 = vunpack.c.l.b16 %v2090
    %v2610 = vunpack.c.l.b16 %v2091
    %v2611 = vunpack.c.l.b16 %v2092
    %v2612 = vunpack.c.l.b16 %v2093
    %v2613 = vunpack.c.l.b16 %v2094
    %v2614 = vunpack.c.l.b16 %v2095
    %v2615 = vunpack.c.l.b16 %v2096
    %v2616 = vunpack.c.l.b16 %v2097
    %v2617 = vunpack.c.l.b16 %v2098
    %v2618 = vunpack.c.l.b16 %v2099
    %v2619 = vunpack.c.l.b16 %v2100
    %v2620 = vunpack.c.l.b16 %v2101
    %v2621 = vunpack.c.l.b16 %v2102
    %v2622 = vunpack.c.l.b16 %v2103
    %v2623 = vunpack.c.l.b16 %v2104
    %v2624 = vpack.c.b16 %v2369, %v2368
    %v2625 = vpack.c.b16 %v2371, %v2370
    %v2626 = vpack.c.b16 %v2373, %v2372
    %v2627 = vpack.c.b16 %v2375, %v2374
    %v2628 = vpack.c.b16 %v2377, %v2376
    %v2629 = vpack.c.b16 %v2379, %v2378
    %v2630 = vpack.c.b16 %v2381, %v2380
    %v2631 = vpack.c.b16 %v2383, %v2382
    %v2632 = vpack.c.b16 %v2385, %v2384
    %v2633 = vpack.c.b16 %v2387, %v2386
    %v2634 = vpack.c.b16 %v2389, %v2388
    %v2635 = vpack.c.b16 %v2391, %v2390
    %v2636 = vpack.c.b16 %v2393, %v2392
    %v2637 = vpack.c.b16 %v2395, %v2394
    %v2638 = vpack.c.b16 %v2397, %v2396
    %v2639 = vpack.c.b16 %v2399, %v2398
    %v2640 = vpack.c.b16 %v2401, %v2400
    %v2641 = vpack.c.b16 %v2403, %v2402
    %v2642 = vpack.c.b16 %v2405, %v2404
    %v2643 = vpack.c.b16 %v2407, %v2406
    %v2644 = vpack.c.b16 %v2409, %v2408
    %v2645 = vpack.c.b16 %v2411, %v2410
    %v2646 = vpack.c.b16 %v2413, %v2412
    %v2647 = vpack.c.b16 %v2415, %v2414
    %v2648 = vpack.c.b16 %v2417, %v2416
    %v2649 = vpack.c.b16 %v2419, %v2418
    %v2650 = vpack.c.b16 %v2421, %v2420
    %v2651 = vpack.c.b16 %v2423, %v2422
    %v2652 = vpack.c.b16 %v2425, %v2424
    %v2653 = vpack.c.b16 %v2427, %v2426
    %v2654 = vpack.c.b16 %v2429, %v2428
    %v2655 = vpack.c.b16 %v2431, %v2430
    %v2656 = vpack.c.b16 %v2433, %v2432
    %v2657 = vpack.c.b16 %v2435, %v2434
    %v2658 = vpack.c.b16 %v2437, %v2436
    %v2659 = vpack.c.b16 %v2439, %v2438
    %v2660 = vpack.c.b16 %v2441, %v2440
    %v2661 = vpack.c.b16 %v2443, %v2442
    %v2662 = vpack.c.b16 %v2445, %v2444
    %v2663 = vpack.c.b16 %v2447, %v2446
    %v2664 = vpack.c.b16 %v2449, %v2448
    %v2665 = vpack.c.b16 %v2451, %v2450
    %v2666 = vpack.c.b16 %v2453, %v2452
    %v2667 = vpack.c.b16 %v2455, %v2454
    %v2668 = vpack.c.b16 %v2457, %v2456
    %v2669 = vpack.c.b16 %v2459, %v2458
    %v2670 = vpack.c.b16 %v2461, %v2460
    %v2671 = vpack.c.b16 %v2463, %v2462
    %v2672 = vpack.c.b16 %v2465, %v2464
    %v2673 = vpack.c.b16 %v2467, %v2466
    %v2674 = vpack.c.b16 %v2469, %v2468
    %v2675 = vpack.c.b16 %v2471, %v2470
    %v2676 = vpack.c.b16 %v2473, %v2472
    %v2677 = vpack.c.b16 %v2475, %v2474
    %v2678 = vpack.c.b16 %v2477, %v2476
    %v2679 = vpack.c.b16 %v2479, %v2478
    %v2680 = vpack.c.b16 %v2481, %v2480
    %v2681 = vpack.c.b16 %v2483, %v2482
    %v2682 = vpack.c.b16 %v2485, %v2484
    %v2683 = vpack.c.b16 %v2487, %v2486
    %v2684 = vpack.c.b16 %v2489, %v2488
    %v2685 = vpack.c.b16 %v2491, %v2490
    %v2686 = vpack.c.b16 %v2493, %v2492
    %v2687 = vpack.c.b16 %v2495, %v2494
    %v2688 = vpack.c.b16 %v2497, %v2496
    %v2689 = vpack.c.b16 %v2499, %v2498
    %v2690 = vpack.c.b16 %v2501, %v2500
    %v2691 = vpack.c.b16 %v2503, %v2502
    %v2692 = vpack.c.b16 %v2505, %v2504
    %v2693 = vpack.c.b16 %v2507, %v2506
    %v2694 = vpack.c.b16 %v2509, %v2508
    %v2695 = vpack.c.b16 %v2511, %v2510
    %v2696 = vpack.c.b16 %v2513, %v2512
    %v2697 = vpack.c.b16 %v2515, %v2514
    %v2698 = vpack.c.b16 %v2517, %v2516
    %v2699 = vpack.c.b16 %v2519, %v2518
    %v2700 = vpack.c.b16 %v2521, %v2520
    %v2701 = vpack.c.b16 %v2523, %v2522
    %v2702 = vpack.c.b16 %v2525, %v2524
    %v2703 = vpack.c.b16 %v2527, %v2526
    %v2704 = vpack.c.b16 %v2529, %v2528
    %v2705 = vpack.c.b16 %v2531, %v2530
    %v2706 = vpack.c.b16 %v2533, %v2532
    %v2707 = vpack.c.b16 %v2535, %v2534
    %v2708 = vpack.c.b16 %v2537, %v2536
    %v2709 = vpack.c.b16 %v2539, %v2538
    %v2710 = vpack.c.b16 %v2541, %v2540
    %v2711 = vpack.c.b16 %v2543, %v2542
    %v2712 = vpack.c.b16 %v2545, %v2544
    %v2713 = vpack.c.b16 %v2547, %v2546
    %v2714 = vpack.c.b16 %v2549, %v2548
    %v2715 = vpack.c.b16 %v2551, %v2550
    %v2716 = vpack.c.b16 %v2553, %v2552
    %v2717 = vpack.c.b16 %v2555, %v2554
    %v2718 = vpack.c.b16 %v2557, %v2556
    %v2719 = vpack.c.b16 %v2559, %v2558
    %v2720 = vpack.c.b16 %v2561, %v2560
    %v2721 = vpack.c.b16 %v2563, %v2562
    %v2722 = vpack.c.b16 %v2565, %v2564
    %v2723 = vpack.c.b16 %v2567, %v2566
    %v2724 = vpack.c.b16 %v2569, %v2568
    %v2725 = vpack.c.b16 %v2571, %v2570
    %v2726 = vpack.c.b16 %v2573, %v2572
    %v2727 = vpack.c.b16 %v2575, %v2574
    %v2728 = vpack.c.b16 %v2577, %v2576
    %v2729 = vpack.c.b16 %v2579, %v2578
    %v2730 = vpack.c.b16 %v2581, %v2580
    %v2731 = vpack.c.b16 %v2583, %v2582
    %v2732 = vpack.c.b16 %v2585, %v2584
    %v2733 = vpack.c.b16 %v2587, %v2586
    %v2734 = vpack.c.b16 %v2589, %v2588
    %v2735 = vpack.c.b16 %v2591, %v2590
    %v2736 = vpack.c.b16 %v2593, %v2592
    %v2737 = vpack.c.b16 %v2595, %v2594
    %v2738 = vpack.c.b16 %v2597, %v2596
    %v2739 = vpack.c.b16 %v2599, %v2598
    %v2740 = vpack.c.b16 %v2601, %v2600
    %v2741 = vpack.c.b16 %v2603, %v2602
    %v2742 = vpack.c.b16 %v2605, %v2604
    %v2743 = vpack.c.b16 %v2607, %v2606
    %v2744 = vpack.c.b16 %v2609, %v2608
    %v2745 = vpack.c.b16 %v2611, %v2610
    %v2746 = vpack.c.b16 %v2613, %v2612
    %v2747 = vpack.c.b16 %v2615, %v2614
    %v2748 = vpack.c.b16 %v2617, %v2616
    %v2749 = vpack.c.b16 %v2619, %v2618
    %v2750 = vpack.c.b16 %v2621, %v2620
    %v2751 = vpack.c.b16 %v2623, %v2622
    %2880 = vmatprep.subr.bf16.mxu0 0
    %2881 = vmatpush1.bf16.msra.mxu0 %v2631
    %2882 = vmatprep.subr.bf16.mxu0 0
    %2883 = vmatpush1.bf16.msra.mxu0 %v2630
    %2884 = vmatprep.subr.bf16.mxu0 0
    %2885 = vmatpush1.bf16.msra.mxu0 %v2629
    %2886 = vmatprep.subr.bf16.mxu0 0
    %2887 = vmatpush1.bf16.msra.mxu0 %v2628
    %2888 = vmatprep.subr.bf16.mxu0 0
    %2889 = vmatpush1.bf16.msra.mxu0 %v2627
    %2890 = vmatprep.subr.bf16.mxu0 0
    %2891 = vmatpush1.bf16.msra.mxu0 %v2626
    %2892 = vmatprep.subr.bf16.mxu0 0
    %2893 = vmatpush1.bf16.msra.mxu0 %v2625
    %2894 = vmatprep.subr.bf16.mxu0 0
    %2895 = vmatpush1.bf16.msra.mxu0 %v2624
    %2896 = vmatprep.subr.bf16.mxu0 0
    %2897 = vmatpush2.bf16.msra.mxu0 %v2639
    %2898 = vmatprep.subr.bf16.mxu0 0
    %2899 = vmatpush2.bf16.msra.mxu0 %v2638
    %2900 = vmatprep.subr.bf16.mxu0 0
    %2901 = vmatpush2.bf16.msra.mxu0 %v2637
    %2902 = vmatprep.subr.bf16.mxu0 0
    %2903 = vmatpush2.bf16.msra.mxu0 %v2636
    %2904 = vmatprep.subr.bf16.mxu0 0
    %2905 = vmatpush2.bf16.msra.mxu0 %v2635
    %2906 = vmatprep.subr.bf16.mxu0 0
    %2907 = vmatpush2.bf16.msra.mxu0 %v2634
    %2908 = vmatprep.subr.bf16.mxu0 0
    %2909 = vmatpush2.bf16.msra.mxu0 %v2633
    %2910 = vmatprep.subr.bf16.mxu0 0
    %2911 = vmatpush2.bf16.msra.mxu0 %v2632
    %2912 = vmatprep.mubr.bf16.mxu0 %v1834
    %2913 = vmatmul.mubr.bf16.gmra.mxu0 %v1833
    %v2914 = vpop.f32.mrf.mxu0
    %v2915 = vadd.f32 %v2110, %v2914
    %v2916 = vpop.f32.mrf.mxu0
    %v2917 = vpop.f32.mrf.mxu0
    %v2918 = vadd.f32 %v2110, %v2917
    %v2919 = vpop.f32.mrf.mxu0
    %2920 = vdwg.mxu0
    %2921 = vmatprep.subr.bf16.mxu0 0
    %2922 = vmatpush1.bf16.msra.mxu0 %v2647
    %2923 = vmatprep.subr.bf16.mxu0 0
    %2924 = vmatpush1.bf16.msra.mxu0 %v2646
    %2925 = vmatprep.subr.bf16.mxu0 0
    %2926 = vmatpush1.bf16.msra.mxu0 %v2645
    %2927 = vmatprep.subr.bf16.mxu0 0
    %2928 = vmatpush1.bf16.msra.mxu0 %v2644
    %2929 = vmatprep.subr.bf16.mxu0 0
    %2930 = vmatpush1.bf16.msra.mxu0 %v2643
    %2931 = vmatprep.subr.bf16.mxu0 0
    %2932 = vmatpush1.bf16.msra.mxu0 %v2642
    %2933 = vmatprep.subr.bf16.mxu0 0
    %2934 = vmatpush1.bf16.msra.mxu0 %v2641
    %2935 = vmatprep.subr.bf16.mxu0 0
    %2936 = vmatpush1.bf16.msra.mxu0 %v2640
    %2937 = vmatprep.subr.bf16.mxu0 0
    %2938 = vmatpush2.bf16.msra.mxu0 %v2655
    %2939 = vmatprep.subr.bf16.mxu0 0
    %2940 = vmatpush2.bf16.msra.mxu0 %v2654
    %2941 = vmatprep.subr.bf16.mxu0 0
    %2942 = vmatpush2.bf16.msra.mxu0 %v2653
    %2943 = vmatprep.subr.bf16.mxu0 0
    %2944 = vmatpush2.bf16.msra.mxu0 %v2652
    %2945 = vmatprep.subr.bf16.mxu0 0
    %2946 = vmatpush2.bf16.msra.mxu0 %v2651
    %2947 = vmatprep.subr.bf16.mxu0 0
    %2948 = vmatpush2.bf16.msra.mxu0 %v2650
    %2949 = vmatprep.subr.bf16.mxu0 0
    %2950 = vmatpush2.bf16.msra.mxu0 %v2649
    %2951 = vmatprep.subr.bf16.mxu0 0
    %2952 = vmatpush2.bf16.msra.mxu0 %v2648
    %2953 = vmatprep.mubr.bf16.mxu0 %v1836
    %2954 = vmatmul.mubr.bf16.gmra.mxu0 %v1835
    %v2955 = vpop.f32.mrf.mxu0
    %v2956 = vadd.f32 %v2915, %v2955
    %v2957 = vpop.f32.mrf.mxu0
    %v2958 = vpop.f32.mrf.mxu0
    %v2959 = vadd.f32 %v2918, %v2958
    %v2960 = vpop.f32.mrf.mxu0
    %2961 = vdwg.mxu0
    %2962 = vmatprep.subr.bf16.mxu0 0
    %2963 = vmatpush1.bf16.msra.mxu0 %v2663
    %2964 = vmatprep.subr.bf16.mxu0 0
    %2965 = vmatpush1.bf16.msra.mxu0 %v2662
    %2966 = vmatprep.subr.bf16.mxu0 0
    %2967 = vmatpush1.bf16.msra.mxu0 %v2661
    %2968 = vmatprep.subr.bf16.mxu0 0
    %2969 = vmatpush1.bf16.msra.mxu0 %v2660
    %2970 = vmatprep.subr.bf16.mxu0 0
    %2971 = vmatpush1.bf16.msra.mxu0 %v2659
    %2972 = vmatprep.subr.bf16.mxu0 0
    %2973 = vmatpush1.bf16.msra.mxu0 %v2658
    %2974 = vmatprep.subr.bf16.mxu0 0
    %2975 = vmatpush1.bf16.msra.mxu0 %v2657
    %2976 = vmatprep.subr.bf16.mxu0 0
    %2977 = vmatpush1.bf16.msra.mxu0 %v2656
    %2978 = vmatprep.subr.bf16.mxu0 0
    %2979 = vmatpush2.bf16.msra.mxu0 %v2671
    %2980 = vmatprep.subr.bf16.mxu0 0
    %2981 = vmatpush2.bf16.msra.mxu0 %v2670
    %2982 = vmatprep.subr.bf16.mxu0 0
    %2983 = vmatpush2.bf16.msra.mxu0 %v2669
    %2984 = vmatprep.subr.bf16.mxu0 0
    %2985 = vmatpush2.bf16.msra.mxu0 %v2668
    %2986 = vmatprep.subr.bf16.mxu0 0
    %2987 = vmatpush2.bf16.msra.mxu0 %v2667
    %2988 = vmatprep.subr.bf16.mxu0 0
    %2989 = vmatpush2.bf16.msra.mxu0 %v2666
    %2990 = vmatprep.subr.bf16.mxu0 0
    %2991 = vmatpush2.bf16.msra.mxu0 %v2665
    %2992 = vmatprep.subr.bf16.mxu0 0
    %2993 = vmatpush2.bf16.msra.mxu0 %v2664
    %2994 = vmatprep.mubr.bf16.mxu0 %v1838
    %2995 = vmatmul.mubr.bf16.gmra.mxu0 %v1837
    %v2996 = vpop.f32.mrf.mxu0
    %v2997 = vadd.f32 %v2956, %v2996
    %v2998 = vpop.f32.mrf.mxu0
    %v2999 = vpop.f32.mrf.mxu0
    %v3000 = vadd.f32 %v2959, %v2999
    %v3001 = vpop.f32.mrf.mxu0
    %3002 = vdwg.mxu0
    %3003 = vmatprep.subr.bf16.mxu0 0
    %3004 = vmatpush1.bf16.msra.mxu0 %v2679
    %3005 = vmatprep.subr.bf16.mxu0 0
    %3006 = vmatpush1.bf16.msra.mxu0 %v2678
    %3007 = vmatprep.subr.bf16.mxu0 0
    %3008 = vmatpush1.bf16.msra.mxu0 %v2677
    %3009 = vmatprep.subr.bf16.mxu0 0
    %3010 = vmatpush1.bf16.msra.mxu0 %v2676
    %3011 = vmatprep.subr.bf16.mxu0 0
    %3012 = vmatpush1.bf16.msra.mxu0 %v2675
    %3013 = vmatprep.subr.bf16.mxu0 0
    %3014 = vmatpush1.bf16.msra.mxu0 %v2674
    %3015 = vmatprep.subr.bf16.mxu0 0
    %3016 = vmatpush1.bf16.msra.mxu0 %v2673
    %3017 = vmatprep.subr.bf16.mxu0 0
    %3018 = vmatpush1.bf16.msra.mxu0 %v2672
    %3019 = vmatprep.subr.bf16.mxu0 0
    %3020 = vmatpush2.bf16.msra.mxu0 %v2687
    %3021 = vmatprep.subr.bf16.mxu0 0
    %3022 = vmatpush2.bf16.msra.mxu0 %v2686
    %3023 = vmatprep.subr.bf16.mxu0 0
    %3024 = vmatpush2.bf16.msra.mxu0 %v2685
    %3025 = vmatprep.subr.bf16.mxu0 0
    %3026 = vmatpush2.bf16.msra.mxu0 %v2684
    %3027 = vmatprep.subr.bf16.mxu0 0
    %3028 = vmatpush2.bf16.msra.mxu0 %v2683
    %3029 = vmatprep.subr.bf16.mxu0 0
    %3030 = vmatpush2.bf16.msra.mxu0 %v2682
    %3031 = vmatprep.subr.bf16.mxu0 0
    %3032 = vmatpush2.bf16.msra.mxu0 %v2681
    %3033 = vmatprep.subr.bf16.mxu0 0
    %3034 = vmatpush2.bf16.msra.mxu0 %v2680
    %3035 = vmatprep.mubr.bf16.mxu0 %v1840
    %3036 = vmatmul.mubr.bf16.gmra.mxu0 %v1839
    %v3037 = vpop.f32.mrf.mxu0
    %v3038 = vadd.f32 %v2997, %v3037
    %v3039 = vpop.f32.mrf.mxu0
    %v3040 = vpop.f32.mrf.mxu0
    %v3041 = vadd.f32 %v3000, %v3040
    %v3042 = vpop.f32.mrf.mxu0
    %3043 = vdwg.mxu0
    %3044 = vmatprep.subr.bf16.mxu0 0
    %3045 = vmatpush1.bf16.msra.mxu0 %v2695
    %3046 = vmatprep.subr.bf16.mxu0 0
    %3047 = vmatpush1.bf16.msra.mxu0 %v2694
    %3048 = vmatprep.subr.bf16.mxu0 0
    %3049 = vmatpush1.bf16.msra.mxu0 %v2693
    %3050 = vmatprep.subr.bf16.mxu0 0
    %3051 = vmatpush1.bf16.msra.mxu0 %v2692
    %3052 = vmatprep.subr.bf16.mxu0 0
    %3053 = vmatpush1.bf16.msra.mxu0 %v2691
    %3054 = vmatprep.subr.bf16.mxu0 0
    %3055 = vmatpush1.bf16.msra.mxu0 %v2690
    %3056 = vmatprep.subr.bf16.mxu0 0
    %3057 = vmatpush1.bf16.msra.mxu0 %v2689
    %3058 = vmatprep.subr.bf16.mxu0 0
    %3059 = vmatpush1.bf16.msra.mxu0 %v2688
    %3060 = vmatprep.subr.bf16.mxu0 0
    %3061 = vmatpush2.bf16.msra.mxu0 %v2703
    %3062 = vmatprep.subr.bf16.mxu0 0
    %3063 = vmatpush2.bf16.msra.mxu0 %v2702
    %3064 = vmatprep.subr.bf16.mxu0 0
    %3065 = vmatpush2.bf16.msra.mxu0 %v2701
    %3066 = vmatprep.subr.bf16.mxu0 0
    %3067 = vmatpush2.bf16.msra.mxu0 %v2700
    %3068 = vmatprep.subr.bf16.mxu0 0
    %3069 = vmatpush2.bf16.msra.mxu0 %v2699
    %3070 = vmatprep.subr.bf16.mxu0 0
    %3071 = vmatpush2.bf16.msra.mxu0 %v2698
    %3072 = vmatprep.subr.bf16.mxu0 0
    %3073 = vmatpush2.bf16.msra.mxu0 %v2697
    %3074 = vmatprep.subr.bf16.mxu0 0
    %3075 = vmatpush2.bf16.msra.mxu0 %v2696
    %3076 = vmatprep.mubr.bf16.mxu0 %v1842
    %3077 = vmatmul.mubr.bf16.gmra.mxu0 %v1841
    %v3078 = vpop.f32.mrf.mxu0
    %v3079 = vadd.f32 %v3038, %v3078
    %v3080 = vpop.f32.mrf.mxu0
    %v3081 = vpop.f32.mrf.mxu0
    %v3082 = vadd.f32 %v3041, %v3081
    %v3083 = vpop.f32.mrf.mxu0
    %3084 = vdwg.mxu0
    %3085 = vmatprep.subr.bf16.mxu0 0
    %3086 = vmatpush1.bf16.msra.mxu0 %v2711
    %3087 = vmatprep.subr.bf16.mxu0 0
    %3088 = vmatpush1.bf16.msra.mxu0 %v2710
    %3089 = vmatprep.subr.bf16.mxu0 0
    %3090 = vmatpush1.bf16.msra.mxu0 %v2709
    %3091 = vmatprep.subr.bf16.mxu0 0
    %3092 = vmatpush1.bf16.msra.mxu0 %v2708
    %3093 = vmatprep.subr.bf16.mxu0 0
    %3094 = vmatpush1.bf16.msra.mxu0 %v2707
    %3095 = vmatprep.subr.bf16.mxu0 0
    %3096 = vmatpush1.bf16.msra.mxu0 %v2706
    %3097 = vmatprep.subr.bf16.mxu0 0
    %3098 = vmatpush1.bf16.msra.mxu0 %v2705
    %3099 = vmatprep.subr.bf16.mxu0 0
    %3100 = vmatpush1.bf16.msra.mxu0 %v2704
    %3101 = vmatprep.subr.bf16.mxu0 0
    %3102 = vmatpush2.bf16.msra.mxu0 %v2719
    %3103 = vmatprep.subr.bf16.mxu0 0
    %3104 = vmatpush2.bf16.msra.mxu0 %v2718
    %3105 = vmatprep.subr.bf16.mxu0 0
    %3106 = vmatpush2.bf16.msra.mxu0 %v2717
    %3107 = vmatprep.subr.bf16.mxu0 0
    %3108 = vmatpush2.bf16.msra.mxu0 %v2716
    %3109 = vmatprep.subr.bf16.mxu0 0
    %3110 = vmatpush2.bf16.msra.mxu0 %v2715
    %3111 = vmatprep.subr.bf16.mxu0 0
    %3112 = vmatpush2.bf16.msra.mxu0 %v2714
    %3113 = vmatprep.subr.bf16.mxu0 0
    %3114 = vmatpush2.bf16.msra.mxu0 %v2713
    %3115 = vmatprep.subr.bf16.mxu0 0
    %3116 = vmatpush2.bf16.msra.mxu0 %v2712
    %3117 = vmatprep.mubr.bf16.mxu0 %v1844
    %3118 = vmatmul.mubr.bf16.gmra.mxu0 %v1843
    %v3119 = vpop.f32.mrf.mxu0
    %v3120 = vadd.f32 %v3079, %v3119
    %v3121 = vpop.f32.mrf.mxu0
    %v3122 = vpop.f32.mrf.mxu0
    %v3123 = vadd.f32 %v3082, %v3122
    %v3124 = vpop.f32.mrf.mxu0
    %3125 = vdwg.mxu0
    %3126 = vmatprep.subr.bf16.mxu0 0
    %3127 = vmatpush1.bf16.msra.mxu0 %v2727
    %3128 = vmatprep.subr.bf16.mxu0 0
    %3129 = vmatpush1.bf16.msra.mxu0 %v2726
    %3130 = vmatprep.subr.bf16.mxu0 0
    %3131 = vmatpush1.bf16.msra.mxu0 %v2725
    %3132 = vmatprep.subr.bf16.mxu0 0
    %3133 = vmatpush1.bf16.msra.mxu0 %v2724
    %3134 = vmatprep.subr.bf16.mxu0 0
    %3135 = vmatpush1.bf16.msra.mxu0 %v2723
    %3136 = vmatprep.subr.bf16.mxu0 0
    %3137 = vmatpush1.bf16.msra.mxu0 %v2722
    %3138 = vmatprep.subr.bf16.mxu0 0
    %3139 = vmatpush1.bf16.msra.mxu0 %v2721
    %3140 = vmatprep.subr.bf16.mxu0 0
    %3141 = vmatpush1.bf16.msra.mxu0 %v2720
    %3142 = vmatprep.subr.bf16.mxu0 0
    %3143 = vmatpush2.bf16.msra.mxu0 %v2735
    %3144 = vmatprep.subr.bf16.mxu0 0
    %3145 = vmatpush2.bf16.msra.mxu0 %v2734
    %3146 = vmatprep.subr.bf16.mxu0 0
    %3147 = vmatpush2.bf16.msra.mxu0 %v2733
    %3148 = vmatprep.subr.bf16.mxu0 0
    %3149 = vmatpush2.bf16.msra.mxu0 %v2732
    %3150 = vmatprep.subr.bf16.mxu0 0
    %3151 = vmatpush2.bf16.msra.mxu0 %v2731
    %3152 = vmatprep.subr.bf16.mxu0 0
    %3153 = vmatpush2.bf16.msra.mxu0 %v2730
    %3154 = vmatprep.subr.bf16.mxu0 0
    %3155 = vmatpush2.bf16.msra.mxu0 %v2729
    %3156 = vmatprep.subr.bf16.mxu0 0
    %3157 = vmatpush2.bf16.msra.mxu0 %v2728
    %3158 = vmatprep.mubr.bf16.mxu0 %v1846
    %3159 = vmatmul.mubr.bf16.gmra.mxu0 %v1845
    %v3160 = vpop.f32.mrf.mxu0
    %v3161 = vadd.f32 %v3120, %v3160
    %v3162 = vpop.f32.mrf.mxu0
    %v3163 = vpop.f32.mrf.mxu0
    %v3164 = vadd.f32 %v3123, %v3163
    %v3165 = vpop.f32.mrf.mxu0
    %3166 = vdwg.mxu0
    %3167 = vmatprep.subr.bf16.mxu0 0
    %3168 = vmatpush1.bf16.msra.mxu0 %v2743
    %3169 = vmatprep.subr.bf16.mxu0 0
    %3170 = vmatpush1.bf16.msra.mxu0 %v2742
    %3171 = vmatprep.subr.bf16.mxu0 0
    %3172 = vmatpush1.bf16.msra.mxu0 %v2741
    %3173 = vmatprep.subr.bf16.mxu0 0
    %3174 = vmatpush1.bf16.msra.mxu0 %v2740
    %3175 = vmatprep.subr.bf16.mxu0 0
    %3176 = vmatpush1.bf16.msra.mxu0 %v2739
    %3177 = vmatprep.subr.bf16.mxu0 0
    %3178 = vmatpush1.bf16.msra.mxu0 %v2738
    %3179 = vmatprep.subr.bf16.mxu0 0
    %3180 = vmatpush1.bf16.msra.mxu0 %v2737
    %3181 = vmatprep.subr.bf16.mxu0 0
    %3182 = vmatpush1.bf16.msra.mxu0 %v2736
    %3183 = vmatprep.subr.bf16.mxu0 0
    %3184 = vmatpush2.bf16.msra.mxu0 %v2751
    %3185 = vmatprep.subr.bf16.mxu0 0
    %3186 = vmatpush2.bf16.msra.mxu0 %v2750
    %3187 = vmatprep.subr.bf16.mxu0 0
    %3188 = vmatpush2.bf16.msra.mxu0 %v2749
    %3189 = vmatprep.subr.bf16.mxu0 0
    %3190 = vmatpush2.bf16.msra.mxu0 %v2748
    %3191 = vmatprep.subr.bf16.mxu0 0
    %3192 = vmatpush2.bf16.msra.mxu0 %v2747
    %3193 = vmatprep.subr.bf16.mxu0 0
    %3194 = vmatpush2.bf16.msra.mxu0 %v2746
    %3195 = vmatprep.subr.bf16.mxu0 0
    %3196 = vmatpush2.bf16.msra.mxu0 %v2745
    %3197 = vmatprep.subr.bf16.mxu0 0
    %3198 = vmatpush2.bf16.msra.mxu0 %v2744
    %3199 = vmatprep.mubr.bf16.mxu0 %v1848
    %3200 = vmatmul.mubr.bf16.gmra.mxu0 %v1847
    %v3201 = vpop.f32.mrf.mxu0
    %v3202 = vadd.f32 %v3161, %v3201
    %v3203 = vpop.f32.mrf.mxu0
    %v3204 = vpop.f32.mrf.mxu0
    %v3205 = vadd.f32 %v3164, %v3204
    %v3206 = vpop.f32.mrf.mxu0
    %3207 = vdwg.mxu0
    %v3208 = vadd.f32 %v1175, %v3202
    %v3209 = vadd.f32 %v1176, %v3205
    %v3210 = vld [vmem:[%s8] sm:$0x1]
    %v3211 = vld [vmem:[%s9] sm:$0x1]
    %v3212 = vsel %vm85, %v3208, 0.0
    %3213 = vadd.xlane.f32.xlu0 %v3212
    %v3214 = vpop.xlane.xlu0 %3213
    %v3215 = vsel %vm85, %v3209, 0.0
    %3216 = vadd.xlane.f32.xlu0 %v3215
    %v3217 = vpop.xlane.xlu0 %3216
    %v3218 = vmul.f32 %v3214, %v1140
    %v3219 = vmul.f32 %v3217, %v1140
    %v3220 = vsub.f32 %v3208, %v3218
    %v3221 = vsub.f32 %v3209, %v3219
    %v3222 = vmul.f32 %v3220, %v3220
    %v3223 = vmul.f32 %v3221, %v3221
    %v3224 = vsel %vm85, %v3222, 0.0
    %3225 = vadd.xlane.f32.xlu0 %v3224
    %v3226 = vpop.xlane.xlu0 %3225
    %v3227 = vsel %vm85, %v3223, 0.0
    %3228 = vadd.xlane.f32.xlu0 %v3227
    %v3229 = vpop.xlane.xlu0 %3228
    %v3230 = vmul.f32 %v3226, %v1140
    %v3231 = vmul.f32 %v3229, %v1140
    %v3232 = vadd.f32 %v3230, 1e-05
    %v3233 = vadd.f32 %v3231, 1e-05
    %v3234 = vrsqrt.pop %v3232
    %v3235 = vrsqrt.pop %v3233
    %v3236 = vmul.f32 %v3220, %v3234
    %v3237 = vmul.f32 %v3221, %v3235
    %v3239 = vlaneseq
    %v3240 = vshrl.u32 %v3239, 7
    %v3241 = vsub.s32 0, %v3240
    %v3242 = vrot.slane %v3210, %v3241
    %v3244 = vmul.f32 %v3236, %v3242
    %v3245 = vmul.f32 %v3237, %v3242
    %v3247 = vlaneseq
    %v3248 = vshrl.u32 %v3247, 7
    %v3249 = vsub.s32 0, %v3248
    %v3250 = vrot.slane %v3211, %v3249
    %v3252 = vadd.f32 %v3244, %v3250
    %v3253 = vadd.f32 %v3245, %v3250
    %v3254 = vpack.c.bf16 %v3253, %v3252
    %s3255 = scalar_lea.vmem %s2, 16
    %v3256 = vld [vmem:[%s3255] sm:$0xf]
    %v3257 = vld [vmem:[%s3255 + $0x4] sm:$0xf]
    %v3258 = vld [vmem:[%s3255 + $0x8] sm:$0xf]
    %v3259 = vld [vmem:[%s3255 + $0xc] sm:$0xf]
    %s3260 = scalar_lea.vmem %s3, 1
    %v3261 = vld [vmem:[%s3260] sm:$0x1]
    %v3263 = vlaneseq
    %v3264 = vshrl.u32 %v3263, 7
    %v3265 = vsub.s32 0, %v3264
    %v3266 = vrot.slane %v3261, %v3265
    %v3272 = vunpack.c.l.b16 %v3256
    %v3273 = vunpack.c.l.b16 %v3257
    %v3274 = vunpack.c.l.b16 %v3258
    %v3275 = vunpack.c.l.b16 %v3259
    %v3276 = vpack.c.b16 %v3273, %v3272
    %v3277 = vpack.c.b16 %v3275, %v3274
    %v3281 = vsel %vm85, %v3254, 0
    %3283 = vmatprep.subr.bf16.mxu0 0
    %3284 = vmatpush1.bf16.msra.mxu0 0
    %3285 = vmatprep.subr.bf16.mxu0 0
    %3286 = vmatpush1.bf16.msra.mxu0 0
    %3287 = vmatprep.subr.bf16.mxu0 0
    %3288 = vmatpush1.bf16.msra.mxu0 0
    %3289 = vmatprep.subr.bf16.mxu0 0
    %3290 = vmatpush1.bf16.msra.mxu0 0
    %3291 = vmatprep.subr.bf16.mxu0 0
    %3292 = vmatpush1.bf16.msra.mxu0 0
    %3293 = vmatprep.subr.bf16.mxu0 0
    %3294 = vmatpush1.bf16.msra.mxu0 0
    %3295 = vmatprep.subr.bf16.mxu0 0
    %3296 = vmatpush1.bf16.msra.mxu0 %v3277
    %3297 = vmatprep.subr.bf16.mxu0 0
    %3298 = vmatpush1.bf16.msra.mxu0 %v3276
    %3299 = vmatprep.subr.bf16.mxu0 0
    %3300 = vmatpush2.bf16.msra.mxu0 0
    %3301 = vmatprep.subr.bf16.mxu0 0
    %3302 = vmatpush2.bf16.msra.mxu0 0
    %3303 = vmatprep.subr.bf16.mxu0 0
    %3304 = vmatpush2.bf16.msra.mxu0 0
    %3305 = vmatprep.subr.bf16.mxu0 0
    %3306 = vmatpush2.bf16.msra.mxu0 0
    %3307 = vmatprep.subr.bf16.mxu0 0
    %3308 = vmatpush2.bf16.msra.mxu0 0
    %3309 = vmatprep.subr.bf16.mxu0 0
    %3310 = vmatpush2.bf16.msra.mxu0 0
    %3311 = vmatprep.subr.bf16.mxu0 0
    %3312 = vmatpush2.bf16.msra.mxu0 0
    %3313 = vmatprep.subr.bf16.mxu0 0
    %3314 = vmatpush2.bf16.msra.mxu0 0
    %3315 = vmatprep.mubr.bf16.mxu0 0
    %3316 = vmatmul.mubr.bf16.gmra.mxu0 %v3281
    %v3317 = vpop.f32.mrf.mxu0
    %v3318 = vadd.f32 %v3266, %v3317
    %v3319 = vpop.f32.mrf.mxu0
    %v3320 = vpop.f32.mrf.mxu0
    %v3321 = vadd.f32 %v3266, %v3320
    %v3322 = vpop.f32.mrf.mxu0
    %3323 = vdwg.mxu0
    %v3324 = vmul.f32 %v3318, 0.35355338
    %v3325 = vmul.f32 %v3321, 0.35355338
    %v3326 = vmul.f32 %v3324, %v139
    %v3327 = vmul.f32 %v3325, %v139
    %v3328 = vmul.f32 %v3324, %v143
    %v3329 = vmul.f32 %v3325, %v143
    %v3330 = vmul.f32 %v3324, %v147
    %v3331 = vmul.f32 %v3325, %v147
    %v3332 = vmul.f32 %v3324, %v151
    %v3333 = vmul.f32 %v3325, %v151
    %v3334 = vpack.c.bf16 %v3326, %v3326
    %v3335 = vpack.c.bf16 %v3327, %v3327
    %v3336 = vpack.c.bf16 %v3328, %v3328
    %v3337 = vpack.c.bf16 %v3329, %v3329
    %v3338 = vpack.c.bf16 %v3330, %v3330
    %v3339 = vpack.c.bf16 %v3331, %v3331
    %v3340 = vpack.c.bf16 %v3332, %v3332
    %v3341 = vpack.c.bf16 %v3333, %v3333
    %v3342 = vpack.c.bf16 %v3318, %v3318
    %v3343 = vpack.c.bf16 %v3321, %v3321
    %v3344 = vmul.f32 %v3318, %v175
    %v3345 = vmul.f32 %v3321, %v175
    %v3346 = vmul.f32 %v3318, %v177
    %v3347 = vmul.f32 %v3321, %v177
    %v3348 = vmul.f32 %v3318, %v179
    %v3349 = vmul.f32 %v3321, %v179
    %v3350 = vmul.f32 %v3318, %v181
    %v3351 = vmul.f32 %v3321, %v181
    %v3352 = vpack.c.bf16 %v3344, %v3344
    %v3353 = vpack.c.bf16 %v3345, %v3345
    %v3354 = vpack.c.bf16 %v3346, %v3346
    %v3355 = vpack.c.bf16 %v3347, %v3347
    %v3356 = vpack.c.bf16 %v3348, %v3348
    %v3357 = vpack.c.bf16 %v3349, %v3349
    %v3358 = vpack.c.bf16 %v3350, %v3350
    %v3359 = vpack.c.bf16 %v3351, %v3351
    %3361 = vrot.lane.b32.xlu0 %v3342, 96
    %v3362 = vpop.permute.xlu0 %3361
    %v3364 = vsel %vm85, %v3334, 0
    %v3367 = vsel %vm85, %v3362, 0
    %3369 = vmatprep.subr.bf16.mxu0 0
    %3370 = vmatpush1.bf16.xpose.msra.mxu0 0
    %3371 = vmatprep.subr.bf16.mxu0 0
    %3372 = vmatpush1.bf16.xpose.msra.mxu0 0
    %3373 = vmatprep.subr.bf16.mxu0 0
    %3374 = vmatpush1.bf16.xpose.msra.mxu0 0
    %3375 = vmatprep.subr.bf16.mxu0 0
    %3376 = vmatpush1.bf16.xpose.msra.mxu0 0
    %3377 = vmatprep.subr.bf16.mxu0 0
    %3378 = vmatpush1.bf16.xpose.msra.mxu0 0
    %3379 = vmatprep.subr.bf16.mxu0 0
    %3380 = vmatpush1.bf16.xpose.msra.mxu0 0
    %3381 = vmatprep.subr.bf16.mxu0 0
    %3382 = vmatpush1.bf16.xpose.msra.mxu0 0
    %3383 = vmatprep.subr.bf16.mxu0 0
    %3384 = vmatpush1.bf16.xpose.msra.mxu0 %v3367
    %3385 = vmatprep.subr.bf16.mxu0 0
    %3386 = vmatpush2.bf16.xpose.msra.mxu0 0
    %3387 = vmatprep.subr.bf16.mxu0 0
    %3388 = vmatpush2.bf16.xpose.msra.mxu0 0
    %3389 = vmatprep.subr.bf16.mxu0 0
    %3390 = vmatpush2.bf16.xpose.msra.mxu0 0
    %3391 = vmatprep.subr.bf16.mxu0 0
    %3392 = vmatpush2.bf16.xpose.msra.mxu0 0
    %3393 = vmatprep.subr.bf16.mxu0 0
    %3394 = vmatpush2.bf16.xpose.msra.mxu0 0
    %3395 = vmatprep.subr.bf16.mxu0 0
    %3396 = vmatpush2.bf16.xpose.msra.mxu0 0
    %3397 = vmatprep.subr.bf16.mxu0 0
    %3398 = vmatpush2.bf16.xpose.msra.mxu0 0
    %3399 = vmatprep.subr.bf16.mxu0 0
    %3400 = vmatpush2.bf16.xpose.msra.mxu0 0
    %3401 = vmatprep.mubr.bf16.mxu0 0
    %3402 = vmatmul.mubr.bf16.gmra.mxu0 %v3364
    %v3403 = vpop.f32.mrf.mxu0
    %v3404 = vadd.f32 0.0, %v3403
    %v3405 = vpop.f32.mrf.mxu0
    %v3406 = vpop.f32.mrf.mxu0
    %v3407 = vpop.f32.mrf.mxu0
    %3408 = vdwg.mxu0
    %3410 = vrot.lane.b32.xlu0 %v3343, 96
    %v3411 = vpop.permute.xlu0 %3410
    %v3413 = vsel %vm85, %v3335, 0
    %v3416 = vsel %vm85, %v3411, 0
    %3418 = vmatprep.subr.bf16.mxu0 0
    %3419 = vmatpush1.bf16.xpose.msra.mxu0 0
    %3420 = vmatprep.subr.bf16.mxu0 0
    %3421 = vmatpush1.bf16.xpose.msra.mxu0 0
    %3422 = vmatprep.subr.bf16.mxu0 0
    %3423 = vmatpush1.bf16.xpose.msra.mxu0 0
    %3424 = vmatprep.subr.bf16.mxu0 0
    %3425 = vmatpush1.bf16.xpose.msra.mxu0 0
    %3426 = vmatprep.subr.bf16.mxu0 0
    %3427 = vmatpush1.bf16.xpose.msra.mxu0 0
    %3428 = vmatprep.subr.bf16.mxu0 0
    %3429 = vmatpush1.bf16.xpose.msra.mxu0 0
    %3430 = vmatprep.subr.bf16.mxu0 0
    %3431 = vmatpush1.bf16.xpose.msra.mxu0 0
    %3432 = vmatprep.subr.bf16.mxu0 0
    %3433 = vmatpush1.bf16.xpose.msra.mxu0 %v3416
    %3434 = vmatprep.subr.bf16.mxu0 0
    %3435 = vmatpush2.bf16.xpose.msra.mxu0 0
    %3436 = vmatprep.subr.bf16.mxu0 0
    %3437 = vmatpush2.bf16.xpose.msra.mxu0 0
    %3438 = vmatprep.subr.bf16.mxu0 0
    %3439 = vmatpush2.bf16.xpose.msra.mxu0 0
    %3440 = vmatprep.subr.bf16.mxu0 0
    %3441 = vmatpush2.bf16.xpose.msra.mxu0 0
    %3442 = vmatprep.subr.bf16.mxu0 0
    %3443 = vmatpush2.bf16.xpose.msra.mxu0 0
    %3444 = vmatprep.subr.bf16.mxu0 0
    %3445 = vmatpush2.bf16.xpose.msra.mxu0 0
    %3446 = vmatprep.subr.bf16.mxu0 0
    %3447 = vmatpush2.bf16.xpose.msra.mxu0 0
    %3448 = vmatprep.subr.bf16.mxu0 0
    %3449 = vmatpush2.bf16.xpose.msra.mxu0 0
    %3450 = vmatprep.mubr.bf16.mxu0 0
    %3451 = vmatmul.mubr.bf16.gmra.mxu0 %v3413
    %v3452 = vpop.f32.mrf.mxu0
    %v3453 = vadd.f32 0.0, %v3452
    %v3454 = vpop.f32.mrf.mxu0
    %v3455 = vpop.f32.mrf.mxu0
    %v3456 = vpop.f32.mrf.mxu0
    %3457 = vdwg.mxu0
    %v3459 = vsel %vm85, %v3336, 0
    %3461 = vmatprep.subr.bf16.mxu0 0
    %3462 = vmatpush1.bf16.xpose.msra.mxu0 0
    %3463 = vmatprep.subr.bf16.mxu0 0
    %3464 = vmatpush1.bf16.xpose.msra.mxu0 0
    %3465 = vmatprep.subr.bf16.mxu0 0
    %3466 = vmatpush1.bf16.xpose.msra.mxu0 0
    %3467 = vmatprep.subr.bf16.mxu0 0
    %3468 = vmatpush1.bf16.xpose.msra.mxu0 0
    %3469 = vmatprep.subr.bf16.mxu0 0
    %3470 = vmatpush1.bf16.xpose.msra.mxu0 0
    %3471 = vmatprep.subr.bf16.mxu0 0
    %3472 = vmatpush1.bf16.xpose.msra.mxu0 0
    %3473 = vmatprep.subr.bf16.mxu0 0
    %3474 = vmatpush1.bf16.xpose.msra.mxu0 0
    %3475 = vmatprep.subr.bf16.mxu0 0
    %3476 = vmatpush1.bf16.xpose.msra.mxu0 %v3367
    %3477 = vmatprep.subr.bf16.mxu0 0
    %3478 = vmatpush2.bf16.xpose.msra.mxu0 0
    %3479 = vmatprep.subr.bf16.mxu0 0
    %3480 = vmatpush2.bf16.xpose.msra.mxu0 0
    %3481 = vmatprep.subr.bf16.mxu0 0
    %3482 = vmatpush2.bf16.xpose.msra.mxu0 0
    %3483 = vmatprep.subr.bf16.mxu0 0
    %3484 = vmatpush2.bf16.xpose.msra.mxu0 0
    %3485 = vmatprep.subr.bf16.mxu0 0
    %3486 = vmatpush2.bf16.xpose.msra.mxu0 0
    %3487 = vmatprep.subr.bf16.mxu0 0
    %3488 = vmatpush2.bf16.xpose.msra.mxu0 0
    %3489 = vmatprep.subr.bf16.mxu0 0
    %3490 = vmatpush2.bf16.xpose.msra.mxu0 0
    %3491 = vmatprep.subr.bf16.mxu0 0
    %3492 = vmatpush2.bf16.xpose.msra.mxu0 0
    %3493 = vmatprep.mubr.bf16.mxu0 0
    %3494 = vmatmul.mubr.bf16.gmra.mxu0 %v3459
    %v3495 = vpop.f32.mrf.mxu0
    %v3496 = vadd.f32 0.0, %v3495
    %v3497 = vpop.f32.mrf.mxu0
    %v3498 = vpop.f32.mrf.mxu0
    %v3499 = vpop.f32.mrf.mxu0
    %3500 = vdwg.mxu0
    %v3502 = vsel %vm85, %v3337, 0
    %3504 = vmatprep.subr.bf16.mxu0 0
    %3505 = vmatpush1.bf16.xpose.msra.mxu0 0
    %3506 = vmatprep.subr.bf16.mxu0 0
    %3507 = vmatpush1.bf16.xpose.msra.mxu0 0
    %3508 = vmatprep.subr.bf16.mxu0 0
    %3509 = vmatpush1.bf16.xpose.msra.mxu0 0
    %3510 = vmatprep.subr.bf16.mxu0 0
    %3511 = vmatpush1.bf16.xpose.msra.mxu0 0
    %3512 = vmatprep.subr.bf16.mxu0 0
    %3513 = vmatpush1.bf16.xpose.msra.mxu0 0
    %3514 = vmatprep.subr.bf16.mxu0 0
    %3515 = vmatpush1.bf16.xpose.msra.mxu0 0
    %3516 = vmatprep.subr.bf16.mxu0 0
    %3517 = vmatpush1.bf16.xpose.msra.mxu0 0
    %3518 = vmatprep.subr.bf16.mxu0 0
    %3519 = vmatpush1.bf16.xpose.msra.mxu0 %v3416
    %3520 = vmatprep.subr.bf16.mxu0 0
    %3521 = vmatpush2.bf16.xpose.msra.mxu0 0
    %3522 = vmatprep.subr.bf16.mxu0 0
    %3523 = vmatpush2.bf16.xpose.msra.mxu0 0
    %3524 = vmatprep.subr.bf16.mxu0 0
    %3525 = vmatpush2.bf16.xpose.msra.mxu0 0
    %3526 = vmatprep.subr.bf16.mxu0 0
    %3527 = vmatpush2.bf16.xpose.msra.mxu0 0
    %3528 = vmatprep.subr.bf16.mxu0 0
    %3529 = vmatpush2.bf16.xpose.msra.mxu0 0
    %3530 = vmatprep.subr.bf16.mxu0 0
    %3531 = vmatpush2.bf16.xpose.msra.mxu0 0
    %3532 = vmatprep.subr.bf16.mxu0 0
    %3533 = vmatpush2.bf16.xpose.msra.mxu0 0
    %3534 = vmatprep.subr.bf16.mxu0 0
    %3535 = vmatpush2.bf16.xpose.msra.mxu0 0
    %3536 = vmatprep.mubr.bf16.mxu0 0
    %3537 = vmatmul.mubr.bf16.gmra.mxu0 %v3502
    %v3538 = vpop.f32.mrf.mxu0
    %v3539 = vadd.f32 0.0, %v3538
    %v3540 = vpop.f32.mrf.mxu0
    %v3541 = vpop.f32.mrf.mxu0
    %v3542 = vpop.f32.mrf.mxu0
    %3543 = vdwg.mxu0
    %v3545 = vsel %vm85, %v3338, 0
    %3547 = vmatprep.subr.bf16.mxu0 0
    %3548 = vmatpush1.bf16.xpose.msra.mxu0 0
    %3549 = vmatprep.subr.bf16.mxu0 0
    %3550 = vmatpush1.bf16.xpose.msra.mxu0 0
    %3551 = vmatprep.subr.bf16.mxu0 0
    %3552 = vmatpush1.bf16.xpose.msra.mxu0 0
    %3553 = vmatprep.subr.bf16.mxu0 0
    %3554 = vmatpush1.bf16.xpose.msra.mxu0 0
    %3555 = vmatprep.subr.bf16.mxu0 0
    %3556 = vmatpush1.bf16.xpose.msra.mxu0 0
    %3557 = vmatprep.subr.bf16.mxu0 0
    %3558 = vmatpush1.bf16.xpose.msra.mxu0 0
    %3559 = vmatprep.subr.bf16.mxu0 0
    %3560 = vmatpush1.bf16.xpose.msra.mxu0 0
    %3561 = vmatprep.subr.bf16.mxu0 0
    %3562 = vmatpush1.bf16.xpose.msra.mxu0 %v3367
    %3563 = vmatprep.subr.bf16.mxu0 0
    %3564 = vmatpush2.bf16.xpose.msra.mxu0 0
    %3565 = vmatprep.subr.bf16.mxu0 0
    %3566 = vmatpush2.bf16.xpose.msra.mxu0 0
    %3567 = vmatprep.subr.bf16.mxu0 0
    %3568 = vmatpush2.bf16.xpose.msra.mxu0 0
    %3569 = vmatprep.subr.bf16.mxu0 0
    %3570 = vmatpush2.bf16.xpose.msra.mxu0 0
    %3571 = vmatprep.subr.bf16.mxu0 0
    %3572 = vmatpush2.bf16.xpose.msra.mxu0 0
    %3573 = vmatprep.subr.bf16.mxu0 0
    %3574 = vmatpush2.bf16.xpose.msra.mxu0 0
    %3575 = vmatprep.subr.bf16.mxu0 0
    %3576 = vmatpush2.bf16.xpose.msra.mxu0 0
    %3577 = vmatprep.subr.bf16.mxu0 0
    %3578 = vmatpush2.bf16.xpose.msra.mxu0 0
    %3579 = vmatprep.mubr.bf16.mxu0 0
    %3580 = vmatmul.mubr.bf16.gmra.mxu0 %v3545
    %v3581 = vpop.f32.mrf.mxu0
    %v3582 = vadd.f32 0.0, %v3581
    %v3583 = vpop.f32.mrf.mxu0
    %v3584 = vpop.f32.mrf.mxu0
    %v3585 = vpop.f32.mrf.mxu0
    %3586 = vdwg.mxu0
    %v3588 = vsel %vm85, %v3339, 0
    %3590 = vmatprep.subr.bf16.mxu0 0
    %3591 = vmatpush1.bf16.xpose.msra.mxu0 0
    %3592 = vmatprep.subr.bf16.mxu0 0
    %3593 = vmatpush1.bf16.xpose.msra.mxu0 0
    %3594 = vmatprep.subr.bf16.mxu0 0
    %3595 = vmatpush1.bf16.xpose.msra.mxu0 0
    %3596 = vmatprep.subr.bf16.mxu0 0
    %3597 = vmatpush1.bf16.xpose.msra.mxu0 0
    %3598 = vmatprep.subr.bf16.mxu0 0
    %3599 = vmatpush1.bf16.xpose.msra.mxu0 0
    %3600 = vmatprep.subr.bf16.mxu0 0
    %3601 = vmatpush1.bf16.xpose.msra.mxu0 0
    %3602 = vmatprep.subr.bf16.mxu0 0
    %3603 = vmatpush1.bf16.xpose.msra.mxu0 0
    %3604 = vmatprep.subr.bf16.mxu0 0
    %3605 = vmatpush1.bf16.xpose.msra.mxu0 %v3416
    %3606 = vmatprep.subr.bf16.mxu0 0
    %3607 = vmatpush2.bf16.xpose.msra.mxu0 0
    %3608 = vmatprep.subr.bf16.mxu0 0
    %3609 = vmatpush2.bf16.xpose.msra.mxu0 0
    %3610 = vmatprep.subr.bf16.mxu0 0
    %3611 = vmatpush2.bf16.xpose.msra.mxu0 0
    %3612 = vmatprep.subr.bf16.mxu0 0
    %3613 = vmatpush2.bf16.xpose.msra.mxu0 0
    %3614 = vmatprep.subr.bf16.mxu0 0
    %3615 = vmatpush2.bf16.xpose.msra.mxu0 0
    %3616 = vmatprep.subr.bf16.mxu0 0
    %3617 = vmatpush2.bf16.xpose.msra.mxu0 0
    %3618 = vmatprep.subr.bf16.mxu0 0
    %3619 = vmatpush2.bf16.xpose.msra.mxu0 0
    %3620 = vmatprep.subr.bf16.mxu0 0
    %3621 = vmatpush2.bf16.xpose.msra.mxu0 0
    %3622 = vmatprep.mubr.bf16.mxu0 0
    %3623 = vmatmul.mubr.bf16.gmra.mxu0 %v3588
    %v3624 = vpop.f32.mrf.mxu0
    %v3625 = vadd.f32 0.0, %v3624
    %v3626 = vpop.f32.mrf.mxu0
    %v3627 = vpop.f32.mrf.mxu0
    %v3628 = vpop.f32.mrf.mxu0
    %3629 = vdwg.mxu0
    %v3631 = vsel %vm85, %v3340, 0
    %3633 = vmatprep.subr.bf16.mxu0 0
    %3634 = vmatpush1.bf16.xpose.msra.mxu0 0
    %3635 = vmatprep.subr.bf16.mxu0 0
    %3636 = vmatpush1.bf16.xpose.msra.mxu0 0
    %3637 = vmatprep.subr.bf16.mxu0 0
    %3638 = vmatpush1.bf16.xpose.msra.mxu0 0
    %3639 = vmatprep.subr.bf16.mxu0 0
    %3640 = vmatpush1.bf16.xpose.msra.mxu0 0
    %3641 = vmatprep.subr.bf16.mxu0 0
    %3642 = vmatpush1.bf16.xpose.msra.mxu0 0
    %3643 = vmatprep.subr.bf16.mxu0 0
    %3644 = vmatpush1.bf16.xpose.msra.mxu0 0
    %3645 = vmatprep.subr.bf16.mxu0 0
    %3646 = vmatpush1.bf16.xpose.msra.mxu0 0
    %3647 = vmatprep.subr.bf16.mxu0 0
    %3648 = vmatpush1.bf16.xpose.msra.mxu0 %v3367
    %3649 = vmatprep.subr.bf16.mxu0 0
    %3650 = vmatpush2.bf16.xpose.msra.mxu0 0
    %3651 = vmatprep.subr.bf16.mxu0 0
    %3652 = vmatpush2.bf16.xpose.msra.mxu0 0
    %3653 = vmatprep.subr.bf16.mxu0 0
    %3654 = vmatpush2.bf16.xpose.msra.mxu0 0
    %3655 = vmatprep.subr.bf16.mxu0 0
    %3656 = vmatpush2.bf16.xpose.msra.mxu0 0
    %3657 = vmatprep.subr.bf16.mxu0 0
    %3658 = vmatpush2.bf16.xpose.msra.mxu0 0
    %3659 = vmatprep.subr.bf16.mxu0 0
    %3660 = vmatpush2.bf16.xpose.msra.mxu0 0
    %3661 = vmatprep.subr.bf16.mxu0 0
    %3662 = vmatpush2.bf16.xpose.msra.mxu0 0
    %3663 = vmatprep.subr.bf16.mxu0 0
    %3664 = vmatpush2.bf16.xpose.msra.mxu0 0
    %3665 = vmatprep.mubr.bf16.mxu0 0
    %3666 = vmatmul.mubr.bf16.gmra.mxu0 %v3631
    %v3667 = vpop.f32.mrf.mxu0
    %v3668 = vadd.f32 0.0, %v3667
    %v3669 = vpop.f32.mrf.mxu0
    %v3670 = vpop.f32.mrf.mxu0
    %v3671 = vpop.f32.mrf.mxu0
    %3672 = vdwg.mxu0
    %v3674 = vsel %vm85, %v3341, 0
    %3676 = vmatprep.subr.bf16.mxu0 0
    %3677 = vmatpush1.bf16.xpose.msra.mxu0 0
    %3678 = vmatprep.subr.bf16.mxu0 0
    %3679 = vmatpush1.bf16.xpose.msra.mxu0 0
    %3680 = vmatprep.subr.bf16.mxu0 0
    %3681 = vmatpush1.bf16.xpose.msra.mxu0 0
    %3682 = vmatprep.subr.bf16.mxu0 0
    %3683 = vmatpush1.bf16.xpose.msra.mxu0 0
    %3684 = vmatprep.subr.bf16.mxu0 0
    %3685 = vmatpush1.bf16.xpose.msra.mxu0 0
    %3686 = vmatprep.subr.bf16.mxu0 0
    %3687 = vmatpush1.bf16.xpose.msra.mxu0 0
    %3688 = vmatprep.subr.bf16.mxu0 0
    %3689 = vmatpush1.bf16.xpose.msra.mxu0 0
    %3690 = vmatprep.subr.bf16.mxu0 0
    %3691 = vmatpush1.bf16.xpose.msra.mxu0 %v3416
    %3692 = vmatprep.subr.bf16.mxu0 0
    %3693 = vmatpush2.bf16.xpose.msra.mxu0 0
    %3694 = vmatprep.subr.bf16.mxu0 0
    %3695 = vmatpush2.bf16.xpose.msra.mxu0 0
    %3696 = vmatprep.subr.bf16.mxu0 0
    %3697 = vmatpush2.bf16.xpose.msra.mxu0 0
    %3698 = vmatprep.subr.bf16.mxu0 0
    %3699 = vmatpush2.bf16.xpose.msra.mxu0 0
    %3700 = vmatprep.subr.bf16.mxu0 0
    %3701 = vmatpush2.bf16.xpose.msra.mxu0 0
    %3702 = vmatprep.subr.bf16.mxu0 0
    %3703 = vmatpush2.bf16.xpose.msra.mxu0 0
    %3704 = vmatprep.subr.bf16.mxu0 0
    %3705 = vmatpush2.bf16.xpose.msra.mxu0 0
    %3706 = vmatprep.subr.bf16.mxu0 0
    %3707 = vmatpush2.bf16.xpose.msra.mxu0 0
    %3708 = vmatprep.mubr.bf16.mxu0 0
    %3709 = vmatmul.mubr.bf16.gmra.mxu0 %v3674
    %v3710 = vpop.f32.mrf.mxu0
    %v3711 = vadd.f32 0.0, %v3710
    %v3712 = vpop.f32.mrf.mxu0
    %v3713 = vpop.f32.mrf.mxu0
    %v3714 = vpop.f32.mrf.mxu0
    %3715 = vdwg.mxu0
    %v3716 = vsel %vm558, %v3404, -inf
    %3717 = vmax.xlane.f32.xlu0 %v3716
    %v3718 = vpop.xlane.xlu0 %3717
    %v3719 = vsel %vm558, %v3453, -inf
    %3720 = vmax.xlane.f32.xlu0 %v3719
    %v3721 = vpop.xlane.xlu0 %3720
    %v3722 = vsel %vm558, %v3496, -inf
    %3723 = vmax.xlane.f32.xlu0 %v3722
    %v3724 = vpop.xlane.xlu0 %3723
    %v3725 = vsel %vm558, %v3539, -inf
    %3726 = vmax.xlane.f32.xlu0 %v3725
    %v3727 = vpop.xlane.xlu0 %3726
    %v3728 = vsel %vm558, %v3582, -inf
    %3729 = vmax.xlane.f32.xlu0 %v3728
    %v3730 = vpop.xlane.xlu0 %3729
    %v3731 = vsel %vm558, %v3625, -inf
    %3732 = vmax.xlane.f32.xlu0 %v3731
    %v3733 = vpop.xlane.xlu0 %3732
    %v3734 = vsel %vm558, %v3668, -inf
    %3735 = vmax.xlane.f32.xlu0 %v3734
    %v3736 = vpop.xlane.xlu0 %3735
    %v3737 = vsel %vm558, %v3711, -inf
    %3738 = vmax.xlane.f32.xlu0 %v3737
    %v3739 = vpop.xlane.xlu0 %3738
    %v3740 = vsub.f32 %v3404, %v3718
    %v3741 = vsub.f32 %v3453, %v3721
    %v3742 = vsub.f32 %v3496, %v3724
    %v3743 = vsub.f32 %v3539, %v3727
    %v3744 = vsub.f32 %v3582, %v3730
    %v3745 = vsub.f32 %v3625, %v3733
    %v3746 = vsub.f32 %v3668, %v3736
    %v3747 = vsub.f32 %v3711, %v3739
    %v3748 = vmul.f32 %v3740, 1.442695
    %v3749 = vpow.pop %v3748
    %v3750 = vmul.f32 %v3741, 1.442695
    %v3751 = vpow.pop %v3750
    %v3752 = vmul.f32 %v3742, 1.442695
    %v3753 = vpow.pop %v3752
    %v3754 = vmul.f32 %v3743, 1.442695
    %v3755 = vpow.pop %v3754
    %v3756 = vmul.f32 %v3744, 1.442695
    %v3757 = vpow.pop %v3756
    %v3758 = vmul.f32 %v3745, 1.442695
    %v3759 = vpow.pop %v3758
    %v3760 = vmul.f32 %v3746, 1.442695
    %v3761 = vpow.pop %v3760
    %v3762 = vmul.f32 %v3747, 1.442695
    %v3763 = vpow.pop %v3762
    %v3764 = vsel %vm558, %v3749, 0.0
    %3765 = vadd.xlane.f32.xlu0 %v3764
    %v3766 = vpop.xlane.xlu0 %3765
    %v3767 = vsel %vm558, %v3751, 0.0
    %3768 = vadd.xlane.f32.xlu0 %v3767
    %v3769 = vpop.xlane.xlu0 %3768
    %v3770 = vsel %vm558, %v3753, 0.0
    %3771 = vadd.xlane.f32.xlu0 %v3770
    %v3772 = vpop.xlane.xlu0 %3771
    %v3773 = vsel %vm558, %v3755, 0.0
    %3774 = vadd.xlane.f32.xlu0 %v3773
    %v3775 = vpop.xlane.xlu0 %3774
    %v3776 = vsel %vm558, %v3757, 0.0
    %3777 = vadd.xlane.f32.xlu0 %v3776
    %v3778 = vpop.xlane.xlu0 %3777
    %v3779 = vsel %vm558, %v3759, 0.0
    %3780 = vadd.xlane.f32.xlu0 %v3779
    %v3781 = vpop.xlane.xlu0 %3780
    %v3782 = vsel %vm558, %v3761, 0.0
    %3783 = vadd.xlane.f32.xlu0 %v3782
    %v3784 = vpop.xlane.xlu0 %3783
    %v3785 = vsel %vm558, %v3763, 0.0
    %3786 = vadd.xlane.f32.xlu0 %v3785
    %v3787 = vpop.xlane.xlu0 %3786
    %v3788 = vrcp.pop %v3766
    %v3789 = vrcp.pop %v3769
    %v3790 = vrcp.pop %v3772
    %v3791 = vrcp.pop %v3775
    %v3792 = vrcp.pop %v3778
    %v3793 = vrcp.pop %v3781
    %v3794 = vrcp.pop %v3784
    %v3795 = vrcp.pop %v3787
    %v3796 = vmul.f32 %v3749, %v3788
    %v3797 = vmul.f32 %v3751, %v3789
    %v3798 = vmul.f32 %v3753, %v3790
    %v3799 = vmul.f32 %v3755, %v3791
    %v3800 = vmul.f32 %v3757, %v3792
    %v3801 = vmul.f32 %v3759, %v3793
    %v3802 = vmul.f32 %v3761, %v3794
    %v3803 = vmul.f32 %v3763, %v3795
    %v3804 = vpack.c.bf16 %v3796, %v3796
    %v3805 = vpack.c.bf16 %v3797, %v3797
    %v3806 = vpack.c.bf16 %v3798, %v3798
    %v3807 = vpack.c.bf16 %v3799, %v3799
    %v3808 = vpack.c.bf16 %v3800, %v3800
    %v3809 = vpack.c.bf16 %v3801, %v3801
    %v3810 = vpack.c.bf16 %v3802, %v3802
    %v3811 = vpack.c.bf16 %v3803, %v3803
    %3813 = vrot.lane.b32.xlu0 %v3352, 64
    %v3814 = vpop.permute.xlu0 %3813
    %v3816 = vsel %vm558, %v3804, 0
    %v3819 = vsel %vm661, %v3814, 0
    %3821 = vmatprep.subr.bf16.mxu0 0
    %3822 = vmatpush1.bf16.msra.mxu0 0
    %3823 = vmatprep.subr.bf16.mxu0 0
    %3824 = vmatpush1.bf16.msra.mxu0 0
    %3825 = vmatprep.subr.bf16.mxu0 0
    %3826 = vmatpush1.bf16.msra.mxu0 0
    %3827 = vmatprep.subr.bf16.mxu0 0
    %3828 = vmatpush1.bf16.msra.mxu0 0
    %3829 = vmatprep.subr.bf16.mxu0 0
    %3830 = vmatpush1.bf16.msra.mxu0 0
    %3831 = vmatprep.subr.bf16.mxu0 0
    %3832 = vmatpush1.bf16.msra.mxu0 0
    %3833 = vmatprep.subr.bf16.mxu0 0
    %3834 = vmatpush1.bf16.msra.mxu0 0
    %3835 = vmatprep.subr.bf16.mxu0 0
    %3836 = vmatpush1.bf16.msra.mxu0 %v3819
    %3837 = vmatprep.subr.bf16.mxu0 0
    %3838 = vmatpush2.bf16.msra.mxu0 0
    %3839 = vmatprep.subr.bf16.mxu0 0
    %3840 = vmatpush2.bf16.msra.mxu0 0
    %3841 = vmatprep.subr.bf16.mxu0 0
    %3842 = vmatpush2.bf16.msra.mxu0 0
    %3843 = vmatprep.subr.bf16.mxu0 0
    %3844 = vmatpush2.bf16.msra.mxu0 0
    %3845 = vmatprep.subr.bf16.mxu0 0
    %3846 = vmatpush2.bf16.msra.mxu0 0
    %3847 = vmatprep.subr.bf16.mxu0 0
    %3848 = vmatpush2.bf16.msra.mxu0 0
    %3849 = vmatprep.subr.bf16.mxu0 0
    %3850 = vmatpush2.bf16.msra.mxu0 0
    %3851 = vmatprep.subr.bf16.mxu0 0
    %3852 = vmatpush2.bf16.msra.mxu0 0
    %3853 = vmatprep.mubr.bf16.mxu0 0
    %3854 = vmatmul.mubr.bf16.gmra.mxu0 %v3816
    %v3855 = vpop.f32.mrf.mxu0
    %v3856 = vadd.f32 0.0, %v3855
    %v3857 = vpop.f32.mrf.mxu0
    %v3858 = vpop.f32.mrf.mxu0
    %v3859 = vpop.f32.mrf.mxu0
    %3860 = vdwg.mxu0
    %3862 = vrot.lane.b32.xlu0 %v3353, 64
    %v3863 = vpop.permute.xlu0 %3862
    %v3865 = vsel %vm558, %v3805, 0
    %v3868 = vsel %vm661, %v3863, 0
    %3870 = vmatprep.subr.bf16.mxu0 0
    %3871 = vmatpush1.bf16.msra.mxu0 0
    %3872 = vmatprep.subr.bf16.mxu0 0
    %3873 = vmatpush1.bf16.msra.mxu0 0
    %3874 = vmatprep.subr.bf16.mxu0 0
    %3875 = vmatpush1.bf16.msra.mxu0 0
    %3876 = vmatprep.subr.bf16.mxu0 0
    %3877 = vmatpush1.bf16.msra.mxu0 0
    %3878 = vmatprep.subr.bf16.mxu0 0
    %3879 = vmatpush1.bf16.msra.mxu0 0
    %3880 = vmatprep.subr.bf16.mxu0 0
    %3881 = vmatpush1.bf16.msra.mxu0 0
    %3882 = vmatprep.subr.bf16.mxu0 0
    %3883 = vmatpush1.bf16.msra.mxu0 0
    %3884 = vmatprep.subr.bf16.mxu0 0
    %3885 = vmatpush1.bf16.msra.mxu0 %v3868
    %3886 = vmatprep.subr.bf16.mxu0 0
    %3887 = vmatpush2.bf16.msra.mxu0 0
    %3888 = vmatprep.subr.bf16.mxu0 0
    %3889 = vmatpush2.bf16.msra.mxu0 0
    %3890 = vmatprep.subr.bf16.mxu0 0
    %3891 = vmatpush2.bf16.msra.mxu0 0
    %3892 = vmatprep.subr.bf16.mxu0 0
    %3893 = vmatpush2.bf16.msra.mxu0 0
    %3894 = vmatprep.subr.bf16.mxu0 0
    %3895 = vmatpush2.bf16.msra.mxu0 0
    %3896 = vmatprep.subr.bf16.mxu0 0
    %3897 = vmatpush2.bf16.msra.mxu0 0
    %3898 = vmatprep.subr.bf16.mxu0 0
    %3899 = vmatpush2.bf16.msra.mxu0 0
    %3900 = vmatprep.subr.bf16.mxu0 0
    %3901 = vmatpush2.bf16.msra.mxu0 0
    %3902 = vmatprep.mubr.bf16.mxu0 0
    %3903 = vmatmul.mubr.bf16.gmra.mxu0 %v3865
    %v3904 = vpop.f32.mrf.mxu0
    %v3905 = vadd.f32 0.0, %v3904
    %v3906 = vpop.f32.mrf.mxu0
    %v3907 = vpop.f32.mrf.mxu0
    %v3908 = vpop.f32.mrf.mxu0
    %3909 = vdwg.mxu0
    %3911 = vrot.lane.b32.xlu0 %v3354, 64
    %v3912 = vpop.permute.xlu0 %3911
    %v3914 = vsel %vm558, %v3806, 0
    %v3917 = vsel %vm661, %v3912, 0
    %3919 = vmatprep.subr.bf16.mxu0 0
    %3920 = vmatpush1.bf16.msra.mxu0 0
    %3921 = vmatprep.subr.bf16.mxu0 0
    %3922 = vmatpush1.bf16.msra.mxu0 0
    %3923 = vmatprep.subr.bf16.mxu0 0
    %3924 = vmatpush1.bf16.msra.mxu0 0
    %3925 = vmatprep.subr.bf16.mxu0 0
    %3926 = vmatpush1.bf16.msra.mxu0 0
    %3927 = vmatprep.subr.bf16.mxu0 0
    %3928 = vmatpush1.bf16.msra.mxu0 0
    %3929 = vmatprep.subr.bf16.mxu0 0
    %3930 = vmatpush1.bf16.msra.mxu0 0
    %3931 = vmatprep.subr.bf16.mxu0 0
    %3932 = vmatpush1.bf16.msra.mxu0 0
    %3933 = vmatprep.subr.bf16.mxu0 0
    %3934 = vmatpush1.bf16.msra.mxu0 %v3917
    %3935 = vmatprep.subr.bf16.mxu0 0
    %3936 = vmatpush2.bf16.msra.mxu0 0
    %3937 = vmatprep.subr.bf16.mxu0 0
    %3938 = vmatpush2.bf16.msra.mxu0 0
    %3939 = vmatprep.subr.bf16.mxu0 0
    %3940 = vmatpush2.bf16.msra.mxu0 0
    %3941 = vmatprep.subr.bf16.mxu0 0
    %3942 = vmatpush2.bf16.msra.mxu0 0
    %3943 = vmatprep.subr.bf16.mxu0 0
    %3944 = vmatpush2.bf16.msra.mxu0 0
    %3945 = vmatprep.subr.bf16.mxu0 0
    %3946 = vmatpush2.bf16.msra.mxu0 0
    %3947 = vmatprep.subr.bf16.mxu0 0
    %3948 = vmatpush2.bf16.msra.mxu0 0
    %3949 = vmatprep.subr.bf16.mxu0 0
    %3950 = vmatpush2.bf16.msra.mxu0 0
    %3951 = vmatprep.mubr.bf16.mxu0 0
    %3952 = vmatmul.mubr.bf16.gmra.mxu0 %v3914
    %v3953 = vpop.f32.mrf.mxu0
    %v3954 = vadd.f32 0.0, %v3953
    %v3955 = vpop.f32.mrf.mxu0
    %v3956 = vpop.f32.mrf.mxu0
    %v3957 = vpop.f32.mrf.mxu0
    %3958 = vdwg.mxu0
    %3960 = vrot.lane.b32.xlu0 %v3355, 64
    %v3961 = vpop.permute.xlu0 %3960
    %v3963 = vsel %vm558, %v3807, 0
    %v3966 = vsel %vm661, %v3961, 0
    %3968 = vmatprep.subr.bf16.mxu0 0
    %3969 = vmatpush1.bf16.msra.mxu0 0
    %3970 = vmatprep.subr.bf16.mxu0 0
    %3971 = vmatpush1.bf16.msra.mxu0 0
    %3972 = vmatprep.subr.bf16.mxu0 0
    %3973 = vmatpush1.bf16.msra.mxu0 0
    %3974 = vmatprep.subr.bf16.mxu0 0
    %3975 = vmatpush1.bf16.msra.mxu0 0
    %3976 = vmatprep.subr.bf16.mxu0 0
    %3977 = vmatpush1.bf16.msra.mxu0 0
    %3978 = vmatprep.subr.bf16.mxu0 0
    %3979 = vmatpush1.bf16.msra.mxu0 0
    %3980 = vmatprep.subr.bf16.mxu0 0
    %3981 = vmatpush1.bf16.msra.mxu0 0
    %3982 = vmatprep.subr.bf16.mxu0 0
    %3983 = vmatpush1.bf16.msra.mxu0 %v3966
    %3984 = vmatprep.subr.bf16.mxu0 0
    %3985 = vmatpush2.bf16.msra.mxu0 0
    %3986 = vmatprep.subr.bf16.mxu0 0
    %3987 = vmatpush2.bf16.msra.mxu0 0
    %3988 = vmatprep.subr.bf16.mxu0 0
    %3989 = vmatpush2.bf16.msra.mxu0 0
    %3990 = vmatprep.subr.bf16.mxu0 0
    %3991 = vmatpush2.bf16.msra.mxu0 0
    %3992 = vmatprep.subr.bf16.mxu0 0
    %3993 = vmatpush2.bf16.msra.mxu0 0
    %3994 = vmatprep.subr.bf16.mxu0 0
    %3995 = vmatpush2.bf16.msra.mxu0 0
    %3996 = vmatprep.subr.bf16.mxu0 0
    %3997 = vmatpush2.bf16.msra.mxu0 0
    %3998 = vmatprep.subr.bf16.mxu0 0
    %3999 = vmatpush2.bf16.msra.mxu0 0
    %4000 = vmatprep.mubr.bf16.mxu0 0
    %4001 = vmatmul.mubr.bf16.gmra.mxu0 %v3963
    %v4002 = vpop.f32.mrf.mxu0
    %v4003 = vadd.f32 0.0, %v4002
    %v4004 = vpop.f32.mrf.mxu0
    %v4005 = vpop.f32.mrf.mxu0
    %v4006 = vpop.f32.mrf.mxu0
    %4007 = vdwg.mxu0
    %4009 = vrot.lane.b32.xlu0 %v3356, 64
    %v4010 = vpop.permute.xlu0 %4009
    %v4012 = vsel %vm558, %v3808, 0
    %v4015 = vsel %vm661, %v4010, 0
    %4017 = vmatprep.subr.bf16.mxu0 0
    %4018 = vmatpush1.bf16.msra.mxu0 0
    %4019 = vmatprep.subr.bf16.mxu0 0
    %4020 = vmatpush1.bf16.msra.mxu0 0
    %4021 = vmatprep.subr.bf16.mxu0 0
    %4022 = vmatpush1.bf16.msra.mxu0 0
    %4023 = vmatprep.subr.bf16.mxu0 0
    %4024 = vmatpush1.bf16.msra.mxu0 0
    %4025 = vmatprep.subr.bf16.mxu0 0
    %4026 = vmatpush1.bf16.msra.mxu0 0
    %4027 = vmatprep.subr.bf16.mxu0 0
    %4028 = vmatpush1.bf16.msra.mxu0 0
    %4029 = vmatprep.subr.bf16.mxu0 0
    %4030 = vmatpush1.bf16.msra.mxu0 0
    %4031 = vmatprep.subr.bf16.mxu0 0
    %4032 = vmatpush1.bf16.msra.mxu0 %v4015
    %4033 = vmatprep.subr.bf16.mxu0 0
    %4034 = vmatpush2.bf16.msra.mxu0 0
    %4035 = vmatprep.subr.bf16.mxu0 0
    %4036 = vmatpush2.bf16.msra.mxu0 0
    %4037 = vmatprep.subr.bf16.mxu0 0
    %4038 = vmatpush2.bf16.msra.mxu0 0
    %4039 = vmatprep.subr.bf16.mxu0 0
    %4040 = vmatpush2.bf16.msra.mxu0 0
    %4041 = vmatprep.subr.bf16.mxu0 0
    %4042 = vmatpush2.bf16.msra.mxu0 0
    %4043 = vmatprep.subr.bf16.mxu0 0
    %4044 = vmatpush2.bf16.msra.mxu0 0
    %4045 = vmatprep.subr.bf16.mxu0 0
    %4046 = vmatpush2.bf16.msra.mxu0 0
    %4047 = vmatprep.subr.bf16.mxu0 0
    %4048 = vmatpush2.bf16.msra.mxu0 0
    %4049 = vmatprep.mubr.bf16.mxu0 0
    %4050 = vmatmul.mubr.bf16.gmra.mxu0 %v4012
    %v4051 = vpop.f32.mrf.mxu0
    %v4052 = vadd.f32 0.0, %v4051
    %v4053 = vpop.f32.mrf.mxu0
    %v4054 = vpop.f32.mrf.mxu0
    %v4055 = vpop.f32.mrf.mxu0
    %4056 = vdwg.mxu0
    %4058 = vrot.lane.b32.xlu0 %v3357, 64
    %v4059 = vpop.permute.xlu0 %4058
    %v4061 = vsel %vm558, %v3809, 0
    %v4064 = vsel %vm661, %v4059, 0
    %4066 = vmatprep.subr.bf16.mxu0 0
    %4067 = vmatpush1.bf16.msra.mxu0 0
    %4068 = vmatprep.subr.bf16.mxu0 0
    %4069 = vmatpush1.bf16.msra.mxu0 0
    %4070 = vmatprep.subr.bf16.mxu0 0
    %4071 = vmatpush1.bf16.msra.mxu0 0
    %4072 = vmatprep.subr.bf16.mxu0 0
    %4073 = vmatpush1.bf16.msra.mxu0 0
    %4074 = vmatprep.subr.bf16.mxu0 0
    %4075 = vmatpush1.bf16.msra.mxu0 0
    %4076 = vmatprep.subr.bf16.mxu0 0
    %4077 = vmatpush1.bf16.msra.mxu0 0
    %4078 = vmatprep.subr.bf16.mxu0 0
    %4079 = vmatpush1.bf16.msra.mxu0 0
    %4080 = vmatprep.subr.bf16.mxu0 0
    %4081 = vmatpush1.bf16.msra.mxu0 %v4064
    %4082 = vmatprep.subr.bf16.mxu0 0
    %4083 = vmatpush2.bf16.msra.mxu0 0
    %4084 = vmatprep.subr.bf16.mxu0 0
    %4085 = vmatpush2.bf16.msra.mxu0 0
    %4086 = vmatprep.subr.bf16.mxu0 0
    %4087 = vmatpush2.bf16.msra.mxu0 0
    %4088 = vmatprep.subr.bf16.mxu0 0
    %4089 = vmatpush2.bf16.msra.mxu0 0
    %4090 = vmatprep.subr.bf16.mxu0 0
    %4091 = vmatpush2.bf16.msra.mxu0 0
    %4092 = vmatprep.subr.bf16.mxu0 0
    %4093 = vmatpush2.bf16.msra.mxu0 0
    %4094 = vmatprep.subr.bf16.mxu0 0
    %4095 = vmatpush2.bf16.msra.mxu0 0
    %4096 = vmatprep.subr.bf16.mxu0 0
    %4097 = vmatpush2.bf16.msra.mxu0 0
    %4098 = vmatprep.mubr.bf16.mxu0 0
    %4099 = vmatmul.mubr.bf16.gmra.mxu0 %v4061
    %v4100 = vpop.f32.mrf.mxu0
    %v4101 = vadd.f32 0.0, %v4100
    %v4102 = vpop.f32.mrf.mxu0
    %v4103 = vpop.f32.mrf.mxu0
    %v4104 = vpop.f32.mrf.mxu0
    %4105 = vdwg.mxu0
    %4107 = vrot.lane.b32.xlu0 %v3358, 64
    %v4108 = vpop.permute.xlu0 %4107
    %v4110 = vsel %vm558, %v3810, 0
    %v4113 = vsel %vm661, %v4108, 0
    %4115 = vmatprep.subr.bf16.mxu0 0
    %4116 = vmatpush1.bf16.msra.mxu0 0
    %4117 = vmatprep.subr.bf16.mxu0 0
    %4118 = vmatpush1.bf16.msra.mxu0 0
    %4119 = vmatprep.subr.bf16.mxu0 0
    %4120 = vmatpush1.bf16.msra.mxu0 0
    %4121 = vmatprep.subr.bf16.mxu0 0
    %4122 = vmatpush1.bf16.msra.mxu0 0
    %4123 = vmatprep.subr.bf16.mxu0 0
    %4124 = vmatpush1.bf16.msra.mxu0 0
    %4125 = vmatprep.subr.bf16.mxu0 0
    %4126 = vmatpush1.bf16.msra.mxu0 0
    %4127 = vmatprep.subr.bf16.mxu0 0
    %4128 = vmatpush1.bf16.msra.mxu0 0
    %4129 = vmatprep.subr.bf16.mxu0 0
    %4130 = vmatpush1.bf16.msra.mxu0 %v4113
    %4131 = vmatprep.subr.bf16.mxu0 0
    %4132 = vmatpush2.bf16.msra.mxu0 0
    %4133 = vmatprep.subr.bf16.mxu0 0
    %4134 = vmatpush2.bf16.msra.mxu0 0
    %4135 = vmatprep.subr.bf16.mxu0 0
    %4136 = vmatpush2.bf16.msra.mxu0 0
    %4137 = vmatprep.subr.bf16.mxu0 0
    %4138 = vmatpush2.bf16.msra.mxu0 0
    %4139 = vmatprep.subr.bf16.mxu0 0
    %4140 = vmatpush2.bf16.msra.mxu0 0
    %4141 = vmatprep.subr.bf16.mxu0 0
    %4142 = vmatpush2.bf16.msra.mxu0 0
    %4143 = vmatprep.subr.bf16.mxu0 0
    %4144 = vmatpush2.bf16.msra.mxu0 0
    %4145 = vmatprep.subr.bf16.mxu0 0
    %4146 = vmatpush2.bf16.msra.mxu0 0
    %4147 = vmatprep.mubr.bf16.mxu0 0
    %4148 = vmatmul.mubr.bf16.gmra.mxu0 %v4110
    %v4149 = vpop.f32.mrf.mxu0
    %v4150 = vadd.f32 0.0, %v4149
    %v4151 = vpop.f32.mrf.mxu0
    %v4152 = vpop.f32.mrf.mxu0
    %v4153 = vpop.f32.mrf.mxu0
    %4154 = vdwg.mxu0
    %4156 = vrot.lane.b32.xlu0 %v3359, 64
    %v4157 = vpop.permute.xlu0 %4156
    %v4159 = vsel %vm558, %v3811, 0
    %v4162 = vsel %vm661, %v4157, 0
    %4164 = vmatprep.subr.bf16.mxu0 0
    %4165 = vmatpush1.bf16.msra.mxu0 0
    %4166 = vmatprep.subr.bf16.mxu0 0
    %4167 = vmatpush1.bf16.msra.mxu0 0
    %4168 = vmatprep.subr.bf16.mxu0 0
    %4169 = vmatpush1.bf16.msra.mxu0 0
    %4170 = vmatprep.subr.bf16.mxu0 0
    %4171 = vmatpush1.bf16.msra.mxu0 0
    %4172 = vmatprep.subr.bf16.mxu0 0
    %4173 = vmatpush1.bf16.msra.mxu0 0
    %4174 = vmatprep.subr.bf16.mxu0 0
    %4175 = vmatpush1.bf16.msra.mxu0 0
    %4176 = vmatprep.subr.bf16.mxu0 0
    %4177 = vmatpush1.bf16.msra.mxu0 0
    %4178 = vmatprep.subr.bf16.mxu0 0
    %4179 = vmatpush1.bf16.msra.mxu0 %v4162
    %4180 = vmatprep.subr.bf16.mxu0 0
    %4181 = vmatpush2.bf16.msra.mxu0 0
    %4182 = vmatprep.subr.bf16.mxu0 0
    %4183 = vmatpush2.bf16.msra.mxu0 0
    %4184 = vmatprep.subr.bf16.mxu0 0
    %4185 = vmatpush2.bf16.msra.mxu0 0
    %4186 = vmatprep.subr.bf16.mxu0 0
    %4187 = vmatpush2.bf16.msra.mxu0 0
    %4188 = vmatprep.subr.bf16.mxu0 0
    %4189 = vmatpush2.bf16.msra.mxu0 0
    %4190 = vmatprep.subr.bf16.mxu0 0
    %4191 = vmatpush2.bf16.msra.mxu0 0
    %4192 = vmatprep.subr.bf16.mxu0 0
    %4193 = vmatpush2.bf16.msra.mxu0 0
    %4194 = vmatprep.subr.bf16.mxu0 0
    %4195 = vmatpush2.bf16.msra.mxu0 0
    %4196 = vmatprep.mubr.bf16.mxu0 0
    %4197 = vmatmul.mubr.bf16.gmra.mxu0 %v4159
    %v4198 = vpop.f32.mrf.mxu0
    %v4199 = vadd.f32 0.0, %v4198
    %v4200 = vpop.f32.mrf.mxu0
    %v4201 = vpop.f32.mrf.mxu0
    %v4202 = vpop.f32.mrf.mxu0
    %4203 = vdwg.mxu0
    %v4204 = vsel %vm85, %v3856, 0.0
    %v4205 = vsel %vm85, %v3954, 0.0
    %v4206 = vadd.f32 %v4204, %v4205
    %v4207 = vsel %vm85, %v4052, 0.0
    %v4208 = vadd.f32 %v4206, %v4207
    %v4209 = vsel %vm85, %v4150, 0.0
    %v4210 = vadd.f32 %v4208, %v4209
    %v4211 = vsel %vm85, %v3905, 0.0
    %v4212 = vsel %vm85, %v4003, 0.0
    %v4213 = vadd.f32 %v4211, %v4212
    %v4214 = vsel %vm85, %v4101, 0.0
    %v4215 = vadd.f32 %v4213, %v4214
    %v4216 = vsel %vm85, %v4199, 0.0
    %v4217 = vadd.f32 %v4215, %v4216
    %v4218 = vpack.c.bf16 %v4217, %v4210
    %s4219 = scalar_lea.vmem %s4, 16
    %v4220 = vld [vmem:[%s4219] sm:$0xf]
    %v4221 = vld [vmem:[%s4219 + $0x4] sm:$0xf]
    %v4222 = vld [vmem:[%s4219 + $0x8] sm:$0xf]
    %v4223 = vld [vmem:[%s4219 + $0xc] sm:$0xf]
    %s4224 = scalar_lea.vmem %s5, 1
    %v4225 = vld [vmem:[%s4224] sm:$0x1]
    %v4227 = vlaneseq
    %v4228 = vshrl.u32 %v4227, 7
    %v4229 = vsub.s32 0, %v4228
    %v4230 = vrot.slane %v4225, %v4229
    %v4236 = vunpack.c.l.b16 %v4220
    %v4237 = vunpack.c.l.b16 %v4221
    %v4238 = vunpack.c.l.b16 %v4222
    %v4239 = vunpack.c.l.b16 %v4223
    %v4240 = vpack.c.b16 %v4237, %v4236
    %v4241 = vpack.c.b16 %v4239, %v4238
    %v4245 = vsel %vm85, %v4218, 0
    %4247 = vmatprep.subr.bf16.mxu0 0
    %4248 = vmatpush1.bf16.msra.mxu0 0
    %4249 = vmatprep.subr.bf16.mxu0 0
    %4250 = vmatpush1.bf16.msra.mxu0 0
    %4251 = vmatprep.subr.bf16.mxu0 0
    %4252 = vmatpush1.bf16.msra.mxu0 0
    %4253 = vmatprep.subr.bf16.mxu0 0
    %4254 = vmatpush1.bf16.msra.mxu0 0
    %4255 = vmatprep.subr.bf16.mxu0 0
    %4256 = vmatpush1.bf16.msra.mxu0 0
    %4257 = vmatprep.subr.bf16.mxu0 0
    %4258 = vmatpush1.bf16.msra.mxu0 0
    %4259 = vmatprep.subr.bf16.mxu0 0
    %4260 = vmatpush1.bf16.msra.mxu0 %v4241
    %4261 = vmatprep.subr.bf16.mxu0 0
    %4262 = vmatpush1.bf16.msra.mxu0 %v4240
    %4263 = vmatprep.subr.bf16.mxu0 0
    %4264 = vmatpush2.bf16.msra.mxu0 0
    %4265 = vmatprep.subr.bf16.mxu0 0
    %4266 = vmatpush2.bf16.msra.mxu0 0
    %4267 = vmatprep.subr.bf16.mxu0 0
    %4268 = vmatpush2.bf16.msra.mxu0 0
    %4269 = vmatprep.subr.bf16.mxu0 0
    %4270 = vmatpush2.bf16.msra.mxu0 0
    %4271 = vmatprep.subr.bf16.mxu0 0
    %4272 = vmatpush2.bf16.msra.mxu0 0
    %4273 = vmatprep.subr.bf16.mxu0 0
    %4274 = vmatpush2.bf16.msra.mxu0 0
    %4275 = vmatprep.subr.bf16.mxu0 0
    %4276 = vmatpush2.bf16.msra.mxu0 0
    %4277 = vmatprep.subr.bf16.mxu0 0
    %4278 = vmatpush2.bf16.msra.mxu0 0
    %4279 = vmatprep.mubr.bf16.mxu0 0
    %4280 = vmatmul.mubr.bf16.gmra.mxu0 %v4245
    %v4281 = vpop.f32.mrf.mxu0
    %v4282 = vadd.f32 %v4230, %v4281
    %v4283 = vpop.f32.mrf.mxu0
    %v4284 = vpop.f32.mrf.mxu0
    %v4285 = vadd.f32 %v4230, %v4284
    %v4286 = vpop.f32.mrf.mxu0
    %4287 = vdwg.mxu0
    %v4288 = vadd.f32 %v3252, %v4282
    %v4289 = vadd.f32 %v3253, %v4285
    %s4290 = scalar_lea.vmem %s6, 1
    %v4291 = vld [vmem:[%s4290] sm:$0x1]
    %s4292 = scalar_lea.vmem %s7, 1
    %v4293 = vld [vmem:[%s4292] sm:$0x1]
    %v4294 = vsel %vm85, %v4288, 0.0
    %4295 = vadd.xlane.f32.xlu0 %v4294
    %v4296 = vpop.xlane.xlu0 %4295
    %v4297 = vsel %vm85, %v4289, 0.0
    %4298 = vadd.xlane.f32.xlu0 %v4297
    %v4299 = vpop.xlane.xlu0 %4298
    %v4300 = vmul.f32 %v4296, %v1140
    %v4301 = vmul.f32 %v4299, %v1140
    %v4302 = vsub.f32 %v4288, %v4300
    %v4303 = vsub.f32 %v4289, %v4301
    %v4304 = vmul.f32 %v4302, %v4302
    %v4305 = vmul.f32 %v4303, %v4303
    %v4306 = vsel %vm85, %v4304, 0.0
    %4307 = vadd.xlane.f32.xlu0 %v4306
    %v4308 = vpop.xlane.xlu0 %4307
    %v4309 = vsel %vm85, %v4305, 0.0
    %4310 = vadd.xlane.f32.xlu0 %v4309
    %v4311 = vpop.xlane.xlu0 %4310
    %v4312 = vmul.f32 %v4308, %v1140
    %v4313 = vmul.f32 %v4311, %v1140
    %v4314 = vadd.f32 %v4312, 1e-05
    %v4315 = vadd.f32 %v4313, 1e-05
    %v4316 = vrsqrt.pop %v4314
    %v4317 = vrsqrt.pop %v4315
    %v4318 = vmul.f32 %v4302, %v4316
    %v4319 = vmul.f32 %v4303, %v4317
    %v4321 = vlaneseq
    %v4322 = vshrl.u32 %v4321, 7
    %v4323 = vsub.s32 0, %v4322
    %v4324 = vrot.slane %v4291, %v4323
    %v4326 = vmul.f32 %v4318, %v4324
    %v4327 = vmul.f32 %v4319, %v4324
    %v4329 = vlaneseq
    %v4330 = vshrl.u32 %v4329, 7
    %v4331 = vsub.s32 0, %v4330
    %v4332 = vrot.slane %v4293, %v4331
    %v4334 = vadd.f32 %v4326, %v4332
    %v4335 = vadd.f32 %v4327, %v4332
    %v4336 = vpack.c.bf16 %v4335, %v4334
    %s4337 = scalar_lea.vmem %s10, 256
    %v4338 = vld [vmem:[%s4337] sm:$0xff]
    %v4339 = vld [vmem:[%s4337 + $0x8] sm:$0xff]
    %v4340 = vld [vmem:[%s4337 + $0x10] sm:$0xff]
    %v4341 = vld [vmem:[%s4337 + $0x18] sm:$0xff]
    %v4342 = vld [vmem:[%s4337 + $0x20] sm:$0xff]
    %v4343 = vld [vmem:[%s4337 + $0x28] sm:$0xff]
    %v4344 = vld [vmem:[%s4337 + $0x30] sm:$0xff]
    %v4345 = vld [vmem:[%s4337 + $0x38] sm:$0xff]
    %v4346 = vld [vmem:[%s4337 + $0x40] sm:$0xff]
    %v4347 = vld [vmem:[%s4337 + $0x48] sm:$0xff]
    %v4348 = vld [vmem:[%s4337 + $0x50] sm:$0xff]
    %v4349 = vld [vmem:[%s4337 + $0x58] sm:$0xff]
    %v4350 = vld [vmem:[%s4337 + $0x60] sm:$0xff]
    %v4351 = vld [vmem:[%s4337 + $0x68] sm:$0xff]
    %v4352 = vld [vmem:[%s4337 + $0x70] sm:$0xff]
    %v4353 = vld [vmem:[%s4337 + $0x78] sm:$0xff]
    %v4354 = vld [vmem:[%s4337 + $0x80] sm:$0xff]
    %v4355 = vld [vmem:[%s4337 + $0x88] sm:$0xff]
    %v4356 = vld [vmem:[%s4337 + $0x90] sm:$0xff]
    %v4357 = vld [vmem:[%s4337 + $0x98] sm:$0xff]
    %v4358 = vld [vmem:[%s4337 + $0xa0] sm:$0xff]
    %v4359 = vld [vmem:[%s4337 + $0xa8] sm:$0xff]
    %v4360 = vld [vmem:[%s4337 + $0xb0] sm:$0xff]
    %v4361 = vld [vmem:[%s4337 + $0xb8] sm:$0xff]
    %v4362 = vld [vmem:[%s4337 + $0xc0] sm:$0xff]
    %v4363 = vld [vmem:[%s4337 + $0xc8] sm:$0xff]
    %v4364 = vld [vmem:[%s4337 + $0xd0] sm:$0xff]
    %v4365 = vld [vmem:[%s4337 + $0xd8] sm:$0xff]
    %v4366 = vld [vmem:[%s4337 + $0xe0] sm:$0xff]
    %v4367 = vld [vmem:[%s4337 + $0xe8] sm:$0xff]
    %v4368 = vld [vmem:[%s4337 + $0xf0] sm:$0xff]
    %v4369 = vld [vmem:[%s4337 + $0xf8] sm:$0xff]
    %s4370 = scalar_lea.vmem %s11, 16
    %v4371 = vld [vmem:[%s4370] sm:$0xff]
    %v4372 = vld [vmem:[%s4370 + $0x8] sm:$0xff]
    %v4375 = vlaneseq
    %v4376 = vshrl.u32 %v4375, 7
    %v4377 = vsub.s32 0, %v4376
    %v4378 = vrot.slane %v4371, %v4377
    %v4379 = vlaneseq
    %v4380 = vshrl.u32 %v4379, 7
    %v4381 = vsub.s32 1, %v4380
    %v4382 = vrot.slane %v4371, %v4381
    %v4383 = vlaneseq
    %v4384 = vshrl.u32 %v4383, 7
    %v4385 = vsub.s32 2, %v4384
    %v4386 = vrot.slane %v4371, %v4385
    %v4387 = vlaneseq
    %v4388 = vshrl.u32 %v4387, 7
    %v4389 = vsub.s32 3, %v4388
    %v4390 = vrot.slane %v4371, %v4389
    %v4391 = vlaneseq
    %v4392 = vshrl.u32 %v4391, 7
    %v4393 = vsub.s32 4, %v4392
    %v4394 = vrot.slane %v4371, %v4393
    %v4395 = vlaneseq
    %v4396 = vshrl.u32 %v4395, 7
    %v4397 = vsub.s32 5, %v4396
    %v4398 = vrot.slane %v4371, %v4397
    %v4399 = vlaneseq
    %v4400 = vshrl.u32 %v4399, 7
    %v4401 = vsub.s32 6, %v4400
    %v4402 = vrot.slane %v4371, %v4401
    %v4403 = vlaneseq
    %v4404 = vshrl.u32 %v4403, 7
    %v4405 = vsub.s32 7, %v4404
    %v4406 = vrot.slane %v4371, %v4405
    %v4407 = vlaneseq
    %v4408 = vshrl.u32 %v4407, 7
    %v4409 = vsub.s32 0, %v4408
    %v4410 = vrot.slane %v4372, %v4409
    %v4411 = vlaneseq
    %v4412 = vshrl.u32 %v4411, 7
    %v4413 = vsub.s32 1, %v4412
    %v4414 = vrot.slane %v4372, %v4413
    %v4415 = vlaneseq
    %v4416 = vshrl.u32 %v4415, 7
    %v4417 = vsub.s32 2, %v4416
    %v4418 = vrot.slane %v4372, %v4417
    %v4419 = vlaneseq
    %v4420 = vshrl.u32 %v4419, 7
    %v4421 = vsub.s32 3, %v4420
    %v4422 = vrot.slane %v4372, %v4421
    %v4423 = vlaneseq
    %v4424 = vshrl.u32 %v4423, 7
    %v4425 = vsub.s32 4, %v4424
    %v4426 = vrot.slane %v4372, %v4425
    %v4427 = vlaneseq
    %v4428 = vshrl.u32 %v4427, 7
    %v4429 = vsub.s32 5, %v4428
    %v4430 = vrot.slane %v4372, %v4429
    %v4431 = vlaneseq
    %v4432 = vshrl.u32 %v4431, 7
    %v4433 = vsub.s32 6, %v4432
    %v4434 = vrot.slane %v4372, %v4433
    %v4435 = vlaneseq
    %v4436 = vshrl.u32 %v4435, 7
    %v4437 = vsub.s32 7, %v4436
    %v4438 = vrot.slane %v4372, %v4437
    %v4487 = vunpack.c.l.b16 %v4338
    %v4488 = vunpack.c.h.b16 %v4338
    %v4489 = vunpack.c.l.b16 %v4339
    %v4490 = vunpack.c.h.b16 %v4339
    %v4491 = vunpack.c.l.b16 %v4340
    %v4492 = vunpack.c.h.b16 %v4340
    %v4493 = vunpack.c.l.b16 %v4341
    %v4494 = vunpack.c.h.b16 %v4341
    %v4495 = vunpack.c.l.b16 %v4342
    %v4496 = vunpack.c.h.b16 %v4342
    %v4497 = vunpack.c.l.b16 %v4343
    %v4498 = vunpack.c.h.b16 %v4343
    %v4499 = vunpack.c.l.b16 %v4344
    %v4500 = vunpack.c.h.b16 %v4344
    %v4501 = vunpack.c.l.b16 %v4345
    %v4502 = vunpack.c.h.b16 %v4345
    %v4503 = vunpack.c.l.b16 %v4346
    %v4504 = vunpack.c.h.b16 %v4346
    %v4505 = vunpack.c.l.b16 %v4347
    %v4506 = vunpack.c.h.b16 %v4347
    %v4507 = vunpack.c.l.b16 %v4348
    %v4508 = vunpack.c.h.b16 %v4348
    %v4509 = vunpack.c.l.b16 %v4349
    %v4510 = vunpack.c.h.b16 %v4349
    %v4511 = vunpack.c.l.b16 %v4350
    %v4512 = vunpack.c.h.b16 %v4350
    %v4513 = vunpack.c.l.b16 %v4351
    %v4514 = vunpack.c.h.b16 %v4351
    %v4515 = vunpack.c.l.b16 %v4352
    %v4516 = vunpack.c.h.b16 %v4352
    %v4517 = vunpack.c.l.b16 %v4353
    %v4518 = vunpack.c.h.b16 %v4353
    %v4519 = vunpack.c.l.b16 %v4354
    %v4520 = vunpack.c.h.b16 %v4354
    %v4521 = vunpack.c.l.b16 %v4355
    %v4522 = vunpack.c.h.b16 %v4355
    %v4523 = vunpack.c.l.b16 %v4356
    %v4524 = vunpack.c.h.b16 %v4356
    %v4525 = vunpack.c.l.b16 %v4357
    %v4526 = vunpack.c.h.b16 %v4357
    %v4527 = vunpack.c.l.b16 %v4358
    %v4528 = vunpack.c.h.b16 %v4358
    %v4529 = vunpack.c.l.b16 %v4359
    %v4530 = vunpack.c.h.b16 %v4359
    %v4531 = vunpack.c.l.b16 %v4360
    %v4532 = vunpack.c.h.b16 %v4360
    %v4533 = vunpack.c.l.b16 %v4361
    %v4534 = vunpack.c.h.b16 %v4361
    %v4535 = vunpack.c.l.b16 %v4362
    %v4536 = vunpack.c.h.b16 %v4362
    %v4537 = vunpack.c.l.b16 %v4363
    %v4538 = vunpack.c.h.b16 %v4363
    %v4539 = vunpack.c.l.b16 %v4364
    %v4540 = vunpack.c.h.b16 %v4364
    %v4541 = vunpack.c.l.b16 %v4365
    %v4542 = vunpack.c.h.b16 %v4365
    %v4543 = vunpack.c.l.b16 %v4366
    %v4544 = vunpack.c.h.b16 %v4366
    %v4545 = vunpack.c.l.b16 %v4367
    %v4546 = vunpack.c.h.b16 %v4367
    %v4547 = vunpack.c.l.b16 %v4368
    %v4548 = vunpack.c.h.b16 %v4368
    %v4549 = vunpack.c.l.b16 %v4369
    %v4550 = vunpack.c.h.b16 %v4369
    %v4551 = vpack.c.b16 %v4503, %v4487
    %v4552 = vpack.c.b16 %v4504, %v4488
    %v4553 = vpack.c.b16 %v4505, %v4489
    %v4554 = vpack.c.b16 %v4506, %v4490
    %v4555 = vpack.c.b16 %v4507, %v4491
    %v4556 = vpack.c.b16 %v4508, %v4492
    %v4557 = vpack.c.b16 %v4509, %v4493
    %v4558 = vpack.c.b16 %v4510, %v4494
    %v4559 = vpack.c.b16 %v4511, %v4495
    %v4560 = vpack.c.b16 %v4512, %v4496
    %v4561 = vpack.c.b16 %v4513, %v4497
    %v4562 = vpack.c.b16 %v4514, %v4498
    %v4563 = vpack.c.b16 %v4515, %v4499
    %v4564 = vpack.c.b16 %v4516, %v4500
    %v4565 = vpack.c.b16 %v4517, %v4501
    %v4566 = vpack.c.b16 %v4518, %v4502
    %v4567 = vpack.c.b16 %v4535, %v4519
    %v4568 = vpack.c.b16 %v4536, %v4520
    %v4569 = vpack.c.b16 %v4537, %v4521
    %v4570 = vpack.c.b16 %v4538, %v4522
    %v4571 = vpack.c.b16 %v4539, %v4523
    %v4572 = vpack.c.b16 %v4540, %v4524
    %v4573 = vpack.c.b16 %v4541, %v4525
    %v4574 = vpack.c.b16 %v4542, %v4526
    %v4575 = vpack.c.b16 %v4543, %v4527
    %v4576 = vpack.c.b16 %v4544, %v4528
    %v4577 = vpack.c.b16 %v4545, %v4529
    %v4578 = vpack.c.b16 %v4546, %v4530
    %v4579 = vpack.c.b16 %v4547, %v4531
    %v4580 = vpack.c.b16 %v4548, %v4532
    %v4581 = vpack.c.b16 %v4549, %v4533
    %v4582 = vpack.c.b16 %v4550, %v4534
    %v4616 = vsel %vm85, %v4336, 0
    %4618 = vmatprep.subr.bf16.mxu0 0
    %4619 = vmatpush1.bf16.msra.mxu0 0
    %4620 = vmatprep.subr.bf16.mxu0 0
    %4621 = vmatpush1.bf16.msra.mxu0 0
    %4622 = vmatprep.subr.bf16.mxu0 0
    %4623 = vmatpush1.bf16.msra.mxu0 0
    %4624 = vmatprep.subr.bf16.mxu0 0
    %4625 = vmatpush1.bf16.msra.mxu0 0
    %4626 = vmatprep.subr.bf16.mxu0 0
    %4627 = vmatpush1.bf16.msra.mxu0 0
    %4628 = vmatprep.subr.bf16.mxu0 0
    %4629 = vmatpush1.bf16.msra.mxu0 0
    %4630 = vmatprep.subr.bf16.mxu0 %v4568
    %4631 = vmatpush1.bf16.msra.mxu0 %v4567
    %4632 = vmatprep.subr.bf16.mxu0 %v4552
    %4633 = vmatpush1.bf16.msra.mxu0 %v4551
    %4634 = vmatprep.subr.bf16.mxu0 0
    %4635 = vmatpush2.bf16.msra.mxu0 0
    %4636 = vmatprep.subr.bf16.mxu0 0
    %4637 = vmatpush2.bf16.msra.mxu0 0
    %4638 = vmatprep.subr.bf16.mxu0 0
    %4639 = vmatpush2.bf16.msra.mxu0 0
    %4640 = vmatprep.subr.bf16.mxu0 0
    %4641 = vmatpush2.bf16.msra.mxu0 0
    %4642 = vmatprep.subr.bf16.mxu0 0
    %4643 = vmatpush2.bf16.msra.mxu0 0
    %4644 = vmatprep.subr.bf16.mxu0 0
    %4645 = vmatpush2.bf16.msra.mxu0 0
    %4646 = vmatprep.subr.bf16.mxu0 0
    %4647 = vmatpush2.bf16.msra.mxu0 0
    %4648 = vmatprep.subr.bf16.mxu0 0
    %4649 = vmatpush2.bf16.msra.mxu0 0
    %4650 = vmatprep.mubr.bf16.mxu0 0
    %4651 = vmatmul.mubr.bf16.gmra.mxu0 %v4616
    %v4652 = vpop.f32.mrf.mxu0
    %v4653 = vadd.f32 %v4378, %v4652
    %v4654 = vpop.f32.mrf.mxu0
    %v4655 = vadd.f32 %v4382, %v4654
    %v4656 = vpop.f32.mrf.mxu0
    %v4657 = vadd.f32 %v4378, %v4656
    %v4658 = vpop.f32.mrf.mxu0
    %v4659 = vadd.f32 %v4382, %v4658
    %4660 = vdwg.mxu0
    %4661 = vmatprep.subr.bf16.mxu0 0
    %4662 = vmatpush1.bf16.msra.mxu0 0
    %4663 = vmatprep.subr.bf16.mxu0 0
    %4664 = vmatpush1.bf16.msra.mxu0 0
    %4665 = vmatprep.subr.bf16.mxu0 0
    %4666 = vmatpush1.bf16.msra.mxu0 0
    %4667 = vmatprep.subr.bf16.mxu0 0
    %4668 = vmatpush1.bf16.msra.mxu0 0
    %4669 = vmatprep.subr.bf16.mxu0 0
    %4670 = vmatpush1.bf16.msra.mxu0 0
    %4671 = vmatprep.subr.bf16.mxu0 0
    %4672 = vmatpush1.bf16.msra.mxu0 0
    %4673 = vmatprep.subr.bf16.mxu0 %v4570
    %4674 = vmatpush1.bf16.msra.mxu0 %v4569
    %4675 = vmatprep.subr.bf16.mxu0 %v4554
    %4676 = vmatpush1.bf16.msra.mxu0 %v4553
    %4677 = vmatprep.subr.bf16.mxu0 0
    %4678 = vmatpush2.bf16.msra.mxu0 0
    %4679 = vmatprep.subr.bf16.mxu0 0
    %4680 = vmatpush2.bf16.msra.mxu0 0
    %4681 = vmatprep.subr.bf16.mxu0 0
    %4682 = vmatpush2.bf16.msra.mxu0 0
    %4683 = vmatprep.subr.bf16.mxu0 0
    %4684 = vmatpush2.bf16.msra.mxu0 0
    %4685 = vmatprep.subr.bf16.mxu0 0
    %4686 = vmatpush2.bf16.msra.mxu0 0
    %4687 = vmatprep.subr.bf16.mxu0 0
    %4688 = vmatpush2.bf16.msra.mxu0 0
    %4689 = vmatprep.subr.bf16.mxu0 0
    %4690 = vmatpush2.bf16.msra.mxu0 0
    %4691 = vmatprep.subr.bf16.mxu0 0
    %4692 = vmatpush2.bf16.msra.mxu0 0
    %4693 = vmatprep.mubr.bf16.mxu0 0
    %4694 = vmatmul.mubr.bf16.gmra.mxu0 %v4616
    %v4695 = vpop.f32.mrf.mxu0
    %v4696 = vadd.f32 %v4386, %v4695
    %v4697 = vpop.f32.mrf.mxu0
    %v4698 = vadd.f32 %v4390, %v4697
    %v4699 = vpop.f32.mrf.mxu0
    %v4700 = vadd.f32 %v4386, %v4699
    %v4701 = vpop.f32.mrf.mxu0
    %v4702 = vadd.f32 %v4390, %v4701
    %4703 = vdwg.mxu0
    %4704 = vmatprep.subr.bf16.mxu0 0
    %4705 = vmatpush1.bf16.msra.mxu0 0
    %4706 = vmatprep.subr.bf16.mxu0 0
    %4707 = vmatpush1.bf16.msra.mxu0 0
    %4708 = vmatprep.subr.bf16.mxu0 0
    %4709 = vmatpush1.bf16.msra.mxu0 0
    %4710 = vmatprep.subr.bf16.mxu0 0
    %4711 = vmatpush1.bf16.msra.mxu0 0
    %4712 = vmatprep.subr.bf16.mxu0 0
    %4713 = vmatpush1.bf16.msra.mxu0 0
    %4714 = vmatprep.subr.bf16.mxu0 0
    %4715 = vmatpush1.bf16.msra.mxu0 0
    %4716 = vmatprep.subr.bf16.mxu0 %v4572
    %4717 = vmatpush1.bf16.msra.mxu0 %v4571
    %4718 = vmatprep.subr.bf16.mxu0 %v4556
    %4719 = vmatpush1.bf16.msra.mxu0 %v4555
    %4720 = vmatprep.subr.bf16.mxu0 0
    %4721 = vmatpush2.bf16.msra.mxu0 0
    %4722 = vmatprep.subr.bf16.mxu0 0
    %4723 = vmatpush2.bf16.msra.mxu0 0
    %4724 = vmatprep.subr.bf16.mxu0 0
    %4725 = vmatpush2.bf16.msra.mxu0 0
    %4726 = vmatprep.subr.bf16.mxu0 0
    %4727 = vmatpush2.bf16.msra.mxu0 0
    %4728 = vmatprep.subr.bf16.mxu0 0
    %4729 = vmatpush2.bf16.msra.mxu0 0
    %4730 = vmatprep.subr.bf16.mxu0 0
    %4731 = vmatpush2.bf16.msra.mxu0 0
    %4732 = vmatprep.subr.bf16.mxu0 0
    %4733 = vmatpush2.bf16.msra.mxu0 0
    %4734 = vmatprep.subr.bf16.mxu0 0
    %4735 = vmatpush2.bf16.msra.mxu0 0
    %4736 = vmatprep.mubr.bf16.mxu0 0
    %4737 = vmatmul.mubr.bf16.gmra.mxu0 %v4616
    %v4738 = vpop.f32.mrf.mxu0
    %v4739 = vadd.f32 %v4394, %v4738
    %v4740 = vpop.f32.mrf.mxu0
    %v4741 = vadd.f32 %v4398, %v4740
    %v4742 = vpop.f32.mrf.mxu0
    %v4743 = vadd.f32 %v4394, %v4742
    %v4744 = vpop.f32.mrf.mxu0
    %v4745 = vadd.f32 %v4398, %v4744
    %4746 = vdwg.mxu0
    %4747 = vmatprep.subr.bf16.mxu0 0
    %4748 = vmatpush1.bf16.msra.mxu0 0
    %4749 = vmatprep.subr.bf16.mxu0 0
    %4750 = vmatpush1.bf16.msra.mxu0 0
    %4751 = vmatprep.subr.bf16.mxu0 0
    %4752 = vmatpush1.bf16.msra.mxu0 0
    %4753 = vmatprep.subr.bf16.mxu0 0
    %4754 = vmatpush1.bf16.msra.mxu0 0
    %4755 = vmatprep.subr.bf16.mxu0 0
    %4756 = vmatpush1.bf16.msra.mxu0 0
    %4757 = vmatprep.subr.bf16.mxu0 0
    %4758 = vmatpush1.bf16.msra.mxu0 0
    %4759 = vmatprep.subr.bf16.mxu0 %v4574
    %4760 = vmatpush1.bf16.msra.mxu0 %v4573
    %4761 = vmatprep.subr.bf16.mxu0 %v4558
    %4762 = vmatpush1.bf16.msra.mxu0 %v4557
    %4763 = vmatprep.subr.bf16.mxu0 0
    %4764 = vmatpush2.bf16.msra.mxu0 0
    %4765 = vmatprep.subr.bf16.mxu0 0
    %4766 = vmatpush2.bf16.msra.mxu0 0
    %4767 = vmatprep.subr.bf16.mxu0 0
    %4768 = vmatpush2.bf16.msra.mxu0 0
    %4769 = vmatprep.subr.bf16.mxu0 0
    %4770 = vmatpush2.bf16.msra.mxu0 0
    %4771 = vmatprep.subr.bf16.mxu0 0
    %4772 = vmatpush2.bf16.msra.mxu0 0
    %4773 = vmatprep.subr.bf16.mxu0 0
    %4774 = vmatpush2.bf16.msra.mxu0 0
    %4775 = vmatprep.subr.bf16.mxu0 0
    %4776 = vmatpush2.bf16.msra.mxu0 0
    %4777 = vmatprep.subr.bf16.mxu0 0
    %4778 = vmatpush2.bf16.msra.mxu0 0
    %4779 = vmatprep.mubr.bf16.mxu0 0
    %4780 = vmatmul.mubr.bf16.gmra.mxu0 %v4616
    %v4781 = vpop.f32.mrf.mxu0
    %v4782 = vadd.f32 %v4402, %v4781
    %v4783 = vpop.f32.mrf.mxu0
    %v4784 = vadd.f32 %v4406, %v4783
    %v4785 = vpop.f32.mrf.mxu0
    %v4786 = vadd.f32 %v4402, %v4785
    %v4787 = vpop.f32.mrf.mxu0
    %v4788 = vadd.f32 %v4406, %v4787
    %4789 = vdwg.mxu0
    %4790 = vmatprep.subr.bf16.mxu0 0
    %4791 = vmatpush1.bf16.msra.mxu0 0
    %4792 = vmatprep.subr.bf16.mxu0 0
    %4793 = vmatpush1.bf16.msra.mxu0 0
    %4794 = vmatprep.subr.bf16.mxu0 0
    %4795 = vmatpush1.bf16.msra.mxu0 0
    %4796 = vmatprep.subr.bf16.mxu0 0
    %4797 = vmatpush1.bf16.msra.mxu0 0
    %4798 = vmatprep.subr.bf16.mxu0 0
    %4799 = vmatpush1.bf16.msra.mxu0 0
    %4800 = vmatprep.subr.bf16.mxu0 0
    %4801 = vmatpush1.bf16.msra.mxu0 0
    %4802 = vmatprep.subr.bf16.mxu0 %v4576
    %4803 = vmatpush1.bf16.msra.mxu0 %v4575
    %4804 = vmatprep.subr.bf16.mxu0 %v4560
    %4805 = vmatpush1.bf16.msra.mxu0 %v4559
    %4806 = vmatprep.subr.bf16.mxu0 0
    %4807 = vmatpush2.bf16.msra.mxu0 0
    %4808 = vmatprep.subr.bf16.mxu0 0
    %4809 = vmatpush2.bf16.msra.mxu0 0
    %4810 = vmatprep.subr.bf16.mxu0 0
    %4811 = vmatpush2.bf16.msra.mxu0 0
    %4812 = vmatprep.subr.bf16.mxu0 0
    %4813 = vmatpush2.bf16.msra.mxu0 0
    %4814 = vmatprep.subr.bf16.mxu0 0
    %4815 = vmatpush2.bf16.msra.mxu0 0
    %4816 = vmatprep.subr.bf16.mxu0 0
    %4817 = vmatpush2.bf16.msra.mxu0 0
    %4818 = vmatprep.subr.bf16.mxu0 0
    %4819 = vmatpush2.bf16.msra.mxu0 0
    %4820 = vmatprep.subr.bf16.mxu0 0
    %4821 = vmatpush2.bf16.msra.mxu0 0
    %4822 = vmatprep.mubr.bf16.mxu0 0
    %4823 = vmatmul.mubr.bf16.gmra.mxu0 %v4616
    %v4824 = vpop.f32.mrf.mxu0
    %v4825 = vadd.f32 %v4410, %v4824
    %v4826 = vpop.f32.mrf.mxu0
    %v4827 = vadd.f32 %v4414, %v4826
    %v4828 = vpop.f32.mrf.mxu0
    %v4829 = vadd.f32 %v4410, %v4828
    %v4830 = vpop.f32.mrf.mxu0
    %v4831 = vadd.f32 %v4414, %v4830
    %4832 = vdwg.mxu0
    %4833 = vmatprep.subr.bf16.mxu0 0
    %4834 = vmatpush1.bf16.msra.mxu0 0
    %4835 = vmatprep.subr.bf16.mxu0 0
    %4836 = vmatpush1.bf16.msra.mxu0 0
    %4837 = vmatprep.subr.bf16.mxu0 0
    %4838 = vmatpush1.bf16.msra.mxu0 0
    %4839 = vmatprep.subr.bf16.mxu0 0
    %4840 = vmatpush1.bf16.msra.mxu0 0
    %4841 = vmatprep.subr.bf16.mxu0 0
    %4842 = vmatpush1.bf16.msra.mxu0 0
    %4843 = vmatprep.subr.bf16.mxu0 0
    %4844 = vmatpush1.bf16.msra.mxu0 0
    %4845 = vmatprep.subr.bf16.mxu0 %v4578
    %4846 = vmatpush1.bf16.msra.mxu0 %v4577
    %4847 = vmatprep.subr.bf16.mxu0 %v4562
    %4848 = vmatpush1.bf16.msra.mxu0 %v4561
    %4849 = vmatprep.subr.bf16.mxu0 0
    %4850 = vmatpush2.bf16.msra.mxu0 0
    %4851 = vmatprep.subr.bf16.mxu0 0
    %4852 = vmatpush2.bf16.msra.mxu0 0
    %4853 = vmatprep.subr.bf16.mxu0 0
    %4854 = vmatpush2.bf16.msra.mxu0 0
    %4855 = vmatprep.subr.bf16.mxu0 0
    %4856 = vmatpush2.bf16.msra.mxu0 0
    %4857 = vmatprep.subr.bf16.mxu0 0
    %4858 = vmatpush2.bf16.msra.mxu0 0
    %4859 = vmatprep.subr.bf16.mxu0 0
    %4860 = vmatpush2.bf16.msra.mxu0 0
    %4861 = vmatprep.subr.bf16.mxu0 0
    %4862 = vmatpush2.bf16.msra.mxu0 0
    %4863 = vmatprep.subr.bf16.mxu0 0
    %4864 = vmatpush2.bf16.msra.mxu0 0
    %4865 = vmatprep.mubr.bf16.mxu0 0
    %4866 = vmatmul.mubr.bf16.gmra.mxu0 %v4616
    %v4867 = vpop.f32.mrf.mxu0
    %v4868 = vadd.f32 %v4418, %v4867
    %v4869 = vpop.f32.mrf.mxu0
    %v4870 = vadd.f32 %v4422, %v4869
    %v4871 = vpop.f32.mrf.mxu0
    %v4872 = vadd.f32 %v4418, %v4871
    %v4873 = vpop.f32.mrf.mxu0
    %v4874 = vadd.f32 %v4422, %v4873
    %4875 = vdwg.mxu0
    %4876 = vmatprep.subr.bf16.mxu0 0
    %4877 = vmatpush1.bf16.msra.mxu0 0
    %4878 = vmatprep.subr.bf16.mxu0 0
    %4879 = vmatpush1.bf16.msra.mxu0 0
    %4880 = vmatprep.subr.bf16.mxu0 0
    %4881 = vmatpush1.bf16.msra.mxu0 0
    %4882 = vmatprep.subr.bf16.mxu0 0
    %4883 = vmatpush1.bf16.msra.mxu0 0
    %4884 = vmatprep.subr.bf16.mxu0 0
    %4885 = vmatpush1.bf16.msra.mxu0 0
    %4886 = vmatprep.subr.bf16.mxu0 0
    %4887 = vmatpush1.bf16.msra.mxu0 0
    %4888 = vmatprep.subr.bf16.mxu0 %v4580
    %4889 = vmatpush1.bf16.msra.mxu0 %v4579
    %4890 = vmatprep.subr.bf16.mxu0 %v4564
    %4891 = vmatpush1.bf16.msra.mxu0 %v4563
    %4892 = vmatprep.subr.bf16.mxu0 0
    %4893 = vmatpush2.bf16.msra.mxu0 0
    %4894 = vmatprep.subr.bf16.mxu0 0
    %4895 = vmatpush2.bf16.msra.mxu0 0
    %4896 = vmatprep.subr.bf16.mxu0 0
    %4897 = vmatpush2.bf16.msra.mxu0 0
    %4898 = vmatprep.subr.bf16.mxu0 0
    %4899 = vmatpush2.bf16.msra.mxu0 0
    %4900 = vmatprep.subr.bf16.mxu0 0
    %4901 = vmatpush2.bf16.msra.mxu0 0
    %4902 = vmatprep.subr.bf16.mxu0 0
    %4903 = vmatpush2.bf16.msra.mxu0 0
    %4904 = vmatprep.subr.bf16.mxu0 0
    %4905 = vmatpush2.bf16.msra.mxu0 0
    %4906 = vmatprep.subr.bf16.mxu0 0
    %4907 = vmatpush2.bf16.msra.mxu0 0
    %4908 = vmatprep.mubr.bf16.mxu0 0
    %4909 = vmatmul.mubr.bf16.gmra.mxu0 %v4616
    %v4910 = vpop.f32.mrf.mxu0
    %v4911 = vadd.f32 %v4426, %v4910
    %v4912 = vpop.f32.mrf.mxu0
    %v4913 = vadd.f32 %v4430, %v4912
    %v4914 = vpop.f32.mrf.mxu0
    %v4915 = vadd.f32 %v4426, %v4914
    %v4916 = vpop.f32.mrf.mxu0
    %v4917 = vadd.f32 %v4430, %v4916
    %4918 = vdwg.mxu0
    %4919 = vmatprep.subr.bf16.mxu0 0
    %4920 = vmatpush1.bf16.msra.mxu0 0
    %4921 = vmatprep.subr.bf16.mxu0 0
    %4922 = vmatpush1.bf16.msra.mxu0 0
    %4923 = vmatprep.subr.bf16.mxu0 0
    %4924 = vmatpush1.bf16.msra.mxu0 0
    %4925 = vmatprep.subr.bf16.mxu0 0
    %4926 = vmatpush1.bf16.msra.mxu0 0
    %4927 = vmatprep.subr.bf16.mxu0 0
    %4928 = vmatpush1.bf16.msra.mxu0 0
    %4929 = vmatprep.subr.bf16.mxu0 0
    %4930 = vmatpush1.bf16.msra.mxu0 0
    %4931 = vmatprep.subr.bf16.mxu0 %v4582
    %4932 = vmatpush1.bf16.msra.mxu0 %v4581
    %4933 = vmatprep.subr.bf16.mxu0 %v4566
    %4934 = vmatpush1.bf16.msra.mxu0 %v4565
    %4935 = vmatprep.subr.bf16.mxu0 0
    %4936 = vmatpush2.bf16.msra.mxu0 0
    %4937 = vmatprep.subr.bf16.mxu0 0
    %4938 = vmatpush2.bf16.msra.mxu0 0
    %4939 = vmatprep.subr.bf16.mxu0 0
    %4940 = vmatpush2.bf16.msra.mxu0 0
    %4941 = vmatprep.subr.bf16.mxu0 0
    %4942 = vmatpush2.bf16.msra.mxu0 0
    %4943 = vmatprep.subr.bf16.mxu0 0
    %4944 = vmatpush2.bf16.msra.mxu0 0
    %4945 = vmatprep.subr.bf16.mxu0 0
    %4946 = vmatpush2.bf16.msra.mxu0 0
    %4947 = vmatprep.subr.bf16.mxu0 0
    %4948 = vmatpush2.bf16.msra.mxu0 0
    %4949 = vmatprep.subr.bf16.mxu0 0
    %4950 = vmatpush2.bf16.msra.mxu0 0
    %4951 = vmatprep.mubr.bf16.mxu0 0
    %4952 = vmatmul.mubr.bf16.gmra.mxu0 %v4616
    %v4953 = vpop.f32.mrf.mxu0
    %v4954 = vadd.f32 %v4434, %v4953
    %v4955 = vpop.f32.mrf.mxu0
    %v4956 = vadd.f32 %v4438, %v4955
    %v4957 = vpop.f32.mrf.mxu0
    %v4958 = vadd.f32 %v4434, %v4957
    %v4959 = vpop.f32.mrf.mxu0
    %v4960 = vadd.f32 %v4438, %v4959
    %4961 = vdwg.mxu0
    %v4962 = vmax.f32 %v4653, 0.0
    %v4963 = vmax.f32 %v4655, 0.0
    %v4964 = vmax.f32 %v4696, 0.0
    %v4965 = vmax.f32 %v4698, 0.0
    %v4966 = vmax.f32 %v4739, 0.0
    %v4967 = vmax.f32 %v4741, 0.0
    %v4968 = vmax.f32 %v4782, 0.0
    %v4969 = vmax.f32 %v4784, 0.0
    %v4970 = vmax.f32 %v4825, 0.0
    %v4971 = vmax.f32 %v4827, 0.0
    %v4972 = vmax.f32 %v4868, 0.0
    %v4973 = vmax.f32 %v4870, 0.0
    %v4974 = vmax.f32 %v4911, 0.0
    %v4975 = vmax.f32 %v4913, 0.0
    %v4976 = vmax.f32 %v4954, 0.0
    %v4977 = vmax.f32 %v4956, 0.0
    %v4978 = vmax.f32 %v4657, 0.0
    %v4979 = vmax.f32 %v4659, 0.0
    %v4980 = vmax.f32 %v4700, 0.0
    %v4981 = vmax.f32 %v4702, 0.0
    %v4982 = vmax.f32 %v4743, 0.0
    %v4983 = vmax.f32 %v4745, 0.0
    %v4984 = vmax.f32 %v4786, 0.0
    %v4985 = vmax.f32 %v4788, 0.0
    %v4986 = vmax.f32 %v4829, 0.0
    %v4987 = vmax.f32 %v4831, 0.0
    %v4988 = vmax.f32 %v4872, 0.0
    %v4989 = vmax.f32 %v4874, 0.0
    %v4990 = vmax.f32 %v4915, 0.0
    %v4991 = vmax.f32 %v4917, 0.0
    %v4992 = vmax.f32 %v4958, 0.0
    %v4993 = vmax.f32 %v4960, 0.0
    %v4994 = vpack.c.bf16 %v4978, %v4962
    %v4995 = vpack.c.bf16 %v4979, %v4963
    %v4996 = vpack.c.bf16 %v4980, %v4964
    %v4997 = vpack.c.bf16 %v4981, %v4965
    %v4998 = vpack.c.bf16 %v4982, %v4966
    %v4999 = vpack.c.bf16 %v4983, %v4967
    %v5000 = vpack.c.bf16 %v4984, %v4968
    %v5001 = vpack.c.bf16 %v4985, %v4969
    %v5002 = vpack.c.bf16 %v4986, %v4970
    %v5003 = vpack.c.bf16 %v4987, %v4971
    %v5004 = vpack.c.bf16 %v4988, %v4972
    %v5005 = vpack.c.bf16 %v4989, %v4973
    %v5006 = vpack.c.bf16 %v4990, %v4974
    %v5007 = vpack.c.bf16 %v4991, %v4975
    %v5008 = vpack.c.bf16 %v4992, %v4976
    %v5009 = vpack.c.bf16 %v4993, %v4977
    %s5010 = scalar_lea.vmem %s12, 1024
    %v5011 = vld [vmem:[%s5010] sm:$0xf]
    %v5012 = vld [vmem:[%s5010 + $0x4] sm:$0xf]
    %v5013 = vld [vmem:[%s5010 + $0x8] sm:$0xf]
    %v5014 = vld [vmem:[%s5010 + $0xc] sm:$0xf]
    %v5015 = vld [vmem:[%s5010 + $0x10] sm:$0xf]
    %v5016 = vld [vmem:[%s5010 + $0x14] sm:$0xf]
    %v5017 = vld [vmem:[%s5010 + $0x18] sm:$0xf]
    %v5018 = vld [vmem:[%s5010 + $0x1c] sm:$0xf]
    %v5019 = vld [vmem:[%s5010 + $0x20] sm:$0xf]
    %v5020 = vld [vmem:[%s5010 + $0x24] sm:$0xf]
    %v5021 = vld [vmem:[%s5010 + $0x28] sm:$0xf]
    %v5022 = vld [vmem:[%s5010 + $0x2c] sm:$0xf]
    %v5023 = vld [vmem:[%s5010 + $0x30] sm:$0xf]
    %v5024 = vld [vmem:[%s5010 + $0x34] sm:$0xf]
    %v5025 = vld [vmem:[%s5010 + $0x38] sm:$0xf]
    %v5026 = vld [vmem:[%s5010 + $0x3c] sm:$0xf]
    %v5027 = vld [vmem:[%s5010 + $0x40] sm:$0xf]
    %v5028 = vld [vmem:[%s5010 + $0x44] sm:$0xf]
    %v5029 = vld [vmem:[%s5010 + $0x48] sm:$0xf]
    %v5030 = vld [vmem:[%s5010 + $0x4c] sm:$0xf]
    %v5031 = vld [vmem:[%s5010 + $0x50] sm:$0xf]
    %v5032 = vld [vmem:[%s5010 + $0x54] sm:$0xf]
    %v5033 = vld [vmem:[%s5010 + $0x58] sm:$0xf]
    %v5034 = vld [vmem:[%s5010 + $0x5c] sm:$0xf]
    %v5035 = vld [vmem:[%s5010 + $0x60] sm:$0xf]
    %v5036 = vld [vmem:[%s5010 + $0x64] sm:$0xf]
    %v5037 = vld [vmem:[%s5010 + $0x68] sm:$0xf]
    %v5038 = vld [vmem:[%s5010 + $0x6c] sm:$0xf]
    %v5039 = vld [vmem:[%s5010 + $0x70] sm:$0xf]
    %v5040 = vld [vmem:[%s5010 + $0x74] sm:$0xf]
    %v5041 = vld [vmem:[%s5010 + $0x78] sm:$0xf]
    %v5042 = vld [vmem:[%s5010 + $0x7c] sm:$0xf]
    %v5043 = vld [vmem:[%s5010 + $0x80] sm:$0xf]
    %v5044 = vld [vmem:[%s5010 + $0x84] sm:$0xf]
    %v5045 = vld [vmem:[%s5010 + $0x88] sm:$0xf]
    %v5046 = vld [vmem:[%s5010 + $0x8c] sm:$0xf]
    %v5047 = vld [vmem:[%s5010 + $0x90] sm:$0xf]
    %v5048 = vld [vmem:[%s5010 + $0x94] sm:$0xf]
    %v5049 = vld [vmem:[%s5010 + $0x98] sm:$0xf]
    %v5050 = vld [vmem:[%s5010 + $0x9c] sm:$0xf]
    %v5051 = vld [vmem:[%s5010 + $0xa0] sm:$0xf]
    %v5052 = vld [vmem:[%s5010 + $0xa4] sm:$0xf]
    %v5053 = vld [vmem:[%s5010 + $0xa8] sm:$0xf]
    %v5054 = vld [vmem:[%s5010 + $0xac] sm:$0xf]
    %v5055 = vld [vmem:[%s5010 + $0xb0] sm:$0xf]
    %v5056 = vld [vmem:[%s5010 + $0xb4] sm:$0xf]
    %v5057 = vld [vmem:[%s5010 + $0xb8] sm:$0xf]
    %v5058 = vld [vmem:[%s5010 + $0xbc] sm:$0xf]
    %v5059 = vld [vmem:[%s5010 + $0xc0] sm:$0xf]
    %v5060 = vld [vmem:[%s5010 + $0xc4] sm:$0xf]
    %v5061 = vld [vmem:[%s5010 + $0xc8] sm:$0xf]
    %v5062 = vld [vmem:[%s5010 + $0xcc] sm:$0xf]
    %v5063 = vld [vmem:[%s5010 + $0xd0] sm:$0xf]
    %v5064 = vld [vmem:[%s5010 + $0xd4] sm:$0xf]
    %v5065 = vld [vmem:[%s5010 + $0xd8] sm:$0xf]
    %v5066 = vld [vmem:[%s5010 + $0xdc] sm:$0xf]
    %v5067 = vld [vmem:[%s5010 + $0xe0] sm:$0xf]
    %v5068 = vld [vmem:[%s5010 + $0xe4] sm:$0xf]
    %v5069 = vld [vmem:[%s5010 + $0xe8] sm:$0xf]
    %v5070 = vld [vmem:[%s5010 + $0xec] sm:$0xf]
    %v5071 = vld [vmem:[%s5010 + $0xf0] sm:$0xf]
    %v5072 = vld [vmem:[%s5010 + $0xf4] sm:$0xf]
    %v5073 = vld [vmem:[%s5010 + $0xf8] sm:$0xf]
    %v5074 = vld [vmem:[%s5010 + $0xfc] sm:$0xf]
    %v5075 = vld [vmem:[%s5010 + $0x100] sm:$0xf]
    %v5076 = vld [vmem:[%s5010 + $0x104] sm:$0xf]
    %v5077 = vld [vmem:[%s5010 + $0x108] sm:$0xf]
    %v5078 = vld [vmem:[%s5010 + $0x10c] sm:$0xf]
    %v5079 = vld [vmem:[%s5010 + $0x110] sm:$0xf]
    %v5080 = vld [vmem:[%s5010 + $0x114] sm:$0xf]
    %v5081 = vld [vmem:[%s5010 + $0x118] sm:$0xf]
    %v5082 = vld [vmem:[%s5010 + $0x11c] sm:$0xf]
    %v5083 = vld [vmem:[%s5010 + $0x120] sm:$0xf]
    %v5084 = vld [vmem:[%s5010 + $0x124] sm:$0xf]
    %v5085 = vld [vmem:[%s5010 + $0x128] sm:$0xf]
    %v5086 = vld [vmem:[%s5010 + $0x12c] sm:$0xf]
    %v5087 = vld [vmem:[%s5010 + $0x130] sm:$0xf]
    %v5088 = vld [vmem:[%s5010 + $0x134] sm:$0xf]
    %v5089 = vld [vmem:[%s5010 + $0x138] sm:$0xf]
    %v5090 = vld [vmem:[%s5010 + $0x13c] sm:$0xf]
    %v5091 = vld [vmem:[%s5010 + $0x140] sm:$0xf]
    %v5092 = vld [vmem:[%s5010 + $0x144] sm:$0xf]
    %v5093 = vld [vmem:[%s5010 + $0x148] sm:$0xf]
    %v5094 = vld [vmem:[%s5010 + $0x14c] sm:$0xf]
    %v5095 = vld [vmem:[%s5010 + $0x150] sm:$0xf]
    %v5096 = vld [vmem:[%s5010 + $0x154] sm:$0xf]
    %v5097 = vld [vmem:[%s5010 + $0x158] sm:$0xf]
    %v5098 = vld [vmem:[%s5010 + $0x15c] sm:$0xf]
    %v5099 = vld [vmem:[%s5010 + $0x160] sm:$0xf]
    %v5100 = vld [vmem:[%s5010 + $0x164] sm:$0xf]
    %v5101 = vld [vmem:[%s5010 + $0x168] sm:$0xf]
    %v5102 = vld [vmem:[%s5010 + $0x16c] sm:$0xf]
    %v5103 = vld [vmem:[%s5010 + $0x170] sm:$0xf]
    %v5104 = vld [vmem:[%s5010 + $0x174] sm:$0xf]
    %v5105 = vld [vmem:[%s5010 + $0x178] sm:$0xf]
    %v5106 = vld [vmem:[%s5010 + $0x17c] sm:$0xf]
    %v5107 = vld [vmem:[%s5010 + $0x180] sm:$0xf]
    %v5108 = vld [vmem:[%s5010 + $0x184] sm:$0xf]
    %v5109 = vld [vmem:[%s5010 + $0x188] sm:$0xf]
    %v5110 = vld [vmem:[%s5010 + $0x18c] sm:$0xf]
    %v5111 = vld [vmem:[%s5010 + $0x190] sm:$0xf]
    %v5112 = vld [vmem:[%s5010 + $0x194] sm:$0xf]
    %v5113 = vld [vmem:[%s5010 + $0x198] sm:$0xf]
    %v5114 = vld [vmem:[%s5010 + $0x19c] sm:$0xf]
    %v5115 = vld [vmem:[%s5010 + $0x1a0] sm:$0xf]
    %v5116 = vld [vmem:[%s5010 + $0x1a4] sm:$0xf]
    %v5117 = vld [vmem:[%s5010 + $0x1a8] sm:$0xf]
    %v5118 = vld [vmem:[%s5010 + $0x1ac] sm:$0xf]
    %v5119 = vld [vmem:[%s5010 + $0x1b0] sm:$0xf]
    %v5120 = vld [vmem:[%s5010 + $0x1b4] sm:$0xf]
    %v5121 = vld [vmem:[%s5010 + $0x1b8] sm:$0xf]
    %v5122 = vld [vmem:[%s5010 + $0x1bc] sm:$0xf]
    %v5123 = vld [vmem:[%s5010 + $0x1c0] sm:$0xf]
    %v5124 = vld [vmem:[%s5010 + $0x1c4] sm:$0xf]
    %v5125 = vld [vmem:[%s5010 + $0x1c8] sm:$0xf]
    %v5126 = vld [vmem:[%s5010 + $0x1cc] sm:$0xf]
    %v5127 = vld [vmem:[%s5010 + $0x1d0] sm:$0xf]
    %v5128 = vld [vmem:[%s5010 + $0x1d4] sm:$0xf]
    %v5129 = vld [vmem:[%s5010 + $0x1d8] sm:$0xf]
    %v5130 = vld [vmem:[%s5010 + $0x1dc] sm:$0xf]
    %v5131 = vld [vmem:[%s5010 + $0x1e0] sm:$0xf]
    %v5132 = vld [vmem:[%s5010 + $0x1e4] sm:$0xf]
    %v5133 = vld [vmem:[%s5010 + $0x1e8] sm:$0xf]
    %v5134 = vld [vmem:[%s5010 + $0x1ec] sm:$0xf]
    %v5135 = vld [vmem:[%s5010 + $0x1f0] sm:$0xf]
    %v5136 = vld [vmem:[%s5010 + $0x1f4] sm:$0xf]
    %v5137 = vld [vmem:[%s5010 + $0x1f8] sm:$0xf]
    %v5138 = vld [vmem:[%s5010 + $0x1fc] sm:$0xf]
    %v5139 = vld [vmem:[%s5010 + $0x200] sm:$0xf]
    %v5140 = vld [vmem:[%s5010 + $0x204] sm:$0xf]
    %v5141 = vld [vmem:[%s5010 + $0x208] sm:$0xf]
    %v5142 = vld [vmem:[%s5010 + $0x20c] sm:$0xf]
    %v5143 = vld [vmem:[%s5010 + $0x210] sm:$0xf]
    %v5144 = vld [vmem:[%s5010 + $0x214] sm:$0xf]
    %v5145 = vld [vmem:[%s5010 + $0x218] sm:$0xf]
    %v5146 = vld [vmem:[%s5010 + $0x21c] sm:$0xf]
    %v5147 = vld [vmem:[%s5010 + $0x220] sm:$0xf]
    %v5148 = vld [vmem:[%s5010 + $0x224] sm:$0xf]
    %v5149 = vld [vmem:[%s5010 + $0x228] sm:$0xf]
    %v5150 = vld [vmem:[%s5010 + $0x22c] sm:$0xf]
    %v5151 = vld [vmem:[%s5010 + $0x230] sm:$0xf]
    %v5152 = vld [vmem:[%s5010 + $0x234] sm:$0xf]
    %v5153 = vld [vmem:[%s5010 + $0x238] sm:$0xf]
    %v5154 = vld [vmem:[%s5010 + $0x23c] sm:$0xf]
    %v5155 = vld [vmem:[%s5010 + $0x240] sm:$0xf]
    %v5156 = vld [vmem:[%s5010 + $0x244] sm:$0xf]
    %v5157 = vld [vmem:[%s5010 + $0x248] sm:$0xf]
    %v5158 = vld [vmem:[%s5010 + $0x24c] sm:$0xf]
    %v5159 = vld [vmem:[%s5010 + $0x250] sm:$0xf]
    %v5160 = vld [vmem:[%s5010 + $0x254] sm:$0xf]
    %v5161 = vld [vmem:[%s5010 + $0x258] sm:$0xf]
    %v5162 = vld [vmem:[%s5010 + $0x25c] sm:$0xf]
    %v5163 = vld [vmem:[%s5010 + $0x260] sm:$0xf]
    %v5164 = vld [vmem:[%s5010 + $0x264] sm:$0xf]
    %v5165 = vld [vmem:[%s5010 + $0x268] sm:$0xf]
    %v5166 = vld [vmem:[%s5010 + $0x26c] sm:$0xf]
    %v5167 = vld [vmem:[%s5010 + $0x270] sm:$0xf]
    %v5168 = vld [vmem:[%s5010 + $0x274] sm:$0xf]
    %v5169 = vld [vmem:[%s5010 + $0x278] sm:$0xf]
    %v5170 = vld [vmem:[%s5010 + $0x27c] sm:$0xf]
    %v5171 = vld [vmem:[%s5010 + $0x280] sm:$0xf]
    %v5172 = vld [vmem:[%s5010 + $0x284] sm:$0xf]
    %v5173 = vld [vmem:[%s5010 + $0x288] sm:$0xf]
    %v5174 = vld [vmem:[%s5010 + $0x28c] sm:$0xf]
    %v5175 = vld [vmem:[%s5010 + $0x290] sm:$0xf]
    %v5176 = vld [vmem:[%s5010 + $0x294] sm:$0xf]
    %v5177 = vld [vmem:[%s5010 + $0x298] sm:$0xf]
    %v5178 = vld [vmem:[%s5010 + $0x29c] sm:$0xf]
    %v5179 = vld [vmem:[%s5010 + $0x2a0] sm:$0xf]
    %v5180 = vld [vmem:[%s5010 + $0x2a4] sm:$0xf]
    %v5181 = vld [vmem:[%s5010 + $0x2a8] sm:$0xf]
    %v5182 = vld [vmem:[%s5010 + $0x2ac] sm:$0xf]
    %v5183 = vld [vmem:[%s5010 + $0x2b0] sm:$0xf]
    %v5184 = vld [vmem:[%s5010 + $0x2b4] sm:$0xf]
    %v5185 = vld [vmem:[%s5010 + $0x2b8] sm:$0xf]
    %v5186 = vld [vmem:[%s5010 + $0x2bc] sm:$0xf]
    %v5187 = vld [vmem:[%s5010 + $0x2c0] sm:$0xf]
    %v5188 = vld [vmem:[%s5010 + $0x2c4] sm:$0xf]
    %v5189 = vld [vmem:[%s5010 + $0x2c8] sm:$0xf]
    %v5190 = vld [vmem:[%s5010 + $0x2cc] sm:$0xf]
    %v5191 = vld [vmem:[%s5010 + $0x2d0] sm:$0xf]
    %v5192 = vld [vmem:[%s5010 + $0x2d4] sm:$0xf]
    %v5193 = vld [vmem:[%s5010 + $0x2d8] sm:$0xf]
    %v5194 = vld [vmem:[%s5010 + $0x2dc] sm:$0xf]
    %v5195 = vld [vmem:[%s5010 + $0x2e0] sm:$0xf]
    %v5196 = vld [vmem:[%s5010 + $0x2e4] sm:$0xf]
    %v5197 = vld [vmem:[%s5010 + $0x2e8] sm:$0xf]
    %v5198 = vld [vmem:[%s5010 + $0x2ec] sm:$0xf]
    %v5199 = vld [vmem:[%s5010 + $0x2f0] sm:$0xf]
    %v5200 = vld [vmem:[%s5010 + $0x2f4] sm:$0xf]
    %v5201 = vld [vmem:[%s5010 + $0x2f8] sm:$0xf]
    %v5202 = vld [vmem:[%s5010 + $0x2fc] sm:$0xf]
    %v5203 = vld [vmem:[%s5010 + $0x300] sm:$0xf]
    %v5204 = vld [vmem:[%s5010 + $0x304] sm:$0xf]
    %v5205 = vld [vmem:[%s5010 + $0x308] sm:$0xf]
    %v5206 = vld [vmem:[%s5010 + $0x30c] sm:$0xf]
    %v5207 = vld [vmem:[%s5010 + $0x310] sm:$0xf]
    %v5208 = vld [vmem:[%s5010 + $0x314] sm:$0xf]
    %v5209 = vld [vmem:[%s5010 + $0x318] sm:$0xf]
    %v5210 = vld [vmem:[%s5010 + $0x31c] sm:$0xf]
    %v5211 = vld [vmem:[%s5010 + $0x320] sm:$0xf]
    %v5212 = vld [vmem:[%s5010 + $0x324] sm:$0xf]
    %v5213 = vld [vmem:[%s5010 + $0x328] sm:$0xf]
    %v5214 = vld [vmem:[%s5010 + $0x32c] sm:$0xf]
    %v5215 = vld [vmem:[%s5010 + $0x330] sm:$0xf]
    %v5216 = vld [vmem:[%s5010 + $0x334] sm:$0xf]
    %v5217 = vld [vmem:[%s5010 + $0x338] sm:$0xf]
    %v5218 = vld [vmem:[%s5010 + $0x33c] sm:$0xf]
    %v5219 = vld [vmem:[%s5010 + $0x340] sm:$0xf]
    %v5220 = vld [vmem:[%s5010 + $0x344] sm:$0xf]
    %v5221 = vld [vmem:[%s5010 + $0x348] sm:$0xf]
    %v5222 = vld [vmem:[%s5010 + $0x34c] sm:$0xf]
    %v5223 = vld [vmem:[%s5010 + $0x350] sm:$0xf]
    %v5224 = vld [vmem:[%s5010 + $0x354] sm:$0xf]
    %v5225 = vld [vmem:[%s5010 + $0x358] sm:$0xf]
    %v5226 = vld [vmem:[%s5010 + $0x35c] sm:$0xf]
    %v5227 = vld [vmem:[%s5010 + $0x360] sm:$0xf]
    %v5228 = vld [vmem:[%s5010 + $0x364] sm:$0xf]
    %v5229 = vld [vmem:[%s5010 + $0x368] sm:$0xf]
    %v5230 = vld [vmem:[%s5010 + $0x36c] sm:$0xf]
    %v5231 = vld [vmem:[%s5010 + $0x370] sm:$0xf]
    %v5232 = vld [vmem:[%s5010 + $0x374] sm:$0xf]
    %v5233 = vld [vmem:[%s5010 + $0x378] sm:$0xf]
    %v5234 = vld [vmem:[%s5010 + $0x37c] sm:$0xf]
    %v5235 = vld [vmem:[%s5010 + $0x380] sm:$0xf]
    %v5236 = vld [vmem:[%s5010 + $0x384] sm:$0xf]
    %v5237 = vld [vmem:[%s5010 + $0x388] sm:$0xf]
    %v5238 = vld [vmem:[%s5010 + $0x38c] sm:$0xf]
    %v5239 = vld [vmem:[%s5010 + $0x390] sm:$0xf]
    %v5240 = vld [vmem:[%s5010 + $0x394] sm:$0xf]
    %v5241 = vld [vmem:[%s5010 + $0x398] sm:$0xf]
    %v5242 = vld [vmem:[%s5010 + $0x39c] sm:$0xf]
    %v5243 = vld [vmem:[%s5010 + $0x3a0] sm:$0xf]
    %v5244 = vld [vmem:[%s5010 + $0x3a4] sm:$0xf]
    %v5245 = vld [vmem:[%s5010 + $0x3a8] sm:$0xf]
    %v5246 = vld [vmem:[%s5010 + $0x3ac] sm:$0xf]
    %v5247 = vld [vmem:[%s5010 + $0x3b0] sm:$0xf]
    %v5248 = vld [vmem:[%s5010 + $0x3b4] sm:$0xf]
    %v5249 = vld [vmem:[%s5010 + $0x3b8] sm:$0xf]
    %v5250 = vld [vmem:[%s5010 + $0x3bc] sm:$0xf]
    %v5251 = vld [vmem:[%s5010 + $0x3c0] sm:$0xf]
    %v5252 = vld [vmem:[%s5010 + $0x3c4] sm:$0xf]
    %v5253 = vld [vmem:[%s5010 + $0x3c8] sm:$0xf]
    %v5254 = vld [vmem:[%s5010 + $0x3cc] sm:$0xf]
    %v5255 = vld [vmem:[%s5010 + $0x3d0] sm:$0xf]
    %v5256 = vld [vmem:[%s5010 + $0x3d4] sm:$0xf]
    %v5257 = vld [vmem:[%s5010 + $0x3d8] sm:$0xf]
    %v5258 = vld [vmem:[%s5010 + $0x3dc] sm:$0xf]
    %v5259 = vld [vmem:[%s5010 + $0x3e0] sm:$0xf]
    %v5260 = vld [vmem:[%s5010 + $0x3e4] sm:$0xf]
    %v5261 = vld [vmem:[%s5010 + $0x3e8] sm:$0xf]
    %v5262 = vld [vmem:[%s5010 + $0x3ec] sm:$0xf]
    %v5263 = vld [vmem:[%s5010 + $0x3f0] sm:$0xf]
    %v5264 = vld [vmem:[%s5010 + $0x3f4] sm:$0xf]
    %v5265 = vld [vmem:[%s5010 + $0x3f8] sm:$0xf]
    %v5266 = vld [vmem:[%s5010 + $0x3fc] sm:$0xf]
    %s5267 = scalar_lea.vmem %s13, 1
    %v5268 = vld [vmem:[%s5267] sm:$0x1]
    %v5270 = vlaneseq
    %v5271 = vshrl.u32 %v5270, 7
    %v5272 = vsub.s32 0, %v5271
    %v5273 = vrot.slane %v5268, %v5272
    %v5531 = vunpack.c.l.b16 %v5011
    %v5532 = vunpack.c.l.b16 %v5012
    %v5533 = vunpack.c.l.b16 %v5013
    %v5534 = vunpack.c.l.b16 %v5014
    %v5535 = vunpack.c.l.b16 %v5015
    %v5536 = vunpack.c.l.b16 %v5016
    %v5537 = vunpack.c.l.b16 %v5017
    %v5538 = vunpack.c.l.b16 %v5018
    %v5539 = vunpack.c.l.b16 %v5019
    %v5540 = vunpack.c.l.b16 %v5020
    %v5541 = vunpack.c.l.b16 %v5021
    %v5542 = vunpack.c.l.b16 %v5022
    %v5543 = vunpack.c.l.b16 %v5023
    %v5544 = vunpack.c.l.b16 %v5024
    %v5545 = vunpack.c.l.b16 %v5025
    %v5546 = vunpack.c.l.b16 %v5026
    %v5547 = vunpack.c.l.b16 %v5027
    %v5548 = vunpack.c.l.b16 %v5028
    %v5549 = vunpack.c.l.b16 %v5029
    %v5550 = vunpack.c.l.b16 %v5030
    %v5551 = vunpack.c.l.b16 %v5031
    %v5552 = vunpack.c.l.b16 %v5032
    %v5553 = vunpack.c.l.b16 %v5033
    %v5554 = vunpack.c.l.b16 %v5034
    %v5555 = vunpack.c.l.b16 %v5035
    %v5556 = vunpack.c.l.b16 %v5036
    %v5557 = vunpack.c.l.b16 %v5037
    %v5558 = vunpack.c.l.b16 %v5038
    %v5559 = vunpack.c.l.b16 %v5039
    %v5560 = vunpack.c.l.b16 %v5040
    %v5561 = vunpack.c.l.b16 %v5041
    %v5562 = vunpack.c.l.b16 %v5042
    %v5563 = vunpack.c.l.b16 %v5043
    %v5564 = vunpack.c.l.b16 %v5044
    %v5565 = vunpack.c.l.b16 %v5045
    %v5566 = vunpack.c.l.b16 %v5046
    %v5567 = vunpack.c.l.b16 %v5047
    %v5568 = vunpack.c.l.b16 %v5048
    %v5569 = vunpack.c.l.b16 %v5049
    %v5570 = vunpack.c.l.b16 %v5050
    %v5571 = vunpack.c.l.b16 %v5051
    %v5572 = vunpack.c.l.b16 %v5052
    %v5573 = vunpack.c.l.b16 %v5053
    %v5574 = vunpack.c.l.b16 %v5054
    %v5575 = vunpack.c.l.b16 %v5055
    %v5576 = vunpack.c.l.b16 %v5056
    %v5577 = vunpack.c.l.b16 %v5057
    %v5578 = vunpack.c.l.b16 %v5058
    %v5579 = vunpack.c.l.b16 %v5059
    %v5580 = vunpack.c.l.b16 %v5060
    %v5581 = vunpack.c.l.b16 %v5061
    %v5582 = vunpack.c.l.b16 %v5062
    %v5583 = vunpack.c.l.b16 %v5063
    %v5584 = vunpack.c.l.b16 %v5064
    %v5585 = vunpack.c.l.b16 %v5065
    %v5586 = vunpack.c.l.b16 %v5066
    %v5587 = vunpack.c.l.b16 %v5067
    %v5588 = vunpack.c.l.b16 %v5068
    %v5589 = vunpack.c.l.b16 %v5069
    %v5590 = vunpack.c.l.b16 %v5070
    %v5591 = vunpack.c.l.b16 %v5071
    %v5592 = vunpack.c.l.b16 %v5072
    %v5593 = vunpack.c.l.b16 %v5073
    %v5594 = vunpack.c.l.b16 %v5074
    %v5595 = vunpack.c.l.b16 %v5075
    %v5596 = vunpack.c.l.b16 %v5076
    %v5597 = vunpack.c.l.b16 %v5077
    %v5598 = vunpack.c.l.b16 %v5078
    %v5599 = vunpack.c.l.b16 %v5079
    %v5600 = vunpack.c.l.b16 %v5080
    %v5601 = vunpack.c.l.b16 %v5081
    %v5602 = vunpack.c.l.b16 %v5082
    %v5603 = vunpack.c.l.b16 %v5083
    %v5604 = vunpack.c.l.b16 %v5084
    %v5605 = vunpack.c.l.b16 %v5085
    %v5606 = vunpack.c.l.b16 %v5086
    %v5607 = vunpack.c.l.b16 %v5087
    %v5608 = vunpack.c.l.b16 %v5088
    %v5609 = vunpack.c.l.b16 %v5089
    %v5610 = vunpack.c.l.b16 %v5090
    %v5611 = vunpack.c.l.b16 %v5091
    %v5612 = vunpack.c.l.b16 %v5092
    %v5613 = vunpack.c.l.b16 %v5093
    %v5614 = vunpack.c.l.b16 %v5094
    %v5615 = vunpack.c.l.b16 %v5095
    %v5616 = vunpack.c.l.b16 %v5096
    %v5617 = vunpack.c.l.b16 %v5097
    %v5618 = vunpack.c.l.b16 %v5098
    %v5619 = vunpack.c.l.b16 %v5099
    %v5620 = vunpack.c.l.b16 %v5100
    %v5621 = vunpack.c.l.b16 %v5101
    %v5622 = vunpack.c.l.b16 %v5102
    %v5623 = vunpack.c.l.b16 %v5103
    %v5624 = vunpack.c.l.b16 %v5104
    %v5625 = vunpack.c.l.b16 %v5105
    %v5626 = vunpack.c.l.b16 %v5106
    %v5627 = vunpack.c.l.b16 %v5107
    %v5628 = vunpack.c.l.b16 %v5108
    %v5629 = vunpack.c.l.b16 %v5109
    %v5630 = vunpack.c.l.b16 %v5110
    %v5631 = vunpack.c.l.b16 %v5111
    %v5632 = vunpack.c.l.b16 %v5112
    %v5633 = vunpack.c.l.b16 %v5113
    %v5634 = vunpack.c.l.b16 %v5114
    %v5635 = vunpack.c.l.b16 %v5115
    %v5636 = vunpack.c.l.b16 %v5116
    %v5637 = vunpack.c.l.b16 %v5117
    %v5638 = vunpack.c.l.b16 %v5118
    %v5639 = vunpack.c.l.b16 %v5119
    %v5640 = vunpack.c.l.b16 %v5120
    %v5641 = vunpack.c.l.b16 %v5121
    %v5642 = vunpack.c.l.b16 %v5122
    %v5643 = vunpack.c.l.b16 %v5123
    %v5644 = vunpack.c.l.b16 %v5124
    %v5645 = vunpack.c.l.b16 %v5125
    %v5646 = vunpack.c.l.b16 %v5126
    %v5647 = vunpack.c.l.b16 %v5127
    %v5648 = vunpack.c.l.b16 %v5128
    %v5649 = vunpack.c.l.b16 %v5129
    %v5650 = vunpack.c.l.b16 %v5130
    %v5651 = vunpack.c.l.b16 %v5131
    %v5652 = vunpack.c.l.b16 %v5132
    %v5653 = vunpack.c.l.b16 %v5133
    %v5654 = vunpack.c.l.b16 %v5134
    %v5655 = vunpack.c.l.b16 %v5135
    %v5656 = vunpack.c.l.b16 %v5136
    %v5657 = vunpack.c.l.b16 %v5137
    %v5658 = vunpack.c.l.b16 %v5138
    %v5659 = vunpack.c.l.b16 %v5139
    %v5660 = vunpack.c.l.b16 %v5140
    %v5661 = vunpack.c.l.b16 %v5141
    %v5662 = vunpack.c.l.b16 %v5142
    %v5663 = vunpack.c.l.b16 %v5143
    %v5664 = vunpack.c.l.b16 %v5144
    %v5665 = vunpack.c.l.b16 %v5145
    %v5666 = vunpack.c.l.b16 %v5146
    %v5667 = vunpack.c.l.b16 %v5147
    %v5668 = vunpack.c.l.b16 %v5148
    %v5669 = vunpack.c.l.b16 %v5149
    %v5670 = vunpack.c.l.b16 %v5150
    %v5671 = vunpack.c.l.b16 %v5151
    %v5672 = vunpack.c.l.b16 %v5152
    %v5673 = vunpack.c.l.b16 %v5153
    %v5674 = vunpack.c.l.b16 %v5154
    %v5675 = vunpack.c.l.b16 %v5155
    %v5676 = vunpack.c.l.b16 %v5156
    %v5677 = vunpack.c.l.b16 %v5157
    %v5678 = vunpack.c.l.b16 %v5158
    %v5679 = vunpack.c.l.b16 %v5159
    %v5680 = vunpack.c.l.b16 %v5160
    %v5681 = vunpack.c.l.b16 %v5161
    %v5682 = vunpack.c.l.b16 %v5162
    %v5683 = vunpack.c.l.b16 %v5163
    %v5684 = vunpack.c.l.b16 %v5164
    %v5685 = vunpack.c.l.b16 %v5165
    %v5686 = vunpack.c.l.b16 %v5166
    %v5687 = vunpack.c.l.b16 %v5167
    %v5688 = vunpack.c.l.b16 %v5168
    %v5689 = vunpack.c.l.b16 %v5169
    %v5690 = vunpack.c.l.b16 %v5170
    %v5691 = vunpack.c.l.b16 %v5171
    %v5692 = vunpack.c.l.b16 %v5172
    %v5693 = vunpack.c.l.b16 %v5173
    %v5694 = vunpack.c.l.b16 %v5174
    %v5695 = vunpack.c.l.b16 %v5175
    %v5696 = vunpack.c.l.b16 %v5176
    %v5697 = vunpack.c.l.b16 %v5177
    %v5698 = vunpack.c.l.b16 %v5178
    %v5699 = vunpack.c.l.b16 %v5179
    %v5700 = vunpack.c.l.b16 %v5180
    %v5701 = vunpack.c.l.b16 %v5181
    %v5702 = vunpack.c.l.b16 %v5182
    %v5703 = vunpack.c.l.b16 %v5183
    %v5704 = vunpack.c.l.b16 %v5184
    %v5705 = vunpack.c.l.b16 %v5185
    %v5706 = vunpack.c.l.b16 %v5186
    %v5707 = vunpack.c.l.b16 %v5187
    %v5708 = vunpack.c.l.b16 %v5188
    %v5709 = vunpack.c.l.b16 %v5189
    %v5710 = vunpack.c.l.b16 %v5190
    %v5711 = vunpack.c.l.b16 %v5191
    %v5712 = vunpack.c.l.b16 %v5192
    %v5713 = vunpack.c.l.b16 %v5193
    %v5714 = vunpack.c.l.b16 %v5194
    %v5715 = vunpack.c.l.b16 %v5195
    %v5716 = vunpack.c.l.b16 %v5196
    %v5717 = vunpack.c.l.b16 %v5197
    %v5718 = vunpack.c.l.b16 %v5198
    %v5719 = vunpack.c.l.b16 %v5199
    %v5720 = vunpack.c.l.b16 %v5200
    %v5721 = vunpack.c.l.b16 %v5201
    %v5722 = vunpack.c.l.b16 %v5202
    %v5723 = vunpack.c.l.b16 %v5203
    %v5724 = vunpack.c.l.b16 %v5204
    %v5725 = vunpack.c.l.b16 %v5205
    %v5726 = vunpack.c.l.b16 %v5206
    %v5727 = vunpack.c.l.b16 %v5207
    %v5728 = vunpack.c.l.b16 %v5208
    %v5729 = vunpack.c.l.b16 %v5209
    %v5730 = vunpack.c.l.b16 %v5210
    %v5731 = vunpack.c.l.b16 %v5211
    %v5732 = vunpack.c.l.b16 %v5212
    %v5733 = vunpack.c.l.b16 %v5213
    %v5734 = vunpack.c.l.b16 %v5214
    %v5735 = vunpack.c.l.b16 %v5215
    %v5736 = vunpack.c.l.b16 %v5216
    %v5737 = vunpack.c.l.b16 %v5217
    %v5738 = vunpack.c.l.b16 %v5218
    %v5739 = vunpack.c.l.b16 %v5219
    %v5740 = vunpack.c.l.b16 %v5220
    %v5741 = vunpack.c.l.b16 %v5221
    %v5742 = vunpack.c.l.b16 %v5222
    %v5743 = vunpack.c.l.b16 %v5223
    %v5744 = vunpack.c.l.b16 %v5224
    %v5745 = vunpack.c.l.b16 %v5225
    %v5746 = vunpack.c.l.b16 %v5226
    %v5747 = vunpack.c.l.b16 %v5227
    %v5748 = vunpack.c.l.b16 %v5228
    %v5749 = vunpack.c.l.b16 %v5229
    %v5750 = vunpack.c.l.b16 %v5230
    %v5751 = vunpack.c.l.b16 %v5231
    %v5752 = vunpack.c.l.b16 %v5232
    %v5753 = vunpack.c.l.b16 %v5233
    %v5754 = vunpack.c.l.b16 %v5234
    %v5755 = vunpack.c.l.b16 %v5235
    %v5756 = vunpack.c.l.b16 %v5236
    %v5757 = vunpack.c.l.b16 %v5237
    %v5758 = vunpack.c.l.b16 %v5238
    %v5759 = vunpack.c.l.b16 %v5239
    %v5760 = vunpack.c.l.b16 %v5240
    %v5761 = vunpack.c.l.b16 %v5241
    %v5762 = vunpack.c.l.b16 %v5242
    %v5763 = vunpack.c.l.b16 %v5243
    %v5764 = vunpack.c.l.b16 %v5244
    %v5765 = vunpack.c.l.b16 %v5245
    %v5766 = vunpack.c.l.b16 %v5246
    %v5767 = vunpack.c.l.b16 %v5247
    %v5768 = vunpack.c.l.b16 %v5248
    %v5769 = vunpack.c.l.b16 %v5249
    %v5770 = vunpack.c.l.b16 %v5250
    %v5771 = vunpack.c.l.b16 %v5251
    %v5772 = vunpack.c.l.b16 %v5252
    %v5773 = vunpack.c.l.b16 %v5253
    %v5774 = vunpack.c.l.b16 %v5254
    %v5775 = vunpack.c.l.b16 %v5255
    %v5776 = vunpack.c.l.b16 %v5256
    %v5777 = vunpack.c.l.b16 %v5257
    %v5778 = vunpack.c.l.b16 %v5258
    %v5779 = vunpack.c.l.b16 %v5259
    %v5780 = vunpack.c.l.b16 %v5260
    %v5781 = vunpack.c.l.b16 %v5261
    %v5782 = vunpack.c.l.b16 %v5262
    %v5783 = vunpack.c.l.b16 %v5263
    %v5784 = vunpack.c.l.b16 %v5264
    %v5785 = vunpack.c.l.b16 %v5265
    %v5786 = vunpack.c.l.b16 %v5266
    %v5787 = vpack.c.b16 %v5532, %v5531
    %v5788 = vpack.c.b16 %v5534, %v5533
    %v5789 = vpack.c.b16 %v5536, %v5535
    %v5790 = vpack.c.b16 %v5538, %v5537
    %v5791 = vpack.c.b16 %v5540, %v5539
    %v5792 = vpack.c.b16 %v5542, %v5541
    %v5793 = vpack.c.b16 %v5544, %v5543
    %v5794 = vpack.c.b16 %v5546, %v5545
    %v5795 = vpack.c.b16 %v5548, %v5547
    %v5796 = vpack.c.b16 %v5550, %v5549
    %v5797 = vpack.c.b16 %v5552, %v5551
    %v5798 = vpack.c.b16 %v5554, %v5553
    %v5799 = vpack.c.b16 %v5556, %v5555
    %v5800 = vpack.c.b16 %v5558, %v5557
    %v5801 = vpack.c.b16 %v5560, %v5559
    %v5802 = vpack.c.b16 %v5562, %v5561
    %v5803 = vpack.c.b16 %v5564, %v5563
    %v5804 = vpack.c.b16 %v5566, %v5565
    %v5805 = vpack.c.b16 %v5568, %v5567
    %v5806 = vpack.c.b16 %v5570, %v5569
    %v5807 = vpack.c.b16 %v5572, %v5571
    %v5808 = vpack.c.b16 %v5574, %v5573
    %v5809 = vpack.c.b16 %v5576, %v5575
    %v5810 = vpack.c.b16 %v5578, %v5577
    %v5811 = vpack.c.b16 %v5580, %v5579
    %v5812 = vpack.c.b16 %v5582, %v5581
    %v5813 = vpack.c.b16 %v5584, %v5583
    %v5814 = vpack.c.b16 %v5586, %v5585
    %v5815 = vpack.c.b16 %v5588, %v5587
    %v5816 = vpack.c.b16 %v5590, %v5589
    %v5817 = vpack.c.b16 %v5592, %v5591
    %v5818 = vpack.c.b16 %v5594, %v5593
    %v5819 = vpack.c.b16 %v5596, %v5595
    %v5820 = vpack.c.b16 %v5598, %v5597
    %v5821 = vpack.c.b16 %v5600, %v5599
    %v5822 = vpack.c.b16 %v5602, %v5601
    %v5823 = vpack.c.b16 %v5604, %v5603
    %v5824 = vpack.c.b16 %v5606, %v5605
    %v5825 = vpack.c.b16 %v5608, %v5607
    %v5826 = vpack.c.b16 %v5610, %v5609
    %v5827 = vpack.c.b16 %v5612, %v5611
    %v5828 = vpack.c.b16 %v5614, %v5613
    %v5829 = vpack.c.b16 %v5616, %v5615
    %v5830 = vpack.c.b16 %v5618, %v5617
    %v5831 = vpack.c.b16 %v5620, %v5619
    %v5832 = vpack.c.b16 %v5622, %v5621
    %v5833 = vpack.c.b16 %v5624, %v5623
    %v5834 = vpack.c.b16 %v5626, %v5625
    %v5835 = vpack.c.b16 %v5628, %v5627
    %v5836 = vpack.c.b16 %v5630, %v5629
    %v5837 = vpack.c.b16 %v5632, %v5631
    %v5838 = vpack.c.b16 %v5634, %v5633
    %v5839 = vpack.c.b16 %v5636, %v5635
    %v5840 = vpack.c.b16 %v5638, %v5637
    %v5841 = vpack.c.b16 %v5640, %v5639
    %v5842 = vpack.c.b16 %v5642, %v5641
    %v5843 = vpack.c.b16 %v5644, %v5643
    %v5844 = vpack.c.b16 %v5646, %v5645
    %v5845 = vpack.c.b16 %v5648, %v5647
    %v5846 = vpack.c.b16 %v5650, %v5649
    %v5847 = vpack.c.b16 %v5652, %v5651
    %v5848 = vpack.c.b16 %v5654, %v5653
    %v5849 = vpack.c.b16 %v5656, %v5655
    %v5850 = vpack.c.b16 %v5658, %v5657
    %v5851 = vpack.c.b16 %v5660, %v5659
    %v5852 = vpack.c.b16 %v5662, %v5661
    %v5853 = vpack.c.b16 %v5664, %v5663
    %v5854 = vpack.c.b16 %v5666, %v5665
    %v5855 = vpack.c.b16 %v5668, %v5667
    %v5856 = vpack.c.b16 %v5670, %v5669
    %v5857 = vpack.c.b16 %v5672, %v5671
    %v5858 = vpack.c.b16 %v5674, %v5673
    %v5859 = vpack.c.b16 %v5676, %v5675
    %v5860 = vpack.c.b16 %v5678, %v5677
    %v5861 = vpack.c.b16 %v5680, %v5679
    %v5862 = vpack.c.b16 %v5682, %v5681
    %v5863 = vpack.c.b16 %v5684, %v5683
    %v5864 = vpack.c.b16 %v5686, %v5685
    %v5865 = vpack.c.b16 %v5688, %v5687
    %v5866 = vpack.c.b16 %v5690, %v5689
    %v5867 = vpack.c.b16 %v5692, %v5691
    %v5868 = vpack.c.b16 %v5694, %v5693
    %v5869 = vpack.c.b16 %v5696, %v5695
    %v5870 = vpack.c.b16 %v5698, %v5697
    %v5871 = vpack.c.b16 %v5700, %v5699
    %v5872 = vpack.c.b16 %v5702, %v5701
    %v5873 = vpack.c.b16 %v5704, %v5703
    %v5874 = vpack.c.b16 %v5706, %v5705
    %v5875 = vpack.c.b16 %v5708, %v5707
    %v5876 = vpack.c.b16 %v5710, %v5709
    %v5877 = vpack.c.b16 %v5712, %v5711
    %v5878 = vpack.c.b16 %v5714, %v5713
    %v5879 = vpack.c.b16 %v5716, %v5715
    %v5880 = vpack.c.b16 %v5718, %v5717
    %v5881 = vpack.c.b16 %v5720, %v5719
    %v5882 = vpack.c.b16 %v5722, %v5721
    %v5883 = vpack.c.b16 %v5724, %v5723
    %v5884 = vpack.c.b16 %v5726, %v5725
    %v5885 = vpack.c.b16 %v5728, %v5727
    %v5886 = vpack.c.b16 %v5730, %v5729
    %v5887 = vpack.c.b16 %v5732, %v5731
    %v5888 = vpack.c.b16 %v5734, %v5733
    %v5889 = vpack.c.b16 %v5736, %v5735
    %v5890 = vpack.c.b16 %v5738, %v5737
    %v5891 = vpack.c.b16 %v5740, %v5739
    %v5892 = vpack.c.b16 %v5742, %v5741
    %v5893 = vpack.c.b16 %v5744, %v5743
    %v5894 = vpack.c.b16 %v5746, %v5745
    %v5895 = vpack.c.b16 %v5748, %v5747
    %v5896 = vpack.c.b16 %v5750, %v5749
    %v5897 = vpack.c.b16 %v5752, %v5751
    %v5898 = vpack.c.b16 %v5754, %v5753
    %v5899 = vpack.c.b16 %v5756, %v5755
    %v5900 = vpack.c.b16 %v5758, %v5757
    %v5901 = vpack.c.b16 %v5760, %v5759
    %v5902 = vpack.c.b16 %v5762, %v5761
    %v5903 = vpack.c.b16 %v5764, %v5763
    %v5904 = vpack.c.b16 %v5766, %v5765
    %v5905 = vpack.c.b16 %v5768, %v5767
    %v5906 = vpack.c.b16 %v5770, %v5769
    %v5907 = vpack.c.b16 %v5772, %v5771
    %v5908 = vpack.c.b16 %v5774, %v5773
    %v5909 = vpack.c.b16 %v5776, %v5775
    %v5910 = vpack.c.b16 %v5778, %v5777
    %v5911 = vpack.c.b16 %v5780, %v5779
    %v5912 = vpack.c.b16 %v5782, %v5781
    %v5913 = vpack.c.b16 %v5784, %v5783
    %v5914 = vpack.c.b16 %v5786, %v5785
    %6043 = vmatprep.subr.bf16.mxu0 0
    %6044 = vmatpush1.bf16.msra.mxu0 %v5794
    %6045 = vmatprep.subr.bf16.mxu0 0
    %6046 = vmatpush1.bf16.msra.mxu0 %v5793
    %6047 = vmatprep.subr.bf16.mxu0 0
    %6048 = vmatpush1.bf16.msra.mxu0 %v5792
    %6049 = vmatprep.subr.bf16.mxu0 0
    %6050 = vmatpush1.bf16.msra.mxu0 %v5791
    %6051 = vmatprep.subr.bf16.mxu0 0
    %6052 = vmatpush1.bf16.msra.mxu0 %v5790
    %6053 = vmatprep.subr.bf16.mxu0 0
    %6054 = vmatpush1.bf16.msra.mxu0 %v5789
    %6055 = vmatprep.subr.bf16.mxu0 0
    %6056 = vmatpush1.bf16.msra.mxu0 %v5788
    %6057 = vmatprep.subr.bf16.mxu0 0
    %6058 = vmatpush1.bf16.msra.mxu0 %v5787
    %6059 = vmatprep.subr.bf16.mxu0 0
    %6060 = vmatpush2.bf16.msra.mxu0 %v5802
    %6061 = vmatprep.subr.bf16.mxu0 0
    %6062 = vmatpush2.bf16.msra.mxu0 %v5801
    %6063 = vmatprep.subr.bf16.mxu0 0
    %6064 = vmatpush2.bf16.msra.mxu0 %v5800
    %6065 = vmatprep.subr.bf16.mxu0 0
    %6066 = vmatpush2.bf16.msra.mxu0 %v5799
    %6067 = vmatprep.subr.bf16.mxu0 0
    %6068 = vmatpush2.bf16.msra.mxu0 %v5798
    %6069 = vmatprep.subr.bf16.mxu0 0
    %6070 = vmatpush2.bf16.msra.mxu0 %v5797
    %6071 = vmatprep.subr.bf16.mxu0 0
    %6072 = vmatpush2.bf16.msra.mxu0 %v5796
    %6073 = vmatprep.subr.bf16.mxu0 0
    %6074 = vmatpush2.bf16.msra.mxu0 %v5795
    %6075 = vmatprep.mubr.bf16.mxu0 %v4995
    %6076 = vmatmul.mubr.bf16.gmra.mxu0 %v4994
    %v6077 = vpop.f32.mrf.mxu0
    %v6078 = vadd.f32 %v5273, %v6077
    %v6079 = vpop.f32.mrf.mxu0
    %v6080 = vpop.f32.mrf.mxu0
    %v6081 = vadd.f32 %v5273, %v6080
    %v6082 = vpop.f32.mrf.mxu0
    %6083 = vdwg.mxu0
    %6084 = vmatprep.subr.bf16.mxu0 0
    %6085 = vmatpush1.bf16.msra.mxu0 %v5810
    %6086 = vmatprep.subr.bf16.mxu0 0
    %6087 = vmatpush1.bf16.msra.mxu0 %v5809
    %6088 = vmatprep.subr.bf16.mxu0 0
    %6089 = vmatpush1.bf16.msra.mxu0 %v5808
    %6090 = vmatprep.subr.bf16.mxu0 0
    %6091 = vmatpush1.bf16.msra.mxu0 %v5807
    %6092 = vmatprep.subr.bf16.mxu0 0
    %6093 = vmatpush1.bf16.msra.mxu0 %v5806
    %6094 = vmatprep.subr.bf16.mxu0 0
    %6095 = vmatpush1.bf16.msra.mxu0 %v5805
    %6096 = vmatprep.subr.bf16.mxu0 0
    %6097 = vmatpush1.bf16.msra.mxu0 %v5804
    %6098 = vmatprep.subr.bf16.mxu0 0
    %6099 = vmatpush1.bf16.msra.mxu0 %v5803
    %6100 = vmatprep.subr.bf16.mxu0 0
    %6101 = vmatpush2.bf16.msra.mxu0 %v5818
    %6102 = vmatprep.subr.bf16.mxu0 0
    %6103 = vmatpush2.bf16.msra.mxu0 %v5817
    %6104 = vmatprep.subr.bf16.mxu0 0
    %6105 = vmatpush2.bf16.msra.mxu0 %v5816
    %6106 = vmatprep.subr.bf16.mxu0 0
    %6107 = vmatpush2.bf16.msra.mxu0 %v5815
    %6108 = vmatprep.subr.bf16.mxu0 0
    %6109 = vmatpush2.bf16.msra.mxu0 %v5814
    %6110 = vmatprep.subr.bf16.mxu0 0
    %6111 = vmatpush2.bf16.msra.mxu0 %v5813
    %6112 = vmatprep.subr.bf16.mxu0 0
    %6113 = vmatpush2.bf16.msra.mxu0 %v5812
    %6114 = vmatprep.subr.bf16.mxu0 0
    %6115 = vmatpush2.bf16.msra.mxu0 %v5811
    %6116 = vmatprep.mubr.bf16.mxu0 %v4997
    %6117 = vmatmul.mubr.bf16.gmra.mxu0 %v4996
    %v6118 = vpop.f32.mrf.mxu0
    %v6119 = vadd.f32 %v6078, %v6118
    %v6120 = vpop.f32.mrf.mxu0
    %v6121 = vpop.f32.mrf.mxu0
    %v6122 = vadd.f32 %v6081, %v6121
    %v6123 = vpop.f32.mrf.mxu0
    %6124 = vdwg.mxu0
    %6125 = vmatprep.subr.bf16.mxu0 0
    %6126 = vmatpush1.bf16.msra.mxu0 %v5826
    %6127 = vmatprep.subr.bf16.mxu0 0
    %6128 = vmatpush1.bf16.msra.mxu0 %v5825
    %6129 = vmatprep.subr.bf16.mxu0 0
    %6130 = vmatpush1.bf16.msra.mxu0 %v5824
    %6131 = vmatprep.subr.bf16.mxu0 0
    %6132 = vmatpush1.bf16.msra.mxu0 %v5823
    %6133 = vmatprep.subr.bf16.mxu0 0
    %6134 = vmatpush1.bf16.msra.mxu0 %v5822
    %6135 = vmatprep.subr.bf16.mxu0 0
    %6136 = vmatpush1.bf16.msra.mxu0 %v5821
    %6137 = vmatprep.subr.bf16.mxu0 0
    %6138 = vmatpush1.bf16.msra.mxu0 %v5820
    %6139 = vmatprep.subr.bf16.mxu0 0
    %6140 = vmatpush1.bf16.msra.mxu0 %v5819
    %6141 = vmatprep.subr.bf16.mxu0 0
    %6142 = vmatpush2.bf16.msra.mxu0 %v5834
    %6143 = vmatprep.subr.bf16.mxu0 0
    %6144 = vmatpush2.bf16.msra.mxu0 %v5833
    %6145 = vmatprep.subr.bf16.mxu0 0
    %6146 = vmatpush2.bf16.msra.mxu0 %v5832
    %6147 = vmatprep.subr.bf16.mxu0 0
    %6148 = vmatpush2.bf16.msra.mxu0 %v5831
    %6149 = vmatprep.subr.bf16.mxu0 0
    %6150 = vmatpush2.bf16.msra.mxu0 %v5830
    %6151 = vmatprep.subr.bf16.mxu0 0
    %6152 = vmatpush2.bf16.msra.mxu0 %v5829
    %6153 = vmatprep.subr.bf16.mxu0 0
    %6154 = vmatpush2.bf16.msra.mxu0 %v5828
    %6155 = vmatprep.subr.bf16.mxu0 0
    %6156 = vmatpush2.bf16.msra.mxu0 %v5827
    %6157 = vmatprep.mubr.bf16.mxu0 %v4999
    %6158 = vmatmul.mubr.bf16.gmra.mxu0 %v4998
    %v6159 = vpop.f32.mrf.mxu0
    %v6160 = vadd.f32 %v6119, %v6159
    %v6161 = vpop.f32.mrf.mxu0
    %v6162 = vpop.f32.mrf.mxu0
    %v6163 = vadd.f32 %v6122, %v6162
    %v6164 = vpop.f32.mrf.mxu0
    %6165 = vdwg.mxu0
    %6166 = vmatprep.subr.bf16.mxu0 0
    %6167 = vmatpush1.bf16.msra.mxu0 %v5842
    %6168 = vmatprep.subr.bf16.mxu0 0
    %6169 = vmatpush1.bf16.msra.mxu0 %v5841
    %6170 = vmatprep.subr.bf16.mxu0 0
    %6171 = vmatpush1.bf16.msra.mxu0 %v5840
    %6172 = vmatprep.subr.bf16.mxu0 0
    %6173 = vmatpush1.bf16.msra.mxu0 %v5839
    %6174 = vmatprep.subr.bf16.mxu0 0
    %6175 = vmatpush1.bf16.msra.mxu0 %v5838
    %6176 = vmatprep.subr.bf16.mxu0 0
    %6177 = vmatpush1.bf16.msra.mxu0 %v5837
    %6178 = vmatprep.subr.bf16.mxu0 0
    %6179 = vmatpush1.bf16.msra.mxu0 %v5836
    %6180 = vmatprep.subr.bf16.mxu0 0
    %6181 = vmatpush1.bf16.msra.mxu0 %v5835
    %6182 = vmatprep.subr.bf16.mxu0 0
    %6183 = vmatpush2.bf16.msra.mxu0 %v5850
    %6184 = vmatprep.subr.bf16.mxu0 0
    %6185 = vmatpush2.bf16.msra.mxu0 %v5849
    %6186 = vmatprep.subr.bf16.mxu0 0
    %6187 = vmatpush2.bf16.msra.mxu0 %v5848
    %6188 = vmatprep.subr.bf16.mxu0 0
    %6189 = vmatpush2.bf16.msra.mxu0 %v5847
    %6190 = vmatprep.subr.bf16.mxu0 0
    %6191 = vmatpush2.bf16.msra.mxu0 %v5846
    %6192 = vmatprep.subr.bf16.mxu0 0
    %6193 = vmatpush2.bf16.msra.mxu0 %v5845
    %6194 = vmatprep.subr.bf16.mxu0 0
    %6195 = vmatpush2.bf16.msra.mxu0 %v5844
    %6196 = vmatprep.subr.bf16.mxu0 0
    %6197 = vmatpush2.bf16.msra.mxu0 %v5843
    %6198 = vmatprep.mubr.bf16.mxu0 %v5001
    %6199 = vmatmul.mubr.bf16.gmra.mxu0 %v5000
    %v6200 = vpop.f32.mrf.mxu0
    %v6201 = vadd.f32 %v6160, %v6200
    %v6202 = vpop.f32.mrf.mxu0
    %v6203 = vpop.f32.mrf.mxu0
    %v6204 = vadd.f32 %v6163, %v6203
    %v6205 = vpop.f32.mrf.mxu0
    %6206 = vdwg.mxu0
    %6207 = vmatprep.subr.bf16.mxu0 0
    %6208 = vmatpush1.bf16.msra.mxu0 %v5858
    %6209 = vmatprep.subr.bf16.mxu0 0
    %6210 = vmatpush1.bf16.msra.mxu0 %v5857
    %6211 = vmatprep.subr.bf16.mxu0 0
    %6212 = vmatpush1.bf16.msra.mxu0 %v5856
    %6213 = vmatprep.subr.bf16.mxu0 0
    %6214 = vmatpush1.bf16.msra.mxu0 %v5855
    %6215 = vmatprep.subr.bf16.mxu0 0
    %6216 = vmatpush1.bf16.msra.mxu0 %v5854
    %6217 = vmatprep.subr.bf16.mxu0 0
    %6218 = vmatpush1.bf16.msra.mxu0 %v5853
    %6219 = vmatprep.subr.bf16.mxu0 0
    %6220 = vmatpush1.bf16.msra.mxu0 %v5852
    %6221 = vmatprep.subr.bf16.mxu0 0
    %6222 = vmatpush1.bf16.msra.mxu0 %v5851
    %6223 = vmatprep.subr.bf16.mxu0 0
    %6224 = vmatpush2.bf16.msra.mxu0 %v5866
    %6225 = vmatprep.subr.bf16.mxu0 0
    %6226 = vmatpush2.bf16.msra.mxu0 %v5865
    %6227 = vmatprep.subr.bf16.mxu0 0
    %6228 = vmatpush2.bf16.msra.mxu0 %v5864
    %6229 = vmatprep.subr.bf16.mxu0 0
    %6230 = vmatpush2.bf16.msra.mxu0 %v5863
    %6231 = vmatprep.subr.bf16.mxu0 0
    %6232 = vmatpush2.bf16.msra.mxu0 %v5862
    %6233 = vmatprep.subr.bf16.mxu0 0
    %6234 = vmatpush2.bf16.msra.mxu0 %v5861
    %6235 = vmatprep.subr.bf16.mxu0 0
    %6236 = vmatpush2.bf16.msra.mxu0 %v5860
    %6237 = vmatprep.subr.bf16.mxu0 0
    %6238 = vmatpush2.bf16.msra.mxu0 %v5859
    %6239 = vmatprep.mubr.bf16.mxu0 %v5003
    %6240 = vmatmul.mubr.bf16.gmra.mxu0 %v5002
    %v6241 = vpop.f32.mrf.mxu0
    %v6242 = vadd.f32 %v6201, %v6241
    %v6243 = vpop.f32.mrf.mxu0
    %v6244 = vpop.f32.mrf.mxu0
    %v6245 = vadd.f32 %v6204, %v6244
    %v6246 = vpop.f32.mrf.mxu0
    %6247 = vdwg.mxu0
    %6248 = vmatprep.subr.bf16.mxu0 0
    %6249 = vmatpush1.bf16.msra.mxu0 %v5874
    %6250 = vmatprep.subr.bf16.mxu0 0
    %6251 = vmatpush1.bf16.msra.mxu0 %v5873
    %6252 = vmatprep.subr.bf16.mxu0 0
    %6253 = vmatpush1.bf16.msra.mxu0 %v5872
    %6254 = vmatprep.subr.bf16.mxu0 0
    %6255 = vmatpush1.bf16.msra.mxu0 %v5871
    %6256 = vmatprep.subr.bf16.mxu0 0
    %6257 = vmatpush1.bf16.msra.mxu0 %v5870
    %6258 = vmatprep.subr.bf16.mxu0 0
    %6259 = vmatpush1.bf16.msra.mxu0 %v5869
    %6260 = vmatprep.subr.bf16.mxu0 0
    %6261 = vmatpush1.bf16.msra.mxu0 %v5868
    %6262 = vmatprep.subr.bf16.mxu0 0
    %6263 = vmatpush1.bf16.msra.mxu0 %v5867
    %6264 = vmatprep.subr.bf16.mxu0 0
    %6265 = vmatpush2.bf16.msra.mxu0 %v5882
    %6266 = vmatprep.subr.bf16.mxu0 0
    %6267 = vmatpush2.bf16.msra.mxu0 %v5881
    %6268 = vmatprep.subr.bf16.mxu0 0
    %6269 = vmatpush2.bf16.msra.mxu0 %v5880
    %6270 = vmatprep.subr.bf16.mxu0 0
    %6271 = vmatpush2.bf16.msra.mxu0 %v5879
    %6272 = vmatprep.subr.bf16.mxu0 0
    %6273 = vmatpush2.bf16.msra.mxu0 %v5878
    %6274 = vmatprep.subr.bf16.mxu0 0
    %6275 = vmatpush2.bf16.msra.mxu0 %v5877
    %6276 = vmatprep.subr.bf16.mxu0 0
    %6277 = vmatpush2.bf16.msra.mxu0 %v5876
    %6278 = vmatprep.subr.bf16.mxu0 0
    %6279 = vmatpush2.bf16.msra.mxu0 %v5875
    %6280 = vmatprep.mubr.bf16.mxu0 %v5005
    %6281 = vmatmul.mubr.bf16.gmra.mxu0 %v5004
    %v6282 = vpop.f32.mrf.mxu0
    %v6283 = vadd.f32 %v6242, %v6282
    %v6284 = vpop.f32.mrf.mxu0
    %v6285 = vpop.f32.mrf.mxu0
    %v6286 = vadd.f32 %v6245, %v6285
    %v6287 = vpop.f32.mrf.mxu0
    %6288 = vdwg.mxu0
    %6289 = vmatprep.subr.bf16.mxu0 0
    %6290 = vmatpush1.bf16.msra.mxu0 %v5890
    %6291 = vmatprep.subr.bf16.mxu0 0
    %6292 = vmatpush1.bf16.msra.mxu0 %v5889
    %6293 = vmatprep.subr.bf16.mxu0 0
    %6294 = vmatpush1.bf16.msra.mxu0 %v5888
    %6295 = vmatprep.subr.bf16.mxu0 0
    %6296 = vmatpush1.bf16.msra.mxu0 %v5887
    %6297 = vmatprep.subr.bf16.mxu0 0
    %6298 = vmatpush1.bf16.msra.mxu0 %v5886
    %6299 = vmatprep.subr.bf16.mxu0 0
    %6300 = vmatpush1.bf16.msra.mxu0 %v5885
    %6301 = vmatprep.subr.bf16.mxu0 0
    %6302 = vmatpush1.bf16.msra.mxu0 %v5884
    %6303 = vmatprep.subr.bf16.mxu0 0
    %6304 = vmatpush1.bf16.msra.mxu0 %v5883
    %6305 = vmatprep.subr.bf16.mxu0 0
    %6306 = vmatpush2.bf16.msra.mxu0 %v5898
    %6307 = vmatprep.subr.bf16.mxu0 0
    %6308 = vmatpush2.bf16.msra.mxu0 %v5897
    %6309 = vmatprep.subr.bf16.mxu0 0
    %6310 = vmatpush2.bf16.msra.mxu0 %v5896
    %6311 = vmatprep.subr.bf16.mxu0 0
    %6312 = vmatpush2.bf16.msra.mxu0 %v5895
    %6313 = vmatprep.subr.bf16.mxu0 0
    %6314 = vmatpush2.bf16.msra.mxu0 %v5894
    %6315 = vmatprep.subr.bf16.mxu0 0
    %6316 = vmatpush2.bf16.msra.mxu0 %v5893
    %6317 = vmatprep.subr.bf16.mxu0 0
    %6318 = vmatpush2.bf16.msra.mxu0 %v5892
    %6319 = vmatprep.subr.bf16.mxu0 0
    %6320 = vmatpush2.bf16.msra.mxu0 %v5891
    %6321 = vmatprep.mubr.bf16.mxu0 %v5007
    %6322 = vmatmul.mubr.bf16.gmra.mxu0 %v5006
    %v6323 = vpop.f32.mrf.mxu0
    %v6324 = vadd.f32 %v6283, %v6323
    %v6325 = vpop.f32.mrf.mxu0
    %v6326 = vpop.f32.mrf.mxu0
    %v6327 = vadd.f32 %v6286, %v6326
    %v6328 = vpop.f32.mrf.mxu0
    %6329 = vdwg.mxu0
    %6330 = vmatprep.subr.bf16.mxu0 0
    %6331 = vmatpush1.bf16.msra.mxu0 %v5906
    %6332 = vmatprep.subr.bf16.mxu0 0
    %6333 = vmatpush1.bf16.msra.mxu0 %v5905
    %6334 = vmatprep.subr.bf16.mxu0 0
    %6335 = vmatpush1.bf16.msra.mxu0 %v5904
    %6336 = vmatprep.subr.bf16.mxu0 0
    %6337 = vmatpush1.bf16.msra.mxu0 %v5903
    %6338 = vmatprep.subr.bf16.mxu0 0
    %6339 = vmatpush1.bf16.msra.mxu0 %v5902
    %6340 = vmatprep.subr.bf16.mxu0 0
    %6341 = vmatpush1.bf16.msra.mxu0 %v5901
    %6342 = vmatprep.subr.bf16.mxu0 0
    %6343 = vmatpush1.bf16.msra.mxu0 %v5900
    %6344 = vmatprep.subr.bf16.mxu0 0
    %6345 = vmatpush1.bf16.msra.mxu0 %v5899
    %6346 = vmatprep.subr.bf16.mxu0 0
    %6347 = vmatpush2.bf16.msra.mxu0 %v5914
    %6348 = vmatprep.subr.bf16.mxu0 0
    %6349 = vmatpush2.bf16.msra.mxu0 %v5913
    %6350 = vmatprep.subr.bf16.mxu0 0
    %6351 = vmatpush2.bf16.msra.mxu0 %v5912
    %6352 = vmatprep.subr.bf16.mxu0 0
    %6353 = vmatpush2.bf16.msra.mxu0 %v5911
    %6354 = vmatprep.subr.bf16.mxu0 0
    %6355 = vmatpush2.bf16.msra.mxu0 %v5910
    %6356 = vmatprep.subr.bf16.mxu0 0
    %6357 = vmatpush2.bf16.msra.mxu0 %v5909
    %6358 = vmatprep.subr.bf16.mxu0 0
    %6359 = vmatpush2.bf16.msra.mxu0 %v5908
    %6360 = vmatprep.subr.bf16.mxu0 0
    %6361 = vmatpush2.bf16.msra.mxu0 %v5907
    %6362 = vmatprep.mubr.bf16.mxu0 %v5009
    %6363 = vmatmul.mubr.bf16.gmra.mxu0 %v5008
    %v6364 = vpop.f32.mrf.mxu0
    %v6365 = vadd.f32 %v6324, %v6364
    %v6366 = vpop.f32.mrf.mxu0
    %v6367 = vpop.f32.mrf.mxu0
    %v6368 = vadd.f32 %v6327, %v6367
    %v6369 = vpop.f32.mrf.mxu0
    %6370 = vdwg.mxu0
    %v6371 = vadd.f32 %v4334, %v6365
    %v6372 = vadd.f32 %v4335, %v6368
    %s6373 = scalar_lea.vmem %s8, 1
    %v6374 = vld [vmem:[%s6373] sm:$0x1]
    %s6375 = scalar_lea.vmem %s9, 1
    %v6376 = vld [vmem:[%s6375] sm:$0x1]
    %v6377 = vsel %vm85, %v6371, 0.0
    %6378 = vadd.xlane.f32.xlu0 %v6377
    %v6379 = vpop.xlane.xlu0 %6378
    %v6380 = vsel %vm85, %v6372, 0.0
    %6381 = vadd.xlane.f32.xlu0 %v6380
    %v6382 = vpop.xlane.xlu0 %6381
    %v6383 = vmul.f32 %v6379, %v1140
    %v6384 = vmul.f32 %v6382, %v1140
    %v6385 = vsub.f32 %v6371, %v6383
    %v6386 = vsub.f32 %v6372, %v6384
    %v6387 = vmul.f32 %v6385, %v6385
    %v6388 = vmul.f32 %v6386, %v6386
    %v6389 = vsel %vm85, %v6387, 0.0
    %6390 = vadd.xlane.f32.xlu0 %v6389
    %v6391 = vpop.xlane.xlu0 %6390
    %v6392 = vsel %vm85, %v6388, 0.0
    %6393 = vadd.xlane.f32.xlu0 %v6392
    %v6394 = vpop.xlane.xlu0 %6393
    %v6395 = vmul.f32 %v6391, %v1140
    %v6396 = vmul.f32 %v6394, %v1140
    %v6397 = vadd.f32 %v6395, 1e-05
    %v6398 = vadd.f32 %v6396, 1e-05
    %v6399 = vrsqrt.pop %v6397
    %v6400 = vrsqrt.pop %v6398
    %v6401 = vmul.f32 %v6385, %v6399
    %v6402 = vmul.f32 %v6386, %v6400
    %v6404 = vlaneseq
    %v6405 = vshrl.u32 %v6404, 7
    %v6406 = vsub.s32 0, %v6405
    %v6407 = vrot.slane %v6374, %v6406
    %v6409 = vmul.f32 %v6401, %v6407
    %v6410 = vmul.f32 %v6402, %v6407
    %v6412 = vlaneseq
    %v6413 = vshrl.u32 %v6412, 7
    %v6414 = vsub.s32 0, %v6413
    %v6415 = vrot.slane %v6376, %v6414
    %v6417 = vadd.f32 %v6409, %v6415
    %v6418 = vadd.f32 %v6410, %v6415
    %v6419 = vld [vmem:[%s14] sm:$0xff]
    %v6420 = vld [vmem:[%s14 + $0x8] sm:$0xff]
    %v6421 = vmul.f32 %v6417, %v6419
    %v6422 = vmul.f32 %v6417, %v6420
    %v6423 = vmul.f32 %v6418, %v6419
    %v6424 = vmul.f32 %v6418, %v6420
    %v6425 = vsel %vm85, %v6421, 0.0
    %6426 = vadd.xlane.f32.xlu0 %v6425
    %v6427 = vpop.xlane.xlu0 %6426
    %v6428 = vsel %vm85, %v6422, 0.0
    %6429 = vadd.xlane.f32.xlu0 %v6428
    %v6430 = vpop.xlane.xlu0 %6429
    %v6431 = vsel %vm85, %v6423, 0.0
    %6432 = vadd.xlane.f32.xlu0 %v6431
    %v6433 = vpop.xlane.xlu0 %6432
    %v6434 = vsel %vm85, %v6424, 0.0
    %6435 = vadd.xlane.f32.xlu0 %v6434
    %v6436 = vpop.xlane.xlu0 %6435
    %v6441 = vlaneseq
    %v6442 = vand.u32 %v6441, 127
    %v6443 = vlaneseq
    %v6444 = vshrl.u32 %v6443, 7
    %v6445 = vsub.s32 %v6442, %v6444
    %v6446 = vrot.slane %v6427, %v6445
    %v6447 = vlaneseq
    %v6448 = vshrl.u32 %v6447, 7
    %v6449 = vsub.s32 %v6442, %v6448
    %v6450 = vrot.slane %v6430, %v6449
    %v6451 = vlaneseq
    %v6452 = vshrl.u32 %v6451, 7
    %v6453 = vsub.s32 %v6442, %v6452
    %v6454 = vrot.slane %v6433, %v6453
    %v6455 = vlaneseq
    %v6456 = vshrl.u32 %v6455, 7
    %v6457 = vsub.s32 %v6442, %v6456
    %v6458 = vrot.slane %v6436, %v6457
    %vm6459 = vcmask 1041409
    %v6460 = vsel %vm6459, %v6450, %v6446
    %v6461 = vsel %vm6459, %v6458, %v6454
    %vm6464 = vcmask 58368
    %v6465 = vsel %vm6464, %v6460, 0.0
    %6466 = vadd.xlane.f32.xlu0 %v6465
    %v6467 = vpop.xlane.xlu0 %6466
    %v6468 = vsel %vm6464, %v6461, 0.0
    %6469 = vadd.xlane.f32.xlu0 %v6468
    %v6470 = vpop.xlane.xlu0 %6469
    %v6471 = vld [vmem:[%s15] sm:$0x1]
    %v6473 = vlaneseq
    %v6474 = vshrl.u32 %v6473, 7
    %v6475 = vsub.s32 0, %v6474
    %v6476 = vrot.slane %v6471, %v6475
    %6478 = vbcast.lane.b32.xlu0 %v6476, 256
    %v6479 = vpop.permute.xlu0 %6478
    %v6481 = vadd.f32 %v6467, %v6479
    %v6482 = vadd.f32 %v6470, %v6479
    %6485 = vset.pattern.permute.xlu0 0
    %6486 = vperm.xlu0 %6485, %v6481
    %v6487 = vpop.permute.xlu0 %6486
    %6488 = vset.pattern.permute.xlu0 0
    %6489 = vperm.xlu0 %6488, %v6482
    %v6490 = vpop.permute.xlu0 %6489
    %v6491 = vlaneseq
    %v6492 = vshrl.u32 %v6491, 7
    %v6493 = vsub.s32 %v6442, %v6492
    %v6494 = vrot.slane %v6487, %v6493
    %v6495 = vlaneseq
    %v6496 = vshrl.u32 %v6495, 7
    %v6497 = vsub.s32 %v6442, %v6496
    %v6498 = vrot.slane %v6490, %v6497
    %v6499 = vsel %vm6459, %v6498, %v6494
    %vm6501 = vcmask 9216
    %6502 = vst.msk [vmem:[#allocation2] sm:$0x3] %vm6501, %v6499
    // Predicated region
    $region66: #{ad_transformer_forward.1} parent=1 // pred_check
      _
    $region67: #{ad_transformer_forward.1} parent=1 // pred_check_branch
      %6504 = sbr.rel (0) target = $region69
    $region68: #{ad_transformer_forward.1} parent=1 // pred_region
      %s6506 = ssub.s32 32, 32
      %6507 = vsyncadd [#allocation3], %s6506
      %s6509 = sshll.u32 [#allocation2], 4
      %s6510 = int_to_ptr.vmem [resolvable:$true] %s6509
      %6512 = dma.vmem_to_hbm [thread:$0]  %s6510, 32, %s16, [#allocation3]
    $region69: #{ad_transformer_forward.1} parent=1 // pred_fallthru
      _
    // Predicated region
    $region70: #{ad_transformer_forward.1} parent=1 // pred_check
      _
    $region71: #{ad_transformer_forward.1} parent=1 // pred_check_branch
      %6514 = sbr.rel (0) target = $region73
    $region72: #{ad_transformer_forward.1} parent=1 // pred_region
      %6515 = dma.done [#allocation3], 32
    $region73: #{ad_transformer_forward.1} parent=1 // pred_fallthru
      _
    %6516 = vsyncpa [#allocation3], 1

</llo_original>
